<compile_context>
chip_gen: v6e
topology: v6e:2x2x1
jax: 0.10.0
libtpu: 0.0.40
codegen_flags: <defaults>
</compile_context>

<pallas_src>
import functools

import jax
import jax.numpy as jnp
from jax import lax
from jax.experimental import pallas as pl
from jax.experimental.pallas import tpu as pltpu

EPS = 1e-5   # nn.InstanceNorm2d default eps (affine=False, no running stats)
COL0 = 16    # sublane-aligned column offset of the staged bf16 intermediate


@functools.lru_cache(maxsize=None)
def _vmem_limit_bytes():
    cap = 64 * 1024 * 1024
    try:
        info = pltpu.get_tpu_info()
        cap = int(getattr(info, "vmem_capacity_bytes", cap))
    except Exception:
        pass
    # leave headroom for the pipeline's double-buffered input/output blocks
    return min(int(cap * 3 // 4), 96 * 1024 * 1024)


# ---------------------------------------------------------------------------
# Fused kernel: conv1(s2) + IN + ReLU + conv2(s1) + IN + ReLU, one sample/step
# ---------------------------------------------------------------------------
def _make_kernel(Ho, Wo, Cin, Cout):
    R = Ho * Wo
    WPAD = COL0 + Wo  # staged width (halo col at COL0-1 for blk0, COL0+Wo-1 for blk1)

    def kernel(xph_ref, wq_ref, wr_ref, wc_ref, wk_ref, b1_ref,
               w2p_ref, w2s_ref, b2_ref, o_ref, y1p_ref):
        # xph_ref : (1, Ho+1, Wo+1, 4*Cin) bf16  phase-stacked padded input
        #           channel blocks ordered [p(0,1), p(0,0), p(1,0), p(1,1)]
        # wq_ref  : (4*Cin, Cout) bf16  conv1 quad taps   (dy,dx in {0,1}^2)
        # wr_ref  : (2*Cin, Cout) bf16  conv1 dy=2 edge   (taps (2,1),(2,0))
        # wc_ref  : (2*Cin, Cout) bf16  conv1 dx=2 edge   (taps (0,2),(1,2))
        # wk_ref  : (Cin,   Cout) bf16  conv1 corner tap  (2,2)
        # b1_ref  : (1, Cout) f32
        # w2p_ref : (3, 2*Cout, Cout) bf16  conv2 paired taps [w(dy,0); w(dy,1)]
        # w2s_ref : (3, Cout,   Cout) bf16  conv2 dx=2 taps
        # b2_ref  : (1, Cout) f32
        # o_ref   : (1, Cout, R) f32  NCHW output, spatial on lanes
        # y1p_ref : (Ho+2, WPAD, 2*Cout) bf16  staged intermediate (VMEM)

        # ---- conv1 (3x3, stride 2): 4 K-concat bf16 dots, f32 accumulate ----
        xq = xph_ref[0, 0:Ho, 0:Wo, :].reshape(R, 4 * Cin)
        acc = jnp.dot(xq, wq_ref[...], preferred_element_type=jnp.float32)
        xr = xph_ref[0, 1:Ho + 1, 0:Wo, 0:2 * Cin].reshape(R, 2 * Cin)
        acc = acc + jnp.dot(xr, wr_ref[...], preferred_element_type=jnp.float32)
        xc = xph_ref[0, 0:Ho, 1:Wo + 1, Cin:3 * Cin].reshape(R, 2 * Cin)
        acc = acc + jnp.dot(xc, wc_ref[...], preferred_element_type=jnp.float32)
        xk = xph_ref[0, 1:Ho + 1, 1:Wo + 1, Cin:2 * Cin].reshape(R, Cin)
        acc = acc + jnp.dot(xk, wk_ref[...], preferred_element_type=jnp.float32)
        y = acc + b1_ref[...]                                   # (R, Cout) f32

        # ---- InstanceNorm (two-pass stats) + ReLU, all in f32 ----
        mean = jnp.mean(y, axis=0, keepdims=True)
        yc = y - mean
        var = jnp.mean(yc * yc, axis=0, keepdims=True)
        y = jnp.maximum(yc * lax.rsqrt(var + EPS), 0.0)

        # ---- stage bf16 intermediate: blk0 = y at col+COL0, blk1 = y shifted
        #      one column left (so each staged column holds [y[c], y[c+1]]).
        # Zero only the 1-pixel halo, every step (scratch is uninitialized and
        # may be per-core; interior is fully overwritten below).
        zrow = jnp.zeros((1, Wo + 1, 2 * Cout), jnp.bfloat16)
        y1p_ref[0:1, COL0 - 1:COL0 + Wo, :] = zrow
        y1p_ref[Ho + 1:Ho + 2, COL0 - 1:COL0 + Wo, :] = zrow
        zcol = jnp.zeros((Ho, 1, Cout), jnp.bfloat16)
        y1p_ref[1:Ho + 1, COL0 - 1:COL0, 0:Cout] = zcol
        y1p_ref[1:Ho + 1, COL0 + Wo - 1:COL0 + Wo, Cout:2 * Cout] = zcol

        y_bf = y.reshape(Ho, Wo, Cout).astype(jnp.bfloat16)
        y1p_ref[1:Ho + 1, COL0:COL0 + Wo, 0:Cout] = y_bf
        y1p_ref[1:Ho + 1, COL0 - 1:COL0 - 1 + Wo, Cout:2 * Cout] = y_bf

        # ---- conv2 (3x3, stride 1): 3 K=2*Cout dots + 3 K=Cout dots ----
        acc2 = None
        for dy in range(3):      # paired taps (dx=0, dx=1)
            yp = y1p_ref[dy:dy + Ho, COL0 - 1:COL0 - 1 + Wo, :].reshape(R, 2 * Cout)
            d = jnp.dot(yp, w2p_ref[dy], preferred_element_type=jnp.float32)
            acc2 = d if acc2 is None else acc2 + d
        for dy in range(3):      # dx=2 taps via the shifted block
            ys = y1p_ref[dy:dy + Ho, COL0:COL0 + Wo, Cout:2 * Cout].reshape(R, Cout)
            acc2 = acc2 + jnp.dot(ys, w2s_ref[dy], preferred_element_type=jnp.float32)
        y2 = acc2 + b2_ref[...]

        mean2 = jnp.mean(y2, axis=0, keepdims=True)
        y2c = y2 - mean2
        var2 = jnp.mean(y2c * y2c, axis=0, keepdims=True)
        y2 = jnp.maximum(y2c * lax.rsqrt(var2 + EPS), 0.0)

        # lane-dense (Cout, R) store -> output is already NCHW
        o_ref[0] = y2.T

    return kernel


# ---------------------------------------------------------------------------
# Wrapper: layout prep (one cheap pass, fused by XLA) + pallas_call
# ---------------------------------------------------------------------------
def downsample_block(x_nchw, w1, b1, w2, b2):
    """DownsampleBlock forward. x: (N, Cin, H, W) -> (N, Cout, H//2, W//2)."""
    N, Cin, H, W = x_nchw.shape
    Cout = w1.shape[0]
    assert H % 2 == 0 and W % 2 == 0, "stride-2 conv path assumes even H, W"
    Ho, Wo = H // 2, W // 2
    Hq, Wq = Ho + 1, Wo + 1
    R = Ho * Wo
    # fail loudly on layouts the staging/store scheme does not expect
    assert Wo % 8 == 0 and R % 8 == 0, "expect Wo and Ho*Wo multiples of 8"

    # NCHW -> NHWC bf16, pad by 1, stack the 4 stride-2 phases on the channel
    # axis in the order [p(0,1), p(0,0), p(1,0), p(1,1)] so every conv1 tap
    # group is a contiguous channel slice inside the kernel.
    x = jnp.transpose(x_nchw, (0, 2, 3, 1)).astype(jnp.bfloat16)   # (N,H,W,Cin)
    xp = jnp.pad(x, ((0, 0), (1, 1), (1, 1), (0, 0)))              # (N,H+2,W+2,Cin)
    xph = jnp.concatenate(
        [xp[:, 0::2, 1::2, :], xp[:, 0::2, 0::2, :],
         xp[:, 1::2, 0::2, :], xp[:, 1::2, 1::2, :]], axis=-1)     # (N,Hq,Wq,4Cin)

    # conv1 weights, K-concatenated to match the phase/channel ordering
    wt = jnp.transpose(w1, (2, 3, 1, 0)).astype(jnp.bfloat16)      # (3,3,Cin,Cout)
    w_quad = jnp.concatenate([wt[0, 1], wt[0, 0], wt[1, 0], wt[1, 1]], axis=0)
    w_row2 = jnp.concatenate([wt[2, 1], wt[2, 0]], axis=0)          # dy=2 edge
    w_col2 = jnp.concatenate([wt[0, 2], wt[1, 2]], axis=0)          # dx=2 edge
    w_corn = wt[2, 2]                                               # (2,2) corner

    # conv2 weights: paired (dx=0,1) and single (dx=2) per dy
    w2t = jnp.transpose(w2, (2, 3, 1, 0)).astype(jnp.bfloat16)      # (3,3,Cout,Cout)
    w2_pair = jnp.stack(
        [jnp.concatenate([w2t[dy, 0], w2t[dy, 1]], axis=0) for dy in range(3)],
        axis=0)                                                     # (3,2Cout,Cout)
    w2_single = jnp.stack([w2t[dy, 2] for dy in range(3)], axis=0)  # (3,Cout,Cout)

    b1r = b1.reshape(1, Cout).astype(jnp.float32)
    b2r = b2.reshape(1, Cout).astype(jnp.float32)

    out = pl.pallas_call(
        _make_kernel(Ho, Wo, Cin, Cout),
        out_shape=jax.ShapeDtypeStruct((N, Cout, R), jnp.float32),
        grid=(N,),
        in_specs=[
            pl.BlockSpec((1, Hq, Wq, 4 * Cin), lambda n: (n, 0, 0, 0)),
            pl.BlockSpec((4 * Cin, Cout), lambda n: (0, 0)),
            pl.BlockSpec((2 * Cin, Cout), lambda n: (0, 0)),
            pl.BlockSpec((2 * Cin, Cout), lambda n: (0, 0)),
            pl.BlockSpec((Cin, Cout), lambda n: (0, 0)),
            pl.BlockSpec((1, Cout), lambda n: (0, 0)),
            pl.BlockSpec((3, 2 * Cout, Cout), lambda n: (0, 0, 0)),
            pl.BlockSpec((3, Cout, Cout), lambda n: (0, 0, 0)),
            pl.BlockSpec((1, Cout), lambda n: (0, 0)),
        ],
        out_specs=pl.BlockSpec((1, Cout, R), lambda n: (n, 0, 0)),
        scratch_shapes=[pltpu.VMEM((Ho + 2, COL0 + Wo, 2 * Cout), jnp.bfloat16)],
        compiler_params=pltpu.CompilerParams(
            dimension_semantics=("parallel",),
            vmem_limit_bytes=_vmem_limit_bytes(),
        ),
    )(xph, w_quad, w_row2, w_col2, w_corn, b1r, w2_pair, w2_single, b2r)

    # (N, Cout, Ho*Wo) is already NCHW-ordered; the reshape is free.
    return out.reshape(N, Cout, Ho, Wo)


# ---------------------------------------------------------------------------
# Pure-JAX reference (same bf16 matmul inputs / f32 math as the kernel)
# ---------------------------------------------------------------------------
def _ref_forward(x, w1, b1, w2, b2):
    def conv(x, w, b, stride):
        y = lax.conv_general_dilated(
            x.astype(jnp.bfloat16), w.astype(jnp.bfloat16),
            (stride, stride), ((1, 1), (1, 1)),
            dimension_numbers=("NCHW", "OIHW", "NCHW"),
            preferred_element_type=jnp.float32)
        return y + b[None, :, None, None].astype(jnp.float32)

    def inorm_relu(y):
        m = jnp.mean(y, axis=(2, 3), keepdims=True)
        v = jnp.mean((y - m) ** 2, axis=(2, 3), keepdims=True)
        return jnp.maximum((y - m) * lax.rsqrt(v + EPS), 0.0)

    y = inorm_relu(conv(x, w1, b1, 2))
    return inorm_relu(conv(y, w2, b2, 1))


# ---------------------------------------------------------------------------
if __name__ == "__main__":
    # Encoder's down1: DownsampleBlock(base_channels=64 -> 128), small spatial.
    N, Cin, Cout, H, W = 2, 64, 128, 32, 32

    key = jax.random.PRNGKey(0)
    k_x, k_w1, k_b1, k_w2, k_b2 = jax.random.split(key, 5)

    x = jax.random.normal(k_x, (N, Cin, H, W), jnp.float32)
    w1 = jax.random.normal(k_w1, (Cout, Cin, 3, 3), jnp.float32) * 0.1
    b1 = jax.random.normal(k_b1, (Cout,), jnp.float32) * 0.1
    w2 = jax.random.normal(k_w2, (Cout, Cout, 3, 3), jnp.float32) * 0.1
    b2 = jax.random.normal(k_b2, (Cout,), jnp.float32) * 0.1

    out = jax.block_until_ready(jax.jit(downsample_block)(x, w1, b1, w2, b2))
    ref = jax.block_until_ready(_ref_forward(x, w1, b1, w2, b2))

    assert out.shape == (N, Cout, H // 2, W // 2), out.shape
    max_err = float(jnp.max(jnp.abs(out - ref)))
    assert jnp.allclose(out, ref, rtol=2e-2, atol=2e-2), max_err

    print("KERNEL_OK")
</pallas_src>

<mosaic_0001>
module attributes {stable_mosaic.version = 11 : i64} {
  func.func @kernel(%arg0: i32, %arg1: memref<1x17x17x256xbf16, #tpu.memory_space<vmem>>, %arg2: memref<256x128xbf16, #tpu.memory_space<vmem>>, %arg3: memref<128x128xbf16, #tpu.memory_space<vmem>>, %arg4: memref<128x128xbf16, #tpu.memory_space<vmem>>, %arg5: memref<64x128xbf16, #tpu.memory_space<vmem>>, %arg6: memref<1x128xf32, #tpu.memory_space<vmem>>, %arg7: memref<3x256x128xbf16, #tpu.memory_space<vmem>>, %arg8: memref<3x128x128xbf16, #tpu.memory_space<vmem>>, %arg9: memref<1x128xf32, #tpu.memory_space<vmem>>, %arg10: memref<1x128x256xf32, #tpu.memory_space<vmem>>, %arg11: memref<18x32x256xbf16, #tpu.memory_space<vmem>>) attributes {dimension_semantics = [#tpu.dimension_semantics<parallel>], iteration_bounds = array<i64: 2>, scalar_prefetch = 0 : i64, scratch_operands = 1 : i64, tpu.core_type = #tpu.core_type<tc>, window_params = [{transform_indices = @transform_0, window_bounds = array<i64: 1, 17, 17, 256>}, {pipeline_mode = #tpu.pipeline_mode<synchronous>, transform_indices = @transform_1, window_bounds = array<i64: 256, 128>}, {pipeline_mode = #tpu.pipeline_mode<synchronous>, transform_indices = @transform_2, window_bounds = array<i64: 128, 128>}, {pipeline_mode = #tpu.pipeline_mode<synchronous>, transform_indices = @transform_3, window_bounds = array<i64: 128, 128>}, {pipeline_mode = #tpu.pipeline_mode<synchronous>, transform_indices = @transform_4, window_bounds = array<i64: 64, 128>}, {pipeline_mode = #tpu.pipeline_mode<synchronous>, transform_indices = @transform_5, window_bounds = array<i64: 1, 128>}, {pipeline_mode = #tpu.pipeline_mode<synchronous>, transform_indices = @transform_6, window_bounds = array<i64: 3, 256, 128>}, {pipeline_mode = #tpu.pipeline_mode<synchronous>, transform_indices = @transform_7, window_bounds = array<i64: 3, 128, 128>}, {pipeline_mode = #tpu.pipeline_mode<synchronous>, transform_indices = @transform_8, window_bounds = array<i64: 1, 128>}, {transform_indices = @transform_9, window_bounds = array<i64: 1, 128, 256>}]} {
    %c0 = arith.constant 0 : index
    %c0_0 = arith.constant 0 : index
    %c0_1 = arith.constant 0 : index
    %c0_2 = arith.constant 0 : index
    %0 = vector.load %arg1[%c0, %c0_0, %c0_1, %c0_2] : memref<1x17x17x256xbf16, #tpu.memory_space<vmem>>, vector<1x16x16x256xbf16>
    %1 = vector.shape_cast %0 : vector<1x16x16x256xbf16> to vector<16x16x256xbf16>
    %2 = vector.shape_cast %1 : vector<16x16x256xbf16> to vector<256x256xbf16>
    %c0_3 = arith.constant 0 : index
    %c0_4 = arith.constant 0 : index
    %3 = vector.load %arg2[%c0_3, %c0_4] : memref<256x128xbf16, #tpu.memory_space<vmem>>, vector<256x128xbf16>
    %cst = arith.constant dense<0.000000e+00> : vector<256x128xf32>
    %4 = tpu.matmul %2, %3, %cst {dimension_numbers = #tpu.dot_dimension_numbers<[1], [0], [0], [1], [0, 0, 1, 1], [], []>} : vector<256x256xbf16>, vector<256x128xbf16>, vector<256x128xf32> -> vector<256x128xf32>
    %c0_5 = arith.constant 0 : index
    %c1 = arith.constant 1 : index
    %c0_6 = arith.constant 0 : index
    %c0_7 = arith.constant 0 : index
    %5 = vector.load %arg1[%c0_5, %c1, %c0_6, %c0_7] : memref<1x17x17x256xbf16, #tpu.memory_space<vmem>>, vector<1x16x16x128xbf16>
    %6 = vector.shape_cast %5 : vector<1x16x16x128xbf16> to vector<16x16x128xbf16>
    %7 = vector.shape_cast %6 : vector<16x16x128xbf16> to vector<256x128xbf16>
    %c0_8 = arith.constant 0 : index
    %c0_9 = arith.constant 0 : index
    %8 = vector.load %arg3[%c0_8, %c0_9] : memref<128x128xbf16, #tpu.memory_space<vmem>>, vector<128x128xbf16>
    %cst_10 = arith.constant dense<0.000000e+00> : vector<256x128xf32>
    %9 = tpu.matmul %7, %8, %cst_10 {dimension_numbers = #tpu.dot_dimension_numbers<[1], [0], [0], [1], [0, 0, 1, 1], [], []>} : vector<256x128xbf16>, vector<128x128xbf16>, vector<256x128xf32> -> vector<256x128xf32>
    %10 = arith.addf %4, %9 : vector<256x128xf32>
    %c0_11 = arith.constant 0 : index
    %c0_12 = arith.constant 0 : index
    %c1_13 = arith.constant 1 : index
    %c64 = arith.constant 64 : index
    %11 = vector.load %arg1[%c0_11, %c0_12, %c1_13, %c64] : memref<1x17x17x256xbf16, #tpu.memory_space<vmem>>, vector<1x16x16x128xbf16>
    %12 = vector.shape_cast %11 : vector<1x16x16x128xbf16> to vector<16x16x128xbf16>
    %13 = vector.shape_cast %12 : vector<16x16x128xbf16> to vector<256x128xbf16>
    %c0_14 = arith.constant 0 : index
    %c0_15 = arith.constant 0 : index
    %14 = vector.load %arg4[%c0_14, %c0_15] : memref<128x128xbf16, #tpu.memory_space<vmem>>, vector<128x128xbf16>
    %cst_16 = arith.constant dense<0.000000e+00> : vector<256x128xf32>
    %15 = tpu.matmul %13, %14, %cst_16 {dimension_numbers = #tpu.dot_dimension_numbers<[1], [0], [0], [1], [0, 0, 1, 1], [], []>} : vector<256x128xbf16>, vector<128x128xbf16>, vector<256x128xf32> -> vector<256x128xf32>
    %16 = arith.addf %10, %15 : vector<256x128xf32>
    %c0_17 = arith.constant 0 : index
    %c1_18 = arith.constant 1 : index
    %c1_19 = arith.constant 1 : index
    %c64_20 = arith.constant 64 : index
    %17 = vector.load %arg1[%c0_17, %c1_18, %c1_19, %c64_20] : memref<1x17x17x256xbf16, #tpu.memory_space<vmem>>, vector<1x16x16x64xbf16>
    %18 = vector.shape_cast %17 : vector<1x16x16x64xbf16> to vector<16x16x64xbf16>
    %19 = vector.shape_cast %18 : vector<16x16x64xbf16> to vector<256x64xbf16>
    %c0_21 = arith.constant 0 : index
    %c0_22 = arith.constant 0 : index
    %20 = vector.load %arg5[%c0_21, %c0_22] : memref<64x128xbf16, #tpu.memory_space<vmem>>, vector<64x128xbf16>
    %cst_23 = arith.constant dense<0.000000e+00> : vector<256x128xf32>
    %21 = tpu.matmul %19, %20, %cst_23 {dimension_numbers = #tpu.dot_dimension_numbers<[1], [0], [0], [1], [0, 0, 1, 1], [], []>} : vector<256x64xbf16>, vector<64x128xbf16>, vector<256x128xf32> -> vector<256x128xf32>
    %22 = arith.addf %16, %21 : vector<256x128xf32>
    %c0_24 = arith.constant 0 : index
    %c0_25 = arith.constant 0 : index
    %23 = vector.load %arg6[%c0_24, %c0_25] : memref<1x128xf32, #tpu.memory_space<vmem>>, vector<1x128xf32>
    %24 = vector.broadcast %23 : vector<1x128xf32> to vector<256x128xf32>
    %25 = arith.addf %22, %24 : vector<256x128xf32>
    %cst_26 = arith.constant dense<0.000000e+00> : vector<128xf32>
    %26 = vector.multi_reduction <add>, %25, %cst_26 [0] : vector<256x128xf32> to vector<128xf32>
    %27 = vector.shape_cast %26 : vector<128xf32> to vector<1x128xf32>
    %cst_27 = arith.constant 2.560000e+02 : f32
    %28 = vector.broadcast %cst_27 : f32 to vector<1x128xf32>
    %29 = arith.divf %27, %28 : vector<1x128xf32>
    %30 = vector.broadcast %29 : vector<1x128xf32> to vector<256x128xf32>
    %31 = arith.subf %25, %30 : vector<256x128xf32>
    %32 = arith.mulf %31, %31 : vector<256x128xf32>
    %cst_28 = arith.constant dense<0.000000e+00> : vector<128xf32>
    %33 = vector.multi_reduction <add>, %32, %cst_28 [0] : vector<256x128xf32> to vector<128xf32>
    %34 = vector.shape_cast %33 : vector<128xf32> to vector<1x128xf32>
    %cst_29 = arith.constant 2.560000e+02 : f32
    %35 = vector.broadcast %cst_29 : f32 to vector<1x128xf32>
    %36 = arith.divf %34, %35 : vector<1x128xf32>
    %cst_30 = arith.constant 9.99999974E-6 : f32
    %37 = vector.broadcast %cst_30 : f32 to vector<1x128xf32>
    %38 = arith.addf %36, %37 : vector<1x128xf32>
    %39 = math.rsqrt %38 : vector<1x128xf32>
    %40 = vector.broadcast %39 : vector<1x128xf32> to vector<256x128xf32>
    %41 = arith.mulf %31, %40 : vector<256x128xf32>
    %cst_31 = arith.constant 0.000000e+00 : f32
    %42 = vector.broadcast %cst_31 : f32 to vector<256x128xf32>
    %43 = arith.maximumf %41, %42 : vector<256x128xf32>
    %cst_32 = arith.constant 0.000000e+00 : bf16
    %44 = vector.broadcast %cst_32 : bf16 to vector<1x17x256xbf16>
    %c0_33 = arith.constant 0 : index
    %c15 = arith.constant 15 : index
    %c0_34 = arith.constant 0 : index
    %45 = vector.load %arg11[%c0_33, %c15, %c0_34] : memref<18x32x256xbf16, #tpu.memory_space<vmem>>, vector<1x17x256xbf16>
    tpu.vector_store %arg11[%c0_33, %c15, %c0_34], %44 {strides = array<i32>} : memref<18x32x256xbf16, #tpu.memory_space<vmem>>, vector<1x17x256xbf16>,
    %c17 = arith.constant 17 : index
    %c15_35 = arith.constant 15 : index
    %c0_36 = arith.constant 0 : index
    %46 = vector.load %arg11[%c17, %c15_35, %c0_36] : memref<18x32x256xbf16, #tpu.memory_space<vmem>>, vector<1x17x256xbf16>
    tpu.vector_store %arg11[%c17, %c15_35, %c0_36], %44 {strides = array<i32>} : memref<18x32x256xbf16, #tpu.memory_space<vmem>>, vector<1x17x256xbf16>,
    %cst_37 = arith.constant 0.000000e+00 : bf16
    %47 = vector.broadcast %cst_37 : bf16 to vector<16x1x128xbf16>
    %c1_38 = arith.constant 1 : index
    %c15_39 = arith.constant 15 : index
    %c0_40 = arith.constant 0 : index
    %48 = vector.load %arg11[%c1_38, %c15_39, %c0_40] : memref<18x32x256xbf16, #tpu.memory_space<vmem>>, vector<16x1x128xbf16>
    tpu.vector_store %arg11[%c1_38, %c15_39, %c0_40], %47 {strides = array<i32>} : memref<18x32x256xbf16, #tpu.memory_space<vmem>>, vector<16x1x128xbf16>,
    %c1_41 = arith.constant 1 : index
    %c31 = arith.constant 31 : index
    %c128 = arith.constant 128 : index
    %49 = vector.load %arg11[%c1_41, %c31, %c128] : memref<18x32x256xbf16, #tpu.memory_space<vmem>>, vector<16x1x128xbf16>
    tpu.vector_store %arg11[%c1_41, %c31, %c128], %47 {strides = array<i32>} : memref<18x32x256xbf16, #tpu.memory_space<vmem>>, vector<16x1x128xbf16>,
    %50 = vector.shape_cast %43 : vector<256x128xf32> to vector<16x16x128xf32>
    %51 = arith.truncf %50 : vector<16x16x128xf32> to vector<16x16x128xbf16>
    %c1_42 = arith.constant 1 : index
    %c16 = arith.constant 16 : index
    %c0_43 = arith.constant 0 : index
    %52 = vector.load %arg11[%c1_42, %c16, %c0_43] : memref<18x32x256xbf16, #tpu.memory_space<vmem>>, vector<16x16x128xbf16>
    tpu.vector_store %arg11[%c1_42, %c16, %c0_43], %51 {strides = array<i32>} : memref<18x32x256xbf16, #tpu.memory_space<vmem>>, vector<16x16x128xbf16>,
    %c1_44 = arith.constant 1 : index
    %c15_45 = arith.constant 15 : index
    %c128_46 = arith.constant 128 : index
    %53 = vector.load %arg11[%c1_44, %c15_45, %c128_46] : memref<18x32x256xbf16, #tpu.memory_space<vmem>>, vector<16x16x128xbf16>
    tpu.vector_store %arg11[%c1_44, %c15_45, %c128_46], %51 {strides = array<i32>} : memref<18x32x256xbf16, #tpu.memory_space<vmem>>, vector<16x16x128xbf16>,
    %c0_47 = arith.constant 0 : index
    %c15_48 = arith.constant 15 : index
    %c0_49 = arith.constant 0 : index
    %54 = vector.load %arg11[%c0_47, %c15_48, %c0_49] : memref<18x32x256xbf16, #tpu.memory_space<vmem>>, vector<16x16x256xbf16>
    %55 = vector.shape_cast %54 : vector<16x16x256xbf16> to vector<256x256xbf16>
    %c0_50 = arith.constant 0 : index
    %c0_51 = arith.constant 0 : index
    %c0_52 = arith.constant 0 : index
    %56 = vector.load %arg7[%c0_50, %c0_51, %c0_52] : memref<3x256x128xbf16, #tpu.memory_space<vmem>>, vector<1x256x128xbf16>
    %57 = vector.shape_cast %56 : vector<1x256x128xbf16> to vector<256x128xbf16>
    %cst_53 = arith.constant dense<0.000000e+00> : vector<256x128xf32>
    %58 = tpu.matmul %55, %57, %cst_53 {dimension_numbers = #tpu.dot_dimension_numbers<[1], [0], [0], [1], [0, 0, 1, 1], [], []>} : vector<256x256xbf16>, vector<256x128xbf16>, vector<256x128xf32> -> vector<256x128xf32>
    %c1_54 = arith.constant 1 : index
    %c15_55 = arith.constant 15 : index
    %c0_56 = arith.constant 0 : index
    %59 = vector.load %arg11[%c1_54, %c15_55, %c0_56] : memref<18x32x256xbf16, #tpu.memory_space<vmem>>, vector<16x16x256xbf16>
    %60 = vector.shape_cast %59 : vector<16x16x256xbf16> to vector<256x256xbf16>
    %c1_57 = arith.constant 1 : index
    %c0_58 = arith.constant 0 : index
    %c0_59 = arith.constant 0 : index
    %61 = vector.load %arg7[%c1_57, %c0_58, %c0_59] : memref<3x256x128xbf16, #tpu.memory_space<vmem>>, vector<1x256x128xbf16>
    %62 = vector.shape_cast %61 : vector<1x256x128xbf16> to vector<256x128xbf16>
    %cst_60 = arith.constant dense<0.000000e+00> : vector<256x128xf32>
    %63 = tpu.matmul %60, %62, %cst_60 {dimension_numbers = #tpu.dot_dimension_numbers<[1], [0], [0], [1], [0, 0, 1, 1], [], []>} : vector<256x256xbf16>, vector<256x128xbf16>, vector<256x128xf32> -> vector<256x128xf32>
    %64 = arith.addf %58, %63 : vector<256x128xf32>
    %c2 = arith.constant 2 : index
    %c15_61 = arith.constant 15 : index
    %c0_62 = arith.constant 0 : index
    %65 = vector.load %arg11[%c2, %c15_61, %c0_62] : memref<18x32x256xbf16, #tpu.memory_space<vmem>>, vector<16x16x256xbf16>
    %66 = vector.shape_cast %65 : vector<16x16x256xbf16> to vector<256x256xbf16>
    %c2_63 = arith.constant 2 : index
    %c0_64 = arith.constant 0 : index
    %c0_65 = arith.constant 0 : index
    %67 = vector.load %arg7[%c2_63, %c0_64, %c0_65] : memref<3x256x128xbf16, #tpu.memory_space<vmem>>, vector<1x256x128xbf16>
    %68 = vector.shape_cast %67 : vector<1x256x128xbf16> to vector<256x128xbf16>
    %cst_66 = arith.constant dense<0.000000e+00> : vector<256x128xf32>
    %69 = tpu.matmul %66, %68, %cst_66 {dimension_numbers = #tpu.dot_dimension_numbers<[1], [0], [0], [1], [0, 0, 1, 1], [], []>} : vector<256x256xbf16>, vector<256x128xbf16>, vector<256x128xf32> -> vector<256x128xf32>
    %70 = arith.addf %64, %69 : vector<256x128xf32>
    %c0_67 = arith.constant 0 : index
    %c16_68 = arith.constant 16 : index
    %c128_69 = arith.constant 128 : index
    %71 = vector.load %arg11[%c0_67, %c16_68, %c128_69] : memref<18x32x256xbf16, #tpu.memory_space<vmem>>, vector<16x16x128xbf16>
    %72 = vector.shape_cast %71 : vector<16x16x128xbf16> to vector<256x128xbf16>
    %c0_70 = arith.constant 0 : index
    %c0_71 = arith.constant 0 : index
    %c0_72 = arith.constant 0 : index
    %73 = vector.load %arg8[%c0_70, %c0_71, %c0_72] : memref<3x128x128xbf16, #tpu.memory_space<vmem>>, vector<1x128x128xbf16>
    %74 = vector.shape_cast %73 : vector<1x128x128xbf16> to vector<128x128xbf16>
    %cst_73 = arith.constant dense<0.000000e+00> : vector<256x128xf32>
    %75 = tpu.matmul %72, %74, %cst_73 {dimension_numbers = #tpu.dot_dimension_numbers<[1], [0], [0], [1], [0, 0, 1, 1], [], []>} : vector<256x128xbf16>, vector<128x128xbf16>, vector<256x128xf32> -> vector<256x128xf32>
    %76 = arith.addf %70, %75 : vector<256x128xf32>
    %c1_74 = arith.constant 1 : index
    %c16_75 = arith.constant 16 : index
    %c128_76 = arith.constant 128 : index
    %77 = vector.load %arg11[%c1_74, %c16_75, %c128_76] : memref<18x32x256xbf16, #tpu.memory_space<vmem>>, vector<16x16x128xbf16>
    %78 = vector.shape_cast %77 : vector<16x16x128xbf16> to vector<256x128xbf16>
    %c1_77 = arith.constant 1 : index
    %c0_78 = arith.constant 0 : index
    %c0_79 = arith.constant 0 : index
    %79 = vector.load %arg8[%c1_77, %c0_78, %c0_79] : memref<3x128x128xbf16, #tpu.memory_space<vmem>>, vector<1x128x128xbf16>
    %80 = vector.shape_cast %79 : vector<1x128x128xbf16> to vector<128x128xbf16>
    %cst_80 = arith.constant dense<0.000000e+00> : vector<256x128xf32>
    %81 = tpu.matmul %78, %80, %cst_80 {dimension_numbers = #tpu.dot_dimension_numbers<[1], [0], [0], [1], [0, 0, 1, 1], [], []>} : vector<256x128xbf16>, vector<128x128xbf16>, vector<256x128xf32> -> vector<256x128xf32>
    %82 = arith.addf %76, %81 : vector<256x128xf32>
    %c2_81 = arith.constant 2 : index
    %c16_82 = arith.constant 16 : index
    %c128_83 = arith.constant 128 : index
    %83 = vector.load %arg11[%c2_81, %c16_82, %c128_83] : memref<18x32x256xbf16, #tpu.memory_space<vmem>>, vector<16x16x128xbf16>
    %84 = vector.shape_cast %83 : vector<16x16x128xbf16> to vector<256x128xbf16>
    %c2_84 = arith.constant 2 : index
    %c0_85 = arith.constant 0 : index
    %c0_86 = arith.constant 0 : index
    %85 = vector.load %arg8[%c2_84, %c0_85, %c0_86] : memref<3x128x128xbf16, #tpu.memory_space<vmem>>, vector<1x128x128xbf16>
    %86 = vector.shape_cast %85 : vector<1x128x128xbf16> to vector<128x128xbf16>
    %cst_87 = arith.constant dense<0.000000e+00> : vector<256x128xf32>
    %87 = tpu.matmul %84, %86, %cst_87 {dimension_numbers = #tpu.dot_dimension_numbers<[1], [0], [0], [1], [0, 0, 1, 1], [], []>} : vector<256x128xbf16>, vector<128x128xbf16>, vector<256x128xf32> -> vector<256x128xf32>
    %88 = arith.addf %82, %87 : vector<256x128xf32>
    %c0_88 = arith.constant 0 : index
    %c0_89 = arith.constant 0 : index
    %89 = vector.load %arg9[%c0_88, %c0_89] : memref<1x128xf32, #tpu.memory_space<vmem>>, vector<1x128xf32>
    %90 = vector.broadcast %89 : vector<1x128xf32> to vector<256x128xf32>
    %91 = arith.addf %88, %90 : vector<256x128xf32>
    %cst_90 = arith.constant dense<0.000000e+00> : vector<128xf32>
    %92 = vector.multi_reduction <add>, %91, %cst_90 [0] : vector<256x128xf32> to vector<128xf32>
    %93 = vector.shape_cast %92 : vector<128xf32> to vector<1x128xf32>
    %cst_91 = arith.constant 2.560000e+02 : f32
    %94 = vector.broadcast %cst_91 : f32 to vector<1x128xf32>
    %95 = arith.divf %93, %94 : vector<1x128xf32>
    %96 = vector.broadcast %95 : vector<1x128xf32> to vector<256x128xf32>
    %97 = arith.subf %91, %96 : vector<256x128xf32>
    %98 = arith.mulf %97, %97 : vector<256x128xf32>
    %cst_92 = arith.constant dense<0.000000e+00> : vector<128xf32>
    %99 = vector.multi_reduction <add>, %98, %cst_92 [0] : vector<256x128xf32> to vector<128xf32>
    %100 = vector.shape_cast %99 : vector<128xf32> to vector<1x128xf32>
    %cst_93 = arith.constant 2.560000e+02 : f32
    %101 = vector.broadcast %cst_93 : f32 to vector<1x128xf32>
    %102 = arith.divf %100, %101 : vector<1x128xf32>
    %cst_94 = arith.constant 9.99999974E-6 : f32
    %103 = vector.broadcast %cst_94 : f32 to vector<1x128xf32>
    %104 = arith.addf %102, %103 : vector<1x128xf32>
    %105 = math.rsqrt %104 : vector<1x128xf32>
    %106 = vector.broadcast %105 : vector<1x128xf32> to vector<256x128xf32>
    %107 = arith.mulf %97, %106 : vector<256x128xf32>
    %cst_95 = arith.constant 0.000000e+00 : f32
    %108 = vector.broadcast %cst_95 : f32 to vector<256x128xf32>
    %109 = arith.maximumf %107, %108 : vector<256x128xf32>
    %110 = tpu.transpose %109, [1, 0] : vector<256x128xf32> -> vector<128x256xf32>
    %c0_96 = arith.constant 0 : index
    %c0_97 = arith.constant 0 : index
    %c0_98 = arith.constant 0 : index
    %111 = vector.load %arg10[%c0_96, %c0_97, %c0_98] : memref<1x128x256xf32, #tpu.memory_space<vmem>>, vector<1x128x256xf32>
    %112 = vector.shape_cast %111 : vector<1x128x256xf32> to vector<128x256xf32>
    %113 = vector.shape_cast %110 : vector<128x256xf32> to vector<1x128x256xf32>
    tpu.vector_store %arg10[%c0_96, %c0_97, %c0_98], %113 {strides = array<i32>} : memref<1x128x256xf32, #tpu.memory_space<vmem>>, vector<1x128x256xf32>,
    return
  }
  func.func @transform_0(%arg0: i32) -> (i32, i32, i32, i32) {
    %c0_i32 = arith.constant 0 : i32
    %c0_i32_0 = arith.constant 0 : i32
    %c0_i32_1 = arith.constant 0 : i32
    %c0_i32_2 = arith.constant 0 : i32
    return %arg0, %c0_i32, %c0_i32_0, %c0_i32_1 : i32, i32, i32, i32
  }
  func.func @transform_1(%arg0: i32) -> (i32, i32) {
    %c0_i32 = arith.constant 0 : i32
    %c0_i32_0 = arith.constant 0 : i32
    %c0_i32_1 = arith.constant 0 : i32
    return %c0_i32, %c0_i32_0 : i32, i32
  }
  func.func @transform_2(%arg0: i32) -> (i32, i32) {
    %c0_i32 = arith.constant 0 : i32
    %c0_i32_0 = arith.constant 0 : i32
    %c0_i32_1 = arith.constant 0 : i32
    return %c0_i32, %c0_i32_0 : i32, i32
  }
  func.func @transform_3(%arg0: i32) -> (i32, i32) {
    %c0_i32 = arith.constant 0 : i32
    %c0_i32_0 = arith.constant 0 : i32
    %c0_i32_1 = arith.constant 0 : i32
    return %c0_i32, %c0_i32_0 : i32, i32
  }
  func.func @transform_4(%arg0: i32) -> (i32, i32) {
    %c0_i32 = arith.constant 0 : i32
    %c0_i32_0 = arith.constant 0 : i32
    %c0_i32_1 = arith.constant 0 : i32
    return %c0_i32, %c0_i32_0 : i32, i32
  }
  func.func @transform_5(%arg0: i32) -> (i32, i32) {
    %c0_i32 = arith.constant 0 : i32
    %c0_i32_0 = arith.constant 0 : i32
    %c0_i32_1 = arith.constant 0 : i32
    return %c0_i32, %c0_i32_0 : i32, i32
  }
  func.func @transform_6(%arg0: i32) -> (i32, i32, i32) {
    %c0_i32 = arith.constant 0 : i32
    %c0_i32_0 = arith.constant 0 : i32
    %c0_i32_1 = arith.constant 0 : i32
    %c0_i32_2 = arith.constant 0 : i32
    return %c0_i32, %c0_i32_0, %c0_i32_1 : i32, i32, i32
  }
  func.func @transform_7(%arg0: i32) -> (i32, i32, i32) {
    %c0_i32 = arith.constant 0 : i32
    %c0_i32_0 = arith.constant 0 : i32
    %c0_i32_1 = arith.constant 0 : i32
    %c0_i32_2 = arith.constant 0 : i32
    return %c0_i32, %c0_i32_0, %c0_i32_1 : i32, i32, i32
  }
  func.func @transform_8(%arg0: i32) -> (i32, i32) {
    %c0_i32 = arith.constant 0 : i32
    %c0_i32_0 = arith.constant 0 : i32
    %c0_i32_1 = arith.constant 0 : i32
    return %c0_i32, %c0_i32_0 : i32, i32
  }
  func.func @transform_9(%arg0: i32) -> (i32, i32, i32) {
    %c0_i32 = arith.constant 0 : i32
    %c0_i32_0 = arith.constant 0 : i32
    %c0_i32_1 = arith.constant 0 : i32
    return %arg0, %c0_i32, %c0_i32_0 : i32, i32, i32
  }
}

</mosaic_0001>

<llo_original>
// kernel: downsample_block.1
$region0: #{downsample_block.1}
  #allocation0 [shape = 'u32[]', space=smem, size = 0x4, offset = 0x4, fixed_abs, tag = 'smem constant byte address 0x4 - core index']
  #allocation1 [shape = 'u32[144,128]{1,0:T(1,128)}', space=vmem, size = 0x12000, scoped, tag = 'internal scratch']
  #allocation2 [shape = 'bf16[18,32,256]{2,1,0:T(8,128)(2,1)}', space=vmem, size = 0x48000, scoped, tag = 'scratch operand']
  %s0 = inlined_call_operand.vmem [shape: bf16[2,17,17,256], index: 0, kind: input, shape index: {}]
  %s1 = inlined_call_operand.vmem [shape: bf16[256,128], index: 1, kind: input, shape index: {}]
  %s2 = inlined_call_operand.vmem [shape: bf16[128,128], index: 2, kind: input, shape index: {}]
  %s3 = inlined_call_operand.vmem [shape: bf16[128,128], index: 3, kind: input, shape index: {}]
  %s4 = inlined_call_operand.vmem [shape: bf16[64,128], index: 4, kind: input, shape index: {}]
  %s5 = inlined_call_operand.vmem [shape: f32[1,128], index: 5, kind: input, shape index: {}]
  %s6 = inlined_call_operand.vmem [shape: bf16[3,256,128], index: 6, kind: input, shape index: {}]
  %s7 = inlined_call_operand.vmem [shape: bf16[3,128,128], index: 7, kind: input, shape index: {}]
  %s8 = inlined_call_operand.vmem [shape: f32[1,128], index: 8, kind: input, shape index: {}]
  %s9 = inlined_call_operand.vmem [shape: f32[2,128,256], index: 9, kind: output, shape index: {}]
  %s10 = sld [smem:[#allocation0]]
  $region69: #{downsample_block.1} parent=0
    _
  %s12 = ssub.s32 1, %s10
  %s13 = scalar_select 0, %s12, %s10
  loop: start=0, step=1, limit=4
  $region2: #{downsample_block.1} parent=0 // loop_pre_header
    _
  $region3: #{downsample_block.1} parent=0 // loop_header
    %s15 = sphi 0, %s19
    %p16 = scmp.ge.s32.totalorder %s15, 4
    %s25 = sphi 0, %s27
    %s28 = sphi 0, %s25
    %s29 = sphi 0, %s28
    %s45 = sphi 0, %s29
    %s49 = sphi 0, %s49
    %s51 = sphi 0, %s49
    %s52 = sphi 0, %s51
    %s66 = sphi 0, %s52
    %s70 = sphi 0, %s70
    %s72 = sphi 0, %s70
    %s73 = sphi 0, %s72
    %s87 = sphi 0, %s73
    %s91 = sphi 0, %s91
    %s93 = sphi 0, %s91
    %s94 = sphi 0, %s93
    %s108 = sphi 0, %s94
    %s112 = sphi 0, %s112
    %s114 = sphi 0, %s112
    %s115 = sphi 0, %s114
    %s129 = sphi 0, %s115
    %s133 = sphi 0, %s133
    %s135 = sphi 0, %s133
    %s136 = sphi 0, %s135
    %s150 = sphi 0, %s136
    %s154 = sphi 0, %s154
    %s156 = sphi 0, %s154
    %s157 = sphi 0, %s156
    %s171 = sphi 0, %s157
    %s175 = sphi 0, %s175
    %s177 = sphi 0, %s175
    %s178 = sphi 0, %s177
    %s192 = sphi 0, %s178
    %s196 = sphi 0, %s196
    %s198 = sphi 0, %s196
    %s199 = sphi 0, %s198
    %s213 = sphi 0, %s199
    %s219 = sphi 0, %s221
    %s222 = sphi 0, %s219
    %s223 = sphi 0, %s222
    %s239 = sphi 0, %s223
  $region4: #{downsample_block.1} parent=0 // loop_header_branch
    %18 = sbr.rel (%p16) target = $region8
  $region5: #{downsample_block.1} parent=0 // loop_body
    %s20 = ssub.s32 %s15, 1
    %s21 = ssub.s32 %s15, 2
    %s22 = sadd.s32 %s15, 1
    %s23 = ssub.s32 %s15, %s22
    %p24 = scmp.eq.s32.totalorder %s23, 0
    %s26 = sadd.s32 %s25, 1
    %s27 = scalar_select %p24, %s25, %s26
    %p30 = pneg %p24
    %p31 = scmp.eq.s32.totalorder %s15, 1
    %p32 = por %p30, %p31
    %p33 = scmp.ne.s32.totalorder %s25, %s28
    %p34 = scmp.eq.s32.totalorder %s15, 0
    %p35 = por %p33, %p34
    %p36 = scmp.ne.s32.totalorder %s25, %s28
    %p37 = scmp.eq.s32.totalorder %s20, 1
    %p38 = por %p36, %p37
    %p39 = scmp.ne.s32.totalorder %s28, %s29
    %p40 = scmp.eq.s32.totalorder %s20, 0
    %p41 = por %p39, %p40
    %p42 = scmp.ne.s32.totalorder %s28, %s29
    %p43 = scmp.eq.s32.totalorder %s21, 1
    %p44 = por %p42, %p43
    %p46 = scmp.ne.s32.totalorder %s29, %s45
    %p47 = scmp.eq.s32.totalorder %s21, 0
    %p48 = por %p46, %p47
    %s50 = sadd.s32 %s49, 1
    %p53 = scmp.eq.s32.totalorder %s15, 1
    %p54 = scmp.ne.s32.totalorder %s49, %s51
    %p55 = scmp.eq.s32.totalorder %s15, 0
    %p56 = por %p54, %p55
    %p57 = scmp.ne.s32.totalorder %s49, %s51
    %p58 = scmp.eq.s32.totalorder %s20, 1
    %p59 = por %p57, %p58
    %p60 = scmp.ne.s32.totalorder %s51, %s52
    %p61 = scmp.eq.s32.totalorder %s20, 0
    %p62 = por %p60, %p61
    %p63 = scmp.ne.s32.totalorder %s51, %s52
    %p64 = scmp.eq.s32.totalorder %s21, 1
    %p65 = por %p63, %p64
    %p67 = scmp.ne.s32.totalorder %s52, %s66
    %p68 = scmp.eq.s32.totalorder %s21, 0
    %p69 = por %p67, %p68
    %s71 = sadd.s32 %s70, 1
    %p74 = scmp.eq.s32.totalorder %s15, 1
    %p75 = scmp.ne.s32.totalorder %s70, %s72
    %p76 = scmp.eq.s32.totalorder %s15, 0
    %p77 = por %p75, %p76
    %p78 = scmp.ne.s32.totalorder %s70, %s72
    %p79 = scmp.eq.s32.totalorder %s20, 1
    %p80 = por %p78, %p79
    %p81 = scmp.ne.s32.totalorder %s72, %s73
    %p82 = scmp.eq.s32.totalorder %s20, 0
    %p83 = por %p81, %p82
    %p84 = scmp.ne.s32.totalorder %s72, %s73
    %p85 = scmp.eq.s32.totalorder %s21, 1
    %p86 = por %p84, %p85
    %p88 = scmp.ne.s32.totalorder %s73, %s87
    %p89 = scmp.eq.s32.totalorder %s21, 0
    %p90 = por %p88, %p89
    %s92 = sadd.s32 %s91, 1
    %p95 = scmp.eq.s32.totalorder %s15, 1
    %p96 = scmp.ne.s32.totalorder %s91, %s93
    %p97 = scmp.eq.s32.totalorder %s15, 0
    %p98 = por %p96, %p97
    %p99 = scmp.ne.s32.totalorder %s91, %s93
    %p100 = scmp.eq.s32.totalorder %s20, 1
    %p101 = por %p99, %p100
    %p102 = scmp.ne.s32.totalorder %s93, %s94
    %p103 = scmp.eq.s32.totalorder %s20, 0
    %p104 = por %p102, %p103
    %p105 = scmp.ne.s32.totalorder %s93, %s94
    %p106 = scmp.eq.s32.totalorder %s21, 1
    %p107 = por %p105, %p106
    %p109 = scmp.ne.s32.totalorder %s94, %s108
    %p110 = scmp.eq.s32.totalorder %s21, 0
    %p111 = por %p109, %p110
    %s113 = sadd.s32 %s112, 1
    %p116 = scmp.eq.s32.totalorder %s15, 1
    %p117 = scmp.ne.s32.totalorder %s112, %s114
    %p118 = scmp.eq.s32.totalorder %s15, 0
    %p119 = por %p117, %p118
    %p120 = scmp.ne.s32.totalorder %s112, %s114
    %p121 = scmp.eq.s32.totalorder %s20, 1
    %p122 = por %p120, %p121
    %p123 = scmp.ne.s32.totalorder %s114, %s115
    %p124 = scmp.eq.s32.totalorder %s20, 0
    %p125 = por %p123, %p124
    %p126 = scmp.ne.s32.totalorder %s114, %s115
    %p127 = scmp.eq.s32.totalorder %s21, 1
    %p128 = por %p126, %p127
    %p130 = scmp.ne.s32.totalorder %s115, %s129
    %p131 = scmp.eq.s32.totalorder %s21, 0
    %p132 = por %p130, %p131
    %s134 = sadd.s32 %s133, 1
    %p137 = scmp.eq.s32.totalorder %s15, 1
    %p138 = scmp.ne.s32.totalorder %s133, %s135
    %p139 = scmp.eq.s32.totalorder %s15, 0
    %p140 = por %p138, %p139
    %p141 = scmp.ne.s32.totalorder %s133, %s135
    %p142 = scmp.eq.s32.totalorder %s20, 1
    %p143 = por %p141, %p142
    %p144 = scmp.ne.s32.totalorder %s135, %s136
    %p145 = scmp.eq.s32.totalorder %s20, 0
    %p146 = por %p144, %p145
    %p147 = scmp.ne.s32.totalorder %s135, %s136
    %p148 = scmp.eq.s32.totalorder %s21, 1
    %p149 = por %p147, %p148
    %p151 = scmp.ne.s32.totalorder %s136, %s150
    %p152 = scmp.eq.s32.totalorder %s21, 0
    %p153 = por %p151, %p152
    %s155 = sadd.s32 %s154, 1
    %p158 = scmp.eq.s32.totalorder %s15, 1
    %p159 = scmp.ne.s32.totalorder %s154, %s156
    %p160 = scmp.eq.s32.totalorder %s15, 0
    %p161 = por %p159, %p160
    %p162 = scmp.ne.s32.totalorder %s154, %s156
    %p163 = scmp.eq.s32.totalorder %s20, 1
    %p164 = por %p162, %p163
    %p165 = scmp.ne.s32.totalorder %s156, %s157
    %p166 = scmp.eq.s32.totalorder %s20, 0
    %p167 = por %p165, %p166
    %p168 = scmp.ne.s32.totalorder %s156, %s157
    %p169 = scmp.eq.s32.totalorder %s21, 1
    %p170 = por %p168, %p169
    %p172 = scmp.ne.s32.totalorder %s157, %s171
    %p173 = scmp.eq.s32.totalorder %s21, 0
    %p174 = por %p172, %p173
    %s176 = sadd.s32 %s175, 1
    %p179 = scmp.eq.s32.totalorder %s15, 1
    %p180 = scmp.ne.s32.totalorder %s175, %s177
    %p181 = scmp.eq.s32.totalorder %s15, 0
    %p182 = por %p180, %p181
    %p183 = scmp.ne.s32.totalorder %s175, %s177
    %p184 = scmp.eq.s32.totalorder %s20, 1
    %p185 = por %p183, %p184
    %p186 = scmp.ne.s32.totalorder %s177, %s178
    %p187 = scmp.eq.s32.totalorder %s20, 0
    %p188 = por %p186, %p187
    %p189 = scmp.ne.s32.totalorder %s177, %s178
    %p190 = scmp.eq.s32.totalorder %s21, 1
    %p191 = por %p189, %p190
    %p193 = scmp.ne.s32.totalorder %s178, %s192
    %p194 = scmp.eq.s32.totalorder %s21, 0
    %p195 = por %p193, %p194
    %s197 = sadd.s32 %s196, 1
    %p200 = scmp.eq.s32.totalorder %s15, 1
    %p201 = scmp.ne.s32.totalorder %s196, %s198
    %p202 = scmp.eq.s32.totalorder %s15, 0
    %p203 = por %p201, %p202
    %p204 = scmp.ne.s32.totalorder %s196, %s198
    %p205 = scmp.eq.s32.totalorder %s20, 1
    %p206 = por %p204, %p205
    %p207 = scmp.ne.s32.totalorder %s198, %s199
    %p208 = scmp.eq.s32.totalorder %s20, 0
    %p209 = por %p207, %p208
    %p210 = scmp.ne.s32.totalorder %s198, %s199
    %p211 = scmp.eq.s32.totalorder %s21, 1
    %p212 = por %p210, %p211
    %p214 = scmp.ne.s32.totalorder %s199, %s213
    %p215 = scmp.eq.s32.totalorder %s21, 0
    %p216 = por %p214, %p215
    %s217 = ssub.s32 %s15, %s22
    %p218 = scmp.eq.s32.totalorder %s217, 0
    %s220 = sadd.s32 %s219, 1
    %s221 = scalar_select %p218, %s219, %s220
    %p224 = pneg %p218
    %p225 = scmp.eq.s32.totalorder %s15, 1
    %p226 = por %p224, %p225
    %p227 = scmp.ne.s32.totalorder %s219, %s222
    %p228 = scmp.eq.s32.totalorder %s15, 0
    %p229 = por %p227, %p228
    %p230 = scmp.ne.s32.totalorder %s219, %s222
    %p231 = scmp.eq.s32.totalorder %s20, 1
    %p232 = por %p230, %p231
    %p233 = scmp.ne.s32.totalorder %s222, %s223
    %p234 = scmp.eq.s32.totalorder %s20, 0
    %p235 = por %p233, %p234
    %p236 = scmp.ne.s32.totalorder %s222, %s223
    %p237 = scmp.eq.s32.totalorder %s21, 1
    %p238 = por %p236, %p237
    %p240 = scmp.ne.s32.totalorder %s223, %s239
    %p241 = scmp.eq.s32.totalorder %s21, 0
    %p242 = por %p240, %p241
    %p243 = scmp.le.s32.totalorder 1, %s15
    %p244 = scmp.lt.s32.totalorder %s15, 3
    %p245 = pnand %p243, %p244
    %p246 = pneg %p245
    // Predicated region
    $region9: #{downsample_block.1} parent=5 // pred_check
      _
    $region10: #{downsample_block.1} parent=5 // pred_check_branch
      %248 = sbr.rel (%p245) target = $region12
    $region11: #{downsample_block.1} parent=5 // pred_region
      %s249 = ssub.s32 %s15, 1
      // Predicated region
      $region13: #{downsample_block.1} parent=11 // pred_check
        %p250 = pneg %p62
      $region14: #{downsample_block.1} parent=11 // pred_check_branch
        %252 = sbr.rel (%p250) target = $region16
      $region15: #{downsample_block.1} parent=11 // pred_region
        _
      $region16: #{downsample_block.1} parent=11 // pred_fallthru
        _
      // Predicated region
      $region17: #{downsample_block.1} parent=11 // pred_check
        %p253 = pneg %p83
      $region18: #{downsample_block.1} parent=11 // pred_check_branch
        %255 = sbr.rel (%p253) target = $region20
      $region19: #{downsample_block.1} parent=11 // pred_region
        _
      $region20: #{downsample_block.1} parent=11 // pred_fallthru
        _
      // Predicated region
      $region21: #{downsample_block.1} parent=11 // pred_check
        %p256 = pneg %p104
      $region22: #{downsample_block.1} parent=11 // pred_check_branch
        %258 = sbr.rel (%p256) target = $region24
      $region23: #{downsample_block.1} parent=11 // pred_region
        _
      $region24: #{downsample_block.1} parent=11 // pred_fallthru
        _
      // Predicated region
      $region25: #{downsample_block.1} parent=11 // pred_check
        %p259 = pneg %p125
      $region26: #{downsample_block.1} parent=11 // pred_check_branch
        %261 = sbr.rel (%p259) target = $region28
      $region27: #{downsample_block.1} parent=11 // pred_region
        _
      $region28: #{downsample_block.1} parent=11 // pred_fallthru
        _
      // Predicated region
      $region29: #{downsample_block.1} parent=11 // pred_check
        %p262 = pneg %p146
      $region30: #{downsample_block.1} parent=11 // pred_check_branch
        %264 = sbr.rel (%p262) target = $region32
      $region31: #{downsample_block.1} parent=11 // pred_region
        _
      $region32: #{downsample_block.1} parent=11 // pred_fallthru
        _
      // Predicated region
      $region33: #{downsample_block.1} parent=11 // pred_check
        %p265 = pneg %p167
      $region34: #{downsample_block.1} parent=11 // pred_check_branch
        %267 = sbr.rel (%p265) target = $region36
      $region35: #{downsample_block.1} parent=11 // pred_region
        _
      $region36: #{downsample_block.1} parent=11 // pred_fallthru
        _
      // Predicated region
      $region37: #{downsample_block.1} parent=11 // pred_check
        %p268 = pneg %p188
      $region38: #{downsample_block.1} parent=11 // pred_check_branch
        %270 = sbr.rel (%p268) target = $region40
      $region39: #{downsample_block.1} parent=11 // pred_region
        _
      $region40: #{downsample_block.1} parent=11 // pred_fallthru
        _
      // Predicated region
      $region41: #{downsample_block.1} parent=11 // pred_check
        %p271 = pneg %p209
      $region42: #{downsample_block.1} parent=11 // pred_check_branch
        %273 = sbr.rel (%p271) target = $region44
      $region43: #{downsample_block.1} parent=11 // pred_region
        _
      $region44: #{downsample_block.1} parent=11 // pred_fallthru
        _
    $region12: #{downsample_block.1} parent=5 // pred_fallthru
      _
    %p274 = scmp.lt.s32.totalorder %s15, 2
    // Predicated region
    $region45: #{downsample_block.1} parent=5 // pred_check
      %p275 = pneg %p274
    $region46: #{downsample_block.1} parent=5 // pred_check_branch
      %277 = sbr.rel (%p275) target = $region48
    $region47: #{downsample_block.1} parent=5 // pred_region
      // Predicated region
      $region49: #{downsample_block.1} parent=47 // pred_check
        %p278 = pneg %p35
      $region50: #{downsample_block.1} parent=47 // pred_check_branch
        %280 = sbr.rel (%p278) target = $region52
      $region51: #{downsample_block.1} parent=47 // pred_region
        %p281 = scmp.lt.s32.totalorder %s15, 1
        %s282 = scalar_select %p281, %s15, 1
        %s283 = smul.addr %s282, 102
        %s284 = smul.addr %s283, 4
        %s285 = scalar_lea.vmem %s0, %s284
      $region52: #{downsample_block.1} parent=47 // pred_fallthru
        _
    $region48: #{downsample_block.1} parent=5 // pred_fallthru
      _
    %p286 = scmp.le.s32.totalorder 1, %s15
    %p287 = scmp.lt.s32.totalorder %s15, 3
    %p288 = pnand %p286, %p287
    %p289 = pneg %p288
    // Predicated region
    $region53: #{downsample_block.1} parent=5 // pred_check
      _
    $region54: #{downsample_block.1} parent=5 // pred_check_branch
      %291 = sbr.rel (%p288) target = $region56
    $region55: #{downsample_block.1} parent=5 // pred_region
      %s292 = ssub.s32 %s15, 1
      %p293 = scmp.lt.s32.totalorder %s20, 1
      %s294 = scalar_select %p293, %s20, 1
      %s295 = smul.addr %s294, 102
      %s296 = smul.addr %s295, 4
      %s297 = scalar_lea.vmem %s0, %s296
      %p298 = pneg %p41
      %p299 = pneg %p38
      %p300 = pneg %p62
      %p301 = pneg %p59
      %p302 = pneg %p83
      %p303 = pneg %p80
      %p304 = pneg %p104
      %p305 = pneg %p101
      %p306 = pneg %p125
      %p307 = pneg %p122
      %p308 = pneg %p146
      %p309 = pneg %p143
      %p310 = pneg %p167
      %p311 = pneg %p164
      %p312 = pneg %p188
      %p313 = pneg %p185
      %p314 = pneg %p209
      %p315 = pneg %p206
      %p316 = pneg %p235
      %p317 = pneg %p232
      %p318 = scmp.lt.s32.totalorder %s20, 1
      %s319 = scalar_select %p318, %s20, 1
      %s320 = smul.addr %s319, 32
      %s321 = smul.addr %s320, 8
      %s322 = scalar_lea.vmem %s9, %s321
      %p323 = scmp.lt.s32.totalorder %s20, 1
      %s324 = scalar_select %p323, %s20, 1
      %s325 = smul.addr %s324, 102
      %s326 = smul.addr %s325, 4
      %s327 = scalar_lea.vmem %s0, %s326
      %p328 = scmp.lt.s32.totalorder %s20, 1
      %s329 = scalar_select %p328, %s20, 1
      %s330 = smul.addr %s329, 32
      %s331 = smul.addr %s330, 8
      %s332 = scalar_lea.vmem %s9, %s331
      %v334 = vld [vmem:[%s327] sm:$0xff]
      %v335 = vld [vmem:[%s327 + $0x8] sm:$0xff]
      %v336 = vld [vmem:[%s327 + $0x18] sm:$0xff]
      %v337 = vld [vmem:[%s327 + $0x20] sm:$0xff]
      %v338 = vld [vmem:[%s327 + $0x30] sm:$0xff]
      %v339 = vld [vmem:[%s327 + $0x38] sm:$0xff]
      %v340 = vld [vmem:[%s327 + $0x48] sm:$0xff]
      %v341 = vld [vmem:[%s327 + $0x50] sm:$0xff]
      %v342 = vld [vmem:[%s327 + $0x60] sm:$0xff]
      %v343 = vld [vmem:[%s327 + $0x68] sm:$0xff]
      %v344 = vld [vmem:[%s327 + $0x78] sm:$0xff]
      %v345 = vld [vmem:[%s327 + $0x80] sm:$0xff]
      %v346 = vld [vmem:[%s327 + $0x90] sm:$0xff]
      %v347 = vld [vmem:[%s327 + $0x98] sm:$0xff]
      %v348 = vld [vmem:[%s327 + $0xa8] sm:$0xff]
      %v349 = vld [vmem:[%s327 + $0xb0] sm:$0xff]
      %v350 = vld [vmem:[%s327 + $0xc0] sm:$0xff]
      %v351 = vld [vmem:[%s327 + $0xc8] sm:$0xff]
      %v352 = vld [vmem:[%s327 + $0xd8] sm:$0xff]
      %v353 = vld [vmem:[%s327 + $0xe0] sm:$0xff]
      %v354 = vld [vmem:[%s327 + $0xf0] sm:$0xff]
      %v355 = vld [vmem:[%s327 + $0xf8] sm:$0xff]
      %v356 = vld [vmem:[%s327 + $0x108] sm:$0xff]
      %v357 = vld [vmem:[%s327 + $0x110] sm:$0xff]
      %v358 = vld [vmem:[%s327 + $0x120] sm:$0xff]
      %v359 = vld [vmem:[%s327 + $0x128] sm:$0xff]
      %v360 = vld [vmem:[%s327 + $0x138] sm:$0xff]
      %v361 = vld [vmem:[%s327 + $0x140] sm:$0xff]
      %v362 = vld [vmem:[%s327 + $0x150] sm:$0xff]
      %v363 = vld [vmem:[%s327 + $0x158] sm:$0xff]
      %v364 = vld [vmem:[%s327 + $0x168] sm:$0xff]
      %v365 = vld [vmem:[%s327 + $0x170] sm:$0xff]
      %v366 = vld [vmem:[%s1] sm:$0xf]
      %v367 = vld [vmem:[%s1 + $0x4] sm:$0xf]
      %v368 = vld [vmem:[%s1 + $0x8] sm:$0xf]
      %v369 = vld [vmem:[%s1 + $0xc] sm:$0xf]
      %v370 = vld [vmem:[%s1 + $0x10] sm:$0xf]
      %v371 = vld [vmem:[%s1 + $0x14] sm:$0xf]
      %v372 = vld [vmem:[%s1 + $0x18] sm:$0xf]
      %v373 = vld [vmem:[%s1 + $0x1c] sm:$0xf]
      %v374 = vld [vmem:[%s1 + $0x20] sm:$0xf]
      %v375 = vld [vmem:[%s1 + $0x24] sm:$0xf]
      %v376 = vld [vmem:[%s1 + $0x28] sm:$0xf]
      %v377 = vld [vmem:[%s1 + $0x2c] sm:$0xf]
      %v378 = vld [vmem:[%s1 + $0x30] sm:$0xf]
      %v379 = vld [vmem:[%s1 + $0x34] sm:$0xf]
      %v380 = vld [vmem:[%s1 + $0x38] sm:$0xf]
      %v381 = vld [vmem:[%s1 + $0x3c] sm:$0xf]
      %v382 = vld [vmem:[%s1 + $0x40] sm:$0xf]
      %v383 = vld [vmem:[%s1 + $0x44] sm:$0xf]
      %v384 = vld [vmem:[%s1 + $0x48] sm:$0xf]
      %v385 = vld [vmem:[%s1 + $0x4c] sm:$0xf]
      %v386 = vld [vmem:[%s1 + $0x50] sm:$0xf]
      %v387 = vld [vmem:[%s1 + $0x54] sm:$0xf]
      %v388 = vld [vmem:[%s1 + $0x58] sm:$0xf]
      %v389 = vld [vmem:[%s1 + $0x5c] sm:$0xf]
      %v390 = vld [vmem:[%s1 + $0x60] sm:$0xf]
      %v391 = vld [vmem:[%s1 + $0x64] sm:$0xf]
      %v392 = vld [vmem:[%s1 + $0x68] sm:$0xf]
      %v393 = vld [vmem:[%s1 + $0x6c] sm:$0xf]
      %v394 = vld [vmem:[%s1 + $0x70] sm:$0xf]
      %v395 = vld [vmem:[%s1 + $0x74] sm:$0xf]
      %v396 = vld [vmem:[%s1 + $0x78] sm:$0xf]
      %v397 = vld [vmem:[%s1 + $0x7c] sm:$0xf]
      %s398 = scalar_lea.vmem %s327, 24
      %v399 = vld [vmem:[%s398] sm:$0xf]
      %v400 = vld [vmem:[%s398 + $0x8] sm:$0xf]
      %v401 = vld [vmem:[%s398 + $0x18] sm:$0xf]
      %v402 = vld [vmem:[%s398 + $0x20] sm:$0xf]
      %v403 = vld [vmem:[%s398 + $0x30] sm:$0xf]
      %v404 = vld [vmem:[%s398 + $0x38] sm:$0xf]
      %v405 = vld [vmem:[%s398 + $0x48] sm:$0xf]
      %v406 = vld [vmem:[%s398 + $0x50] sm:$0xf]
      %v407 = vld [vmem:[%s398 + $0x60] sm:$0xf]
      %v408 = vld [vmem:[%s398 + $0x68] sm:$0xf]
      %v409 = vld [vmem:[%s398 + $0x78] sm:$0xf]
      %v410 = vld [vmem:[%s398 + $0x80] sm:$0xf]
      %v411 = vld [vmem:[%s398 + $0x90] sm:$0xf]
      %v412 = vld [vmem:[%s398 + $0x98] sm:$0xf]
      %v413 = vld [vmem:[%s398 + $0xa8] sm:$0xf]
      %v414 = vld [vmem:[%s398 + $0xb0] sm:$0xf]
      %v415 = vld [vmem:[%s398 + $0xc0] sm:$0xf]
      %v416 = vld [vmem:[%s398 + $0xc8] sm:$0xf]
      %v417 = vld [vmem:[%s398 + $0xd8] sm:$0xf]
      %v418 = vld [vmem:[%s398 + $0xe0] sm:$0xf]
      %v419 = vld [vmem:[%s398 + $0xf0] sm:$0xf]
      %v420 = vld [vmem:[%s398 + $0xf8] sm:$0xf]
      %v421 = vld [vmem:[%s398 + $0x108] sm:$0xf]
      %v422 = vld [vmem:[%s398 + $0x110] sm:$0xf]
      %v423 = vld [vmem:[%s398 + $0x120] sm:$0xf]
      %v424 = vld [vmem:[%s398 + $0x128] sm:$0xf]
      %v425 = vld [vmem:[%s398 + $0x138] sm:$0xf]
      %v426 = vld [vmem:[%s398 + $0x140] sm:$0xf]
      %v427 = vld [vmem:[%s398 + $0x150] sm:$0xf]
      %v428 = vld [vmem:[%s398 + $0x158] sm:$0xf]
      %v429 = vld [vmem:[%s398 + $0x168] sm:$0xf]
      %v430 = vld [vmem:[%s398 + $0x170] sm:$0xf]
      %v431 = vld [vmem:[%s2] sm:$0xf]
      %v432 = vld [vmem:[%s2 + $0x4] sm:$0xf]
      %v433 = vld [vmem:[%s2 + $0x8] sm:$0xf]
      %v434 = vld [vmem:[%s2 + $0xc] sm:$0xf]
      %v435 = vld [vmem:[%s2 + $0x10] sm:$0xf]
      %v436 = vld [vmem:[%s2 + $0x14] sm:$0xf]
      %v437 = vld [vmem:[%s2 + $0x18] sm:$0xf]
      %v438 = vld [vmem:[%s2 + $0x1c] sm:$0xf]
      %v439 = vld [vmem:[%s2 + $0x20] sm:$0xf]
      %v440 = vld [vmem:[%s2 + $0x24] sm:$0xf]
      %v441 = vld [vmem:[%s2 + $0x28] sm:$0xf]
      %v442 = vld [vmem:[%s2 + $0x2c] sm:$0xf]
      %v443 = vld [vmem:[%s2 + $0x30] sm:$0xf]
      %v444 = vld [vmem:[%s2 + $0x34] sm:$0xf]
      %v445 = vld [vmem:[%s2 + $0x38] sm:$0xf]
      %v446 = vld [vmem:[%s2 + $0x3c] sm:$0xf]
      %v479 = vunpack.c.l.b16 %v399
      %v480 = vunpack.c.l.b16 %v400
      %v481 = vunpack.c.l.b16 %v401
      %v482 = vunpack.c.l.b16 %v402
      %v483 = vunpack.c.l.b16 %v403
      %v484 = vunpack.c.l.b16 %v404
      %v485 = vunpack.c.l.b16 %v405
      %v486 = vunpack.c.l.b16 %v406
      %v487 = vunpack.c.l.b16 %v407
      %v488 = vunpack.c.l.b16 %v408
      %v489 = vunpack.c.l.b16 %v409
      %v490 = vunpack.c.l.b16 %v410
      %v491 = vunpack.c.l.b16 %v411
      %v492 = vunpack.c.l.b16 %v412
      %v493 = vunpack.c.l.b16 %v413
      %v494 = vunpack.c.l.b16 %v414
      %v495 = vunpack.c.l.b16 %v415
      %v496 = vunpack.c.l.b16 %v416
      %v497 = vunpack.c.l.b16 %v417
      %v498 = vunpack.c.l.b16 %v418
      %v499 = vunpack.c.l.b16 %v419
      %v500 = vunpack.c.l.b16 %v420
      %v501 = vunpack.c.l.b16 %v421
      %v502 = vunpack.c.l.b16 %v422
      %v503 = vunpack.c.l.b16 %v423
      %v504 = vunpack.c.l.b16 %v424
      %v505 = vunpack.c.l.b16 %v425
      %v506 = vunpack.c.l.b16 %v426
      %v507 = vunpack.c.l.b16 %v427
      %v508 = vunpack.c.l.b16 %v428
      %v509 = vunpack.c.l.b16 %v429
      %v510 = vunpack.c.l.b16 %v430
      %v511 = vpack.c.b16 %v480, %v479
      %v512 = vpack.c.b16 %v482, %v481
      %v513 = vpack.c.b16 %v484, %v483
      %v514 = vpack.c.b16 %v486, %v485
      %v515 = vpack.c.b16 %v488, %v487
      %v516 = vpack.c.b16 %v490, %v489
      %v517 = vpack.c.b16 %v492, %v491
      %v518 = vpack.c.b16 %v494, %v493
      %v519 = vpack.c.b16 %v496, %v495
      %v520 = vpack.c.b16 %v498, %v497
      %v521 = vpack.c.b16 %v500, %v499
      %v522 = vpack.c.b16 %v502, %v501
      %v523 = vpack.c.b16 %v504, %v503
      %v524 = vpack.c.b16 %v506, %v505
      %v525 = vpack.c.b16 %v508, %v507
      %v526 = vpack.c.b16 %v510, %v509
      %v559 = vunpack.c.l.b16 %v431
      %v560 = vunpack.c.l.b16 %v432
      %v561 = vunpack.c.l.b16 %v433
      %v562 = vunpack.c.l.b16 %v434
      %v563 = vunpack.c.l.b16 %v435
      %v564 = vunpack.c.l.b16 %v436
      %v565 = vunpack.c.l.b16 %v437
      %v566 = vunpack.c.l.b16 %v438
      %v567 = vunpack.c.l.b16 %v439
      %v568 = vunpack.c.l.b16 %v440
      %v569 = vunpack.c.l.b16 %v441
      %v570 = vunpack.c.l.b16 %v442
      %v571 = vunpack.c.l.b16 %v443
      %v572 = vunpack.c.l.b16 %v444
      %v573 = vunpack.c.l.b16 %v445
      %v574 = vunpack.c.l.b16 %v446
      %v575 = vpack.c.b16 %v560, %v559
      %v576 = vpack.c.b16 %v562, %v561
      %v577 = vpack.c.b16 %v564, %v563
      %v578 = vpack.c.b16 %v566, %v565
      %v579 = vpack.c.b16 %v568, %v567
      %v580 = vpack.c.b16 %v570, %v569
      %v581 = vpack.c.b16 %v572, %v571
      %v582 = vpack.c.b16 %v574, %v573
      %591 = vmatprep.subr.bf16.mxu0 0
      %592 = vmatpush1.bf16.msra.mxu0 %v582
      %593 = vmatprep.subr.bf16.mxu0 0
      %594 = vmatpush1.bf16.msra.mxu0 %v581
      %595 = vmatprep.subr.bf16.mxu0 0
      %596 = vmatpush1.bf16.msra.mxu0 %v580
      %597 = vmatprep.subr.bf16.mxu0 0
      %598 = vmatpush1.bf16.msra.mxu0 %v579
      %599 = vmatprep.subr.bf16.mxu0 0
      %600 = vmatpush1.bf16.msra.mxu0 %v578
      %601 = vmatprep.subr.bf16.mxu0 0
      %602 = vmatpush1.bf16.msra.mxu0 %v577
      %603 = vmatprep.subr.bf16.mxu0 0
      %604 = vmatpush1.bf16.msra.mxu0 %v576
      %605 = vmatprep.subr.bf16.mxu0 0
      %606 = vmatpush1.bf16.msra.mxu0 %v575
      %607 = vmatprep.subr.bf16.mxu0 0
      %608 = vmatpush2.bf16.msra.mxu0 0
      %609 = vmatprep.subr.bf16.mxu0 0
      %610 = vmatpush2.bf16.msra.mxu0 0
      %611 = vmatprep.subr.bf16.mxu0 0
      %612 = vmatpush2.bf16.msra.mxu0 0
      %613 = vmatprep.subr.bf16.mxu0 0
      %614 = vmatpush2.bf16.msra.mxu0 0
      %615 = vmatprep.subr.bf16.mxu0 0
      %616 = vmatpush2.bf16.msra.mxu0 0
      %617 = vmatprep.subr.bf16.mxu0 0
      %618 = vmatpush2.bf16.msra.mxu0 0
      %619 = vmatprep.subr.bf16.mxu0 0
      %620 = vmatpush2.bf16.msra.mxu0 0
      %621 = vmatprep.subr.bf16.mxu0 0
      %622 = vmatpush2.bf16.msra.mxu0 0
      %623 = vmatprep.mubr.bf16.mxu0 0
      %624 = vmatmul.mubr.bf16.gmra.mxu0 %v511
      %v625 = vpop.f32.mrf.mxu0
      %v626 = vadd.f32 0.0, %v625
      %v627 = vpop.f32.mrf.mxu0
      %v628 = vpop.f32.mrf.mxu0
      %v629 = vadd.f32 0.0, %v628
      %v630 = vpop.f32.mrf.mxu0
      %631 = vmatprep.mubr.bf16.mxu0 0
      %632 = vmatmul.mubr.bf16.gmra.mxu0 %v512
      %v633 = vpop.f32.mrf.mxu0
      %v634 = vadd.f32 0.0, %v633
      %v635 = vpop.f32.mrf.mxu0
      %v636 = vpop.f32.mrf.mxu0
      %v637 = vadd.f32 0.0, %v636
      %v638 = vpop.f32.mrf.mxu0
      %639 = vmatprep.mubr.bf16.mxu0 0
      %640 = vmatmul.mubr.bf16.gmra.mxu0 %v513
      %v641 = vpop.f32.mrf.mxu0
      %v642 = vadd.f32 0.0, %v641
      %v643 = vpop.f32.mrf.mxu0
      %v644 = vpop.f32.mrf.mxu0
      %v645 = vadd.f32 0.0, %v644
      %v646 = vpop.f32.mrf.mxu0
      %647 = vmatprep.mubr.bf16.mxu0 0
      %648 = vmatmul.mubr.bf16.gmra.mxu0 %v514
      %v649 = vpop.f32.mrf.mxu0
      %v650 = vadd.f32 0.0, %v649
      %v651 = vpop.f32.mrf.mxu0
      %v652 = vpop.f32.mrf.mxu0
      %v653 = vadd.f32 0.0, %v652
      %v654 = vpop.f32.mrf.mxu0
      %655 = vmatprep.mubr.bf16.mxu0 0
      %656 = vmatmul.mubr.bf16.gmra.mxu0 %v515
      %v657 = vpop.f32.mrf.mxu0
      %v658 = vadd.f32 0.0, %v657
      %v659 = vpop.f32.mrf.mxu0
      %v660 = vpop.f32.mrf.mxu0
      %v661 = vadd.f32 0.0, %v660
      %v662 = vpop.f32.mrf.mxu0
      %663 = vmatprep.mubr.bf16.mxu0 0
      %664 = vmatmul.mubr.bf16.gmra.mxu0 %v516
      %v665 = vpop.f32.mrf.mxu0
      %v666 = vadd.f32 0.0, %v665
      %v667 = vpop.f32.mrf.mxu0
      %v668 = vpop.f32.mrf.mxu0
      %v669 = vadd.f32 0.0, %v668
      %v670 = vpop.f32.mrf.mxu0
      %671 = vmatprep.mubr.bf16.mxu0 0
      %672 = vmatmul.mubr.bf16.gmra.mxu0 %v517
      %v673 = vpop.f32.mrf.mxu0
      %v674 = vadd.f32 0.0, %v673
      %v675 = vpop.f32.mrf.mxu0
      %v676 = vpop.f32.mrf.mxu0
      %v677 = vadd.f32 0.0, %v676
      %v678 = vpop.f32.mrf.mxu0
      %679 = vmatprep.mubr.bf16.mxu0 0
      %680 = vmatmul.mubr.bf16.gmra.mxu0 %v518
      %v681 = vpop.f32.mrf.mxu0
      %v682 = vadd.f32 0.0, %v681
      %v683 = vpop.f32.mrf.mxu0
      %v684 = vpop.f32.mrf.mxu0
      %v685 = vadd.f32 0.0, %v684
      %v686 = vpop.f32.mrf.mxu0
      %687 = vmatprep.mubr.bf16.mxu0 0
      %688 = vmatmul.mubr.bf16.gmra.mxu0 %v519
      %v689 = vpop.f32.mrf.mxu0
      %v690 = vadd.f32 0.0, %v689
      %v691 = vpop.f32.mrf.mxu0
      %v692 = vpop.f32.mrf.mxu0
      %v693 = vadd.f32 0.0, %v692
      %v694 = vpop.f32.mrf.mxu0
      %695 = vmatprep.mubr.bf16.mxu0 0
      %696 = vmatmul.mubr.bf16.gmra.mxu0 %v520
      %v697 = vpop.f32.mrf.mxu0
      %v698 = vadd.f32 0.0, %v697
      %v699 = vpop.f32.mrf.mxu0
      %v700 = vpop.f32.mrf.mxu0
      %v701 = vadd.f32 0.0, %v700
      %v702 = vpop.f32.mrf.mxu0
      %703 = vmatprep.mubr.bf16.mxu0 0
      %704 = vmatmul.mubr.bf16.gmra.mxu0 %v521
      %v705 = vpop.f32.mrf.mxu0
      %v706 = vadd.f32 0.0, %v705
      %v707 = vpop.f32.mrf.mxu0
      %v708 = vpop.f32.mrf.mxu0
      %v709 = vadd.f32 0.0, %v708
      %v710 = vpop.f32.mrf.mxu0
      %711 = vmatprep.mubr.bf16.mxu0 0
      %712 = vmatmul.mubr.bf16.gmra.mxu0 %v522
      %v713 = vpop.f32.mrf.mxu0
      %v714 = vadd.f32 0.0, %v713
      %v715 = vpop.f32.mrf.mxu0
      %v716 = vpop.f32.mrf.mxu0
      %v717 = vadd.f32 0.0, %v716
      %v718 = vpop.f32.mrf.mxu0
      %719 = vmatprep.mubr.bf16.mxu0 0
      %720 = vmatmul.mubr.bf16.gmra.mxu0 %v523
      %v721 = vpop.f32.mrf.mxu0
      %v722 = vadd.f32 0.0, %v721
      %v723 = vpop.f32.mrf.mxu0
      %v724 = vpop.f32.mrf.mxu0
      %v725 = vadd.f32 0.0, %v724
      %v726 = vpop.f32.mrf.mxu0
      %727 = vmatprep.mubr.bf16.mxu0 0
      %728 = vmatmul.mubr.bf16.gmra.mxu0 %v524
      %v729 = vpop.f32.mrf.mxu0
      %v730 = vadd.f32 0.0, %v729
      %v731 = vpop.f32.mrf.mxu0
      %v732 = vpop.f32.mrf.mxu0
      %v733 = vadd.f32 0.0, %v732
      %v734 = vpop.f32.mrf.mxu0
      %735 = vmatprep.mubr.bf16.mxu0 0
      %736 = vmatmul.mubr.bf16.gmra.mxu0 %v525
      %v737 = vpop.f32.mrf.mxu0
      %v738 = vadd.f32 0.0, %v737
      %v739 = vpop.f32.mrf.mxu0
      %v740 = vpop.f32.mrf.mxu0
      %v741 = vadd.f32 0.0, %v740
      %v742 = vpop.f32.mrf.mxu0
      %743 = vmatprep.mubr.bf16.mxu0 0
      %744 = vmatmul.mubr.bf16.gmra.mxu0 %v526
      %v745 = vpop.f32.mrf.mxu0
      %v746 = vadd.f32 0.0, %v745
      %v747 = vpop.f32.mrf.mxu0
      %v748 = vpop.f32.mrf.mxu0
      %v749 = vadd.f32 0.0, %v748
      %v750 = vpop.f32.mrf.mxu0
      %751 = vdwg.mxu0
      %v784 = vunpack.c.l.b16 %v334
      %v785 = vunpack.c.h.b16 %v334
      %v786 = vunpack.c.l.b16 %v335
      %v787 = vunpack.c.h.b16 %v335
      %v788 = vunpack.c.l.b16 %v336
      %v789 = vunpack.c.h.b16 %v336
      %v790 = vunpack.c.l.b16 %v337
      %v791 = vunpack.c.h.b16 %v337
      %v792 = vunpack.c.l.b16 %v338
      %v793 = vunpack.c.h.b16 %v338
      %v794 = vunpack.c.l.b16 %v339
      %v795 = vunpack.c.h.b16 %v339
      %v796 = vunpack.c.l.b16 %v340
      %v797 = vunpack.c.h.b16 %v340
      %v798 = vunpack.c.l.b16 %v341
      %v799 = vunpack.c.h.b16 %v341
      %v800 = vunpack.c.l.b16 %v342
      %v801 = vunpack.c.h.b16 %v342
      %v802 = vunpack.c.l.b16 %v343
      %v803 = vunpack.c.h.b16 %v343
      %v804 = vunpack.c.l.b16 %v344
      %v805 = vunpack.c.h.b16 %v344
      %v806 = vunpack.c.l.b16 %v345
      %v807 = vunpack.c.h.b16 %v345
      %v808 = vunpack.c.l.b16 %v346
      %v809 = vunpack.c.h.b16 %v346
      %v810 = vunpack.c.l.b16 %v347
      %v811 = vunpack.c.h.b16 %v347
      %v812 = vunpack.c.l.b16 %v348
      %v813 = vunpack.c.h.b16 %v348
      %v814 = vunpack.c.l.b16 %v349
      %v815 = vunpack.c.h.b16 %v349
      %v816 = vunpack.c.l.b16 %v350
      %v817 = vunpack.c.h.b16 %v350
      %v818 = vunpack.c.l.b16 %v351
      %v819 = vunpack.c.h.b16 %v351
      %v820 = vunpack.c.l.b16 %v352
      %v821 = vunpack.c.h.b16 %v352
      %v822 = vunpack.c.l.b16 %v353
      %v823 = vunpack.c.h.b16 %v353
      %v824 = vunpack.c.l.b16 %v354
      %v825 = vunpack.c.h.b16 %v354
      %v826 = vunpack.c.l.b16 %v355
      %v827 = vunpack.c.h.b16 %v355
      %v828 = vunpack.c.l.b16 %v356
      %v829 = vunpack.c.h.b16 %v356
      %v830 = vunpack.c.l.b16 %v357
      %v831 = vunpack.c.h.b16 %v357
      %v832 = vunpack.c.l.b16 %v358
      %v833 = vunpack.c.h.b16 %v358
      %v834 = vunpack.c.l.b16 %v359
      %v835 = vunpack.c.h.b16 %v359
      %v836 = vunpack.c.l.b16 %v360
      %v837 = vunpack.c.h.b16 %v360
      %v838 = vunpack.c.l.b16 %v361
      %v839 = vunpack.c.h.b16 %v361
      %v840 = vunpack.c.l.b16 %v362
      %v841 = vunpack.c.h.b16 %v362
      %v842 = vunpack.c.l.b16 %v363
      %v843 = vunpack.c.h.b16 %v363
      %v844 = vunpack.c.l.b16 %v364
      %v845 = vunpack.c.h.b16 %v364
      %v846 = vunpack.c.l.b16 %v365
      %v847 = vunpack.c.h.b16 %v365
      %v848 = vpack.c.b16 %v786, %v784
      %v849 = vpack.c.b16 %v787, %v785
      %v850 = vpack.c.b16 %v790, %v788
      %v851 = vpack.c.b16 %v791, %v789
      %v852 = vpack.c.b16 %v794, %v792
      %v853 = vpack.c.b16 %v795, %v793
      %v854 = vpack.c.b16 %v798, %v796
      %v855 = vpack.c.b16 %v799, %v797
      %v856 = vpack.c.b16 %v802, %v800
      %v857 = vpack.c.b16 %v803, %v801
      %v858 = vpack.c.b16 %v806, %v804
      %v859 = vpack.c.b16 %v807, %v805
      %v860 = vpack.c.b16 %v810, %v808
      %v861 = vpack.c.b16 %v811, %v809
      %v862 = vpack.c.b16 %v814, %v812
      %v863 = vpack.c.b16 %v815, %v813
      %v864 = vpack.c.b16 %v818, %v816
      %v865 = vpack.c.b16 %v819, %v817
      %v866 = vpack.c.b16 %v822, %v820
      %v867 = vpack.c.b16 %v823, %v821
      %v868 = vpack.c.b16 %v826, %v824
      %v869 = vpack.c.b16 %v827, %v825
      %v870 = vpack.c.b16 %v830, %v828
      %v871 = vpack.c.b16 %v831, %v829
      %v872 = vpack.c.b16 %v834, %v832
      %v873 = vpack.c.b16 %v835, %v833
      %v874 = vpack.c.b16 %v838, %v836
      %v875 = vpack.c.b16 %v839, %v837
      %v876 = vpack.c.b16 %v842, %v840
      %v877 = vpack.c.b16 %v843, %v841
      %v878 = vpack.c.b16 %v846, %v844
      %v879 = vpack.c.b16 %v847, %v845
      %v944 = vunpack.c.l.b16 %v366
      %v945 = vunpack.c.l.b16 %v367
      %v946 = vunpack.c.l.b16 %v368
      %v947 = vunpack.c.l.b16 %v369
      %v948 = vunpack.c.l.b16 %v370
      %v949 = vunpack.c.l.b16 %v371
      %v950 = vunpack.c.l.b16 %v372
      %v951 = vunpack.c.l.b16 %v373
      %v952 = vunpack.c.l.b16 %v374
      %v953 = vunpack.c.l.b16 %v375
      %v954 = vunpack.c.l.b16 %v376
      %v955 = vunpack.c.l.b16 %v377
      %v956 = vunpack.c.l.b16 %v378
      %v957 = vunpack.c.l.b16 %v379
      %v958 = vunpack.c.l.b16 %v380
      %v959 = vunpack.c.l.b16 %v381
      %v960 = vunpack.c.l.b16 %v382
      %v961 = vunpack.c.l.b16 %v383
      %v962 = vunpack.c.l.b16 %v384
      %v963 = vunpack.c.l.b16 %v385
      %v964 = vunpack.c.l.b16 %v386
      %v965 = vunpack.c.l.b16 %v387
      %v966 = vunpack.c.l.b16 %v388
      %v967 = vunpack.c.l.b16 %v389
      %v968 = vunpack.c.l.b16 %v390
      %v969 = vunpack.c.l.b16 %v391
      %v970 = vunpack.c.l.b16 %v392
      %v971 = vunpack.c.l.b16 %v393
      %v972 = vunpack.c.l.b16 %v394
      %v973 = vunpack.c.l.b16 %v395
      %v974 = vunpack.c.l.b16 %v396
      %v975 = vunpack.c.l.b16 %v397
      %v976 = vpack.c.b16 %v945, %v944
      %v977 = vpack.c.b16 %v947, %v946
      %v978 = vpack.c.b16 %v949, %v948
      %v979 = vpack.c.b16 %v951, %v950
      %v980 = vpack.c.b16 %v953, %v952
      %v981 = vpack.c.b16 %v955, %v954
      %v982 = vpack.c.b16 %v957, %v956
      %v983 = vpack.c.b16 %v959, %v958
      %v984 = vpack.c.b16 %v961, %v960
      %v985 = vpack.c.b16 %v963, %v962
      %v986 = vpack.c.b16 %v965, %v964
      %v987 = vpack.c.b16 %v967, %v966
      %v988 = vpack.c.b16 %v969, %v968
      %v989 = vpack.c.b16 %v971, %v970
      %v990 = vpack.c.b16 %v973, %v972
      %v991 = vpack.c.b16 %v975, %v974
      %1008 = vmatprep.subr.bf16.mxu0 0
      %1009 = vmatpush1.bf16.msra.mxu0 %v983
      %1010 = vmatprep.subr.bf16.mxu0 0
      %1011 = vmatpush1.bf16.msra.mxu0 %v982
      %1012 = vmatprep.subr.bf16.mxu0 0
      %1013 = vmatpush1.bf16.msra.mxu0 %v981
      %1014 = vmatprep.subr.bf16.mxu0 0
      %1015 = vmatpush1.bf16.msra.mxu0 %v980
      %1016 = vmatprep.subr.bf16.mxu0 0
      %1017 = vmatpush1.bf16.msra.mxu0 %v979
      %1018 = vmatprep.subr.bf16.mxu0 0
      %1019 = vmatpush1.bf16.msra.mxu0 %v978
      %1020 = vmatprep.subr.bf16.mxu0 0
      %1021 = vmatpush1.bf16.msra.mxu0 %v977
      %1022 = vmatprep.subr.bf16.mxu0 0
      %1023 = vmatpush1.bf16.msra.mxu0 %v976
      %1024 = vmatprep.subr.bf16.mxu0 0
      %1025 = vmatpush2.bf16.msra.mxu0 %v991
      %1026 = vmatprep.subr.bf16.mxu0 0
      %1027 = vmatpush2.bf16.msra.mxu0 %v990
      %1028 = vmatprep.subr.bf16.mxu0 0
      %1029 = vmatpush2.bf16.msra.mxu0 %v989
      %1030 = vmatprep.subr.bf16.mxu0 0
      %1031 = vmatpush2.bf16.msra.mxu0 %v988
      %1032 = vmatprep.subr.bf16.mxu0 0
      %1033 = vmatpush2.bf16.msra.mxu0 %v987
      %1034 = vmatprep.subr.bf16.mxu0 0
      %1035 = vmatpush2.bf16.msra.mxu0 %v986
      %1036 = vmatprep.subr.bf16.mxu0 0
      %1037 = vmatpush2.bf16.msra.mxu0 %v985
      %1038 = vmatprep.subr.bf16.mxu0 0
      %1039 = vmatpush2.bf16.msra.mxu0 %v984
      %1040 = vmatprep.mubr.bf16.mxu0 %v849
      %1041 = vmatmul.mubr.bf16.gmra.mxu0 %v848
      %v1042 = vpop.f32.mrf.mxu0
      %v1043 = vadd.f32 %v626, %v1042
      %v1044 = vpop.f32.mrf.mxu0
      %v1045 = vpop.f32.mrf.mxu0
      %v1046 = vadd.f32 %v629, %v1045
      %v1047 = vpop.f32.mrf.mxu0
      %1048 = vmatprep.mubr.bf16.mxu0 %v851
      %1049 = vmatmul.mubr.bf16.gmra.mxu0 %v850
      %v1050 = vpop.f32.mrf.mxu0
      %v1051 = vadd.f32 %v634, %v1050
      %v1052 = vpop.f32.mrf.mxu0
      %v1053 = vpop.f32.mrf.mxu0
      %v1054 = vadd.f32 %v637, %v1053
      %v1055 = vpop.f32.mrf.mxu0
      %1056 = vmatprep.mubr.bf16.mxu0 %v853
      %1057 = vmatmul.mubr.bf16.gmra.mxu0 %v852
      %v1058 = vpop.f32.mrf.mxu0
      %v1059 = vadd.f32 %v642, %v1058
      %v1060 = vpop.f32.mrf.mxu0
      %v1061 = vpop.f32.mrf.mxu0
      %v1062 = vadd.f32 %v645, %v1061
      %v1063 = vpop.f32.mrf.mxu0
      %1064 = vmatprep.mubr.bf16.mxu0 %v855
      %1065 = vmatmul.mubr.bf16.gmra.mxu0 %v854
      %v1066 = vpop.f32.mrf.mxu0
      %v1067 = vadd.f32 %v650, %v1066
      %v1068 = vpop.f32.mrf.mxu0
      %v1069 = vpop.f32.mrf.mxu0
      %v1070 = vadd.f32 %v653, %v1069
      %v1071 = vpop.f32.mrf.mxu0
      %1072 = vmatprep.mubr.bf16.mxu0 %v857
      %1073 = vmatmul.mubr.bf16.gmra.mxu0 %v856
      %v1074 = vpop.f32.mrf.mxu0
      %v1075 = vadd.f32 %v658, %v1074
      %v1076 = vpop.f32.mrf.mxu0
      %v1077 = vpop.f32.mrf.mxu0
      %v1078 = vadd.f32 %v661, %v1077
      %v1079 = vpop.f32.mrf.mxu0
      %1080 = vmatprep.mubr.bf16.mxu0 %v859
      %1081 = vmatmul.mubr.bf16.gmra.mxu0 %v858
      %v1082 = vpop.f32.mrf.mxu0
      %v1083 = vadd.f32 %v666, %v1082
      %v1084 = vpop.f32.mrf.mxu0
      %v1085 = vpop.f32.mrf.mxu0
      %v1086 = vadd.f32 %v669, %v1085
      %v1087 = vpop.f32.mrf.mxu0
      %1088 = vmatprep.mubr.bf16.mxu0 %v861
      %1089 = vmatmul.mubr.bf16.gmra.mxu0 %v860
      %v1090 = vpop.f32.mrf.mxu0
      %v1091 = vadd.f32 %v674, %v1090
      %v1092 = vpop.f32.mrf.mxu0
      %v1093 = vpop.f32.mrf.mxu0
      %v1094 = vadd.f32 %v677, %v1093
      %v1095 = vpop.f32.mrf.mxu0
      %1096 = vmatprep.mubr.bf16.mxu0 %v863
      %1097 = vmatmul.mubr.bf16.gmra.mxu0 %v862
      %v1098 = vpop.f32.mrf.mxu0
      %v1099 = vadd.f32 %v682, %v1098
      %v1100 = vpop.f32.mrf.mxu0
      %v1101 = vpop.f32.mrf.mxu0
      %v1102 = vadd.f32 %v685, %v1101
      %v1103 = vpop.f32.mrf.mxu0
      %1104 = vmatprep.mubr.bf16.mxu0 %v865
      %1105 = vmatmul.mubr.bf16.gmra.mxu0 %v864
      %v1106 = vpop.f32.mrf.mxu0
      %v1107 = vadd.f32 %v690, %v1106
      %v1108 = vpop.f32.mrf.mxu0
      %v1109 = vpop.f32.mrf.mxu0
      %v1110 = vadd.f32 %v693, %v1109
      %v1111 = vpop.f32.mrf.mxu0
      %1112 = vmatprep.mubr.bf16.mxu0 %v867
      %1113 = vmatmul.mubr.bf16.gmra.mxu0 %v866
      %v1114 = vpop.f32.mrf.mxu0
      %v1115 = vadd.f32 %v698, %v1114
      %v1116 = vpop.f32.mrf.mxu0
      %v1117 = vpop.f32.mrf.mxu0
      %v1118 = vadd.f32 %v701, %v1117
      %v1119 = vpop.f32.mrf.mxu0
      %1120 = vmatprep.mubr.bf16.mxu0 %v869
      %1121 = vmatmul.mubr.bf16.gmra.mxu0 %v868
      %v1122 = vpop.f32.mrf.mxu0
      %v1123 = vadd.f32 %v706, %v1122
      %v1124 = vpop.f32.mrf.mxu0
      %v1125 = vpop.f32.mrf.mxu0
      %v1126 = vadd.f32 %v709, %v1125
      %v1127 = vpop.f32.mrf.mxu0
      %1128 = vmatprep.mubr.bf16.mxu0 %v871
      %1129 = vmatmul.mubr.bf16.gmra.mxu0 %v870
      %v1130 = vpop.f32.mrf.mxu0
      %v1131 = vadd.f32 %v714, %v1130
      %v1132 = vpop.f32.mrf.mxu0
      %v1133 = vpop.f32.mrf.mxu0
      %v1134 = vadd.f32 %v717, %v1133
      %v1135 = vpop.f32.mrf.mxu0
      %1136 = vmatprep.mubr.bf16.mxu0 %v873
      %1137 = vmatmul.mubr.bf16.gmra.mxu0 %v872
      %v1138 = vpop.f32.mrf.mxu0
      %v1139 = vadd.f32 %v722, %v1138
      %v1140 = vpop.f32.mrf.mxu0
      %v1141 = vpop.f32.mrf.mxu0
      %v1142 = vadd.f32 %v725, %v1141
      %v1143 = vpop.f32.mrf.mxu0
      %1144 = vmatprep.mubr.bf16.mxu0 %v875
      %1145 = vmatmul.mubr.bf16.gmra.mxu0 %v874
      %v1146 = vpop.f32.mrf.mxu0
      %v1147 = vadd.f32 %v730, %v1146
      %v1148 = vpop.f32.mrf.mxu0
      %v1149 = vpop.f32.mrf.mxu0
      %v1150 = vadd.f32 %v733, %v1149
      %v1151 = vpop.f32.mrf.mxu0
      %1152 = vmatprep.mubr.bf16.mxu0 %v877
      %1153 = vmatmul.mubr.bf16.gmra.mxu0 %v876
      %v1154 = vpop.f32.mrf.mxu0
      %v1155 = vadd.f32 %v738, %v1154
      %v1156 = vpop.f32.mrf.mxu0
      %v1157 = vpop.f32.mrf.mxu0
      %v1158 = vadd.f32 %v741, %v1157
      %v1159 = vpop.f32.mrf.mxu0
      %1160 = vmatprep.mubr.bf16.mxu0 %v879
      %1161 = vmatmul.mubr.bf16.gmra.mxu0 %v878
      %v1162 = vpop.f32.mrf.mxu0
      %v1163 = vadd.f32 %v746, %v1162
      %v1164 = vpop.f32.mrf.mxu0
      %v1165 = vpop.f32.mrf.mxu0
      %v1166 = vadd.f32 %v749, %v1165
      %v1167 = vpop.f32.mrf.mxu0
      %1168 = vdwg.mxu0
      %v1169 = vld [vmem:[%s327] sm:$0xff]
      %v1170 = vld [vmem:[%s327 + $0x8] sm:$0xff]
      %v1171 = vld [vmem:[%s327 + $0x10] sm:$0x11]
      %v1172 = vld [vmem:[%s327 + $0x18] sm:$0xff]
      %v1173 = vld [vmem:[%s327 + $0x20] sm:$0xff]
      %v1174 = vld [vmem:[%s327 + $0x28] sm:$0x11]
      %v1175 = vld [vmem:[%s327 + $0x30] sm:$0xff]
      %v1176 = vld [vmem:[%s327 + $0x38] sm:$0xff]
      %v1177 = vld [vmem:[%s327 + $0x40] sm:$0x11]
      %v1178 = vld [vmem:[%s327 + $0x48] sm:$0xff]
      %v1179 = vld [vmem:[%s327 + $0x50] sm:$0xff]
      %v1180 = vld [vmem:[%s327 + $0x58] sm:$0x11]
      %v1181 = vld [vmem:[%s327 + $0x60] sm:$0xff]
      %v1182 = vld [vmem:[%s327 + $0x68] sm:$0xff]
      %v1183 = vld [vmem:[%s327 + $0x70] sm:$0x11]
      %v1184 = vld [vmem:[%s327 + $0x78] sm:$0xff]
      %v1185 = vld [vmem:[%s327 + $0x80] sm:$0xff]
      %v1186 = vld [vmem:[%s327 + $0x88] sm:$0x11]
      %v1187 = vld [vmem:[%s327 + $0x90] sm:$0xff]
      %v1188 = vld [vmem:[%s327 + $0x98] sm:$0xff]
      %v1189 = vld [vmem:[%s327 + $0xa0] sm:$0x11]
      %v1190 = vld [vmem:[%s327 + $0xa8] sm:$0xff]
      %v1191 = vld [vmem:[%s327 + $0xb0] sm:$0xff]
      %v1192 = vld [vmem:[%s327 + $0xb8] sm:$0x11]
      %v1193 = vld [vmem:[%s327 + $0xc0] sm:$0xff]
      %v1194 = vld [vmem:[%s327 + $0xc8] sm:$0xff]
      %v1195 = vld [vmem:[%s327 + $0xd0] sm:$0x11]
      %v1196 = vld [vmem:[%s327 + $0xd8] sm:$0xff]
      %v1197 = vld [vmem:[%s327 + $0xe0] sm:$0xff]
      %v1198 = vld [vmem:[%s327 + $0xe8] sm:$0x11]
      %v1199 = vld [vmem:[%s327 + $0xf0] sm:$0xff]
      %v1200 = vld [vmem:[%s327 + $0xf8] sm:$0xff]
      %v1201 = vld [vmem:[%s327 + $0x100] sm:$0x11]
      %v1202 = vld [vmem:[%s327 + $0x108] sm:$0xff]
      %v1203 = vld [vmem:[%s327 + $0x110] sm:$0xff]
      %v1204 = vld [vmem:[%s327 + $0x118] sm:$0x11]
      %v1205 = vld [vmem:[%s327 + $0x120] sm:$0xff]
      %v1206 = vld [vmem:[%s327 + $0x128] sm:$0xff]
      %v1207 = vld [vmem:[%s327 + $0x130] sm:$0x11]
      %v1208 = vld [vmem:[%s327 + $0x138] sm:$0xff]
      %v1209 = vld [vmem:[%s327 + $0x140] sm:$0xff]
      %v1210 = vld [vmem:[%s327 + $0x148] sm:$0x11]
      %v1211 = vld [vmem:[%s327 + $0x150] sm:$0xff]
      %v1212 = vld [vmem:[%s327 + $0x158] sm:$0xff]
      %v1213 = vld [vmem:[%s327 + $0x160] sm:$0x11]
      %v1214 = vld [vmem:[%s327 + $0x168] sm:$0xff]
      %v1215 = vld [vmem:[%s327 + $0x170] sm:$0xff]
      %v1216 = vld [vmem:[%s327 + $0x178] sm:$0x11]
      %vm1217 = vsmask.f32 3328
      %vm1218 = vsmask.f32 7440
      %vm1219 = vmor %vm1217, %vm1218
      %v1221 = vshrl.u32 %v1169, 16
      %v1223 = vrot.slane %v1221, 4
      %v1224 = vshll.u32 %v1169, 16
      %v1226 = vrot.slane %v1224, 5
      %v1227 = vor.u32 %v1223, %v1226
      %v1228 = vrot.slane %v1227, 4
      %v1230 = vshll.u32 %v1170, 16
      %v1232 = vrot.slane %v1230, 5
      %v1233 = vsel %vm1219, %v1228, %v1232
      %v1234 = vshrl.u32 %v1170, 16
      %v1236 = vrot.slane %v1234, 4
      %v1237 = vor.u32 %v1236, %v1232
      %v1238 = vrot.slane %v1237, 4
      %v1240 = vshll.u32 %v1171, 16
      %v1242 = vrot.slane %v1240, 5
      %v1243 = vsel %vm1219, %v1238, %v1242
      %v1245 = vshrl.u32 %v1172, 16
      %v1247 = vrot.slane %v1245, 4
      %v1248 = vshll.u32 %v1172, 16
      %v1250 = vrot.slane %v1248, 5
      %v1251 = vor.u32 %v1247, %v1250
      %v1252 = vrot.slane %v1251, 4
      %v1254 = vshll.u32 %v1173, 16
      %v1256 = vrot.slane %v1254, 5
      %v1257 = vsel %vm1219, %v1252, %v1256
      %v1258 = vshrl.u32 %v1173, 16
      %v1260 = vrot.slane %v1258, 4
      %v1261 = vor.u32 %v1260, %v1256
      %v1262 = vrot.slane %v1261, 4
      %v1264 = vshll.u32 %v1174, 16
      %v1266 = vrot.slane %v1264, 5
      %v1267 = vsel %vm1219, %v1262, %v1266
      %v1269 = vshrl.u32 %v1175, 16
      %v1271 = vrot.slane %v1269, 4
      %v1272 = vshll.u32 %v1175, 16
      %v1274 = vrot.slane %v1272, 5
      %v1275 = vor.u32 %v1271, %v1274
      %v1276 = vrot.slane %v1275, 4
      %v1278 = vshll.u32 %v1176, 16
      %v1280 = vrot.slane %v1278, 5
      %v1281 = vsel %vm1219, %v1276, %v1280
      %v1282 = vshrl.u32 %v1176, 16
      %v1284 = vrot.slane %v1282, 4
      %v1285 = vor.u32 %v1284, %v1280
      %v1286 = vrot.slane %v1285, 4
      %v1288 = vshll.u32 %v1177, 16
      %v1290 = vrot.slane %v1288, 5
      %v1291 = vsel %vm1219, %v1286, %v1290
      %v1293 = vshrl.u32 %v1178, 16
      %v1295 = vrot.slane %v1293, 4
      %v1296 = vshll.u32 %v1178, 16
      %v1298 = vrot.slane %v1296, 5
      %v1299 = vor.u32 %v1295, %v1298
      %v1300 = vrot.slane %v1299, 4
      %v1302 = vshll.u32 %v1179, 16
      %v1304 = vrot.slane %v1302, 5
      %v1305 = vsel %vm1219, %v1300, %v1304
      %v1306 = vshrl.u32 %v1179, 16
      %v1308 = vrot.slane %v1306, 4
      %v1309 = vor.u32 %v1308, %v1304
      %v1310 = vrot.slane %v1309, 4
      %v1312 = vshll.u32 %v1180, 16
      %v1314 = vrot.slane %v1312, 5
      %v1315 = vsel %vm1219, %v1310, %v1314
      %v1317 = vshrl.u32 %v1181, 16
      %v1319 = vrot.slane %v1317, 4
      %v1320 = vshll.u32 %v1181, 16
      %v1322 = vrot.slane %v1320, 5
      %v1323 = vor.u32 %v1319, %v1322
      %v1324 = vrot.slane %v1323, 4
      %v1326 = vshll.u32 %v1182, 16
      %v1328 = vrot.slane %v1326, 5
      %v1329 = vsel %vm1219, %v1324, %v1328
      %v1330 = vshrl.u32 %v1182, 16
      %v1332 = vrot.slane %v1330, 4
      %v1333 = vor.u32 %v1332, %v1328
      %v1334 = vrot.slane %v1333, 4
      %v1336 = vshll.u32 %v1183, 16
      %v1338 = vrot.slane %v1336, 5
      %v1339 = vsel %vm1219, %v1334, %v1338
      %v1341 = vshrl.u32 %v1184, 16
      %v1343 = vrot.slane %v1341, 4
      %v1344 = vshll.u32 %v1184, 16
      %v1346 = vrot.slane %v1344, 5
      %v1347 = vor.u32 %v1343, %v1346
      %v1348 = vrot.slane %v1347, 4
      %v1350 = vshll.u32 %v1185, 16
      %v1352 = vrot.slane %v1350, 5
      %v1353 = vsel %vm1219, %v1348, %v1352
      %v1354 = vshrl.u32 %v1185, 16
      %v1356 = vrot.slane %v1354, 4
      %v1357 = vor.u32 %v1356, %v1352
      %v1358 = vrot.slane %v1357, 4
      %v1360 = vshll.u32 %v1186, 16
      %v1362 = vrot.slane %v1360, 5
      %v1363 = vsel %vm1219, %v1358, %v1362
      %v1365 = vshrl.u32 %v1187, 16
      %v1367 = vrot.slane %v1365, 4
      %v1368 = vshll.u32 %v1187, 16
      %v1370 = vrot.slane %v1368, 5
      %v1371 = vor.u32 %v1367, %v1370
      %v1372 = vrot.slane %v1371, 4
      %v1374 = vshll.u32 %v1188, 16
      %v1376 = vrot.slane %v1374, 5
      %v1377 = vsel %vm1219, %v1372, %v1376
      %v1378 = vshrl.u32 %v1188, 16
      %v1380 = vrot.slane %v1378, 4
      %v1381 = vor.u32 %v1380, %v1376
      %v1382 = vrot.slane %v1381, 4
      %v1384 = vshll.u32 %v1189, 16
      %v1386 = vrot.slane %v1384, 5
      %v1387 = vsel %vm1219, %v1382, %v1386
      %v1389 = vshrl.u32 %v1190, 16
      %v1391 = vrot.slane %v1389, 4
      %v1392 = vshll.u32 %v1190, 16
      %v1394 = vrot.slane %v1392, 5
      %v1395 = vor.u32 %v1391, %v1394
      %v1396 = vrot.slane %v1395, 4
      %v1398 = vshll.u32 %v1191, 16
      %v1400 = vrot.slane %v1398, 5
      %v1401 = vsel %vm1219, %v1396, %v1400
      %v1402 = vshrl.u32 %v1191, 16
      %v1404 = vrot.slane %v1402, 4
      %v1405 = vor.u32 %v1404, %v1400
      %v1406 = vrot.slane %v1405, 4
      %v1408 = vshll.u32 %v1192, 16
      %v1410 = vrot.slane %v1408, 5
      %v1411 = vsel %vm1219, %v1406, %v1410
      %v1413 = vshrl.u32 %v1193, 16
      %v1415 = vrot.slane %v1413, 4
      %v1416 = vshll.u32 %v1193, 16
      %v1418 = vrot.slane %v1416, 5
      %v1419 = vor.u32 %v1415, %v1418
      %v1420 = vrot.slane %v1419, 4
      %v1422 = vshll.u32 %v1194, 16
      %v1424 = vrot.slane %v1422, 5
      %v1425 = vsel %vm1219, %v1420, %v1424
      %v1426 = vshrl.u32 %v1194, 16
      %v1428 = vrot.slane %v1426, 4
      %v1429 = vor.u32 %v1428, %v1424
      %v1430 = vrot.slane %v1429, 4
      %v1432 = vshll.u32 %v1195, 16
      %v1434 = vrot.slane %v1432, 5
      %v1435 = vsel %vm1219, %v1430, %v1434
      %v1437 = vshrl.u32 %v1196, 16
      %v1439 = vrot.slane %v1437, 4
      %v1440 = vshll.u32 %v1196, 16
      %v1442 = vrot.slane %v1440, 5
      %v1443 = vor.u32 %v1439, %v1442
      %v1444 = vrot.slane %v1443, 4
      %v1446 = vshll.u32 %v1197, 16
      %v1448 = vrot.slane %v1446, 5
      %v1449 = vsel %vm1219, %v1444, %v1448
      %v1450 = vshrl.u32 %v1197, 16
      %v1452 = vrot.slane %v1450, 4
      %v1453 = vor.u32 %v1452, %v1448
      %v1454 = vrot.slane %v1453, 4
      %v1456 = vshll.u32 %v1198, 16
      %v1458 = vrot.slane %v1456, 5
      %v1459 = vsel %vm1219, %v1454, %v1458
      %v1461 = vshrl.u32 %v1199, 16
      %v1463 = vrot.slane %v1461, 4
      %v1464 = vshll.u32 %v1199, 16
      %v1466 = vrot.slane %v1464, 5
      %v1467 = vor.u32 %v1463, %v1466
      %v1468 = vrot.slane %v1467, 4
      %v1470 = vshll.u32 %v1200, 16
      %v1472 = vrot.slane %v1470, 5
      %v1473 = vsel %vm1219, %v1468, %v1472
      %v1474 = vshrl.u32 %v1200, 16
      %v1476 = vrot.slane %v1474, 4
      %v1477 = vor.u32 %v1476, %v1472
      %v1478 = vrot.slane %v1477, 4
      %v1480 = vshll.u32 %v1201, 16
      %v1482 = vrot.slane %v1480, 5
      %v1483 = vsel %vm1219, %v1478, %v1482
      %v1485 = vshrl.u32 %v1202, 16
      %v1487 = vrot.slane %v1485, 4
      %v1488 = vshll.u32 %v1202, 16
      %v1490 = vrot.slane %v1488, 5
      %v1491 = vor.u32 %v1487, %v1490
      %v1492 = vrot.slane %v1491, 4
      %v1494 = vshll.u32 %v1203, 16
      %v1496 = vrot.slane %v1494, 5
      %v1497 = vsel %vm1219, %v1492, %v1496
      %v1498 = vshrl.u32 %v1203, 16
      %v1500 = vrot.slane %v1498, 4
      %v1501 = vor.u32 %v1500, %v1496
      %v1502 = vrot.slane %v1501, 4
      %v1504 = vshll.u32 %v1204, 16
      %v1506 = vrot.slane %v1504, 5
      %v1507 = vsel %vm1219, %v1502, %v1506
      %v1509 = vshrl.u32 %v1205, 16
      %v1511 = vrot.slane %v1509, 4
      %v1512 = vshll.u32 %v1205, 16
      %v1514 = vrot.slane %v1512, 5
      %v1515 = vor.u32 %v1511, %v1514
      %v1516 = vrot.slane %v1515, 4
      %v1518 = vshll.u32 %v1206, 16
      %v1520 = vrot.slane %v1518, 5
      %v1521 = vsel %vm1219, %v1516, %v1520
      %v1522 = vshrl.u32 %v1206, 16
      %v1524 = vrot.slane %v1522, 4
      %v1525 = vor.u32 %v1524, %v1520
      %v1526 = vrot.slane %v1525, 4
      %v1528 = vshll.u32 %v1207, 16
      %v1530 = vrot.slane %v1528, 5
      %v1531 = vsel %vm1219, %v1526, %v1530
      %v1533 = vshrl.u32 %v1208, 16
      %v1535 = vrot.slane %v1533, 4
      %v1536 = vshll.u32 %v1208, 16
      %v1538 = vrot.slane %v1536, 5
      %v1539 = vor.u32 %v1535, %v1538
      %v1540 = vrot.slane %v1539, 4
      %v1542 = vshll.u32 %v1209, 16
      %v1544 = vrot.slane %v1542, 5
      %v1545 = vsel %vm1219, %v1540, %v1544
      %v1546 = vshrl.u32 %v1209, 16
      %v1548 = vrot.slane %v1546, 4
      %v1549 = vor.u32 %v1548, %v1544
      %v1550 = vrot.slane %v1549, 4
      %v1552 = vshll.u32 %v1210, 16
      %v1554 = vrot.slane %v1552, 5
      %v1555 = vsel %vm1219, %v1550, %v1554
      %v1557 = vshrl.u32 %v1211, 16
      %v1559 = vrot.slane %v1557, 4
      %v1560 = vshll.u32 %v1211, 16
      %v1562 = vrot.slane %v1560, 5
      %v1563 = vor.u32 %v1559, %v1562
      %v1564 = vrot.slane %v1563, 4
      %v1566 = vshll.u32 %v1212, 16
      %v1568 = vrot.slane %v1566, 5
      %v1569 = vsel %vm1219, %v1564, %v1568
      %v1570 = vshrl.u32 %v1212, 16
      %v1572 = vrot.slane %v1570, 4
      %v1573 = vor.u32 %v1572, %v1568
      %v1574 = vrot.slane %v1573, 4
      %v1576 = vshll.u32 %v1213, 16
      %v1578 = vrot.slane %v1576, 5
      %v1579 = vsel %vm1219, %v1574, %v1578
      %v1581 = vshrl.u32 %v1214, 16
      %v1583 = vrot.slane %v1581, 4
      %v1584 = vshll.u32 %v1214, 16
      %v1586 = vrot.slane %v1584, 5
      %v1587 = vor.u32 %v1583, %v1586
      %v1588 = vrot.slane %v1587, 4
      %v1590 = vshll.u32 %v1215, 16
      %v1592 = vrot.slane %v1590, 5
      %v1593 = vsel %vm1219, %v1588, %v1592
      %v1594 = vshrl.u32 %v1215, 16
      %v1596 = vrot.slane %v1594, 4
      %v1597 = vor.u32 %v1596, %v1592
      %v1598 = vrot.slane %v1597, 4
      %v1600 = vshll.u32 %v1216, 16
      %v1602 = vrot.slane %v1600, 5
      %v1603 = vsel %vm1219, %v1598, %v1602
      %v1604 = vld [vmem:[%s3] sm:$0xf]
      %v1605 = vld [vmem:[%s3 + $0x4] sm:$0xf]
      %v1606 = vld [vmem:[%s3 + $0x8] sm:$0xf]
      %v1607 = vld [vmem:[%s3 + $0xc] sm:$0xf]
      %v1608 = vld [vmem:[%s3 + $0x10] sm:$0xf]
      %v1609 = vld [vmem:[%s3 + $0x14] sm:$0xf]
      %v1610 = vld [vmem:[%s3 + $0x18] sm:$0xf]
      %v1611 = vld [vmem:[%s3 + $0x1c] sm:$0xf]
      %v1612 = vld [vmem:[%s3 + $0x20] sm:$0xf]
      %v1613 = vld [vmem:[%s3 + $0x24] sm:$0xf]
      %v1614 = vld [vmem:[%s3 + $0x28] sm:$0xf]
      %v1615 = vld [vmem:[%s3 + $0x2c] sm:$0xf]
      %v1616 = vld [vmem:[%s3 + $0x30] sm:$0xf]
      %v1617 = vld [vmem:[%s3 + $0x34] sm:$0xf]
      %v1618 = vld [vmem:[%s3 + $0x38] sm:$0xf]
      %v1619 = vld [vmem:[%s3 + $0x3c] sm:$0xf]
      %v1620 = vunpack.c.l.b16 %v1233
      %v1621 = vunpack.c.h.b16 %v1233
      %v1622 = vunpack.c.l.b16 %v1243
      %v1623 = vunpack.c.h.b16 %v1243
      %v1624 = vunpack.c.l.b16 %v1257
      %v1625 = vunpack.c.h.b16 %v1257
      %v1626 = vunpack.c.l.b16 %v1267
      %v1627 = vunpack.c.h.b16 %v1267
      %v1628 = vunpack.c.l.b16 %v1281
      %v1629 = vunpack.c.h.b16 %v1281
      %v1630 = vunpack.c.l.b16 %v1291
      %v1631 = vunpack.c.h.b16 %v1291
      %v1632 = vunpack.c.l.b16 %v1305
      %v1633 = vunpack.c.h.b16 %v1305
      %v1634 = vunpack.c.l.b16 %v1315
      %v1635 = vunpack.c.h.b16 %v1315
      %v1636 = vunpack.c.l.b16 %v1329
      %v1637 = vunpack.c.h.b16 %v1329
      %v1638 = vunpack.c.l.b16 %v1339
      %v1639 = vunpack.c.h.b16 %v1339
      %v1640 = vunpack.c.l.b16 %v1353
      %v1641 = vunpack.c.h.b16 %v1353
      %v1642 = vunpack.c.l.b16 %v1363
      %v1643 = vunpack.c.h.b16 %v1363
      %v1644 = vunpack.c.l.b16 %v1377
      %v1645 = vunpack.c.h.b16 %v1377
      %v1646 = vunpack.c.l.b16 %v1387
      %v1647 = vunpack.c.h.b16 %v1387
      %v1648 = vunpack.c.l.b16 %v1401
      %v1649 = vunpack.c.h.b16 %v1401
      %v1650 = vunpack.c.l.b16 %v1411
      %v1651 = vunpack.c.h.b16 %v1411
      %v1652 = vunpack.c.l.b16 %v1425
      %v1653 = vunpack.c.h.b16 %v1425
      %v1654 = vunpack.c.l.b16 %v1435
      %v1655 = vunpack.c.h.b16 %v1435
      %v1656 = vunpack.c.l.b16 %v1449
      %v1657 = vunpack.c.h.b16 %v1449
      %v1658 = vunpack.c.l.b16 %v1459
      %v1659 = vunpack.c.h.b16 %v1459
      %v1660 = vunpack.c.l.b16 %v1473
      %v1661 = vunpack.c.h.b16 %v1473
      %v1662 = vunpack.c.l.b16 %v1483
      %v1663 = vunpack.c.h.b16 %v1483
      %v1664 = vunpack.c.l.b16 %v1497
      %v1665 = vunpack.c.h.b16 %v1497
      %v1666 = vunpack.c.l.b16 %v1507
      %v1667 = vunpack.c.h.b16 %v1507
      %v1668 = vunpack.c.l.b16 %v1521
      %v1669 = vunpack.c.h.b16 %v1521
      %v1670 = vunpack.c.l.b16 %v1531
      %v1671 = vunpack.c.h.b16 %v1531
      %v1672 = vunpack.c.l.b16 %v1545
      %v1673 = vunpack.c.h.b16 %v1545
      %v1674 = vunpack.c.l.b16 %v1555
      %v1675 = vunpack.c.h.b16 %v1555
      %v1676 = vunpack.c.l.b16 %v1569
      %v1677 = vunpack.c.h.b16 %v1569
      %v1678 = vunpack.c.l.b16 %v1579
      %v1679 = vunpack.c.h.b16 %v1579
      %v1680 = vunpack.c.l.b16 %v1593
      %v1681 = vunpack.c.h.b16 %v1593
      %v1682 = vunpack.c.l.b16 %v1603
      %v1683 = vunpack.c.h.b16 %v1603
      %v1684 = vpack.c.b16 %v1622, %v1620
      %v1685 = vpack.c.b16 %v1623, %v1621
      %v1686 = vpack.c.b16 %v1626, %v1624
      %v1687 = vpack.c.b16 %v1627, %v1625
      %v1688 = vpack.c.b16 %v1630, %v1628
      %v1689 = vpack.c.b16 %v1631, %v1629
      %v1690 = vpack.c.b16 %v1634, %v1632
      %v1691 = vpack.c.b16 %v1635, %v1633
      %v1692 = vpack.c.b16 %v1638, %v1636
      %v1693 = vpack.c.b16 %v1639, %v1637
      %v1694 = vpack.c.b16 %v1642, %v1640
      %v1695 = vpack.c.b16 %v1643, %v1641
      %v1696 = vpack.c.b16 %v1646, %v1644
      %v1697 = vpack.c.b16 %v1647, %v1645
      %v1698 = vpack.c.b16 %v1650, %v1648
      %v1699 = vpack.c.b16 %v1651, %v1649
      %v1700 = vpack.c.b16 %v1654, %v1652
      %v1701 = vpack.c.b16 %v1655, %v1653
      %v1702 = vpack.c.b16 %v1658, %v1656
      %v1703 = vpack.c.b16 %v1659, %v1657
      %v1704 = vpack.c.b16 %v1662, %v1660
      %v1705 = vpack.c.b16 %v1663, %v1661
      %v1706 = vpack.c.b16 %v1666, %v1664
      %v1707 = vpack.c.b16 %v1667, %v1665
      %v1708 = vpack.c.b16 %v1670, %v1668
      %v1709 = vpack.c.b16 %v1671, %v1669
      %v1710 = vpack.c.b16 %v1674, %v1672
      %v1711 = vpack.c.b16 %v1675, %v1673
      %v1712 = vpack.c.b16 %v1678, %v1676
      %v1713 = vpack.c.b16 %v1679, %v1677
      %v1714 = vpack.c.b16 %v1682, %v1680
      %v1715 = vpack.c.b16 %v1683, %v1681
      %1716 = vrot.lane.b32.xlu0 %v1684, 64
      %v1717 = vpop.permute.xlu0 %1716
      %1718 = vrot.lane.b32.xlu0 %v1685, 64
      %v1719 = vpop.permute.xlu0 %1718
      %1720 = vrot.lane.b32.xlu0 %v1686, 64
      %v1721 = vpop.permute.xlu0 %1720
      %1722 = vrot.lane.b32.xlu0 %v1687, 64
      %v1723 = vpop.permute.xlu0 %1722
      %1724 = vrot.lane.b32.xlu0 %v1688, 64
      %v1725 = vpop.permute.xlu0 %1724
      %1726 = vrot.lane.b32.xlu0 %v1689, 64
      %v1727 = vpop.permute.xlu0 %1726
      %1728 = vrot.lane.b32.xlu0 %v1690, 64
      %v1729 = vpop.permute.xlu0 %1728
      %1730 = vrot.lane.b32.xlu0 %v1691, 64
      %v1731 = vpop.permute.xlu0 %1730
      %1732 = vrot.lane.b32.xlu0 %v1692, 64
      %v1733 = vpop.permute.xlu0 %1732
      %1734 = vrot.lane.b32.xlu0 %v1693, 64
      %v1735 = vpop.permute.xlu0 %1734
      %1736 = vrot.lane.b32.xlu0 %v1694, 64
      %v1737 = vpop.permute.xlu0 %1736
      %1738 = vrot.lane.b32.xlu0 %v1695, 64
      %v1739 = vpop.permute.xlu0 %1738
      %1740 = vrot.lane.b32.xlu0 %v1696, 64
      %v1741 = vpop.permute.xlu0 %1740
      %1742 = vrot.lane.b32.xlu0 %v1697, 64
      %v1743 = vpop.permute.xlu0 %1742
      %1744 = vrot.lane.b32.xlu0 %v1698, 64
      %v1745 = vpop.permute.xlu0 %1744
      %1746 = vrot.lane.b32.xlu0 %v1699, 64
      %v1747 = vpop.permute.xlu0 %1746
      %1748 = vrot.lane.b32.xlu0 %v1700, 64
      %v1749 = vpop.permute.xlu0 %1748
      %1750 = vrot.lane.b32.xlu0 %v1701, 64
      %v1751 = vpop.permute.xlu0 %1750
      %1752 = vrot.lane.b32.xlu0 %v1702, 64
      %v1753 = vpop.permute.xlu0 %1752
      %1754 = vrot.lane.b32.xlu0 %v1703, 64
      %v1755 = vpop.permute.xlu0 %1754
      %1756 = vrot.lane.b32.xlu0 %v1704, 64
      %v1757 = vpop.permute.xlu0 %1756
      %1758 = vrot.lane.b32.xlu0 %v1705, 64
      %v1759 = vpop.permute.xlu0 %1758
      %1760 = vrot.lane.b32.xlu0 %v1706, 64
      %v1761 = vpop.permute.xlu0 %1760
      %1762 = vrot.lane.b32.xlu0 %v1707, 64
      %v1763 = vpop.permute.xlu0 %1762
      %1764 = vrot.lane.b32.xlu0 %v1708, 64
      %v1765 = vpop.permute.xlu0 %1764
      %1766 = vrot.lane.b32.xlu0 %v1709, 64
      %v1767 = vpop.permute.xlu0 %1766
      %1768 = vrot.lane.b32.xlu0 %v1710, 64
      %v1769 = vpop.permute.xlu0 %1768
      %1770 = vrot.lane.b32.xlu0 %v1711, 64
      %v1771 = vpop.permute.xlu0 %1770
      %1772 = vrot.lane.b32.xlu0 %v1712, 64
      %v1773 = vpop.permute.xlu0 %1772
      %1774 = vrot.lane.b32.xlu0 %v1713, 64
      %v1775 = vpop.permute.xlu0 %1774
      %1776 = vrot.lane.b32.xlu0 %v1714, 64
      %v1777 = vpop.permute.xlu0 %1776
      %1778 = vrot.lane.b32.xlu0 %v1715, 64
      %v1779 = vpop.permute.xlu0 %1778
      %vm1780 = vcmask 523264
      %v1781 = vsel %vm1780, %v1717, %v1719
      %v1782 = vsel %vm1780, %v1721, %v1723
      %v1783 = vsel %vm1780, %v1725, %v1727
      %v1784 = vsel %vm1780, %v1729, %v1731
      %v1785 = vsel %vm1780, %v1733, %v1735
      %v1786 = vsel %vm1780, %v1737, %v1739
      %v1787 = vsel %vm1780, %v1741, %v1743
      %v1788 = vsel %vm1780, %v1745, %v1747
      %v1789 = vsel %vm1780, %v1749, %v1751
      %v1790 = vsel %vm1780, %v1753, %v1755
      %v1791 = vsel %vm1780, %v1757, %v1759
      %v1792 = vsel %vm1780, %v1761, %v1763
      %v1793 = vsel %vm1780, %v1765, %v1767
      %v1794 = vsel %vm1780, %v1769, %v1771
      %v1795 = vsel %vm1780, %v1773, %v1775
      %v1796 = vsel %vm1780, %v1777, %v1779
      %v1829 = vunpack.c.l.b16 %v1604
      %v1830 = vunpack.c.l.b16 %v1605
      %v1831 = vunpack.c.l.b16 %v1606
      %v1832 = vunpack.c.l.b16 %v1607
      %v1833 = vunpack.c.l.b16 %v1608
      %v1834 = vunpack.c.l.b16 %v1609
      %v1835 = vunpack.c.l.b16 %v1610
      %v1836 = vunpack.c.l.b16 %v1611
      %v1837 = vunpack.c.l.b16 %v1612
      %v1838 = vunpack.c.l.b16 %v1613
      %v1839 = vunpack.c.l.b16 %v1614
      %v1840 = vunpack.c.l.b16 %v1615
      %v1841 = vunpack.c.l.b16 %v1616
      %v1842 = vunpack.c.l.b16 %v1617
      %v1843 = vunpack.c.l.b16 %v1618
      %v1844 = vunpack.c.l.b16 %v1619
      %v1845 = vpack.c.b16 %v1830, %v1829
      %v1846 = vpack.c.b16 %v1832, %v1831
      %v1847 = vpack.c.b16 %v1834, %v1833
      %v1848 = vpack.c.b16 %v1836, %v1835
      %v1849 = vpack.c.b16 %v1838, %v1837
      %v1850 = vpack.c.b16 %v1840, %v1839
      %v1851 = vpack.c.b16 %v1842, %v1841
      %v1852 = vpack.c.b16 %v1844, %v1843
      %1861 = vmatprep.subr.bf16.mxu0 0
      %1862 = vmatpush1.bf16.msra.mxu0 %v1852
      %1863 = vmatprep.subr.bf16.mxu0 0
      %1864 = vmatpush1.bf16.msra.mxu0 %v1851
      %1865 = vmatprep.subr.bf16.mxu0 0
      %1866 = vmatpush1.bf16.msra.mxu0 %v1850
      %1867 = vmatprep.subr.bf16.mxu0 0
      %1868 = vmatpush1.bf16.msra.mxu0 %v1849
      %1869 = vmatprep.subr.bf16.mxu0 0
      %1870 = vmatpush1.bf16.msra.mxu0 %v1848
      %1871 = vmatprep.subr.bf16.mxu0 0
      %1872 = vmatpush1.bf16.msra.mxu0 %v1847
      %1873 = vmatprep.subr.bf16.mxu0 0
      %1874 = vmatpush1.bf16.msra.mxu0 %v1846
      %1875 = vmatprep.subr.bf16.mxu0 0
      %1876 = vmatpush1.bf16.msra.mxu0 %v1845
      %1877 = vmatprep.subr.bf16.mxu0 0
      %1878 = vmatpush2.bf16.msra.mxu0 0
      %1879 = vmatprep.subr.bf16.mxu0 0
      %1880 = vmatpush2.bf16.msra.mxu0 0
      %1881 = vmatprep.subr.bf16.mxu0 0
      %1882 = vmatpush2.bf16.msra.mxu0 0
      %1883 = vmatprep.subr.bf16.mxu0 0
      %1884 = vmatpush2.bf16.msra.mxu0 0
      %1885 = vmatprep.subr.bf16.mxu0 0
      %1886 = vmatpush2.bf16.msra.mxu0 0
      %1887 = vmatprep.subr.bf16.mxu0 0
      %1888 = vmatpush2.bf16.msra.mxu0 0
      %1889 = vmatprep.subr.bf16.mxu0 0
      %1890 = vmatpush2.bf16.msra.mxu0 0
      %1891 = vmatprep.subr.bf16.mxu0 0
      %1892 = vmatpush2.bf16.msra.mxu0 0
      %1893 = vmatprep.mubr.bf16.mxu0 0
      %1894 = vmatmul.mubr.bf16.gmra.mxu0 %v1781
      %v1895 = vpop.f32.mrf.mxu0
      %v1896 = vadd.f32 0.0, %v1895
      %v1897 = vpop.f32.mrf.mxu0
      %v1898 = vpop.f32.mrf.mxu0
      %v1899 = vadd.f32 0.0, %v1898
      %v1900 = vpop.f32.mrf.mxu0
      %1901 = vmatprep.mubr.bf16.mxu0 0
      %1902 = vmatmul.mubr.bf16.gmra.mxu0 %v1782
      %v1903 = vpop.f32.mrf.mxu0
      %v1904 = vadd.f32 0.0, %v1903
      %v1905 = vpop.f32.mrf.mxu0
      %v1906 = vpop.f32.mrf.mxu0
      %v1907 = vadd.f32 0.0, %v1906
      %v1908 = vpop.f32.mrf.mxu0
      %1909 = vmatprep.mubr.bf16.mxu0 0
      %1910 = vmatmul.mubr.bf16.gmra.mxu0 %v1783
      %v1911 = vpop.f32.mrf.mxu0
      %v1912 = vadd.f32 0.0, %v1911
      %v1913 = vpop.f32.mrf.mxu0
      %v1914 = vpop.f32.mrf.mxu0
      %v1915 = vadd.f32 0.0, %v1914
      %v1916 = vpop.f32.mrf.mxu0
      %1917 = vmatprep.mubr.bf16.mxu0 0
      %1918 = vmatmul.mubr.bf16.gmra.mxu0 %v1784
      %v1919 = vpop.f32.mrf.mxu0
      %v1920 = vadd.f32 0.0, %v1919
      %v1921 = vpop.f32.mrf.mxu0
      %v1922 = vpop.f32.mrf.mxu0
      %v1923 = vadd.f32 0.0, %v1922
      %v1924 = vpop.f32.mrf.mxu0
      %1925 = vmatprep.mubr.bf16.mxu0 0
      %1926 = vmatmul.mubr.bf16.gmra.mxu0 %v1785
      %v1927 = vpop.f32.mrf.mxu0
      %v1928 = vadd.f32 0.0, %v1927
      %v1929 = vpop.f32.mrf.mxu0
      %v1930 = vpop.f32.mrf.mxu0
      %v1931 = vadd.f32 0.0, %v1930
      %v1932 = vpop.f32.mrf.mxu0
      %1933 = vmatprep.mubr.bf16.mxu0 0
      %1934 = vmatmul.mubr.bf16.gmra.mxu0 %v1786
      %v1935 = vpop.f32.mrf.mxu0
      %v1936 = vadd.f32 0.0, %v1935
      %v1937 = vpop.f32.mrf.mxu0
      %v1938 = vpop.f32.mrf.mxu0
      %v1939 = vadd.f32 0.0, %v1938
      %v1940 = vpop.f32.mrf.mxu0
      %1941 = vmatprep.mubr.bf16.mxu0 0
      %1942 = vmatmul.mubr.bf16.gmra.mxu0 %v1787
      %v1943 = vpop.f32.mrf.mxu0
      %v1944 = vadd.f32 0.0, %v1943
      %v1945 = vpop.f32.mrf.mxu0
      %v1946 = vpop.f32.mrf.mxu0
      %v1947 = vadd.f32 0.0, %v1946
      %v1948 = vpop.f32.mrf.mxu0
      %1949 = vmatprep.mubr.bf16.mxu0 0
      %1950 = vmatmul.mubr.bf16.gmra.mxu0 %v1788
      %v1951 = vpop.f32.mrf.mxu0
      %v1952 = vadd.f32 0.0, %v1951
      %v1953 = vpop.f32.mrf.mxu0
      %v1954 = vpop.f32.mrf.mxu0
      %v1955 = vadd.f32 0.0, %v1954
      %v1956 = vpop.f32.mrf.mxu0
      %1957 = vmatprep.mubr.bf16.mxu0 0
      %1958 = vmatmul.mubr.bf16.gmra.mxu0 %v1789
      %v1959 = vpop.f32.mrf.mxu0
      %v1960 = vadd.f32 0.0, %v1959
      %v1961 = vpop.f32.mrf.mxu0
      %v1962 = vpop.f32.mrf.mxu0
      %v1963 = vadd.f32 0.0, %v1962
      %v1964 = vpop.f32.mrf.mxu0
      %1965 = vmatprep.mubr.bf16.mxu0 0
      %1966 = vmatmul.mubr.bf16.gmra.mxu0 %v1790
      %v1967 = vpop.f32.mrf.mxu0
      %v1968 = vadd.f32 0.0, %v1967
      %v1969 = vpop.f32.mrf.mxu0
      %v1970 = vpop.f32.mrf.mxu0
      %v1971 = vadd.f32 0.0, %v1970
      %v1972 = vpop.f32.mrf.mxu0
      %1973 = vmatprep.mubr.bf16.mxu0 0
      %1974 = vmatmul.mubr.bf16.gmra.mxu0 %v1791
      %v1975 = vpop.f32.mrf.mxu0
      %v1976 = vadd.f32 0.0, %v1975
      %v1977 = vpop.f32.mrf.mxu0
      %v1978 = vpop.f32.mrf.mxu0
      %v1979 = vadd.f32 0.0, %v1978
      %v1980 = vpop.f32.mrf.mxu0
      %1981 = vmatprep.mubr.bf16.mxu0 0
      %1982 = vmatmul.mubr.bf16.gmra.mxu0 %v1792
      %v1983 = vpop.f32.mrf.mxu0
      %v1984 = vadd.f32 0.0, %v1983
      %v1985 = vpop.f32.mrf.mxu0
      %v1986 = vpop.f32.mrf.mxu0
      %v1987 = vadd.f32 0.0, %v1986
      %v1988 = vpop.f32.mrf.mxu0
      %1989 = vmatprep.mubr.bf16.mxu0 0
      %1990 = vmatmul.mubr.bf16.gmra.mxu0 %v1793
      %v1991 = vpop.f32.mrf.mxu0
      %v1992 = vadd.f32 0.0, %v1991
      %v1993 = vpop.f32.mrf.mxu0
      %v1994 = vpop.f32.mrf.mxu0
      %v1995 = vadd.f32 0.0, %v1994
      %v1996 = vpop.f32.mrf.mxu0
      %1997 = vmatprep.mubr.bf16.mxu0 0
      %1998 = vmatmul.mubr.bf16.gmra.mxu0 %v1794
      %v1999 = vpop.f32.mrf.mxu0
      %v2000 = vadd.f32 0.0, %v1999
      %v2001 = vpop.f32.mrf.mxu0
      %v2002 = vpop.f32.mrf.mxu0
      %v2003 = vadd.f32 0.0, %v2002
      %v2004 = vpop.f32.mrf.mxu0
      %2005 = vmatprep.mubr.bf16.mxu0 0
      %2006 = vmatmul.mubr.bf16.gmra.mxu0 %v1795
      %v2007 = vpop.f32.mrf.mxu0
      %v2008 = vadd.f32 0.0, %v2007
      %v2009 = vpop.f32.mrf.mxu0
      %v2010 = vpop.f32.mrf.mxu0
      %v2011 = vadd.f32 0.0, %v2010
      %v2012 = vpop.f32.mrf.mxu0
      %2013 = vmatprep.mubr.bf16.mxu0 0
      %2014 = vmatmul.mubr.bf16.gmra.mxu0 %v1796
      %v2015 = vpop.f32.mrf.mxu0
      %v2016 = vadd.f32 0.0, %v2015
      %v2017 = vpop.f32.mrf.mxu0
      %v2018 = vpop.f32.mrf.mxu0
      %v2019 = vadd.f32 0.0, %v2018
      %v2020 = vpop.f32.mrf.mxu0
      %2021 = vdwg.mxu0
      %v2022 = vadd.f32 %v1043, %v1896
      %v2023 = vadd.f32 %v1046, %v1899
      %v2024 = vadd.f32 %v1051, %v1904
      %v2025 = vadd.f32 %v1054, %v1907
      %v2026 = vadd.f32 %v1059, %v1912
      %v2027 = vadd.f32 %v1062, %v1915
      %v2028 = vadd.f32 %v1067, %v1920
      %v2029 = vadd.f32 %v1070, %v1923
      %v2030 = vadd.f32 %v1075, %v1928
      %v2031 = vadd.f32 %v1078, %v1931
      %v2032 = vadd.f32 %v1083, %v1936
      %v2033 = vadd.f32 %v1086, %v1939
      %v2034 = vadd.f32 %v1091, %v1944
      %v2035 = vadd.f32 %v1094, %v1947
      %v2036 = vadd.f32 %v1099, %v1952
      %v2037 = vadd.f32 %v1102, %v1955
      %v2038 = vadd.f32 %v1107, %v1960
      %v2039 = vadd.f32 %v1110, %v1963
      %v2040 = vadd.f32 %v1115, %v1968
      %v2041 = vadd.f32 %v1118, %v1971
      %v2042 = vadd.f32 %v1123, %v1976
      %v2043 = vadd.f32 %v1126, %v1979
      %v2044 = vadd.f32 %v1131, %v1984
      %v2045 = vadd.f32 %v1134, %v1987
      %v2046 = vadd.f32 %v1139, %v1992
      %v2047 = vadd.f32 %v1142, %v1995
      %v2048 = vadd.f32 %v1147, %v2000
      %v2049 = vadd.f32 %v1150, %v2003
      %v2050 = vadd.f32 %v1155, %v2008
      %v2051 = vadd.f32 %v1158, %v2011
      %v2052 = vadd.f32 %v1163, %v2016
      %v2053 = vadd.f32 %v1166, %v2019
      %v2054 = vld [vmem:[%s398] sm:$0xf]
      %v2055 = vld [vmem:[%s398 + $0x8] sm:$0xf]
      %v2056 = vld [vmem:[%s398 + $0x10] sm:$0x1]
      %v2057 = vld [vmem:[%s398 + $0x18] sm:$0xf]
      %v2058 = vld [vmem:[%s398 + $0x20] sm:$0xf]
      %v2059 = vld [vmem:[%s398 + $0x28] sm:$0x1]
      %v2060 = vld [vmem:[%s398 + $0x30] sm:$0xf]
      %v2061 = vld [vmem:[%s398 + $0x38] sm:$0xf]
      %v2062 = vld [vmem:[%s398 + $0x40] sm:$0x1]
      %v2063 = vld [vmem:[%s398 + $0x48] sm:$0xf]
      %v2064 = vld [vmem:[%s398 + $0x50] sm:$0xf]
      %v2065 = vld [vmem:[%s398 + $0x58] sm:$0x1]
      %v2066 = vld [vmem:[%s398 + $0x60] sm:$0xf]
      %v2067 = vld [vmem:[%s398 + $0x68] sm:$0xf]
      %v2068 = vld [vmem:[%s398 + $0x70] sm:$0x1]
      %v2069 = vld [vmem:[%s398 + $0x78] sm:$0xf]
      %v2070 = vld [vmem:[%s398 + $0x80] sm:$0xf]
      %v2071 = vld [vmem:[%s398 + $0x88] sm:$0x1]
      %v2072 = vld [vmem:[%s398 + $0x90] sm:$0xf]
      %v2073 = vld [vmem:[%s398 + $0x98] sm:$0xf]
      %v2074 = vld [vmem:[%s398 + $0xa0] sm:$0x1]
      %v2075 = vld [vmem:[%s398 + $0xa8] sm:$0xf]
      %v2076 = vld [vmem:[%s398 + $0xb0] sm:$0xf]
      %v2077 = vld [vmem:[%s398 + $0xb8] sm:$0x1]
      %v2078 = vld [vmem:[%s398 + $0xc0] sm:$0xf]
      %v2079 = vld [vmem:[%s398 + $0xc8] sm:$0xf]
      %v2080 = vld [vmem:[%s398 + $0xd0] sm:$0x1]
      %v2081 = vld [vmem:[%s398 + $0xd8] sm:$0xf]
      %v2082 = vld [vmem:[%s398 + $0xe0] sm:$0xf]
      %v2083 = vld [vmem:[%s398 + $0xe8] sm:$0x1]
      %v2084 = vld [vmem:[%s398 + $0xf0] sm:$0xf]
      %v2085 = vld [vmem:[%s398 + $0xf8] sm:$0xf]
      %v2086 = vld [vmem:[%s398 + $0x100] sm:$0x1]
      %v2087 = vld [vmem:[%s398 + $0x108] sm:$0xf]
      %v2088 = vld [vmem:[%s398 + $0x110] sm:$0xf]
      %v2089 = vld [vmem:[%s398 + $0x118] sm:$0x1]
      %v2090 = vld [vmem:[%s398 + $0x120] sm:$0xf]
      %v2091 = vld [vmem:[%s398 + $0x128] sm:$0xf]
      %v2092 = vld [vmem:[%s398 + $0x130] sm:$0x1]
      %v2093 = vld [vmem:[%s398 + $0x138] sm:$0xf]
      %v2094 = vld [vmem:[%s398 + $0x140] sm:$0xf]
      %v2095 = vld [vmem:[%s398 + $0x148] sm:$0x1]
      %v2096 = vld [vmem:[%s398 + $0x150] sm:$0xf]
      %v2097 = vld [vmem:[%s398 + $0x158] sm:$0xf]
      %v2098 = vld [vmem:[%s398 + $0x160] sm:$0x1]
      %v2099 = vld [vmem:[%s398 + $0x168] sm:$0xf]
      %v2100 = vld [vmem:[%s398 + $0x170] sm:$0xf]
      %v2101 = vld [vmem:[%s398 + $0x178] sm:$0x1]
      %v2103 = vshrl.u32 %v2054, 16
      %v2105 = vrot.slane %v2103, 4
      %v2106 = vshll.u32 %v2054, 16
      %v2108 = vrot.slane %v2106, 5
      %v2109 = vor.u32 %v2105, %v2108
      %v2110 = vrot.slane %v2109, 4
      %v2112 = vshll.u32 %v2055, 16
      %v2114 = vrot.slane %v2112, 5
      %v2115 = vsel %vm1219, %v2110, %v2114
      %v2116 = vshrl.u32 %v2055, 16
      %v2118 = vrot.slane %v2116, 4
      %v2119 = vor.u32 %v2118, %v2114
      %v2120 = vrot.slane %v2119, 4
      %v2122 = vshll.u32 %v2056, 16
      %v2124 = vrot.slane %v2122, 5
      %v2125 = vsel %vm1219, %v2120, %v2124
      %v2127 = vshrl.u32 %v2057, 16
      %v2129 = vrot.slane %v2127, 4
      %v2130 = vshll.u32 %v2057, 16
      %v2132 = vrot.slane %v2130, 5
      %v2133 = vor.u32 %v2129, %v2132
      %v2134 = vrot.slane %v2133, 4
      %v2136 = vshll.u32 %v2058, 16
      %v2138 = vrot.slane %v2136, 5
      %v2139 = vsel %vm1219, %v2134, %v2138
      %v2140 = vshrl.u32 %v2058, 16
      %v2142 = vrot.slane %v2140, 4
      %v2143 = vor.u32 %v2142, %v2138
      %v2144 = vrot.slane %v2143, 4
      %v2146 = vshll.u32 %v2059, 16
      %v2148 = vrot.slane %v2146, 5
      %v2149 = vsel %vm1219, %v2144, %v2148
      %v2151 = vshrl.u32 %v2060, 16
      %v2153 = vrot.slane %v2151, 4
      %v2154 = vshll.u32 %v2060, 16
      %v2156 = vrot.slane %v2154, 5
      %v2157 = vor.u32 %v2153, %v2156
      %v2158 = vrot.slane %v2157, 4
      %v2160 = vshll.u32 %v2061, 16
      %v2162 = vrot.slane %v2160, 5
      %v2163 = vsel %vm1219, %v2158, %v2162
      %v2164 = vshrl.u32 %v2061, 16
      %v2166 = vrot.slane %v2164, 4
      %v2167 = vor.u32 %v2166, %v2162
      %v2168 = vrot.slane %v2167, 4
      %v2170 = vshll.u32 %v2062, 16
      %v2172 = vrot.slane %v2170, 5
      %v2173 = vsel %vm1219, %v2168, %v2172
      %v2175 = vshrl.u32 %v2063, 16
      %v2177 = vrot.slane %v2175, 4
      %v2178 = vshll.u32 %v2063, 16
      %v2180 = vrot.slane %v2178, 5
      %v2181 = vor.u32 %v2177, %v2180
      %v2182 = vrot.slane %v2181, 4
      %v2184 = vshll.u32 %v2064, 16
      %v2186 = vrot.slane %v2184, 5
      %v2187 = vsel %vm1219, %v2182, %v2186
      %v2188 = vshrl.u32 %v2064, 16
      %v2190 = vrot.slane %v2188, 4
      %v2191 = vor.u32 %v2190, %v2186
      %v2192 = vrot.slane %v2191, 4
      %v2194 = vshll.u32 %v2065, 16
      %v2196 = vrot.slane %v2194, 5
      %v2197 = vsel %vm1219, %v2192, %v2196
      %v2199 = vshrl.u32 %v2066, 16
      %v2201 = vrot.slane %v2199, 4
      %v2202 = vshll.u32 %v2066, 16
      %v2204 = vrot.slane %v2202, 5
      %v2205 = vor.u32 %v2201, %v2204
      %v2206 = vrot.slane %v2205, 4
      %v2208 = vshll.u32 %v2067, 16
      %v2210 = vrot.slane %v2208, 5
      %v2211 = vsel %vm1219, %v2206, %v2210
      %v2212 = vshrl.u32 %v2067, 16
      %v2214 = vrot.slane %v2212, 4
      %v2215 = vor.u32 %v2214, %v2210
      %v2216 = vrot.slane %v2215, 4
      %v2218 = vshll.u32 %v2068, 16
      %v2220 = vrot.slane %v2218, 5
      %v2221 = vsel %vm1219, %v2216, %v2220
      %v2223 = vshrl.u32 %v2069, 16
      %v2225 = vrot.slane %v2223, 4
      %v2226 = vshll.u32 %v2069, 16
      %v2228 = vrot.slane %v2226, 5
      %v2229 = vor.u32 %v2225, %v2228
      %v2230 = vrot.slane %v2229, 4
      %v2232 = vshll.u32 %v2070, 16
      %v2234 = vrot.slane %v2232, 5
      %v2235 = vsel %vm1219, %v2230, %v2234
      %v2236 = vshrl.u32 %v2070, 16
      %v2238 = vrot.slane %v2236, 4
      %v2239 = vor.u32 %v2238, %v2234
      %v2240 = vrot.slane %v2239, 4
      %v2242 = vshll.u32 %v2071, 16
      %v2244 = vrot.slane %v2242, 5
      %v2245 = vsel %vm1219, %v2240, %v2244
      %v2247 = vshrl.u32 %v2072, 16
      %v2249 = vrot.slane %v2247, 4
      %v2250 = vshll.u32 %v2072, 16
      %v2252 = vrot.slane %v2250, 5
      %v2253 = vor.u32 %v2249, %v2252
      %v2254 = vrot.slane %v2253, 4
      %v2256 = vshll.u32 %v2073, 16
      %v2258 = vrot.slane %v2256, 5
      %v2259 = vsel %vm1219, %v2254, %v2258
      %v2260 = vshrl.u32 %v2073, 16
      %v2262 = vrot.slane %v2260, 4
      %v2263 = vor.u32 %v2262, %v2258
      %v2264 = vrot.slane %v2263, 4
      %v2266 = vshll.u32 %v2074, 16
      %v2268 = vrot.slane %v2266, 5
      %v2269 = vsel %vm1219, %v2264, %v2268
      %v2271 = vshrl.u32 %v2075, 16
      %v2273 = vrot.slane %v2271, 4
      %v2274 = vshll.u32 %v2075, 16
      %v2276 = vrot.slane %v2274, 5
      %v2277 = vor.u32 %v2273, %v2276
      %v2278 = vrot.slane %v2277, 4
      %v2280 = vshll.u32 %v2076, 16
      %v2282 = vrot.slane %v2280, 5
      %v2283 = vsel %vm1219, %v2278, %v2282
      %v2284 = vshrl.u32 %v2076, 16
      %v2286 = vrot.slane %v2284, 4
      %v2287 = vor.u32 %v2286, %v2282
      %v2288 = vrot.slane %v2287, 4
      %v2290 = vshll.u32 %v2077, 16
      %v2292 = vrot.slane %v2290, 5
      %v2293 = vsel %vm1219, %v2288, %v2292
      %v2295 = vshrl.u32 %v2078, 16
      %v2297 = vrot.slane %v2295, 4
      %v2298 = vshll.u32 %v2078, 16
      %v2300 = vrot.slane %v2298, 5
      %v2301 = vor.u32 %v2297, %v2300
      %v2302 = vrot.slane %v2301, 4
      %v2304 = vshll.u32 %v2079, 16
      %v2306 = vrot.slane %v2304, 5
      %v2307 = vsel %vm1219, %v2302, %v2306
      %v2308 = vshrl.u32 %v2079, 16
      %v2310 = vrot.slane %v2308, 4
      %v2311 = vor.u32 %v2310, %v2306
      %v2312 = vrot.slane %v2311, 4
      %v2314 = vshll.u32 %v2080, 16
      %v2316 = vrot.slane %v2314, 5
      %v2317 = vsel %vm1219, %v2312, %v2316
      %v2319 = vshrl.u32 %v2081, 16
      %v2321 = vrot.slane %v2319, 4
      %v2322 = vshll.u32 %v2081, 16
      %v2324 = vrot.slane %v2322, 5
      %v2325 = vor.u32 %v2321, %v2324
      %v2326 = vrot.slane %v2325, 4
      %v2328 = vshll.u32 %v2082, 16
      %v2330 = vrot.slane %v2328, 5
      %v2331 = vsel %vm1219, %v2326, %v2330
      %v2332 = vshrl.u32 %v2082, 16
      %v2334 = vrot.slane %v2332, 4
      %v2335 = vor.u32 %v2334, %v2330
      %v2336 = vrot.slane %v2335, 4
      %v2338 = vshll.u32 %v2083, 16
      %v2340 = vrot.slane %v2338, 5
      %v2341 = vsel %vm1219, %v2336, %v2340
      %v2343 = vshrl.u32 %v2084, 16
      %v2345 = vrot.slane %v2343, 4
      %v2346 = vshll.u32 %v2084, 16
      %v2348 = vrot.slane %v2346, 5
      %v2349 = vor.u32 %v2345, %v2348
      %v2350 = vrot.slane %v2349, 4
      %v2352 = vshll.u32 %v2085, 16
      %v2354 = vrot.slane %v2352, 5
      %v2355 = vsel %vm1219, %v2350, %v2354
      %v2356 = vshrl.u32 %v2085, 16
      %v2358 = vrot.slane %v2356, 4
      %v2359 = vor.u32 %v2358, %v2354
      %v2360 = vrot.slane %v2359, 4
      %v2362 = vshll.u32 %v2086, 16
      %v2364 = vrot.slane %v2362, 5
      %v2365 = vsel %vm1219, %v2360, %v2364
      %v2367 = vshrl.u32 %v2087, 16
      %v2369 = vrot.slane %v2367, 4
      %v2370 = vshll.u32 %v2087, 16
      %v2372 = vrot.slane %v2370, 5
      %v2373 = vor.u32 %v2369, %v2372
      %v2374 = vrot.slane %v2373, 4
      %v2376 = vshll.u32 %v2088, 16
      %v2378 = vrot.slane %v2376, 5
      %v2379 = vsel %vm1219, %v2374, %v2378
      %v2380 = vshrl.u32 %v2088, 16
      %v2382 = vrot.slane %v2380, 4
      %v2383 = vor.u32 %v2382, %v2378
      %v2384 = vrot.slane %v2383, 4
      %v2386 = vshll.u32 %v2089, 16
      %v2388 = vrot.slane %v2386, 5
      %v2389 = vsel %vm1219, %v2384, %v2388
      %v2391 = vshrl.u32 %v2090, 16
      %v2393 = vrot.slane %v2391, 4
      %v2394 = vshll.u32 %v2090, 16
      %v2396 = vrot.slane %v2394, 5
      %v2397 = vor.u32 %v2393, %v2396
      %v2398 = vrot.slane %v2397, 4
      %v2400 = vshll.u32 %v2091, 16
      %v2402 = vrot.slane %v2400, 5
      %v2403 = vsel %vm1219, %v2398, %v2402
      %v2404 = vshrl.u32 %v2091, 16
      %v2406 = vrot.slane %v2404, 4
      %v2407 = vor.u32 %v2406, %v2402
      %v2408 = vrot.slane %v2407, 4
      %v2410 = vshll.u32 %v2092, 16
      %v2412 = vrot.slane %v2410, 5
      %v2413 = vsel %vm1219, %v2408, %v2412
      %v2415 = vshrl.u32 %v2093, 16
      %v2417 = vrot.slane %v2415, 4
      %v2418 = vshll.u32 %v2093, 16
      %v2420 = vrot.slane %v2418, 5
      %v2421 = vor.u32 %v2417, %v2420
      %v2422 = vrot.slane %v2421, 4
      %v2424 = vshll.u32 %v2094, 16
      %v2426 = vrot.slane %v2424, 5
      %v2427 = vsel %vm1219, %v2422, %v2426
      %v2428 = vshrl.u32 %v2094, 16
      %v2430 = vrot.slane %v2428, 4
      %v2431 = vor.u32 %v2430, %v2426
      %v2432 = vrot.slane %v2431, 4
      %v2434 = vshll.u32 %v2095, 16
      %v2436 = vrot.slane %v2434, 5
      %v2437 = vsel %vm1219, %v2432, %v2436
      %v2439 = vshrl.u32 %v2096, 16
      %v2441 = vrot.slane %v2439, 4
      %v2442 = vshll.u32 %v2096, 16
      %v2444 = vrot.slane %v2442, 5
      %v2445 = vor.u32 %v2441, %v2444
      %v2446 = vrot.slane %v2445, 4
      %v2448 = vshll.u32 %v2097, 16
      %v2450 = vrot.slane %v2448, 5
      %v2451 = vsel %vm1219, %v2446, %v2450
      %v2452 = vshrl.u32 %v2097, 16
      %v2454 = vrot.slane %v2452, 4
      %v2455 = vor.u32 %v2454, %v2450
      %v2456 = vrot.slane %v2455, 4
      %v2458 = vshll.u32 %v2098, 16
      %v2460 = vrot.slane %v2458, 5
      %v2461 = vsel %vm1219, %v2456, %v2460
      %v2463 = vshrl.u32 %v2099, 16
      %v2465 = vrot.slane %v2463, 4
      %v2466 = vshll.u32 %v2099, 16
      %v2468 = vrot.slane %v2466, 5
      %v2469 = vor.u32 %v2465, %v2468
      %v2470 = vrot.slane %v2469, 4
      %v2472 = vshll.u32 %v2100, 16
      %v2474 = vrot.slane %v2472, 5
      %v2475 = vsel %vm1219, %v2470, %v2474
      %v2476 = vshrl.u32 %v2100, 16
      %v2478 = vrot.slane %v2476, 4
      %v2479 = vor.u32 %v2478, %v2474
      %v2480 = vrot.slane %v2479, 4
      %v2482 = vshll.u32 %v2101, 16
      %v2484 = vrot.slane %v2482, 5
      %v2485 = vsel %vm1219, %v2480, %v2484
      %v2486 = vld [vmem:[%s4] sm:$0xf]
      %v2487 = vld [vmem:[%s4 + $0x4] sm:$0xf]
      %v2488 = vld [vmem:[%s4 + $0x8] sm:$0xf]
      %v2489 = vld [vmem:[%s4 + $0xc] sm:$0xf]
      %v2490 = vld [vmem:[%s4 + $0x10] sm:$0xf]
      %v2491 = vld [vmem:[%s4 + $0x14] sm:$0xf]
      %v2492 = vld [vmem:[%s4 + $0x18] sm:$0xf]
      %v2493 = vld [vmem:[%s4 + $0x1c] sm:$0xf]
      %v2494 = vunpack.c.l.b16 %v2115
      %v2495 = vunpack.c.l.b16 %v2125
      %v2496 = vunpack.c.l.b16 %v2139
      %v2497 = vunpack.c.l.b16 %v2149
      %v2498 = vunpack.c.l.b16 %v2163
      %v2499 = vunpack.c.l.b16 %v2173
      %v2500 = vunpack.c.l.b16 %v2187
      %v2501 = vunpack.c.l.b16 %v2197
      %v2502 = vunpack.c.l.b16 %v2211
      %v2503 = vunpack.c.l.b16 %v2221
      %v2504 = vunpack.c.l.b16 %v2235
      %v2505 = vunpack.c.l.b16 %v2245
      %v2506 = vunpack.c.l.b16 %v2259
      %v2507 = vunpack.c.l.b16 %v2269
      %v2508 = vunpack.c.l.b16 %v2283
      %v2509 = vunpack.c.l.b16 %v2293
      %v2510 = vunpack.c.l.b16 %v2307
      %v2511 = vunpack.c.l.b16 %v2317
      %v2512 = vunpack.c.l.b16 %v2331
      %v2513 = vunpack.c.l.b16 %v2341
      %v2514 = vunpack.c.l.b16 %v2355
      %v2515 = vunpack.c.l.b16 %v2365
      %v2516 = vunpack.c.l.b16 %v2379
      %v2517 = vunpack.c.l.b16 %v2389
      %v2518 = vunpack.c.l.b16 %v2403
      %v2519 = vunpack.c.l.b16 %v2413
      %v2520 = vunpack.c.l.b16 %v2427
      %v2521 = vunpack.c.l.b16 %v2437
      %v2522 = vunpack.c.l.b16 %v2451
      %v2523 = vunpack.c.l.b16 %v2461
      %v2524 = vunpack.c.l.b16 %v2475
      %v2525 = vunpack.c.l.b16 %v2485
      %v2526 = vpack.c.b16 %v2495, %v2494
      %v2527 = vpack.c.b16 %v2497, %v2496
      %v2528 = vpack.c.b16 %v2499, %v2498
      %v2529 = vpack.c.b16 %v2501, %v2500
      %v2530 = vpack.c.b16 %v2503, %v2502
      %v2531 = vpack.c.b16 %v2505, %v2504
      %v2532 = vpack.c.b16 %v2507, %v2506
      %v2533 = vpack.c.b16 %v2509, %v2508
      %v2534 = vpack.c.b16 %v2511, %v2510
      %v2535 = vpack.c.b16 %v2513, %v2512
      %v2536 = vpack.c.b16 %v2515, %v2514
      %v2537 = vpack.c.b16 %v2517, %v2516
      %v2538 = vpack.c.b16 %v2519, %v2518
      %v2539 = vpack.c.b16 %v2521, %v2520
      %v2540 = vpack.c.b16 %v2523, %v2522
      %v2541 = vpack.c.b16 %v2525, %v2524
      %2542 = vrot.lane.b32.xlu0 %v2526, 64
      %v2543 = vpop.permute.xlu0 %2542
      %2544 = vrot.lane.b32.xlu0 %v2527, 64
      %v2545 = vpop.permute.xlu0 %2544
      %2546 = vrot.lane.b32.xlu0 %v2528, 64
      %v2547 = vpop.permute.xlu0 %2546
      %2548 = vrot.lane.b32.xlu0 %v2529, 64
      %v2549 = vpop.permute.xlu0 %2548
      %2550 = vrot.lane.b32.xlu0 %v2530, 64
      %v2551 = vpop.permute.xlu0 %2550
      %2552 = vrot.lane.b32.xlu0 %v2531, 64
      %v2553 = vpop.permute.xlu0 %2552
      %2554 = vrot.lane.b32.xlu0 %v2532, 64
      %v2555 = vpop.permute.xlu0 %2554
      %2556 = vrot.lane.b32.xlu0 %v2533, 64
      %v2557 = vpop.permute.xlu0 %2556
      %2558 = vrot.lane.b32.xlu0 %v2534, 64
      %v2559 = vpop.permute.xlu0 %2558
      %2560 = vrot.lane.b32.xlu0 %v2535, 64
      %v2561 = vpop.permute.xlu0 %2560
      %2562 = vrot.lane.b32.xlu0 %v2536, 64
      %v2563 = vpop.permute.xlu0 %2562
      %2564 = vrot.lane.b32.xlu0 %v2537, 64
      %v2565 = vpop.permute.xlu0 %2564
      %2566 = vrot.lane.b32.xlu0 %v2538, 64
      %v2567 = vpop.permute.xlu0 %2566
      %2568 = vrot.lane.b32.xlu0 %v2539, 64
      %v2569 = vpop.permute.xlu0 %2568
      %2570 = vrot.lane.b32.xlu0 %v2540, 64
      %v2571 = vpop.permute.xlu0 %2570
      %2572 = vrot.lane.b32.xlu0 %v2541, 64
      %v2573 = vpop.permute.xlu0 %2572
      %v2582 = vunpack.c.l.b16 %v2486
      %v2583 = vunpack.c.l.b16 %v2487
      %v2584 = vunpack.c.l.b16 %v2488
      %v2585 = vunpack.c.l.b16 %v2489
      %v2586 = vunpack.c.l.b16 %v2490
      %v2587 = vunpack.c.l.b16 %v2491
      %v2588 = vunpack.c.l.b16 %v2492
      %v2589 = vunpack.c.l.b16 %v2493
      %v2590 = vpack.c.b16 %v2583, %v2582
      %v2591 = vpack.c.b16 %v2585, %v2584
      %v2592 = vpack.c.b16 %v2587, %v2586
      %v2593 = vpack.c.b16 %v2589, %v2588
      %vm2598 = vcmask 523264
      %v2600 = vsel %vm2598, %v2543, 0
      %v2603 = vsel %vm2598, %v2545, 0
      %v2606 = vsel %vm2598, %v2547, 0
      %v2609 = vsel %vm2598, %v2549, 0
      %v2612 = vsel %vm2598, %v2551, 0
      %v2615 = vsel %vm2598, %v2553, 0
      %v2618 = vsel %vm2598, %v2555, 0
      %v2621 = vsel %vm2598, %v2557, 0
      %v2624 = vsel %vm2598, %v2559, 0
      %v2627 = vsel %vm2598, %v2561, 0
      %v2630 = vsel %vm2598, %v2563, 0
      %v2633 = vsel %vm2598, %v2565, 0
      %v2636 = vsel %vm2598, %v2567, 0
      %v2639 = vsel %vm2598, %v2569, 0
      %v2642 = vsel %vm2598, %v2571, 0
      %v2645 = vsel %vm2598, %v2573, 0
      %2647 = vmatprep.subr.bf16.mxu0 0
      %2648 = vmatpush1.bf16.msra.mxu0 0
      %2649 = vmatprep.subr.bf16.mxu0 0
      %2650 = vmatpush1.bf16.msra.mxu0 0
      %2651 = vmatprep.subr.bf16.mxu0 0
      %2652 = vmatpush1.bf16.msra.mxu0 0
      %2653 = vmatprep.subr.bf16.mxu0 0
      %2654 = vmatpush1.bf16.msra.mxu0 0
      %2655 = vmatprep.subr.bf16.mxu0 0
      %2656 = vmatpush1.bf16.msra.mxu0 %v2593
      %2657 = vmatprep.subr.bf16.mxu0 0
      %2658 = vmatpush1.bf16.msra.mxu0 %v2592
      %2659 = vmatprep.subr.bf16.mxu0 0
      %2660 = vmatpush1.bf16.msra.mxu0 %v2591
      %2661 = vmatprep.subr.bf16.mxu0 0
      %2662 = vmatpush1.bf16.msra.mxu0 %v2590
      %2663 = vmatprep.subr.bf16.mxu0 0
      %2664 = vmatpush2.bf16.msra.mxu0 0
      %2665 = vmatprep.subr.bf16.mxu0 0
      %2666 = vmatpush2.bf16.msra.mxu0 0
      %2667 = vmatprep.subr.bf16.mxu0 0
      %2668 = vmatpush2.bf16.msra.mxu0 0
      %2669 = vmatprep.subr.bf16.mxu0 0
      %2670 = vmatpush2.bf16.msra.mxu0 0
      %2671 = vmatprep.subr.bf16.mxu0 0
      %2672 = vmatpush2.bf16.msra.mxu0 0
      %2673 = vmatprep.subr.bf16.mxu0 0
      %2674 = vmatpush2.bf16.msra.mxu0 0
      %2675 = vmatprep.subr.bf16.mxu0 0
      %2676 = vmatpush2.bf16.msra.mxu0 0
      %2677 = vmatprep.subr.bf16.mxu0 0
      %2678 = vmatpush2.bf16.msra.mxu0 0
      %2679 = vmatprep.mubr.bf16.mxu0 0
      %2680 = vmatmul.mubr.bf16.gmra.mxu0 %v2600
      %v2681 = vpop.f32.mrf.mxu0
      %v2682 = vadd.f32 0.0, %v2681
      %v2683 = vpop.f32.mrf.mxu0
      %v2684 = vpop.f32.mrf.mxu0
      %v2685 = vadd.f32 0.0, %v2684
      %v2686 = vpop.f32.mrf.mxu0
      %2687 = vmatprep.mubr.bf16.mxu0 0
      %2688 = vmatmul.mubr.bf16.gmra.mxu0 %v2603
      %v2689 = vpop.f32.mrf.mxu0
      %v2690 = vadd.f32 0.0, %v2689
      %v2691 = vpop.f32.mrf.mxu0
      %v2692 = vpop.f32.mrf.mxu0
      %v2693 = vadd.f32 0.0, %v2692
      %v2694 = vpop.f32.mrf.mxu0
      %2695 = vmatprep.mubr.bf16.mxu0 0
      %2696 = vmatmul.mubr.bf16.gmra.mxu0 %v2606
      %v2697 = vpop.f32.mrf.mxu0
      %v2698 = vadd.f32 0.0, %v2697
      %v2699 = vpop.f32.mrf.mxu0
      %v2700 = vpop.f32.mrf.mxu0
      %v2701 = vadd.f32 0.0, %v2700
      %v2702 = vpop.f32.mrf.mxu0
      %2703 = vmatprep.mubr.bf16.mxu0 0
      %2704 = vmatmul.mubr.bf16.gmra.mxu0 %v2609
      %v2705 = vpop.f32.mrf.mxu0
      %v2706 = vadd.f32 0.0, %v2705
      %v2707 = vpop.f32.mrf.mxu0
      %v2708 = vpop.f32.mrf.mxu0
      %v2709 = vadd.f32 0.0, %v2708
      %v2710 = vpop.f32.mrf.mxu0
      %2711 = vmatprep.mubr.bf16.mxu0 0
      %2712 = vmatmul.mubr.bf16.gmra.mxu0 %v2612
      %v2713 = vpop.f32.mrf.mxu0
      %v2714 = vadd.f32 0.0, %v2713
      %v2715 = vpop.f32.mrf.mxu0
      %v2716 = vpop.f32.mrf.mxu0
      %v2717 = vadd.f32 0.0, %v2716
      %v2718 = vpop.f32.mrf.mxu0
      %2719 = vmatprep.mubr.bf16.mxu0 0
      %2720 = vmatmul.mubr.bf16.gmra.mxu0 %v2615
      %v2721 = vpop.f32.mrf.mxu0
      %v2722 = vadd.f32 0.0, %v2721
      %v2723 = vpop.f32.mrf.mxu0
      %v2724 = vpop.f32.mrf.mxu0
      %v2725 = vadd.f32 0.0, %v2724
      %v2726 = vpop.f32.mrf.mxu0
      %2727 = vmatprep.mubr.bf16.mxu0 0
      %2728 = vmatmul.mubr.bf16.gmra.mxu0 %v2618
      %v2729 = vpop.f32.mrf.mxu0
      %v2730 = vadd.f32 0.0, %v2729
      %v2731 = vpop.f32.mrf.mxu0
      %v2732 = vpop.f32.mrf.mxu0
      %v2733 = vadd.f32 0.0, %v2732
      %v2734 = vpop.f32.mrf.mxu0
      %2735 = vmatprep.mubr.bf16.mxu0 0
      %2736 = vmatmul.mubr.bf16.gmra.mxu0 %v2621
      %v2737 = vpop.f32.mrf.mxu0
      %v2738 = vadd.f32 0.0, %v2737
      %v2739 = vpop.f32.mrf.mxu0
      %v2740 = vpop.f32.mrf.mxu0
      %v2741 = vadd.f32 0.0, %v2740
      %v2742 = vpop.f32.mrf.mxu0
      %2743 = vmatprep.mubr.bf16.mxu0 0
      %2744 = vmatmul.mubr.bf16.gmra.mxu0 %v2624
      %v2745 = vpop.f32.mrf.mxu0
      %v2746 = vadd.f32 0.0, %v2745
      %v2747 = vpop.f32.mrf.mxu0
      %v2748 = vpop.f32.mrf.mxu0
      %v2749 = vadd.f32 0.0, %v2748
      %v2750 = vpop.f32.mrf.mxu0
      %2751 = vmatprep.mubr.bf16.mxu0 0
      %2752 = vmatmul.mubr.bf16.gmra.mxu0 %v2627
      %v2753 = vpop.f32.mrf.mxu0
      %v2754 = vadd.f32 0.0, %v2753
      %v2755 = vpop.f32.mrf.mxu0
      %v2756 = vpop.f32.mrf.mxu0
      %v2757 = vadd.f32 0.0, %v2756
      %v2758 = vpop.f32.mrf.mxu0
      %2759 = vmatprep.mubr.bf16.mxu0 0
      %2760 = vmatmul.mubr.bf16.gmra.mxu0 %v2630
      %v2761 = vpop.f32.mrf.mxu0
      %v2762 = vadd.f32 0.0, %v2761
      %v2763 = vpop.f32.mrf.mxu0
      %v2764 = vpop.f32.mrf.mxu0
      %v2765 = vadd.f32 0.0, %v2764
      %v2766 = vpop.f32.mrf.mxu0
      %2767 = vmatprep.mubr.bf16.mxu0 0
      %2768 = vmatmul.mubr.bf16.gmra.mxu0 %v2633
      %v2769 = vpop.f32.mrf.mxu0
      %v2770 = vadd.f32 0.0, %v2769
      %v2771 = vpop.f32.mrf.mxu0
      %v2772 = vpop.f32.mrf.mxu0
      %v2773 = vadd.f32 0.0, %v2772
      %v2774 = vpop.f32.mrf.mxu0
      %2775 = vmatprep.mubr.bf16.mxu0 0
      %2776 = vmatmul.mubr.bf16.gmra.mxu0 %v2636
      %v2777 = vpop.f32.mrf.mxu0
      %v2778 = vadd.f32 0.0, %v2777
      %v2779 = vpop.f32.mrf.mxu0
      %v2780 = vpop.f32.mrf.mxu0
      %v2781 = vadd.f32 0.0, %v2780
      %v2782 = vpop.f32.mrf.mxu0
      %2783 = vmatprep.mubr.bf16.mxu0 0
      %2784 = vmatmul.mubr.bf16.gmra.mxu0 %v2639
      %v2785 = vpop.f32.mrf.mxu0
      %v2786 = vadd.f32 0.0, %v2785
      %v2787 = vpop.f32.mrf.mxu0
      %v2788 = vpop.f32.mrf.mxu0
      %v2789 = vadd.f32 0.0, %v2788
      %v2790 = vpop.f32.mrf.mxu0
      %2791 = vmatprep.mubr.bf16.mxu0 0
      %2792 = vmatmul.mubr.bf16.gmra.mxu0 %v2642
      %v2793 = vpop.f32.mrf.mxu0
      %v2794 = vadd.f32 0.0, %v2793
      %v2795 = vpop.f32.mrf.mxu0
      %v2796 = vpop.f32.mrf.mxu0
      %v2797 = vadd.f32 0.0, %v2796
      %v2798 = vpop.f32.mrf.mxu0
      %2799 = vmatprep.mubr.bf16.mxu0 0
      %2800 = vmatmul.mubr.bf16.gmra.mxu0 %v2645
      %v2801 = vpop.f32.mrf.mxu0
      %v2802 = vadd.f32 0.0, %v2801
      %v2803 = vpop.f32.mrf.mxu0
      %v2804 = vpop.f32.mrf.mxu0
      %v2805 = vadd.f32 0.0, %v2804
      %v2806 = vpop.f32.mrf.mxu0
      %2807 = vdwg.mxu0
      %v2808 = vadd.f32 %v2022, %v2682
      %v2809 = vadd.f32 %v2023, %v2685
      %v2810 = vadd.f32 %v2024, %v2690
      %v2811 = vadd.f32 %v2025, %v2693
      %v2812 = vadd.f32 %v2026, %v2698
      %v2813 = vadd.f32 %v2027, %v2701
      %v2814 = vadd.f32 %v2028, %v2706
      %v2815 = vadd.f32 %v2029, %v2709
      %v2816 = vadd.f32 %v2030, %v2714
      %v2817 = vadd.f32 %v2031, %v2717
      %v2818 = vadd.f32 %v2032, %v2722
      %v2819 = vadd.f32 %v2033, %v2725
      %v2820 = vadd.f32 %v2034, %v2730
      %v2821 = vadd.f32 %v2035, %v2733
      %v2822 = vadd.f32 %v2036, %v2738
      %v2823 = vadd.f32 %v2037, %v2741
      %v2824 = vadd.f32 %v2038, %v2746
      %v2825 = vadd.f32 %v2039, %v2749
      %v2826 = vadd.f32 %v2040, %v2754
      %v2827 = vadd.f32 %v2041, %v2757
      %v2828 = vadd.f32 %v2042, %v2762
      %v2829 = vadd.f32 %v2043, %v2765
      %v2830 = vadd.f32 %v2044, %v2770
      %v2831 = vadd.f32 %v2045, %v2773
      %v2832 = vadd.f32 %v2046, %v2778
      %v2833 = vadd.f32 %v2047, %v2781
      %v2834 = vadd.f32 %v2048, %v2786
      %v2835 = vadd.f32 %v2049, %v2789
      %v2836 = vadd.f32 %v2050, %v2794
      %v2837 = vadd.f32 %v2051, %v2797
      %v2838 = vadd.f32 %v2052, %v2802
      %v2839 = vadd.f32 %v2053, %v2805
      %v2840 = vld [vmem:[%s5] sm:$0x1]
      %v2842 = vlaneseq
      %v2843 = vshrl.u32 %v2842, 7
      %v2844 = vsub.s32 0, %v2843
      %v2845 = vrot.slane %v2840, %v2844
      %v2847 = vadd.f32 %v2808, %v2845
      %v2848 = vadd.f32 %v2809, %v2845
      %v2849 = vadd.f32 %v2810, %v2845
      %v2850 = vadd.f32 %v2811, %v2845
      %v2851 = vadd.f32 %v2812, %v2845
      %v2852 = vadd.f32 %v2813, %v2845
      %v2853 = vadd.f32 %v2814, %v2845
      %v2854 = vadd.f32 %v2815, %v2845
      %v2855 = vadd.f32 %v2816, %v2845
      %v2856 = vadd.f32 %v2817, %v2845
      %v2857 = vadd.f32 %v2818, %v2845
      %v2858 = vadd.f32 %v2819, %v2845
      %v2859 = vadd.f32 %v2820, %v2845
      %v2860 = vadd.f32 %v2821, %v2845
      %v2861 = vadd.f32 %v2822, %v2845
      %v2862 = vadd.f32 %v2823, %v2845
      %v2863 = vadd.f32 %v2824, %v2845
      %v2864 = vadd.f32 %v2825, %v2845
      %v2865 = vadd.f32 %v2826, %v2845
      %v2866 = vadd.f32 %v2827, %v2845
      %v2867 = vadd.f32 %v2828, %v2845
      %v2868 = vadd.f32 %v2829, %v2845
      %v2869 = vadd.f32 %v2830, %v2845
      %v2870 = vadd.f32 %v2831, %v2845
      %v2871 = vadd.f32 %v2832, %v2845
      %v2872 = vadd.f32 %v2833, %v2845
      %v2873 = vadd.f32 %v2834, %v2845
      %v2874 = vadd.f32 %v2835, %v2845
      %v2875 = vadd.f32 %v2836, %v2845
      %v2876 = vadd.f32 %v2837, %v2845
      %v2877 = vadd.f32 %v2838, %v2845
      %v2878 = vadd.f32 %v2839, %v2845
      %v2879 = vadd.f32 %v2847, %v2848
      %v2880 = vadd.f32 %v2879, %v2849
      %v2881 = vadd.f32 %v2880, %v2850
      %v2882 = vadd.f32 %v2881, %v2851
      %v2883 = vadd.f32 %v2882, %v2852
      %v2884 = vadd.f32 %v2883, %v2853
      %v2885 = vadd.f32 %v2884, %v2854
      %v2886 = vadd.f32 %v2885, %v2855
      %v2887 = vadd.f32 %v2886, %v2856
      %v2888 = vadd.f32 %v2887, %v2857
      %v2889 = vadd.f32 %v2888, %v2858
      %v2890 = vadd.f32 %v2889, %v2859
      %v2891 = vadd.f32 %v2890, %v2860
      %v2892 = vadd.f32 %v2891, %v2861
      %v2893 = vadd.f32 %v2892, %v2862
      %v2894 = vadd.f32 %v2893, %v2863
      %v2895 = vadd.f32 %v2894, %v2864
      %v2896 = vadd.f32 %v2895, %v2865
      %v2897 = vadd.f32 %v2896, %v2866
      %v2898 = vadd.f32 %v2897, %v2867
      %v2899 = vadd.f32 %v2898, %v2868
      %v2900 = vadd.f32 %v2899, %v2869
      %v2901 = vadd.f32 %v2900, %v2870
      %v2902 = vadd.f32 %v2901, %v2871
      %v2903 = vadd.f32 %v2902, %v2872
      %v2904 = vadd.f32 %v2903, %v2873
      %v2905 = vadd.f32 %v2904, %v2874
      %v2906 = vadd.f32 %v2905, %v2875
      %v2907 = vadd.f32 %v2906, %v2876
      %v2908 = vadd.f32 %v2907, %v2877
      %v2909 = vadd.f32 %v2908, %v2878
      %v2910 = vrot.slane %v2909, 4
      %v2911 = vadd.f32 %v2909, %v2910
      %v2912 = vrot.slane %v2911, 2
      %v2913 = vadd.f32 %v2911, %v2912
      %v2914 = vrot.slane %v2913, 1
      %v2915 = vadd.f32 %v2913, %v2914
      %v2916 = vrcp.pop 256.0
      %v2917 = vmul.f32 %v2915, %v2916
      %v2918 = vsub.f32 %v2847, %v2917
      %v2919 = vsub.f32 %v2848, %v2917
      %v2920 = vsub.f32 %v2849, %v2917
      %v2921 = vsub.f32 %v2850, %v2917
      %v2922 = vsub.f32 %v2851, %v2917
      %v2923 = vsub.f32 %v2852, %v2917
      %v2924 = vsub.f32 %v2853, %v2917
      %v2925 = vsub.f32 %v2854, %v2917
      %v2926 = vsub.f32 %v2855, %v2917
      %v2927 = vsub.f32 %v2856, %v2917
      %v2928 = vsub.f32 %v2857, %v2917
      %v2929 = vsub.f32 %v2858, %v2917
      %v2930 = vsub.f32 %v2859, %v2917
      %v2931 = vsub.f32 %v2860, %v2917
      %v2932 = vsub.f32 %v2861, %v2917
      %v2933 = vsub.f32 %v2862, %v2917
      %v2934 = vsub.f32 %v2863, %v2917
      %v2935 = vsub.f32 %v2864, %v2917
      %v2936 = vsub.f32 %v2865, %v2917
      %v2937 = vsub.f32 %v2866, %v2917
      %v2938 = vsub.f32 %v2867, %v2917
      %v2939 = vsub.f32 %v2868, %v2917
      %v2940 = vsub.f32 %v2869, %v2917
      %v2941 = vsub.f32 %v2870, %v2917
      %v2942 = vsub.f32 %v2871, %v2917
      %v2943 = vsub.f32 %v2872, %v2917
      %v2944 = vsub.f32 %v2873, %v2917
      %v2945 = vsub.f32 %v2874, %v2917
      %v2946 = vsub.f32 %v2875, %v2917
      %v2947 = vsub.f32 %v2876, %v2917
      %v2948 = vsub.f32 %v2877, %v2917
      %v2949 = vsub.f32 %v2878, %v2917
      %v2950 = vmul.f32 %v2918, %v2918
      %v2951 = vmul.f32 %v2919, %v2919
      %v2952 = vmul.f32 %v2920, %v2920
      %v2953 = vmul.f32 %v2921, %v2921
      %v2954 = vmul.f32 %v2922, %v2922
      %v2955 = vmul.f32 %v2923, %v2923
      %v2956 = vmul.f32 %v2924, %v2924
      %v2957 = vmul.f32 %v2925, %v2925
      %v2958 = vmul.f32 %v2926, %v2926
      %v2959 = vmul.f32 %v2927, %v2927
      %v2960 = vmul.f32 %v2928, %v2928
      %v2961 = vmul.f32 %v2929, %v2929
      %v2962 = vmul.f32 %v2930, %v2930
      %v2963 = vmul.f32 %v2931, %v2931
      %v2964 = vmul.f32 %v2932, %v2932
      %v2965 = vmul.f32 %v2933, %v2933
      %v2966 = vmul.f32 %v2934, %v2934
      %v2967 = vmul.f32 %v2935, %v2935
      %v2968 = vmul.f32 %v2936, %v2936
      %v2969 = vmul.f32 %v2937, %v2937
      %v2970 = vmul.f32 %v2938, %v2938
      %v2971 = vmul.f32 %v2939, %v2939
      %v2972 = vmul.f32 %v2940, %v2940
      %v2973 = vmul.f32 %v2941, %v2941
      %v2974 = vmul.f32 %v2942, %v2942
      %v2975 = vmul.f32 %v2943, %v2943
      %v2976 = vmul.f32 %v2944, %v2944
      %v2977 = vmul.f32 %v2945, %v2945
      %v2978 = vmul.f32 %v2946, %v2946
      %v2979 = vmul.f32 %v2947, %v2947
      %v2980 = vmul.f32 %v2948, %v2948
      %v2981 = vmul.f32 %v2949, %v2949
      %v2982 = vadd.f32 %v2950, %v2951
      %v2983 = vadd.f32 %v2982, %v2952
      %v2984 = vadd.f32 %v2983, %v2953
      %v2985 = vadd.f32 %v2984, %v2954
      %v2986 = vadd.f32 %v2985, %v2955
      %v2987 = vadd.f32 %v2986, %v2956
      %v2988 = vadd.f32 %v2987, %v2957
      %v2989 = vadd.f32 %v2988, %v2958
      %v2990 = vadd.f32 %v2989, %v2959
      %v2991 = vadd.f32 %v2990, %v2960
      %v2992 = vadd.f32 %v2991, %v2961
      %v2993 = vadd.f32 %v2992, %v2962
      %v2994 = vadd.f32 %v2993, %v2963
      %v2995 = vadd.f32 %v2994, %v2964
      %v2996 = vadd.f32 %v2995, %v2965
      %v2997 = vadd.f32 %v2996, %v2966
      %v2998 = vadd.f32 %v2997, %v2967
      %v2999 = vadd.f32 %v2998, %v2968
      %v3000 = vadd.f32 %v2999, %v2969
      %v3001 = vadd.f32 %v3000, %v2970
      %v3002 = vadd.f32 %v3001, %v2971
      %v3003 = vadd.f32 %v3002, %v2972
      %v3004 = vadd.f32 %v3003, %v2973
      %v3005 = vadd.f32 %v3004, %v2974
      %v3006 = vadd.f32 %v3005, %v2975
      %v3007 = vadd.f32 %v3006, %v2976
      %v3008 = vadd.f32 %v3007, %v2977
      %v3009 = vadd.f32 %v3008, %v2978
      %v3010 = vadd.f32 %v3009, %v2979
      %v3011 = vadd.f32 %v3010, %v2980
      %v3012 = vadd.f32 %v3011, %v2981
      %v3013 = vrot.slane %v3012, 4
      %v3014 = vadd.f32 %v3012, %v3013
      %v3015 = vrot.slane %v3014, 2
      %v3016 = vadd.f32 %v3014, %v3015
      %v3017 = vrot.slane %v3016, 1
      %v3018 = vadd.f32 %v3016, %v3017
      %v3019 = vmul.f32 %v3018, %v2916
      %v3020 = vadd.f32 %v3019, 1e-05
      %v3021 = vrsqrt.pop %v3020
      %v3022 = vmul.f32 %v2918, %v3021
      %v3023 = vmul.f32 %v2919, %v3021
      %v3024 = vmul.f32 %v2920, %v3021
      %v3025 = vmul.f32 %v2921, %v3021
      %v3026 = vmul.f32 %v2922, %v3021
      %v3027 = vmul.f32 %v2923, %v3021
      %v3028 = vmul.f32 %v2924, %v3021
      %v3029 = vmul.f32 %v2925, %v3021
      %v3030 = vmul.f32 %v2926, %v3021
      %v3031 = vmul.f32 %v2927, %v3021
      %v3032 = vmul.f32 %v2928, %v3021
      %v3033 = vmul.f32 %v2929, %v3021
      %v3034 = vmul.f32 %v2930, %v3021
      %v3035 = vmul.f32 %v2931, %v3021
      %v3036 = vmul.f32 %v2932, %v3021
      %v3037 = vmul.f32 %v2933, %v3021
      %v3038 = vmul.f32 %v2934, %v3021
      %v3039 = vmul.f32 %v2935, %v3021
      %v3040 = vmul.f32 %v2936, %v3021
      %v3041 = vmul.f32 %v2937, %v3021
      %v3042 = vmul.f32 %v2938, %v3021
      %v3043 = vmul.f32 %v2939, %v3021
      %v3044 = vmul.f32 %v2940, %v3021
      %v3045 = vmul.f32 %v2941, %v3021
      %v3046 = vmul.f32 %v2942, %v3021
      %v3047 = vmul.f32 %v2943, %v3021
      %v3048 = vmul.f32 %v2944, %v3021
      %v3049 = vmul.f32 %v2945, %v3021
      %v3050 = vmul.f32 %v2946, %v3021
      %v3051 = vmul.f32 %v2947, %v3021
      %v3052 = vmul.f32 %v2948, %v3021
      %v3053 = vmul.f32 %v2949, %v3021
      %v3054 = vmax.f32 %v3022, 0.0
      %v3055 = vmax.f32 %v3023, 0.0
      %v3056 = vmax.f32 %v3024, 0.0
      %v3057 = vmax.f32 %v3025, 0.0
      %v3058 = vmax.f32 %v3026, 0.0
      %v3059 = vmax.f32 %v3027, 0.0
      %v3060 = vmax.f32 %v3028, 0.0
      %v3061 = vmax.f32 %v3029, 0.0
      %v3062 = vmax.f32 %v3030, 0.0
      %v3063 = vmax.f32 %v3031, 0.0
      %v3064 = vmax.f32 %v3032, 0.0
      %v3065 = vmax.f32 %v3033, 0.0
      %v3066 = vmax.f32 %v3034, 0.0
      %v3067 = vmax.f32 %v3035, 0.0
      %v3068 = vmax.f32 %v3036, 0.0
      %v3069 = vmax.f32 %v3037, 0.0
      %v3070 = vmax.f32 %v3038, 0.0
      %v3071 = vmax.f32 %v3039, 0.0
      %v3072 = vmax.f32 %v3040, 0.0
      %v3073 = vmax.f32 %v3041, 0.0
      %v3074 = vmax.f32 %v3042, 0.0
      %v3075 = vmax.f32 %v3043, 0.0
      %v3076 = vmax.f32 %v3044, 0.0
      %v3077 = vmax.f32 %v3045, 0.0
      %v3078 = vmax.f32 %v3046, 0.0
      %v3079 = vmax.f32 %v3047, 0.0
      %v3080 = vmax.f32 %v3048, 0.0
      %v3081 = vmax.f32 %v3049, 0.0
      %v3082 = vmax.f32 %v3050, 0.0
      %v3083 = vmax.f32 %v3051, 0.0
      %v3084 = vmax.f32 %v3052, 0.0
      %v3085 = vmax.f32 %v3053, 0.0
      %vm3086 = vcmask 1043459
      %vm3087 = vsmask.f32 7950
      %vm3088 = vmand %vm3086, %vm3087
      %vm3089 = vcmask 1047559
      %vm3090 = vsmask.f32 7966
      %vm3091 = vmand %vm3089, %vm3090
      %vm3092 = vmor %vm3091, %vm3088
      %v3093 = vld [vmem:[#allocation2 + $0x8] sm:$0x88]
      %v3094 = vsel %vm3092, 0, %v3093
      %3095 = vst [vmem:[#allocation2 + $0x8] sm:$0x88] %v3094
      %3096 = vst [vmem:[#allocation2 + $0x10] sm:$0xff] 0
      %3097 = vst [vmem:[#allocation2 + $0x18] sm:$0xff] 0
      %s3098 = scalar_lea.vmem [#allocation2], 544
      %v3099 = vld [vmem:[%s3098 + $0x8] sm:$0x88]
      %v3100 = vsel %vm3092, 0, %v3099
      %3101 = vst [vmem:[%s3098 + $0x8] sm:$0x88] %v3100
      %3102 = vst [vmem:[%s3098 + $0x10] sm:$0xff] 0
      %3103 = vst [vmem:[%s3098 + $0x18] sm:$0xff] 0
      %s3104 = scalar_lea.vmem [#allocation2], 32
      %v3105 = vld [vmem:[%s3104 + $0x8] sm:$0x8]
      %v3106 = vsel %vm3088, 0, %v3105
      %3107 = vst [vmem:[%s3104 + $0x8] sm:$0x8] %v3106
      %v3108 = vld [vmem:[%s3104 + $0x28] sm:$0x8]
      %v3109 = vsel %vm3088, 0, %v3108
      %3110 = vst [vmem:[%s3104 + $0x28] sm:$0x8] %v3109
      %v3111 = vld [vmem:[%s3104 + $0x48] sm:$0x8]
      %v3112 = vsel %vm3088, 0, %v3111
      %3113 = vst [vmem:[%s3104 + $0x48] sm:$0x8] %v3112
      %v3114 = vld [vmem:[%s3104 + $0x68] sm:$0x8]
      %v3115 = vsel %vm3088, 0, %v3114
      %3116 = vst [vmem:[%s3104 + $0x68] sm:$0x8] %v3115
      %v3117 = vld [vmem:[%s3104 + $0x88] sm:$0x8]
      %v3118 = vsel %vm3088, 0, %v3117
      %3119 = vst [vmem:[%s3104 + $0x88] sm:$0x8] %v3118
      %v3120 = vld [vmem:[%s3104 + $0xa8] sm:$0x8]
      %v3121 = vsel %vm3088, 0, %v3120
      %3122 = vst [vmem:[%s3104 + $0xa8] sm:$0x8] %v3121
      %v3123 = vld [vmem:[%s3104 + $0xc8] sm:$0x8]
      %v3124 = vsel %vm3088, 0, %v3123
      %3125 = vst [vmem:[%s3104 + $0xc8] sm:$0x8] %v3124
      %v3126 = vld [vmem:[%s3104 + $0xe8] sm:$0x8]
      %v3127 = vsel %vm3088, 0, %v3126
      %3128 = vst [vmem:[%s3104 + $0xe8] sm:$0x8] %v3127
      %v3129 = vld [vmem:[%s3104 + $0x108] sm:$0x8]
      %v3130 = vsel %vm3088, 0, %v3129
      %3131 = vst [vmem:[%s3104 + $0x108] sm:$0x8] %v3130
      %v3132 = vld [vmem:[%s3104 + $0x128] sm:$0x8]
      %v3133 = vsel %vm3088, 0, %v3132
      %3134 = vst [vmem:[%s3104 + $0x128] sm:$0x8] %v3133
      %v3135 = vld [vmem:[%s3104 + $0x148] sm:$0x8]
      %v3136 = vsel %vm3088, 0, %v3135
      %3137 = vst [vmem:[%s3104 + $0x148] sm:$0x8] %v3136
      %v3138 = vld [vmem:[%s3104 + $0x168] sm:$0x8]
      %v3139 = vsel %vm3088, 0, %v3138
      %3140 = vst [vmem:[%s3104 + $0x168] sm:$0x8] %v3139
      %v3141 = vld [vmem:[%s3104 + $0x188] sm:$0x8]
      %v3142 = vsel %vm3088, 0, %v3141
      %3143 = vst [vmem:[%s3104 + $0x188] sm:$0x8] %v3142
      %v3144 = vld [vmem:[%s3104 + $0x1a8] sm:$0x8]
      %v3145 = vsel %vm3088, 0, %v3144
      %3146 = vst [vmem:[%s3104 + $0x1a8] sm:$0x8] %v3145
      %v3147 = vld [vmem:[%s3104 + $0x1c8] sm:$0x8]
      %v3148 = vsel %vm3088, 0, %v3147
      %3149 = vst [vmem:[%s3104 + $0x1c8] sm:$0x8] %v3148
      %v3150 = vld [vmem:[%s3104 + $0x1e8] sm:$0x8]
      %v3151 = vsel %vm3088, 0, %v3150
      %3152 = vst [vmem:[%s3104 + $0x1e8] sm:$0x8] %v3151
      %v3153 = vld [vmem:[%s3104 + $0x1c] sm:$0x8]
      %v3154 = vsel %vm3088, 0, %v3153
      %3155 = vst [vmem:[%s3104 + $0x1c] sm:$0x8] %v3154
      %v3156 = vld [vmem:[%s3104 + $0x3c] sm:$0x8]
      %v3157 = vsel %vm3088, 0, %v3156
      %3158 = vst [vmem:[%s3104 + $0x3c] sm:$0x8] %v3157
      %v3159 = vld [vmem:[%s3104 + $0x5c] sm:$0x8]
      %v3160 = vsel %vm3088, 0, %v3159
      %3161 = vst [vmem:[%s3104 + $0x5c] sm:$0x8] %v3160
      %v3162 = vld [vmem:[%s3104 + $0x7c] sm:$0x8]
      %v3163 = vsel %vm3088, 0, %v3162
      %3164 = vst [vmem:[%s3104 + $0x7c] sm:$0x8] %v3163
      %v3165 = vld [vmem:[%s3104 + $0x9c] sm:$0x8]
      %v3166 = vsel %vm3088, 0, %v3165
      %3167 = vst [vmem:[%s3104 + $0x9c] sm:$0x8] %v3166
      %v3168 = vld [vmem:[%s3104 + $0xbc] sm:$0x8]
      %v3169 = vsel %vm3088, 0, %v3168
      %3170 = vst [vmem:[%s3104 + $0xbc] sm:$0x8] %v3169
      %v3171 = vld [vmem:[%s3104 + $0xdc] sm:$0x8]
      %v3172 = vsel %vm3088, 0, %v3171
      %3173 = vst [vmem:[%s3104 + $0xdc] sm:$0x8] %v3172
      %v3174 = vld [vmem:[%s3104 + $0xfc] sm:$0x8]
      %v3175 = vsel %vm3088, 0, %v3174
      %3176 = vst [vmem:[%s3104 + $0xfc] sm:$0x8] %v3175
      %v3177 = vld [vmem:[%s3104 + $0x11c] sm:$0x8]
      %v3178 = vsel %vm3088, 0, %v3177
      %3179 = vst [vmem:[%s3104 + $0x11c] sm:$0x8] %v3178
      %v3180 = vld [vmem:[%s3104 + $0x13c] sm:$0x8]
      %v3181 = vsel %vm3088, 0, %v3180
      %3182 = vst [vmem:[%s3104 + $0x13c] sm:$0x8] %v3181
      %v3183 = vld [vmem:[%s3104 + $0x15c] sm:$0x8]
      %v3184 = vsel %vm3088, 0, %v3183
      %3185 = vst [vmem:[%s3104 + $0x15c] sm:$0x8] %v3184
      %v3186 = vld [vmem:[%s3104 + $0x17c] sm:$0x8]
      %v3187 = vsel %vm3088, 0, %v3186
      %3188 = vst [vmem:[%s3104 + $0x17c] sm:$0x8] %v3187
      %v3189 = vld [vmem:[%s3104 + $0x19c] sm:$0x8]
      %v3190 = vsel %vm3088, 0, %v3189
      %3191 = vst [vmem:[%s3104 + $0x19c] sm:$0x8] %v3190
      %v3192 = vld [vmem:[%s3104 + $0x1bc] sm:$0x8]
      %v3193 = vsel %vm3088, 0, %v3192
      %3194 = vst [vmem:[%s3104 + $0x1bc] sm:$0x8] %v3193
      %v3195 = vld [vmem:[%s3104 + $0x1dc] sm:$0x8]
      %v3196 = vsel %vm3088, 0, %v3195
      %3197 = vst [vmem:[%s3104 + $0x1dc] sm:$0x8] %v3196
      %v3198 = vld [vmem:[%s3104 + $0x1fc] sm:$0x8]
      %v3199 = vsel %vm3088, 0, %v3198
      %3200 = vst [vmem:[%s3104 + $0x1fc] sm:$0x8] %v3199
      %v3201 = vpack.c.bf16 %v3055, %v3054
      %v3202 = vpack.c.bf16 %v3057, %v3056
      %v3203 = vpack.c.bf16 %v3059, %v3058
      %v3204 = vpack.c.bf16 %v3061, %v3060
      %v3205 = vpack.c.bf16 %v3063, %v3062
      %v3206 = vpack.c.bf16 %v3065, %v3064
      %v3207 = vpack.c.bf16 %v3067, %v3066
      %v3208 = vpack.c.bf16 %v3069, %v3068
      %v3209 = vpack.c.bf16 %v3071, %v3070
      %v3210 = vpack.c.bf16 %v3073, %v3072
      %v3211 = vpack.c.bf16 %v3075, %v3074
      %v3212 = vpack.c.bf16 %v3077, %v3076
      %v3213 = vpack.c.bf16 %v3079, %v3078
      %v3214 = vpack.c.bf16 %v3081, %v3080
      %v3215 = vpack.c.bf16 %v3083, %v3082
      %v3216 = vpack.c.bf16 %v3085, %v3084
      %v3233 = vunpack.c.l.b16 %v3201
      %v3234 = vunpack.c.h.b16 %v3201
      %v3235 = vunpack.c.l.b16 %v3202
      %v3236 = vunpack.c.h.b16 %v3202
      %v3237 = vunpack.c.l.b16 %v3203
      %v3238 = vunpack.c.h.b16 %v3203
      %v3239 = vunpack.c.l.b16 %v3204
      %v3240 = vunpack.c.h.b16 %v3204
      %v3241 = vunpack.c.l.b16 %v3205
      %v3242 = vunpack.c.h.b16 %v3205
      %v3243 = vunpack.c.l.b16 %v3206
      %v3244 = vunpack.c.h.b16 %v3206
      %v3245 = vunpack.c.l.b16 %v3207
      %v3246 = vunpack.c.h.b16 %v3207
      %v3247 = vunpack.c.l.b16 %v3208
      %v3248 = vunpack.c.h.b16 %v3208
      %v3249 = vunpack.c.l.b16 %v3209
      %v3250 = vunpack.c.h.b16 %v3209
      %v3251 = vunpack.c.l.b16 %v3210
      %v3252 = vunpack.c.h.b16 %v3210
      %v3253 = vunpack.c.l.b16 %v3211
      %v3254 = vunpack.c.h.b16 %v3211
      %v3255 = vunpack.c.l.b16 %v3212
      %v3256 = vunpack.c.h.b16 %v3212
      %v3257 = vunpack.c.l.b16 %v3213
      %v3258 = vunpack.c.h.b16 %v3213
      %v3259 = vunpack.c.l.b16 %v3214
      %v3260 = vunpack.c.h.b16 %v3214
      %v3261 = vunpack.c.l.b16 %v3215
      %v3262 = vunpack.c.h.b16 %v3215
      %v3263 = vunpack.c.l.b16 %v3216
      %v3264 = vunpack.c.h.b16 %v3216
      %v3265 = vpack.c.b16 %v3233, %v3233
      %v3266 = vpack.c.b16 %v3234, %v3234
      %v3267 = vpack.c.b16 %v3235, %v3235
      %v3268 = vpack.c.b16 %v3236, %v3236
      %v3269 = vpack.c.b16 %v3237, %v3237
      %v3270 = vpack.c.b16 %v3238, %v3238
      %v3271 = vpack.c.b16 %v3239, %v3239
      %v3272 = vpack.c.b16 %v3240, %v3240
      %v3273 = vpack.c.b16 %v3241, %v3241
      %v3274 = vpack.c.b16 %v3242, %v3242
      %v3275 = vpack.c.b16 %v3243, %v3243
      %v3276 = vpack.c.b16 %v3244, %v3244
      %v3277 = vpack.c.b16 %v3245, %v3245
      %v3278 = vpack.c.b16 %v3246, %v3246
      %v3279 = vpack.c.b16 %v3247, %v3247
      %v3280 = vpack.c.b16 %v3248, %v3248
      %v3281 = vpack.c.b16 %v3249, %v3249
      %v3282 = vpack.c.b16 %v3250, %v3250
      %v3283 = vpack.c.b16 %v3251, %v3251
      %v3284 = vpack.c.b16 %v3252, %v3252
      %v3285 = vpack.c.b16 %v3253, %v3253
      %v3286 = vpack.c.b16 %v3254, %v3254
      %v3287 = vpack.c.b16 %v3255, %v3255
      %v3288 = vpack.c.b16 %v3256, %v3256
      %v3289 = vpack.c.b16 %v3257, %v3257
      %v3290 = vpack.c.b16 %v3258, %v3258
      %v3291 = vpack.c.b16 %v3259, %v3259
      %v3292 = vpack.c.b16 %v3260, %v3260
      %v3293 = vpack.c.b16 %v3261, %v3261
      %v3294 = vpack.c.b16 %v3262, %v3262
      %v3295 = vpack.c.b16 %v3263, %v3263
      %v3296 = vpack.c.b16 %v3264, %v3264
      %3329 = vst [vmem:[%s3104 + $0x10] sm:$0xf] %v3265
      %3330 = vst [vmem:[%s3104 + $0x18] sm:$0xf] %v3266
      %3331 = vst [vmem:[%s3104 + $0x30] sm:$0xf] %v3267
      %3332 = vst [vmem:[%s3104 + $0x38] sm:$0xf] %v3268
      %3333 = vst [vmem:[%s3104 + $0x50] sm:$0xf] %v3269
      %3334 = vst [vmem:[%s3104 + $0x58] sm:$0xf] %v3270
      %3335 = vst [vmem:[%s3104 + $0x70] sm:$0xf] %v3271
      %3336 = vst [vmem:[%s3104 + $0x78] sm:$0xf] %v3272
      %3337 = vst [vmem:[%s3104 + $0x90] sm:$0xf] %v3273
      %3338 = vst [vmem:[%s3104 + $0x98] sm:$0xf] %v3274
      %3339 = vst [vmem:[%s3104 + $0xb0] sm:$0xf] %v3275
      %3340 = vst [vmem:[%s3104 + $0xb8] sm:$0xf] %v3276
      %3341 = vst [vmem:[%s3104 + $0xd0] sm:$0xf] %v3277
      %3342 = vst [vmem:[%s3104 + $0xd8] sm:$0xf] %v3278
      %3343 = vst [vmem:[%s3104 + $0xf0] sm:$0xf] %v3279
      %3344 = vst [vmem:[%s3104 + $0xf8] sm:$0xf] %v3280
      %3345 = vst [vmem:[%s3104 + $0x110] sm:$0xf] %v3281
      %3346 = vst [vmem:[%s3104 + $0x118] sm:$0xf] %v3282
      %3347 = vst [vmem:[%s3104 + $0x130] sm:$0xf] %v3283
      %3348 = vst [vmem:[%s3104 + $0x138] sm:$0xf] %v3284
      %3349 = vst [vmem:[%s3104 + $0x150] sm:$0xf] %v3285
      %3350 = vst [vmem:[%s3104 + $0x158] sm:$0xf] %v3286
      %3351 = vst [vmem:[%s3104 + $0x170] sm:$0xf] %v3287
      %3352 = vst [vmem:[%s3104 + $0x178] sm:$0xf] %v3288
      %3353 = vst [vmem:[%s3104 + $0x190] sm:$0xf] %v3289
      %3354 = vst [vmem:[%s3104 + $0x198] sm:$0xf] %v3290
      %3355 = vst [vmem:[%s3104 + $0x1b0] sm:$0xf] %v3291
      %3356 = vst [vmem:[%s3104 + $0x1b8] sm:$0xf] %v3292
      %3357 = vst [vmem:[%s3104 + $0x1d0] sm:$0xf] %v3293
      %3358 = vst [vmem:[%s3104 + $0x1d8] sm:$0xf] %v3294
      %3359 = vst [vmem:[%s3104 + $0x1f0] sm:$0xf] %v3295
      %3360 = vst [vmem:[%s3104 + $0x1f8] sm:$0xf] %v3296
      %v3362 = vshll.u32 %v3265, 16
      %v3364 = vrot.slane %v3362, 5
      %v3365 = vshrl.u32 %v3265, 16
      %v3367 = vrot.slane %v3365, 4
      %v3368 = vor.u32 %v3367, %v3364
      %v3369 = vrot.slane %v3368, 4
      %v3371 = vshll.u32 %v3266, 16
      %v3373 = vrot.slane %v3371, 5
      %v3374 = vsel %vm1219, %v3369, %v3373
      %v3375 = vshrl.u32 %v3266, 16
      %v3377 = vrot.slane %v3375, 4
      %v3378 = vor.u32 %v3377, %v3373
      %v3379 = vrot.slane %v3378, 4
      %v3381 = vshll.u32 %v3267, 16
      %v3383 = vrot.slane %v3381, 5
      %v3384 = vshrl.u32 %v3267, 16
      %v3386 = vrot.slane %v3384, 4
      %v3387 = vor.u32 %v3386, %v3383
      %v3388 = vrot.slane %v3387, 4
      %v3390 = vshll.u32 %v3268, 16
      %v3392 = vrot.slane %v3390, 5
      %v3393 = vsel %vm1219, %v3388, %v3392
      %v3394 = vshrl.u32 %v3268, 16
      %v3396 = vrot.slane %v3394, 4
      %v3397 = vor.u32 %v3396, %v3392
      %v3398 = vrot.slane %v3397, 4
      %v3400 = vshll.u32 %v3269, 16
      %v3402 = vrot.slane %v3400, 5
      %v3403 = vshrl.u32 %v3269, 16
      %v3405 = vrot.slane %v3403, 4
      %v3406 = vor.u32 %v3405, %v3402
      %v3407 = vrot.slane %v3406, 4
      %v3409 = vshll.u32 %v3270, 16
      %v3411 = vrot.slane %v3409, 5
      %v3412 = vsel %vm1219, %v3407, %v3411
      %v3413 = vshrl.u32 %v3270, 16
      %v3415 = vrot.slane %v3413, 4
      %v3416 = vor.u32 %v3415, %v3411
      %v3417 = vrot.slane %v3416, 4
      %v3419 = vshll.u32 %v3271, 16
      %v3421 = vrot.slane %v3419, 5
      %v3422 = vshrl.u32 %v3271, 16
      %v3424 = vrot.slane %v3422, 4
      %v3425 = vor.u32 %v3424, %v3421
      %v3426 = vrot.slane %v3425, 4
      %v3428 = vshll.u32 %v3272, 16
      %v3430 = vrot.slane %v3428, 5
      %v3431 = vsel %vm1219, %v3426, %v3430
      %v3432 = vshrl.u32 %v3272, 16
      %v3434 = vrot.slane %v3432, 4
      %v3435 = vor.u32 %v3434, %v3430
      %v3436 = vrot.slane %v3435, 4
      %v3438 = vshll.u32 %v3273, 16
      %v3440 = vrot.slane %v3438, 5
      %v3441 = vshrl.u32 %v3273, 16
      %v3443 = vrot.slane %v3441, 4
      %v3444 = vor.u32 %v3443, %v3440
      %v3445 = vrot.slane %v3444, 4
      %v3447 = vshll.u32 %v3274, 16
      %v3449 = vrot.slane %v3447, 5
      %v3450 = vsel %vm1219, %v3445, %v3449
      %v3451 = vshrl.u32 %v3274, 16
      %v3453 = vrot.slane %v3451, 4
      %v3454 = vor.u32 %v3453, %v3449
      %v3455 = vrot.slane %v3454, 4
      %v3457 = vshll.u32 %v3275, 16
      %v3459 = vrot.slane %v3457, 5
      %v3460 = vshrl.u32 %v3275, 16
      %v3462 = vrot.slane %v3460, 4
      %v3463 = vor.u32 %v3462, %v3459
      %v3464 = vrot.slane %v3463, 4
      %v3466 = vshll.u32 %v3276, 16
      %v3468 = vrot.slane %v3466, 5
      %v3469 = vsel %vm1219, %v3464, %v3468
      %v3470 = vshrl.u32 %v3276, 16
      %v3472 = vrot.slane %v3470, 4
      %v3473 = vor.u32 %v3472, %v3468
      %v3474 = vrot.slane %v3473, 4
      %v3476 = vshll.u32 %v3277, 16
      %v3478 = vrot.slane %v3476, 5
      %v3479 = vshrl.u32 %v3277, 16
      %v3481 = vrot.slane %v3479, 4
      %v3482 = vor.u32 %v3481, %v3478
      %v3483 = vrot.slane %v3482, 4
      %v3485 = vshll.u32 %v3278, 16
      %v3487 = vrot.slane %v3485, 5
      %v3488 = vsel %vm1219, %v3483, %v3487
      %v3489 = vshrl.u32 %v3278, 16
      %v3491 = vrot.slane %v3489, 4
      %v3492 = vor.u32 %v3491, %v3487
      %v3493 = vrot.slane %v3492, 4
      %v3495 = vshll.u32 %v3279, 16
      %v3497 = vrot.slane %v3495, 5
      %v3498 = vshrl.u32 %v3279, 16
      %v3500 = vrot.slane %v3498, 4
      %v3501 = vor.u32 %v3500, %v3497
      %v3502 = vrot.slane %v3501, 4
      %v3504 = vshll.u32 %v3280, 16
      %v3506 = vrot.slane %v3504, 5
      %v3507 = vsel %vm1219, %v3502, %v3506
      %v3508 = vshrl.u32 %v3280, 16
      %v3510 = vrot.slane %v3508, 4
      %v3511 = vor.u32 %v3510, %v3506
      %v3512 = vrot.slane %v3511, 4
      %v3514 = vshll.u32 %v3281, 16
      %v3516 = vrot.slane %v3514, 5
      %v3517 = vshrl.u32 %v3281, 16
      %v3519 = vrot.slane %v3517, 4
      %v3520 = vor.u32 %v3519, %v3516
      %v3521 = vrot.slane %v3520, 4
      %v3523 = vshll.u32 %v3282, 16
      %v3525 = vrot.slane %v3523, 5
      %v3526 = vsel %vm1219, %v3521, %v3525
      %v3527 = vshrl.u32 %v3282, 16
      %v3529 = vrot.slane %v3527, 4
      %v3530 = vor.u32 %v3529, %v3525
      %v3531 = vrot.slane %v3530, 4
      %v3533 = vshll.u32 %v3283, 16
      %v3535 = vrot.slane %v3533, 5
      %v3536 = vshrl.u32 %v3283, 16
      %v3538 = vrot.slane %v3536, 4
      %v3539 = vor.u32 %v3538, %v3535
      %v3540 = vrot.slane %v3539, 4
      %v3542 = vshll.u32 %v3284, 16
      %v3544 = vrot.slane %v3542, 5
      %v3545 = vsel %vm1219, %v3540, %v3544
      %v3546 = vshrl.u32 %v3284, 16
      %v3548 = vrot.slane %v3546, 4
      %v3549 = vor.u32 %v3548, %v3544
      %v3550 = vrot.slane %v3549, 4
      %v3552 = vshll.u32 %v3285, 16
      %v3554 = vrot.slane %v3552, 5
      %v3555 = vshrl.u32 %v3285, 16
      %v3557 = vrot.slane %v3555, 4
      %v3558 = vor.u32 %v3557, %v3554
      %v3559 = vrot.slane %v3558, 4
      %v3561 = vshll.u32 %v3286, 16
      %v3563 = vrot.slane %v3561, 5
      %v3564 = vsel %vm1219, %v3559, %v3563
      %v3565 = vshrl.u32 %v3286, 16
      %v3567 = vrot.slane %v3565, 4
      %v3568 = vor.u32 %v3567, %v3563
      %v3569 = vrot.slane %v3568, 4
      %v3571 = vshll.u32 %v3287, 16
      %v3573 = vrot.slane %v3571, 5
      %v3574 = vshrl.u32 %v3287, 16
      %v3576 = vrot.slane %v3574, 4
      %v3577 = vor.u32 %v3576, %v3573
      %v3578 = vrot.slane %v3577, 4
      %v3580 = vshll.u32 %v3288, 16
      %v3582 = vrot.slane %v3580, 5
      %v3583 = vsel %vm1219, %v3578, %v3582
      %v3584 = vshrl.u32 %v3288, 16
      %v3586 = vrot.slane %v3584, 4
      %v3587 = vor.u32 %v3586, %v3582
      %v3588 = vrot.slane %v3587, 4
      %v3590 = vshll.u32 %v3289, 16
      %v3592 = vrot.slane %v3590, 5
      %v3593 = vshrl.u32 %v3289, 16
      %v3595 = vrot.slane %v3593, 4
      %v3596 = vor.u32 %v3595, %v3592
      %v3597 = vrot.slane %v3596, 4
      %v3599 = vshll.u32 %v3290, 16
      %v3601 = vrot.slane %v3599, 5
      %v3602 = vsel %vm1219, %v3597, %v3601
      %v3603 = vshrl.u32 %v3290, 16
      %v3605 = vrot.slane %v3603, 4
      %v3606 = vor.u32 %v3605, %v3601
      %v3607 = vrot.slane %v3606, 4
      %v3609 = vshll.u32 %v3291, 16
      %v3611 = vrot.slane %v3609, 5
      %v3612 = vshrl.u32 %v3291, 16
      %v3614 = vrot.slane %v3612, 4
      %v3615 = vor.u32 %v3614, %v3611
      %v3616 = vrot.slane %v3615, 4
      %v3618 = vshll.u32 %v3292, 16
      %v3620 = vrot.slane %v3618, 5
      %v3621 = vsel %vm1219, %v3616, %v3620
      %v3622 = vshrl.u32 %v3292, 16
      %v3624 = vrot.slane %v3622, 4
      %v3625 = vor.u32 %v3624, %v3620
      %v3626 = vrot.slane %v3625, 4
      %v3628 = vshll.u32 %v3293, 16
      %v3630 = vrot.slane %v3628, 5
      %v3631 = vshrl.u32 %v3293, 16
      %v3633 = vrot.slane %v3631, 4
      %v3634 = vor.u32 %v3633, %v3630
      %v3635 = vrot.slane %v3634, 4
      %v3637 = vshll.u32 %v3294, 16
      %v3639 = vrot.slane %v3637, 5
      %v3640 = vsel %vm1219, %v3635, %v3639
      %v3641 = vshrl.u32 %v3294, 16
      %v3643 = vrot.slane %v3641, 4
      %v3644 = vor.u32 %v3643, %v3639
      %v3645 = vrot.slane %v3644, 4
      %v3647 = vshll.u32 %v3295, 16
      %v3649 = vrot.slane %v3647, 5
      %v3650 = vshrl.u32 %v3295, 16
      %v3652 = vrot.slane %v3650, 4
      %v3653 = vor.u32 %v3652, %v3649
      %v3654 = vrot.slane %v3653, 4
      %v3656 = vshll.u32 %v3296, 16
      %v3658 = vrot.slane %v3656, 5
      %v3659 = vsel %vm1219, %v3654, %v3658
      %v3660 = vshrl.u32 %v3296, 16
      %v3662 = vrot.slane %v3660, 4
      %v3663 = vor.u32 %v3662, %v3658
      %v3664 = vrot.slane %v3663, 4
      %v3713 = vld [vmem:[%s3104 + $0xc] sm:$0x8]
      %v3714 = vsel %vm3088, %v3364, %v3713
      %3715 = vst [vmem:[%s3104 + $0xc] sm:$0x8] %v3714
      %3716 = vst [vmem:[%s3104 + $0x14] sm:$0xf] %v3374
      %vm3717 = vcmask 1043456
      %vm3718 = vmand %vm3717, %vm1217
      %v3719 = vld [vmem:[%s3104 + $0x1c] sm:$0xf]
      %v3720 = vsel %vm3718, %v3379, %v3719
      %3721 = vst [vmem:[%s3104 + $0x1c] sm:$0xf] %v3720
      %v3722 = vld [vmem:[%s3104 + $0x2c] sm:$0x8]
      %v3723 = vsel %vm3088, %v3383, %v3722
      %3724 = vst [vmem:[%s3104 + $0x2c] sm:$0x8] %v3723
      %3725 = vst [vmem:[%s3104 + $0x34] sm:$0xf] %v3393
      %v3726 = vld [vmem:[%s3104 + $0x3c] sm:$0xf]
      %v3727 = vsel %vm3718, %v3398, %v3726
      %3728 = vst [vmem:[%s3104 + $0x3c] sm:$0xf] %v3727
      %v3729 = vld [vmem:[%s3104 + $0x4c] sm:$0x8]
      %v3730 = vsel %vm3088, %v3402, %v3729
      %3731 = vst [vmem:[%s3104 + $0x4c] sm:$0x8] %v3730
      %3732 = vst [vmem:[%s3104 + $0x54] sm:$0xf] %v3412
      %v3733 = vld [vmem:[%s3104 + $0x5c] sm:$0xf]
      %v3734 = vsel %vm3718, %v3417, %v3733
      %3735 = vst [vmem:[%s3104 + $0x5c] sm:$0xf] %v3734
      %v3736 = vld [vmem:[%s3104 + $0x6c] sm:$0x8]
      %v3737 = vsel %vm3088, %v3421, %v3736
      %3738 = vst [vmem:[%s3104 + $0x6c] sm:$0x8] %v3737
      %3739 = vst [vmem:[%s3104 + $0x74] sm:$0xf] %v3431
      %v3740 = vld [vmem:[%s3104 + $0x7c] sm:$0xf]
      %v3741 = vsel %vm3718, %v3436, %v3740
      %3742 = vst [vmem:[%s3104 + $0x7c] sm:$0xf] %v3741
      %v3743 = vld [vmem:[%s3104 + $0x8c] sm:$0x8]
      %v3744 = vsel %vm3088, %v3440, %v3743
      %3745 = vst [vmem:[%s3104 + $0x8c] sm:$0x8] %v3744
      %3746 = vst [vmem:[%s3104 + $0x94] sm:$0xf] %v3450
      %v3747 = vld [vmem:[%s3104 + $0x9c] sm:$0xf]
      %v3748 = vsel %vm3718, %v3455, %v3747
      %3749 = vst [vmem:[%s3104 + $0x9c] sm:$0xf] %v3748
      %v3750 = vld [vmem:[%s3104 + $0xac] sm:$0x8]
      %v3751 = vsel %vm3088, %v3459, %v3750
      %3752 = vst [vmem:[%s3104 + $0xac] sm:$0x8] %v3751
      %3753 = vst [vmem:[%s3104 + $0xb4] sm:$0xf] %v3469
      %v3754 = vld [vmem:[%s3104 + $0xbc] sm:$0xf]
      %v3755 = vsel %vm3718, %v3474, %v3754
      %3756 = vst [vmem:[%s3104 + $0xbc] sm:$0xf] %v3755
      %v3757 = vld [vmem:[%s3104 + $0xcc] sm:$0x8]
      %v3758 = vsel %vm3088, %v3478, %v3757
      %3759 = vst [vmem:[%s3104 + $0xcc] sm:$0x8] %v3758
      %3760 = vst [vmem:[%s3104 + $0xd4] sm:$0xf] %v3488
      %v3761 = vld [vmem:[%s3104 + $0xdc] sm:$0xf]
      %v3762 = vsel %vm3718, %v3493, %v3761
      %3763 = vst [vmem:[%s3104 + $0xdc] sm:$0xf] %v3762
      %v3764 = vld [vmem:[%s3104 + $0xec] sm:$0x8]
      %v3765 = vsel %vm3088, %v3497, %v3764
      %3766 = vst [vmem:[%s3104 + $0xec] sm:$0x8] %v3765
      %3767 = vst [vmem:[%s3104 + $0xf4] sm:$0xf] %v3507
      %v3768 = vld [vmem:[%s3104 + $0xfc] sm:$0xf]
      %v3769 = vsel %vm3718, %v3512, %v3768
      %3770 = vst [vmem:[%s3104 + $0xfc] sm:$0xf] %v3769
      %v3771 = vld [vmem:[%s3104 + $0x10c] sm:$0x8]
      %v3772 = vsel %vm3088, %v3516, %v3771
      %3773 = vst [vmem:[%s3104 + $0x10c] sm:$0x8] %v3772
      %3774 = vst [vmem:[%s3104 + $0x114] sm:$0xf] %v3526
      %v3775 = vld [vmem:[%s3104 + $0x11c] sm:$0xf]
      %v3776 = vsel %vm3718, %v3531, %v3775
      %3777 = vst [vmem:[%s3104 + $0x11c] sm:$0xf] %v3776
      %v3778 = vld [vmem:[%s3104 + $0x12c] sm:$0x8]
      %v3779 = vsel %vm3088, %v3535, %v3778
      %3780 = vst [vmem:[%s3104 + $0x12c] sm:$0x8] %v3779
      %3781 = vst [vmem:[%s3104 + $0x134] sm:$0xf] %v3545
      %v3782 = vld [vmem:[%s3104 + $0x13c] sm:$0xf]
      %v3783 = vsel %vm3718, %v3550, %v3782
      %3784 = vst [vmem:[%s3104 + $0x13c] sm:$0xf] %v3783
      %v3785 = vld [vmem:[%s3104 + $0x14c] sm:$0x8]
      %v3786 = vsel %vm3088, %v3554, %v3785
      %3787 = vst [vmem:[%s3104 + $0x14c] sm:$0x8] %v3786
      %3788 = vst [vmem:[%s3104 + $0x154] sm:$0xf] %v3564
      %v3789 = vld [vmem:[%s3104 + $0x15c] sm:$0xf]
      %v3790 = vsel %vm3718, %v3569, %v3789
      %3791 = vst [vmem:[%s3104 + $0x15c] sm:$0xf] %v3790
      %v3792 = vld [vmem:[%s3104 + $0x16c] sm:$0x8]
      %v3793 = vsel %vm3088, %v3573, %v3792
      %3794 = vst [vmem:[%s3104 + $0x16c] sm:$0x8] %v3793
      %3795 = vst [vmem:[%s3104 + $0x174] sm:$0xf] %v3583
      %v3796 = vld [vmem:[%s3104 + $0x17c] sm:$0xf]
      %v3797 = vsel %vm3718, %v3588, %v3796
      %3798 = vst [vmem:[%s3104 + $0x17c] sm:$0xf] %v3797
      %v3799 = vld [vmem:[%s3104 + $0x18c] sm:$0x8]
      %v3800 = vsel %vm3088, %v3592, %v3799
      %3801 = vst [vmem:[%s3104 + $0x18c] sm:$0x8] %v3800
      %3802 = vst [vmem:[%s3104 + $0x194] sm:$0xf] %v3602
      %v3803 = vld [vmem:[%s3104 + $0x19c] sm:$0xf]
      %v3804 = vsel %vm3718, %v3607, %v3803
      %3805 = vst [vmem:[%s3104 + $0x19c] sm:$0xf] %v3804
      %v3806 = vld [vmem:[%s3104 + $0x1ac] sm:$0x8]
      %v3807 = vsel %vm3088, %v3611, %v3806
      %3808 = vst [vmem:[%s3104 + $0x1ac] sm:$0x8] %v3807
      %3809 = vst [vmem:[%s3104 + $0x1b4] sm:$0xf] %v3621
      %v3810 = vld [vmem:[%s3104 + $0x1bc] sm:$0xf]
      %v3811 = vsel %vm3718, %v3626, %v3810
      %3812 = vst [vmem:[%s3104 + $0x1bc] sm:$0xf] %v3811
      %v3813 = vld [vmem:[%s3104 + $0x1cc] sm:$0x8]
      %v3814 = vsel %vm3088, %v3630, %v3813
      %3815 = vst [vmem:[%s3104 + $0x1cc] sm:$0x8] %v3814
      %3816 = vst [vmem:[%s3104 + $0x1d4] sm:$0xf] %v3640
      %v3817 = vld [vmem:[%s3104 + $0x1dc] sm:$0xf]
      %v3818 = vsel %vm3718, %v3645, %v3817
      %3819 = vst [vmem:[%s3104 + $0x1dc] sm:$0xf] %v3818
      %v3820 = vld [vmem:[%s3104 + $0x1ec] sm:$0x8]
      %v3821 = vsel %vm3088, %v3649, %v3820
      %3822 = vst [vmem:[%s3104 + $0x1ec] sm:$0x8] %v3821
      %3823 = vst [vmem:[%s3104 + $0x1f4] sm:$0xf] %v3659
      %v3824 = vld [vmem:[%s3104 + $0x1fc] sm:$0xf]
      %v3825 = vsel %vm3718, %v3664, %v3824
      %3826 = vst [vmem:[%s3104 + $0x1fc] sm:$0xf] %v3825
      %v3827 = vld [vmem:[#allocation2 + $0x8] sm:$0x88]
      %v3828 = vld [vmem:[#allocation2 + $0x10] sm:$0xff]
      %v3829 = vld [vmem:[#allocation2 + $0x18] sm:$0xff]
      %v3830 = vld [vmem:[#allocation2 + $0x28] sm:$0x88]
      %v3831 = vld [vmem:[#allocation2 + $0x30] sm:$0xff]
      %v3832 = vld [vmem:[#allocation2 + $0x38] sm:$0xff]
      %v3833 = vld [vmem:[#allocation2 + $0x48] sm:$0x88]
      %v3834 = vld [vmem:[#allocation2 + $0x50] sm:$0xff]
      %v3835 = vld [vmem:[#allocation2 + $0x58] sm:$0xff]
      %v3836 = vld [vmem:[#allocation2 + $0x68] sm:$0x88]
      %v3837 = vld [vmem:[#allocation2 + $0x70] sm:$0xff]
      %v3838 = vld [vmem:[#allocation2 + $0x78] sm:$0xff]
      %v3839 = vld [vmem:[#allocation2 + $0x88] sm:$0x88]
      %v3840 = vld [vmem:[#allocation2 + $0x90] sm:$0xff]
      %v3841 = vld [vmem:[#allocation2 + $0x98] sm:$0xff]
      %v3842 = vld [vmem:[#allocation2 + $0xa8] sm:$0x88]
      %v3843 = vld [vmem:[#allocation2 + $0xb0] sm:$0xff]
      %v3844 = vld [vmem:[#allocation2 + $0xb8] sm:$0xff]
      %v3845 = vld [vmem:[#allocation2 + $0xc8] sm:$0x88]
      %v3846 = vld [vmem:[#allocation2 + $0xd0] sm:$0xff]
      %v3847 = vld [vmem:[#allocation2 + $0xd8] sm:$0xff]
      %v3848 = vld [vmem:[#allocation2 + $0xe8] sm:$0x88]
      %v3849 = vld [vmem:[#allocation2 + $0xf0] sm:$0xff]
      %v3850 = vld [vmem:[#allocation2 + $0xf8] sm:$0xff]
      %v3851 = vld [vmem:[#allocation2 + $0x108] sm:$0x88]
      %v3852 = vld [vmem:[#allocation2 + $0x110] sm:$0xff]
      %v3853 = vld [vmem:[#allocation2 + $0x118] sm:$0xff]
      %v3854 = vld [vmem:[#allocation2 + $0x128] sm:$0x88]
      %v3855 = vld [vmem:[#allocation2 + $0x130] sm:$0xff]
      %v3856 = vld [vmem:[#allocation2 + $0x138] sm:$0xff]
      %v3857 = vld [vmem:[#allocation2 + $0x148] sm:$0x88]
      %v3858 = vld [vmem:[#allocation2 + $0x150] sm:$0xff]
      %v3859 = vld [vmem:[#allocation2 + $0x158] sm:$0xff]
      %v3860 = vld [vmem:[#allocation2 + $0x168] sm:$0x88]
      %v3861 = vld [vmem:[#allocation2 + $0x170] sm:$0xff]
      %v3862 = vld [vmem:[#allocation2 + $0x178] sm:$0xff]
      %v3863 = vld [vmem:[#allocation2 + $0x188] sm:$0x88]
      %v3864 = vld [vmem:[#allocation2 + $0x190] sm:$0xff]
      %v3865 = vld [vmem:[#allocation2 + $0x198] sm:$0xff]
      %v3866 = vld [vmem:[#allocation2 + $0x1a8] sm:$0x88]
      %v3867 = vld [vmem:[#allocation2 + $0x1b0] sm:$0xff]
      %v3868 = vld [vmem:[#allocation2 + $0x1b8] sm:$0xff]
      %v3869 = vld [vmem:[#allocation2 + $0x1c8] sm:$0x88]
      %v3870 = vld [vmem:[#allocation2 + $0x1d0] sm:$0xff]
      %v3871 = vld [vmem:[#allocation2 + $0x1d8] sm:$0xff]
      %v3872 = vld [vmem:[#allocation2 + $0x1e8] sm:$0x88]
      %v3873 = vld [vmem:[#allocation2 + $0x1f0] sm:$0xff]
      %v3874 = vld [vmem:[#allocation2 + $0x1f8] sm:$0xff]
      %vm3875 = vsmask.f32 256
      %vm3876 = vsmask.f32 4368
      %vm3877 = vmor %vm3875, %vm3876
      %v3879 = vshrl.u32 %v3827, 16
      %v3881 = vrot.slane %v3879, 7
      %v3882 = vrot.slane %v3881, 4
      %v3884 = vshrl.u32 %v3828, 16
      %v3886 = vrot.slane %v3884, 7
      %v3887 = vshll.u32 %v3828, 16
      %v3889 = vor.u32 %v3886, %v3887
      %v3890 = vsel %vm3877, %v3882, %v3889
      %v3891 = vrot.slane %v3886, 4
      %v3893 = vshrl.u32 %v3829, 16
      %v3895 = vrot.slane %v3893, 7
      %v3896 = vshll.u32 %v3829, 16
      %v3898 = vor.u32 %v3895, %v3896
      %v3899 = vsel %vm3877, %v3891, %v3898
      %v3901 = vshrl.u32 %v3830, 16
      %v3903 = vrot.slane %v3901, 7
      %v3904 = vrot.slane %v3903, 4
      %v3906 = vshrl.u32 %v3831, 16
      %v3908 = vrot.slane %v3906, 7
      %v3909 = vshll.u32 %v3831, 16
      %v3911 = vor.u32 %v3908, %v3909
      %v3912 = vsel %vm3877, %v3904, %v3911
      %v3913 = vrot.slane %v3908, 4
      %v3915 = vshrl.u32 %v3832, 16
      %v3917 = vrot.slane %v3915, 7
      %v3918 = vshll.u32 %v3832, 16
      %v3920 = vor.u32 %v3917, %v3918
      %v3921 = vsel %vm3877, %v3913, %v3920
      %v3923 = vshrl.u32 %v3833, 16
      %v3925 = vrot.slane %v3923, 7
      %v3926 = vrot.slane %v3925, 4
      %v3928 = vshrl.u32 %v3834, 16
      %v3930 = vrot.slane %v3928, 7
      %v3931 = vshll.u32 %v3834, 16
      %v3933 = vor.u32 %v3930, %v3931
      %v3934 = vsel %vm3877, %v3926, %v3933
      %v3935 = vrot.slane %v3930, 4
      %v3937 = vshrl.u32 %v3835, 16
      %v3939 = vrot.slane %v3937, 7
      %v3940 = vshll.u32 %v3835, 16
      %v3942 = vor.u32 %v3939, %v3940
      %v3943 = vsel %vm3877, %v3935, %v3942
      %v3945 = vshrl.u32 %v3836, 16
      %v3947 = vrot.slane %v3945, 7
      %v3948 = vrot.slane %v3947, 4
      %v3950 = vshrl.u32 %v3837, 16
      %v3952 = vrot.slane %v3950, 7
      %v3953 = vshll.u32 %v3837, 16
      %v3955 = vor.u32 %v3952, %v3953
      %v3956 = vsel %vm3877, %v3948, %v3955
      %v3957 = vrot.slane %v3952, 4
      %v3959 = vshrl.u32 %v3838, 16
      %v3961 = vrot.slane %v3959, 7
      %v3962 = vshll.u32 %v3838, 16
      %v3964 = vor.u32 %v3961, %v3962
      %v3965 = vsel %vm3877, %v3957, %v3964
      %v3967 = vshrl.u32 %v3839, 16
      %v3969 = vrot.slane %v3967, 7
      %v3970 = vrot.slane %v3969, 4
      %v3972 = vshrl.u32 %v3840, 16
      %v3974 = vrot.slane %v3972, 7
      %v3975 = vshll.u32 %v3840, 16
      %v3977 = vor.u32 %v3974, %v3975
      %v3978 = vsel %vm3877, %v3970, %v3977
      %v3979 = vrot.slane %v3974, 4
      %v3981 = vshrl.u32 %v3841, 16
      %v3983 = vrot.slane %v3981, 7
      %v3984 = vshll.u32 %v3841, 16
      %v3986 = vor.u32 %v3983, %v3984
      %v3987 = vsel %vm3877, %v3979, %v3986
      %v3989 = vshrl.u32 %v3842, 16
      %v3991 = vrot.slane %v3989, 7
      %v3992 = vrot.slane %v3991, 4
      %v3994 = vshrl.u32 %v3843, 16
      %v3996 = vrot.slane %v3994, 7
      %v3997 = vshll.u32 %v3843, 16
      %v3999 = vor.u32 %v3996, %v3997
      %v4000 = vsel %vm3877, %v3992, %v3999
      %v4001 = vrot.slane %v3996, 4
      %v4003 = vshrl.u32 %v3844, 16
      %v4005 = vrot.slane %v4003, 7
      %v4006 = vshll.u32 %v3844, 16
      %v4008 = vor.u32 %v4005, %v4006
      %v4009 = vsel %vm3877, %v4001, %v4008
      %v4011 = vshrl.u32 %v3845, 16
      %v4013 = vrot.slane %v4011, 7
      %v4014 = vrot.slane %v4013, 4
      %v4016 = vshrl.u32 %v3846, 16
      %v4018 = vrot.slane %v4016, 7
      %v4019 = vshll.u32 %v3846, 16
      %v4021 = vor.u32 %v4018, %v4019
      %v4022 = vsel %vm3877, %v4014, %v4021
      %v4023 = vrot.slane %v4018, 4
      %v4025 = vshrl.u32 %v3847, 16
      %v4027 = vrot.slane %v4025, 7
      %v4028 = vshll.u32 %v3847, 16
      %v4030 = vor.u32 %v4027, %v4028
      %v4031 = vsel %vm3877, %v4023, %v4030
      %v4033 = vshrl.u32 %v3848, 16
      %v4035 = vrot.slane %v4033, 7
      %v4036 = vrot.slane %v4035, 4
      %v4038 = vshrl.u32 %v3849, 16
      %v4040 = vrot.slane %v4038, 7
      %v4041 = vshll.u32 %v3849, 16
      %v4043 = vor.u32 %v4040, %v4041
      %v4044 = vsel %vm3877, %v4036, %v4043
      %v4045 = vrot.slane %v4040, 4
      %v4047 = vshrl.u32 %v3850, 16
      %v4049 = vrot.slane %v4047, 7
      %v4050 = vshll.u32 %v3850, 16
      %v4052 = vor.u32 %v4049, %v4050
      %v4053 = vsel %vm3877, %v4045, %v4052
      %v4055 = vshrl.u32 %v3851, 16
      %v4057 = vrot.slane %v4055, 7
      %v4058 = vrot.slane %v4057, 4
      %v4060 = vshrl.u32 %v3852, 16
      %v4062 = vrot.slane %v4060, 7
      %v4063 = vshll.u32 %v3852, 16
      %v4065 = vor.u32 %v4062, %v4063
      %v4066 = vsel %vm3877, %v4058, %v4065
      %v4067 = vrot.slane %v4062, 4
      %v4069 = vshrl.u32 %v3853, 16
      %v4071 = vrot.slane %v4069, 7
      %v4072 = vshll.u32 %v3853, 16
      %v4074 = vor.u32 %v4071, %v4072
      %v4075 = vsel %vm3877, %v4067, %v4074
      %v4077 = vshrl.u32 %v3854, 16
      %v4079 = vrot.slane %v4077, 7
      %v4080 = vrot.slane %v4079, 4
      %v4082 = vshrl.u32 %v3855, 16
      %v4084 = vrot.slane %v4082, 7
      %v4085 = vshll.u32 %v3855, 16
      %v4087 = vor.u32 %v4084, %v4085
      %v4088 = vsel %vm3877, %v4080, %v4087
      %v4089 = vrot.slane %v4084, 4
      %v4091 = vshrl.u32 %v3856, 16
      %v4093 = vrot.slane %v4091, 7
      %v4094 = vshll.u32 %v3856, 16
      %v4096 = vor.u32 %v4093, %v4094
      %v4097 = vsel %vm3877, %v4089, %v4096
      %v4099 = vshrl.u32 %v3857, 16
      %v4101 = vrot.slane %v4099, 7
      %v4102 = vrot.slane %v4101, 4
      %v4104 = vshrl.u32 %v3858, 16
      %v4106 = vrot.slane %v4104, 7
      %v4107 = vshll.u32 %v3858, 16
      %v4109 = vor.u32 %v4106, %v4107
      %v4110 = vsel %vm3877, %v4102, %v4109
      %v4111 = vrot.slane %v4106, 4
      %v4113 = vshrl.u32 %v3859, 16
      %v4115 = vrot.slane %v4113, 7
      %v4116 = vshll.u32 %v3859, 16
      %v4118 = vor.u32 %v4115, %v4116
      %v4119 = vsel %vm3877, %v4111, %v4118
      %v4121 = vshrl.u32 %v3860, 16
      %v4123 = vrot.slane %v4121, 7
      %v4124 = vrot.slane %v4123, 4
      %v4126 = vshrl.u32 %v3861, 16
      %v4128 = vrot.slane %v4126, 7
      %v4129 = vshll.u32 %v3861, 16
      %v4131 = vor.u32 %v4128, %v4129
      %v4132 = vsel %vm3877, %v4124, %v4131
      %v4133 = vrot.slane %v4128, 4
      %v4135 = vshrl.u32 %v3862, 16
      %v4137 = vrot.slane %v4135, 7
      %v4138 = vshll.u32 %v3862, 16
      %v4140 = vor.u32 %v4137, %v4138
      %v4141 = vsel %vm3877, %v4133, %v4140
      %v4143 = vshrl.u32 %v3863, 16
      %v4145 = vrot.slane %v4143, 7
      %v4146 = vrot.slane %v4145, 4
      %v4148 = vshrl.u32 %v3864, 16
      %v4150 = vrot.slane %v4148, 7
      %v4151 = vshll.u32 %v3864, 16
      %v4153 = vor.u32 %v4150, %v4151
      %v4154 = vsel %vm3877, %v4146, %v4153
      %v4155 = vrot.slane %v4150, 4
      %v4157 = vshrl.u32 %v3865, 16
      %v4159 = vrot.slane %v4157, 7
      %v4160 = vshll.u32 %v3865, 16
      %v4162 = vor.u32 %v4159, %v4160
      %v4163 = vsel %vm3877, %v4155, %v4162
      %v4165 = vshrl.u32 %v3866, 16
      %v4167 = vrot.slane %v4165, 7
      %v4168 = vrot.slane %v4167, 4
      %v4170 = vshrl.u32 %v3867, 16
      %v4172 = vrot.slane %v4170, 7
      %v4173 = vshll.u32 %v3867, 16
      %v4175 = vor.u32 %v4172, %v4173
      %v4176 = vsel %vm3877, %v4168, %v4175
      %v4177 = vrot.slane %v4172, 4
      %v4179 = vshrl.u32 %v3868, 16
      %v4181 = vrot.slane %v4179, 7
      %v4182 = vshll.u32 %v3868, 16
      %v4184 = vor.u32 %v4181, %v4182
      %v4185 = vsel %vm3877, %v4177, %v4184
      %v4187 = vshrl.u32 %v3869, 16
      %v4189 = vrot.slane %v4187, 7
      %v4190 = vrot.slane %v4189, 4
      %v4192 = vshrl.u32 %v3870, 16
      %v4194 = vrot.slane %v4192, 7
      %v4195 = vshll.u32 %v3870, 16
      %v4197 = vor.u32 %v4194, %v4195
      %v4198 = vsel %vm3877, %v4190, %v4197
      %v4199 = vrot.slane %v4194, 4
      %v4201 = vshrl.u32 %v3871, 16
      %v4203 = vrot.slane %v4201, 7
      %v4204 = vshll.u32 %v3871, 16
      %v4206 = vor.u32 %v4203, %v4204
      %v4207 = vsel %vm3877, %v4199, %v4206
      %v4209 = vshrl.u32 %v3872, 16
      %v4211 = vrot.slane %v4209, 7
      %v4212 = vrot.slane %v4211, 4
      %v4214 = vshrl.u32 %v3873, 16
      %v4216 = vrot.slane %v4214, 7
      %v4217 = vshll.u32 %v3873, 16
      %v4219 = vor.u32 %v4216, %v4217
      %v4220 = vsel %vm3877, %v4212, %v4219
      %v4221 = vrot.slane %v4216, 4
      %v4223 = vshrl.u32 %v3874, 16
      %v4225 = vrot.slane %v4223, 7
      %v4226 = vshll.u32 %v3874, 16
      %v4228 = vor.u32 %v4225, %v4226
      %v4229 = vsel %vm3877, %v4221, %v4228
      %v4230 = vld [vmem:[%s6] sm:$0xf]
      %v4231 = vld [vmem:[%s6 + $0x4] sm:$0xf]
      %v4232 = vld [vmem:[%s6 + $0x8] sm:$0xf]
      %v4233 = vld [vmem:[%s6 + $0xc] sm:$0xf]
      %v4234 = vld [vmem:[%s6 + $0x10] sm:$0xf]
      %v4235 = vld [vmem:[%s6 + $0x14] sm:$0xf]
      %v4236 = vld [vmem:[%s6 + $0x18] sm:$0xf]
      %v4237 = vld [vmem:[%s6 + $0x1c] sm:$0xf]
      %v4238 = vld [vmem:[%s6 + $0x20] sm:$0xf]
      %v4239 = vld [vmem:[%s6 + $0x24] sm:$0xf]
      %v4240 = vld [vmem:[%s6 + $0x28] sm:$0xf]
      %v4241 = vld [vmem:[%s6 + $0x2c] sm:$0xf]
      %v4242 = vld [vmem:[%s6 + $0x30] sm:$0xf]
      %v4243 = vld [vmem:[%s6 + $0x34] sm:$0xf]
      %v4244 = vld [vmem:[%s6 + $0x38] sm:$0xf]
      %v4245 = vld [vmem:[%s6 + $0x3c] sm:$0xf]
      %v4246 = vld [vmem:[%s6 + $0x40] sm:$0xf]
      %v4247 = vld [vmem:[%s6 + $0x44] sm:$0xf]
      %v4248 = vld [vmem:[%s6 + $0x48] sm:$0xf]
      %v4249 = vld [vmem:[%s6 + $0x4c] sm:$0xf]
      %v4250 = vld [vmem:[%s6 + $0x50] sm:$0xf]
      %v4251 = vld [vmem:[%s6 + $0x54] sm:$0xf]
      %v4252 = vld [vmem:[%s6 + $0x58] sm:$0xf]
      %v4253 = vld [vmem:[%s6 + $0x5c] sm:$0xf]
      %v4254 = vld [vmem:[%s6 + $0x60] sm:$0xf]
      %v4255 = vld [vmem:[%s6 + $0x64] sm:$0xf]
      %v4256 = vld [vmem:[%s6 + $0x68] sm:$0xf]
      %v4257 = vld [vmem:[%s6 + $0x6c] sm:$0xf]
      %v4258 = vld [vmem:[%s6 + $0x70] sm:$0xf]
      %v4259 = vld [vmem:[%s6 + $0x74] sm:$0xf]
      %v4260 = vld [vmem:[%s6 + $0x78] sm:$0xf]
      %v4261 = vld [vmem:[%s6 + $0x7c] sm:$0xf]
      %v4262 = vld [vmem:[%s3104 + $0x8] sm:$0x88]
      %v4263 = vld [vmem:[%s3104 + $0x10] sm:$0xff]
      %v4264 = vld [vmem:[%s3104 + $0x18] sm:$0xff]
      %v4265 = vld [vmem:[%s3104 + $0x28] sm:$0x88]
      %v4266 = vld [vmem:[%s3104 + $0x30] sm:$0xff]
      %v4267 = vld [vmem:[%s3104 + $0x38] sm:$0xff]
      %v4268 = vld [vmem:[%s3104 + $0x48] sm:$0x88]
      %v4269 = vld [vmem:[%s3104 + $0x50] sm:$0xff]
      %v4270 = vld [vmem:[%s3104 + $0x58] sm:$0xff]
      %v4271 = vld [vmem:[%s3104 + $0x68] sm:$0x88]
      %v4272 = vld [vmem:[%s3104 + $0x70] sm:$0xff]
      %v4273 = vld [vmem:[%s3104 + $0x78] sm:$0xff]
      %v4274 = vld [vmem:[%s3104 + $0x88] sm:$0x88]
      %v4275 = vld [vmem:[%s3104 + $0x90] sm:$0xff]
      %v4276 = vld [vmem:[%s3104 + $0x98] sm:$0xff]
      %v4277 = vld [vmem:[%s3104 + $0xa8] sm:$0x88]
      %v4278 = vld [vmem:[%s3104 + $0xb0] sm:$0xff]
      %v4279 = vld [vmem:[%s3104 + $0xb8] sm:$0xff]
      %v4280 = vld [vmem:[%s3104 + $0xc8] sm:$0x88]
      %v4281 = vld [vmem:[%s3104 + $0xd0] sm:$0xff]
      %v4282 = vld [vmem:[%s3104 + $0xd8] sm:$0xff]
      %v4283 = vld [vmem:[%s3104 + $0xe8] sm:$0x88]
      %v4284 = vld [vmem:[%s3104 + $0xf0] sm:$0xff]
      %v4285 = vld [vmem:[%s3104 + $0xf8] sm:$0xff]
      %v4286 = vld [vmem:[%s3104 + $0x108] sm:$0x88]
      %v4287 = vld [vmem:[%s3104 + $0x110] sm:$0xff]
      %v4288 = vld [vmem:[%s3104 + $0x118] sm:$0xff]
      %v4289 = vld [vmem:[%s3104 + $0x128] sm:$0x88]
      %v4290 = vld [vmem:[%s3104 + $0x130] sm:$0xff]
      %v4291 = vld [vmem:[%s3104 + $0x138] sm:$0xff]
      %v4292 = vld [vmem:[%s3104 + $0x148] sm:$0x88]
      %v4293 = vld [vmem:[%s3104 + $0x150] sm:$0xff]
      %v4294 = vld [vmem:[%s3104 + $0x158] sm:$0xff]
      %v4295 = vld [vmem:[%s3104 + $0x168] sm:$0x88]
      %v4296 = vld [vmem:[%s3104 + $0x170] sm:$0xff]
      %v4297 = vld [vmem:[%s3104 + $0x178] sm:$0xff]
      %v4298 = vld [vmem:[%s3104 + $0x188] sm:$0x88]
      %v4299 = vld [vmem:[%s3104 + $0x190] sm:$0xff]
      %v4300 = vld [vmem:[%s3104 + $0x198] sm:$0xff]
      %v4301 = vld [vmem:[%s3104 + $0x1a8] sm:$0x88]
      %v4302 = vld [vmem:[%s3104 + $0x1b0] sm:$0xff]
      %v4303 = vld [vmem:[%s3104 + $0x1b8] sm:$0xff]
      %v4304 = vld [vmem:[%s3104 + $0x1c8] sm:$0x88]
      %v4305 = vld [vmem:[%s3104 + $0x1d0] sm:$0xff]
      %v4306 = vld [vmem:[%s3104 + $0x1d8] sm:$0xff]
      %v4307 = vld [vmem:[%s3104 + $0x1e8] sm:$0x88]
      %v4308 = vld [vmem:[%s3104 + $0x1f0] sm:$0xff]
      %v4309 = vld [vmem:[%s3104 + $0x1f8] sm:$0xff]
      %v4311 = vshrl.u32 %v4262, 16
      %v4313 = vrot.slane %v4311, 7
      %v4314 = vrot.slane %v4313, 4
      %v4316 = vshrl.u32 %v4263, 16
      %v4318 = vrot.slane %v4316, 7
      %v4319 = vshll.u32 %v4263, 16
      %v4321 = vor.u32 %v4318, %v4319
      %v4322 = vsel %vm3877, %v4314, %v4321
      %v4323 = vrot.slane %v4318, 4
      %v4325 = vshrl.u32 %v4264, 16
      %v4327 = vrot.slane %v4325, 7
      %v4328 = vshll.u32 %v4264, 16
      %v4330 = vor.u32 %v4327, %v4328
      %v4331 = vsel %vm3877, %v4323, %v4330
      %v4333 = vshrl.u32 %v4265, 16
      %v4335 = vrot.slane %v4333, 7
      %v4336 = vrot.slane %v4335, 4
      %v4338 = vshrl.u32 %v4266, 16
      %v4340 = vrot.slane %v4338, 7
      %v4341 = vshll.u32 %v4266, 16
      %v4343 = vor.u32 %v4340, %v4341
      %v4344 = vsel %vm3877, %v4336, %v4343
      %v4345 = vrot.slane %v4340, 4
      %v4347 = vshrl.u32 %v4267, 16
      %v4349 = vrot.slane %v4347, 7
      %v4350 = vshll.u32 %v4267, 16
      %v4352 = vor.u32 %v4349, %v4350
      %v4353 = vsel %vm3877, %v4345, %v4352
      %v4355 = vshrl.u32 %v4268, 16
      %v4357 = vrot.slane %v4355, 7
      %v4358 = vrot.slane %v4357, 4
      %v4360 = vshrl.u32 %v4269, 16
      %v4362 = vrot.slane %v4360, 7
      %v4363 = vshll.u32 %v4269, 16
      %v4365 = vor.u32 %v4362, %v4363
      %v4366 = vsel %vm3877, %v4358, %v4365
      %v4367 = vrot.slane %v4362, 4
      %v4369 = vshrl.u32 %v4270, 16
      %v4371 = vrot.slane %v4369, 7
      %v4372 = vshll.u32 %v4270, 16
      %v4374 = vor.u32 %v4371, %v4372
      %v4375 = vsel %vm3877, %v4367, %v4374
      %v4377 = vshrl.u32 %v4271, 16
      %v4379 = vrot.slane %v4377, 7
      %v4380 = vrot.slane %v4379, 4
      %v4382 = vshrl.u32 %v4272, 16
      %v4384 = vrot.slane %v4382, 7
      %v4385 = vshll.u32 %v4272, 16
      %v4387 = vor.u32 %v4384, %v4385
      %v4388 = vsel %vm3877, %v4380, %v4387
      %v4389 = vrot.slane %v4384, 4
      %v4391 = vshrl.u32 %v4273, 16
      %v4393 = vrot.slane %v4391, 7
      %v4394 = vshll.u32 %v4273, 16
      %v4396 = vor.u32 %v4393, %v4394
      %v4397 = vsel %vm3877, %v4389, %v4396
      %v4399 = vshrl.u32 %v4274, 16
      %v4401 = vrot.slane %v4399, 7
      %v4402 = vrot.slane %v4401, 4
      %v4404 = vshrl.u32 %v4275, 16
      %v4406 = vrot.slane %v4404, 7
      %v4407 = vshll.u32 %v4275, 16
      %v4409 = vor.u32 %v4406, %v4407
      %v4410 = vsel %vm3877, %v4402, %v4409
      %v4411 = vrot.slane %v4406, 4
      %v4413 = vshrl.u32 %v4276, 16
      %v4415 = vrot.slane %v4413, 7
      %v4416 = vshll.u32 %v4276, 16
      %v4418 = vor.u32 %v4415, %v4416
      %v4419 = vsel %vm3877, %v4411, %v4418
      %v4421 = vshrl.u32 %v4277, 16
      %v4423 = vrot.slane %v4421, 7
      %v4424 = vrot.slane %v4423, 4
      %v4426 = vshrl.u32 %v4278, 16
      %v4428 = vrot.slane %v4426, 7
      %v4429 = vshll.u32 %v4278, 16
      %v4431 = vor.u32 %v4428, %v4429
      %v4432 = vsel %vm3877, %v4424, %v4431
      %v4433 = vrot.slane %v4428, 4
      %v4435 = vshrl.u32 %v4279, 16
      %v4437 = vrot.slane %v4435, 7
      %v4438 = vshll.u32 %v4279, 16
      %v4440 = vor.u32 %v4437, %v4438
      %v4441 = vsel %vm3877, %v4433, %v4440
      %v4443 = vshrl.u32 %v4280, 16
      %v4445 = vrot.slane %v4443, 7
      %v4446 = vrot.slane %v4445, 4
      %v4448 = vshrl.u32 %v4281, 16
      %v4450 = vrot.slane %v4448, 7
      %v4451 = vshll.u32 %v4281, 16
      %v4453 = vor.u32 %v4450, %v4451
      %v4454 = vsel %vm3877, %v4446, %v4453
      %v4455 = vrot.slane %v4450, 4
      %v4457 = vshrl.u32 %v4282, 16
      %v4459 = vrot.slane %v4457, 7
      %v4460 = vshll.u32 %v4282, 16
      %v4462 = vor.u32 %v4459, %v4460
      %v4463 = vsel %vm3877, %v4455, %v4462
      %v4465 = vshrl.u32 %v4283, 16
      %v4467 = vrot.slane %v4465, 7
      %v4468 = vrot.slane %v4467, 4
      %v4470 = vshrl.u32 %v4284, 16
      %v4472 = vrot.slane %v4470, 7
      %v4473 = vshll.u32 %v4284, 16
      %v4475 = vor.u32 %v4472, %v4473
      %v4476 = vsel %vm3877, %v4468, %v4475
      %v4477 = vrot.slane %v4472, 4
      %v4479 = vshrl.u32 %v4285, 16
      %v4481 = vrot.slane %v4479, 7
      %v4482 = vshll.u32 %v4285, 16
      %v4484 = vor.u32 %v4481, %v4482
      %v4485 = vsel %vm3877, %v4477, %v4484
      %v4487 = vshrl.u32 %v4286, 16
      %v4489 = vrot.slane %v4487, 7
      %v4490 = vrot.slane %v4489, 4
      %v4492 = vshrl.u32 %v4287, 16
      %v4494 = vrot.slane %v4492, 7
      %v4495 = vshll.u32 %v4287, 16
      %v4497 = vor.u32 %v4494, %v4495
      %v4498 = vsel %vm3877, %v4490, %v4497
      %v4499 = vrot.slane %v4494, 4
      %v4501 = vshrl.u32 %v4288, 16
      %v4503 = vrot.slane %v4501, 7
      %v4504 = vshll.u32 %v4288, 16
      %v4506 = vor.u32 %v4503, %v4504
      %v4507 = vsel %vm3877, %v4499, %v4506
      %v4509 = vshrl.u32 %v4289, 16
      %v4511 = vrot.slane %v4509, 7
      %v4512 = vrot.slane %v4511, 4
      %v4514 = vshrl.u32 %v4290, 16
      %v4516 = vrot.slane %v4514, 7
      %v4517 = vshll.u32 %v4290, 16
      %v4519 = vor.u32 %v4516, %v4517
      %v4520 = vsel %vm3877, %v4512, %v4519
      %v4521 = vrot.slane %v4516, 4
      %v4523 = vshrl.u32 %v4291, 16
      %v4525 = vrot.slane %v4523, 7
      %v4526 = vshll.u32 %v4291, 16
      %v4528 = vor.u32 %v4525, %v4526
      %v4529 = vsel %vm3877, %v4521, %v4528
      %v4531 = vshrl.u32 %v4292, 16
      %v4533 = vrot.slane %v4531, 7
      %v4534 = vrot.slane %v4533, 4
      %v4536 = vshrl.u32 %v4293, 16
      %v4538 = vrot.slane %v4536, 7
      %v4539 = vshll.u32 %v4293, 16
      %v4541 = vor.u32 %v4538, %v4539
      %v4542 = vsel %vm3877, %v4534, %v4541
      %v4543 = vrot.slane %v4538, 4
      %v4545 = vshrl.u32 %v4294, 16
      %v4547 = vrot.slane %v4545, 7
      %v4548 = vshll.u32 %v4294, 16
      %v4550 = vor.u32 %v4547, %v4548
      %v4551 = vsel %vm3877, %v4543, %v4550
      %v4553 = vshrl.u32 %v4295, 16
      %v4555 = vrot.slane %v4553, 7
      %v4556 = vrot.slane %v4555, 4
      %v4558 = vshrl.u32 %v4296, 16
      %v4560 = vrot.slane %v4558, 7
      %v4561 = vshll.u32 %v4296, 16
      %v4563 = vor.u32 %v4560, %v4561
      %v4564 = vsel %vm3877, %v4556, %v4563
      %v4565 = vrot.slane %v4560, 4
      %v4567 = vshrl.u32 %v4297, 16
      %v4569 = vrot.slane %v4567, 7
      %v4570 = vshll.u32 %v4297, 16
      %v4572 = vor.u32 %v4569, %v4570
      %v4573 = vsel %vm3877, %v4565, %v4572
      %v4575 = vshrl.u32 %v4298, 16
      %v4577 = vrot.slane %v4575, 7
      %v4578 = vrot.slane %v4577, 4
      %v4580 = vshrl.u32 %v4299, 16
      %v4582 = vrot.slane %v4580, 7
      %v4583 = vshll.u32 %v4299, 16
      %v4585 = vor.u32 %v4582, %v4583
      %v4586 = vsel %vm3877, %v4578, %v4585
      %v4587 = vrot.slane %v4582, 4
      %v4589 = vshrl.u32 %v4300, 16
      %v4591 = vrot.slane %v4589, 7
      %v4592 = vshll.u32 %v4300, 16
      %v4594 = vor.u32 %v4591, %v4592
      %v4595 = vsel %vm3877, %v4587, %v4594
      %v4597 = vshrl.u32 %v4301, 16
      %v4599 = vrot.slane %v4597, 7
      %v4600 = vrot.slane %v4599, 4
      %v4602 = vshrl.u32 %v4302, 16
      %v4604 = vrot.slane %v4602, 7
      %v4605 = vshll.u32 %v4302, 16
      %v4607 = vor.u32 %v4604, %v4605
      %v4608 = vsel %vm3877, %v4600, %v4607
      %v4609 = vrot.slane %v4604, 4
      %v4611 = vshrl.u32 %v4303, 16
      %v4613 = vrot.slane %v4611, 7
      %v4614 = vshll.u32 %v4303, 16
      %v4616 = vor.u32 %v4613, %v4614
      %v4617 = vsel %vm3877, %v4609, %v4616
      %v4619 = vshrl.u32 %v4304, 16
      %v4621 = vrot.slane %v4619, 7
      %v4622 = vrot.slane %v4621, 4
      %v4624 = vshrl.u32 %v4305, 16
      %v4626 = vrot.slane %v4624, 7
      %v4627 = vshll.u32 %v4305, 16
      %v4629 = vor.u32 %v4626, %v4627
      %v4630 = vsel %vm3877, %v4622, %v4629
      %v4631 = vrot.slane %v4626, 4
      %v4633 = vshrl.u32 %v4306, 16
      %v4635 = vrot.slane %v4633, 7
      %v4636 = vshll.u32 %v4306, 16
      %v4638 = vor.u32 %v4635, %v4636
      %v4639 = vsel %vm3877, %v4631, %v4638
      %v4641 = vshrl.u32 %v4307, 16
      %v4643 = vrot.slane %v4641, 7
      %v4644 = vrot.slane %v4643, 4
      %v4646 = vshrl.u32 %v4308, 16
      %v4648 = vrot.slane %v4646, 7
      %v4649 = vshll.u32 %v4308, 16
      %v4651 = vor.u32 %v4648, %v4649
      %v4652 = vsel %vm3877, %v4644, %v4651
      %v4653 = vrot.slane %v4648, 4
      %v4655 = vshrl.u32 %v4309, 16
      %v4657 = vrot.slane %v4655, 7
      %v4658 = vshll.u32 %v4309, 16
      %v4660 = vor.u32 %v4657, %v4658
      %v4661 = vsel %vm3877, %v4653, %v4660
      %s4662 = scalar_lea.vmem %s6, 128
      %v4663 = vld [vmem:[%s4662] sm:$0xf]
      %v4664 = vld [vmem:[%s4662 + $0x4] sm:$0xf]
      %v4665 = vld [vmem:[%s4662 + $0x8] sm:$0xf]
      %v4666 = vld [vmem:[%s4662 + $0xc] sm:$0xf]
      %v4667 = vld [vmem:[%s4662 + $0x10] sm:$0xf]
      %v4668 = vld [vmem:[%s4662 + $0x14] sm:$0xf]
      %v4669 = vld [vmem:[%s4662 + $0x18] sm:$0xf]
      %v4670 = vld [vmem:[%s4662 + $0x1c] sm:$0xf]
      %v4671 = vld [vmem:[%s4662 + $0x20] sm:$0xf]
      %v4672 = vld [vmem:[%s4662 + $0x24] sm:$0xf]
      %v4673 = vld [vmem:[%s4662 + $0x28] sm:$0xf]
      %v4674 = vld [vmem:[%s4662 + $0x2c] sm:$0xf]
      %v4675 = vld [vmem:[%s4662 + $0x30] sm:$0xf]
      %v4676 = vld [vmem:[%s4662 + $0x34] sm:$0xf]
      %v4677 = vld [vmem:[%s4662 + $0x38] sm:$0xf]
      %v4678 = vld [vmem:[%s4662 + $0x3c] sm:$0xf]
      %v4679 = vld [vmem:[%s4662 + $0x40] sm:$0xf]
      %v4680 = vld [vmem:[%s4662 + $0x44] sm:$0xf]
      %v4681 = vld [vmem:[%s4662 + $0x48] sm:$0xf]
      %v4682 = vld [vmem:[%s4662 + $0x4c] sm:$0xf]
      %v4683 = vld [vmem:[%s4662 + $0x50] sm:$0xf]
      %v4684 = vld [vmem:[%s4662 + $0x54] sm:$0xf]
      %v4685 = vld [vmem:[%s4662 + $0x58] sm:$0xf]
      %v4686 = vld [vmem:[%s4662 + $0x5c] sm:$0xf]
      %v4687 = vld [vmem:[%s4662 + $0x60] sm:$0xf]
      %v4688 = vld [vmem:[%s4662 + $0x64] sm:$0xf]
      %v4689 = vld [vmem:[%s4662 + $0x68] sm:$0xf]
      %v4690 = vld [vmem:[%s4662 + $0x6c] sm:$0xf]
      %v4691 = vld [vmem:[%s4662 + $0x70] sm:$0xf]
      %v4692 = vld [vmem:[%s4662 + $0x74] sm:$0xf]
      %v4693 = vld [vmem:[%s4662 + $0x78] sm:$0xf]
      %v4694 = vld [vmem:[%s4662 + $0x7c] sm:$0xf]
      %v4695 = vunpack.c.l.b16 %v4322
      %v4696 = vunpack.c.h.b16 %v4322
      %v4697 = vunpack.c.l.b16 %v4331
      %v4698 = vunpack.c.h.b16 %v4331
      %v4699 = vunpack.c.l.b16 %v4344
      %v4700 = vunpack.c.h.b16 %v4344
      %v4701 = vunpack.c.l.b16 %v4353
      %v4702 = vunpack.c.h.b16 %v4353
      %v4703 = vunpack.c.l.b16 %v4366
      %v4704 = vunpack.c.h.b16 %v4366
      %v4705 = vunpack.c.l.b16 %v4375
      %v4706 = vunpack.c.h.b16 %v4375
      %v4707 = vunpack.c.l.b16 %v4388
      %v4708 = vunpack.c.h.b16 %v4388
      %v4709 = vunpack.c.l.b16 %v4397
      %v4710 = vunpack.c.h.b16 %v4397
      %v4711 = vunpack.c.l.b16 %v4410
      %v4712 = vunpack.c.h.b16 %v4410
      %v4713 = vunpack.c.l.b16 %v4419
      %v4714 = vunpack.c.h.b16 %v4419
      %v4715 = vunpack.c.l.b16 %v4432
      %v4716 = vunpack.c.h.b16 %v4432
      %v4717 = vunpack.c.l.b16 %v4441
      %v4718 = vunpack.c.h.b16 %v4441
      %v4719 = vunpack.c.l.b16 %v4454
      %v4720 = vunpack.c.h.b16 %v4454
      %v4721 = vunpack.c.l.b16 %v4463
      %v4722 = vunpack.c.h.b16 %v4463
      %v4723 = vunpack.c.l.b16 %v4476
      %v4724 = vunpack.c.h.b16 %v4476
      %v4725 = vunpack.c.l.b16 %v4485
      %v4726 = vunpack.c.h.b16 %v4485
      %v4727 = vunpack.c.l.b16 %v4498
      %v4728 = vunpack.c.h.b16 %v4498
      %v4729 = vunpack.c.l.b16 %v4507
      %v4730 = vunpack.c.h.b16 %v4507
      %v4731 = vunpack.c.l.b16 %v4520
      %v4732 = vunpack.c.h.b16 %v4520
      %v4733 = vunpack.c.l.b16 %v4529
      %v4734 = vunpack.c.h.b16 %v4529
      %v4735 = vunpack.c.l.b16 %v4542
      %v4736 = vunpack.c.h.b16 %v4542
      %v4737 = vunpack.c.l.b16 %v4551
      %v4738 = vunpack.c.h.b16 %v4551
      %v4739 = vunpack.c.l.b16 %v4564
      %v4740 = vunpack.c.h.b16 %v4564
      %v4741 = vunpack.c.l.b16 %v4573
      %v4742 = vunpack.c.h.b16 %v4573
      %v4743 = vunpack.c.l.b16 %v4586
      %v4744 = vunpack.c.h.b16 %v4586
      %v4745 = vunpack.c.l.b16 %v4595
      %v4746 = vunpack.c.h.b16 %v4595
      %v4747 = vunpack.c.l.b16 %v4608
      %v4748 = vunpack.c.h.b16 %v4608
      %v4749 = vunpack.c.l.b16 %v4617
      %v4750 = vunpack.c.h.b16 %v4617
      %v4751 = vunpack.c.l.b16 %v4630
      %v4752 = vunpack.c.h.b16 %v4630
      %v4753 = vunpack.c.l.b16 %v4639
      %v4754 = vunpack.c.h.b16 %v4639
      %v4755 = vunpack.c.l.b16 %v4652
      %v4756 = vunpack.c.h.b16 %v4652
      %v4757 = vunpack.c.l.b16 %v4661
      %v4758 = vunpack.c.h.b16 %v4661
      %v4759 = vpack.c.b16 %v4697, %v4695
      %v4760 = vpack.c.b16 %v4698, %v4696
      %v4761 = vpack.c.b16 %v4701, %v4699
      %v4762 = vpack.c.b16 %v4702, %v4700
      %v4763 = vpack.c.b16 %v4705, %v4703
      %v4764 = vpack.c.b16 %v4706, %v4704
      %v4765 = vpack.c.b16 %v4709, %v4707
      %v4766 = vpack.c.b16 %v4710, %v4708
      %v4767 = vpack.c.b16 %v4713, %v4711
      %v4768 = vpack.c.b16 %v4714, %v4712
      %v4769 = vpack.c.b16 %v4717, %v4715
      %v4770 = vpack.c.b16 %v4718, %v4716
      %v4771 = vpack.c.b16 %v4721, %v4719
      %v4772 = vpack.c.b16 %v4722, %v4720
      %v4773 = vpack.c.b16 %v4725, %v4723
      %v4774 = vpack.c.b16 %v4726, %v4724
      %v4775 = vpack.c.b16 %v4729, %v4727
      %v4776 = vpack.c.b16 %v4730, %v4728
      %v4777 = vpack.c.b16 %v4733, %v4731
      %v4778 = vpack.c.b16 %v4734, %v4732
      %v4779 = vpack.c.b16 %v4737, %v4735
      %v4780 = vpack.c.b16 %v4738, %v4736
      %v4781 = vpack.c.b16 %v4741, %v4739
      %v4782 = vpack.c.b16 %v4742, %v4740
      %v4783 = vpack.c.b16 %v4745, %v4743
      %v4784 = vpack.c.b16 %v4746, %v4744
      %v4785 = vpack.c.b16 %v4749, %v4747
      %v4786 = vpack.c.b16 %v4750, %v4748
      %v4787 = vpack.c.b16 %v4753, %v4751
      %v4788 = vpack.c.b16 %v4754, %v4752
      %v4789 = vpack.c.b16 %v4757, %v4755
      %v4790 = vpack.c.b16 %v4758, %v4756
      %v4855 = vunpack.c.l.b16 %v4663
      %v4856 = vunpack.c.l.b16 %v4664
      %v4857 = vunpack.c.l.b16 %v4665
      %v4858 = vunpack.c.l.b16 %v4666
      %v4859 = vunpack.c.l.b16 %v4667
      %v4860 = vunpack.c.l.b16 %v4668
      %v4861 = vunpack.c.l.b16 %v4669
      %v4862 = vunpack.c.l.b16 %v4670
      %v4863 = vunpack.c.l.b16 %v4671
      %v4864 = vunpack.c.l.b16 %v4672
      %v4865 = vunpack.c.l.b16 %v4673
      %v4866 = vunpack.c.l.b16 %v4674
      %v4867 = vunpack.c.l.b16 %v4675
      %v4868 = vunpack.c.l.b16 %v4676
      %v4869 = vunpack.c.l.b16 %v4677
      %v4870 = vunpack.c.l.b16 %v4678
      %v4871 = vunpack.c.l.b16 %v4679
      %v4872 = vunpack.c.l.b16 %v4680
      %v4873 = vunpack.c.l.b16 %v4681
      %v4874 = vunpack.c.l.b16 %v4682
      %v4875 = vunpack.c.l.b16 %v4683
      %v4876 = vunpack.c.l.b16 %v4684
      %v4877 = vunpack.c.l.b16 %v4685
      %v4878 = vunpack.c.l.b16 %v4686
      %v4879 = vunpack.c.l.b16 %v4687
      %v4880 = vunpack.c.l.b16 %v4688
      %v4881 = vunpack.c.l.b16 %v4689
      %v4882 = vunpack.c.l.b16 %v4690
      %v4883 = vunpack.c.l.b16 %v4691
      %v4884 = vunpack.c.l.b16 %v4692
      %v4885 = vunpack.c.l.b16 %v4693
      %v4886 = vunpack.c.l.b16 %v4694
      %v4887 = vpack.c.b16 %v4856, %v4855
      %v4888 = vpack.c.b16 %v4858, %v4857
      %v4889 = vpack.c.b16 %v4860, %v4859
      %v4890 = vpack.c.b16 %v4862, %v4861
      %v4891 = vpack.c.b16 %v4864, %v4863
      %v4892 = vpack.c.b16 %v4866, %v4865
      %v4893 = vpack.c.b16 %v4868, %v4867
      %v4894 = vpack.c.b16 %v4870, %v4869
      %v4895 = vpack.c.b16 %v4872, %v4871
      %v4896 = vpack.c.b16 %v4874, %v4873
      %v4897 = vpack.c.b16 %v4876, %v4875
      %v4898 = vpack.c.b16 %v4878, %v4877
      %v4899 = vpack.c.b16 %v4880, %v4879
      %v4900 = vpack.c.b16 %v4882, %v4881
      %v4901 = vpack.c.b16 %v4884, %v4883
      %v4902 = vpack.c.b16 %v4886, %v4885
      %4919 = vmatprep.subr.bf16.mxu0 0
      %4920 = vmatpush1.bf16.msra.mxu0 %v4894
      %4921 = vmatprep.subr.bf16.mxu0 0
      %4922 = vmatpush1.bf16.msra.mxu0 %v4893
      %4923 = vmatprep.subr.bf16.mxu0 0
      %4924 = vmatpush1.bf16.msra.mxu0 %v4892
      %4925 = vmatprep.subr.bf16.mxu0 0
      %4926 = vmatpush1.bf16.msra.mxu0 %v4891
      %4927 = vmatprep.subr.bf16.mxu0 0
      %4928 = vmatpush1.bf16.msra.mxu0 %v4890
      %4929 = vmatprep.subr.bf16.mxu0 0
      %4930 = vmatpush1.bf16.msra.mxu0 %v4889
      %4931 = vmatprep.subr.bf16.mxu0 0
      %4932 = vmatpush1.bf16.msra.mxu0 %v4888
      %4933 = vmatprep.subr.bf16.mxu0 0
      %4934 = vmatpush1.bf16.msra.mxu0 %v4887
      %4935 = vmatprep.subr.bf16.mxu0 0
      %4936 = vmatpush2.bf16.msra.mxu0 %v4902
      %4937 = vmatprep.subr.bf16.mxu0 0
      %4938 = vmatpush2.bf16.msra.mxu0 %v4901
      %4939 = vmatprep.subr.bf16.mxu0 0
      %4940 = vmatpush2.bf16.msra.mxu0 %v4900
      %4941 = vmatprep.subr.bf16.mxu0 0
      %4942 = vmatpush2.bf16.msra.mxu0 %v4899
      %4943 = vmatprep.subr.bf16.mxu0 0
      %4944 = vmatpush2.bf16.msra.mxu0 %v4898
      %4945 = vmatprep.subr.bf16.mxu0 0
      %4946 = vmatpush2.bf16.msra.mxu0 %v4897
      %4947 = vmatprep.subr.bf16.mxu0 0
      %4948 = vmatpush2.bf16.msra.mxu0 %v4896
      %4949 = vmatprep.subr.bf16.mxu0 0
      %4950 = vmatpush2.bf16.msra.mxu0 %v4895
      %4951 = vmatprep.mubr.bf16.mxu0 %v4760
      %4952 = vmatmul.mubr.bf16.gmra.mxu0 %v4759
      %v4953 = vpop.f32.mrf.mxu0
      %v4954 = vadd.f32 0.0, %v4953
      %v4955 = vpop.f32.mrf.mxu0
      %v4956 = vpop.f32.mrf.mxu0
      %v4957 = vadd.f32 0.0, %v4956
      %v4958 = vpop.f32.mrf.mxu0
      %4959 = vmatprep.mubr.bf16.mxu0 %v4762
      %4960 = vmatmul.mubr.bf16.gmra.mxu0 %v4761
      %v4961 = vpop.f32.mrf.mxu0
      %v4962 = vadd.f32 0.0, %v4961
      %v4963 = vpop.f32.mrf.mxu0
      %v4964 = vpop.f32.mrf.mxu0
      %v4965 = vadd.f32 0.0, %v4964
      %v4966 = vpop.f32.mrf.mxu0
      %4967 = vmatprep.mubr.bf16.mxu0 %v4764
      %4968 = vmatmul.mubr.bf16.gmra.mxu0 %v4763
      %v4969 = vpop.f32.mrf.mxu0
      %v4970 = vadd.f32 0.0, %v4969
      %v4971 = vpop.f32.mrf.mxu0
      %v4972 = vpop.f32.mrf.mxu0
      %v4973 = vadd.f32 0.0, %v4972
      %v4974 = vpop.f32.mrf.mxu0
      %4975 = vmatprep.mubr.bf16.mxu0 %v4766
      %4976 = vmatmul.mubr.bf16.gmra.mxu0 %v4765
      %v4977 = vpop.f32.mrf.mxu0
      %v4978 = vadd.f32 0.0, %v4977
      %v4979 = vpop.f32.mrf.mxu0
      %v4980 = vpop.f32.mrf.mxu0
      %v4981 = vadd.f32 0.0, %v4980
      %v4982 = vpop.f32.mrf.mxu0
      %4983 = vmatprep.mubr.bf16.mxu0 %v4768
      %4984 = vmatmul.mubr.bf16.gmra.mxu0 %v4767
      %v4985 = vpop.f32.mrf.mxu0
      %v4986 = vadd.f32 0.0, %v4985
      %v4987 = vpop.f32.mrf.mxu0
      %v4988 = vpop.f32.mrf.mxu0
      %v4989 = vadd.f32 0.0, %v4988
      %v4990 = vpop.f32.mrf.mxu0
      %4991 = vmatprep.mubr.bf16.mxu0 %v4770
      %4992 = vmatmul.mubr.bf16.gmra.mxu0 %v4769
      %v4993 = vpop.f32.mrf.mxu0
      %v4994 = vadd.f32 0.0, %v4993
      %v4995 = vpop.f32.mrf.mxu0
      %v4996 = vpop.f32.mrf.mxu0
      %v4997 = vadd.f32 0.0, %v4996
      %v4998 = vpop.f32.mrf.mxu0
      %4999 = vmatprep.mubr.bf16.mxu0 %v4772
      %5000 = vmatmul.mubr.bf16.gmra.mxu0 %v4771
      %v5001 = vpop.f32.mrf.mxu0
      %v5002 = vadd.f32 0.0, %v5001
      %v5003 = vpop.f32.mrf.mxu0
      %v5004 = vpop.f32.mrf.mxu0
      %v5005 = vadd.f32 0.0, %v5004
      %v5006 = vpop.f32.mrf.mxu0
      %5007 = vmatprep.mubr.bf16.mxu0 %v4774
      %5008 = vmatmul.mubr.bf16.gmra.mxu0 %v4773
      %v5009 = vpop.f32.mrf.mxu0
      %v5010 = vadd.f32 0.0, %v5009
      %v5011 = vpop.f32.mrf.mxu0
      %v5012 = vpop.f32.mrf.mxu0
      %v5013 = vadd.f32 0.0, %v5012
      %v5014 = vpop.f32.mrf.mxu0
      %5015 = vmatprep.mubr.bf16.mxu0 %v4776
      %5016 = vmatmul.mubr.bf16.gmra.mxu0 %v4775
      %v5017 = vpop.f32.mrf.mxu0
      %v5018 = vadd.f32 0.0, %v5017
      %v5019 = vpop.f32.mrf.mxu0
      %v5020 = vpop.f32.mrf.mxu0
      %v5021 = vadd.f32 0.0, %v5020
      %v5022 = vpop.f32.mrf.mxu0
      %5023 = vmatprep.mubr.bf16.mxu0 %v4778
      %5024 = vmatmul.mubr.bf16.gmra.mxu0 %v4777
      %v5025 = vpop.f32.mrf.mxu0
      %v5026 = vadd.f32 0.0, %v5025
      %v5027 = vpop.f32.mrf.mxu0
      %v5028 = vpop.f32.mrf.mxu0
      %v5029 = vadd.f32 0.0, %v5028
      %v5030 = vpop.f32.mrf.mxu0
      %5031 = vmatprep.mubr.bf16.mxu0 %v4780
      %5032 = vmatmul.mubr.bf16.gmra.mxu0 %v4779
      %v5033 = vpop.f32.mrf.mxu0
      %v5034 = vadd.f32 0.0, %v5033
      %v5035 = vpop.f32.mrf.mxu0
      %v5036 = vpop.f32.mrf.mxu0
      %v5037 = vadd.f32 0.0, %v5036
      %v5038 = vpop.f32.mrf.mxu0
      %5039 = vmatprep.mubr.bf16.mxu0 %v4782
      %5040 = vmatmul.mubr.bf16.gmra.mxu0 %v4781
      %v5041 = vpop.f32.mrf.mxu0
      %v5042 = vadd.f32 0.0, %v5041
      %v5043 = vpop.f32.mrf.mxu0
      %v5044 = vpop.f32.mrf.mxu0
      %v5045 = vadd.f32 0.0, %v5044
      %v5046 = vpop.f32.mrf.mxu0
      %5047 = vmatprep.mubr.bf16.mxu0 %v4784
      %5048 = vmatmul.mubr.bf16.gmra.mxu0 %v4783
      %v5049 = vpop.f32.mrf.mxu0
      %v5050 = vadd.f32 0.0, %v5049
      %v5051 = vpop.f32.mrf.mxu0
      %v5052 = vpop.f32.mrf.mxu0
      %v5053 = vadd.f32 0.0, %v5052
      %v5054 = vpop.f32.mrf.mxu0
      %5055 = vmatprep.mubr.bf16.mxu0 %v4786
      %5056 = vmatmul.mubr.bf16.gmra.mxu0 %v4785
      %v5057 = vpop.f32.mrf.mxu0
      %v5058 = vadd.f32 0.0, %v5057
      %v5059 = vpop.f32.mrf.mxu0
      %v5060 = vpop.f32.mrf.mxu0
      %v5061 = vadd.f32 0.0, %v5060
      %v5062 = vpop.f32.mrf.mxu0
      %5063 = vmatprep.mubr.bf16.mxu0 %v4788
      %5064 = vmatmul.mubr.bf16.gmra.mxu0 %v4787
      %v5065 = vpop.f32.mrf.mxu0
      %v5066 = vadd.f32 0.0, %v5065
      %v5067 = vpop.f32.mrf.mxu0
      %v5068 = vpop.f32.mrf.mxu0
      %v5069 = vadd.f32 0.0, %v5068
      %v5070 = vpop.f32.mrf.mxu0
      %5071 = vmatprep.mubr.bf16.mxu0 %v4790
      %5072 = vmatmul.mubr.bf16.gmra.mxu0 %v4789
      %v5073 = vpop.f32.mrf.mxu0
      %v5074 = vadd.f32 0.0, %v5073
      %v5075 = vpop.f32.mrf.mxu0
      %v5076 = vpop.f32.mrf.mxu0
      %v5077 = vadd.f32 0.0, %v5076
      %v5078 = vpop.f32.mrf.mxu0
      %5079 = vdwg.mxu0
      %v5080 = vunpack.c.l.b16 %v3890
      %v5081 = vunpack.c.h.b16 %v3890
      %v5082 = vunpack.c.l.b16 %v3899
      %v5083 = vunpack.c.h.b16 %v3899
      %v5084 = vunpack.c.l.b16 %v3912
      %v5085 = vunpack.c.h.b16 %v3912
      %v5086 = vunpack.c.l.b16 %v3921
      %v5087 = vunpack.c.h.b16 %v3921
      %v5088 = vunpack.c.l.b16 %v3934
      %v5089 = vunpack.c.h.b16 %v3934
      %v5090 = vunpack.c.l.b16 %v3943
      %v5091 = vunpack.c.h.b16 %v3943
      %v5092 = vunpack.c.l.b16 %v3956
      %v5093 = vunpack.c.h.b16 %v3956
      %v5094 = vunpack.c.l.b16 %v3965
      %v5095 = vunpack.c.h.b16 %v3965
      %v5096 = vunpack.c.l.b16 %v3978
      %v5097 = vunpack.c.h.b16 %v3978
      %v5098 = vunpack.c.l.b16 %v3987
      %v5099 = vunpack.c.h.b16 %v3987
      %v5100 = vunpack.c.l.b16 %v4000
      %v5101 = vunpack.c.h.b16 %v4000
      %v5102 = vunpack.c.l.b16 %v4009
      %v5103 = vunpack.c.h.b16 %v4009
      %v5104 = vunpack.c.l.b16 %v4022
      %v5105 = vunpack.c.h.b16 %v4022
      %v5106 = vunpack.c.l.b16 %v4031
      %v5107 = vunpack.c.h.b16 %v4031
      %v5108 = vunpack.c.l.b16 %v4044
      %v5109 = vunpack.c.h.b16 %v4044
      %v5110 = vunpack.c.l.b16 %v4053
      %v5111 = vunpack.c.h.b16 %v4053
      %v5112 = vunpack.c.l.b16 %v4066
      %v5113 = vunpack.c.h.b16 %v4066
      %v5114 = vunpack.c.l.b16 %v4075
      %v5115 = vunpack.c.h.b16 %v4075
      %v5116 = vunpack.c.l.b16 %v4088
      %v5117 = vunpack.c.h.b16 %v4088
      %v5118 = vunpack.c.l.b16 %v4097
      %v5119 = vunpack.c.h.b16 %v4097
      %v5120 = vunpack.c.l.b16 %v4110
      %v5121 = vunpack.c.h.b16 %v4110
      %v5122 = vunpack.c.l.b16 %v4119
      %v5123 = vunpack.c.h.b16 %v4119
      %v5124 = vunpack.c.l.b16 %v4132
      %v5125 = vunpack.c.h.b16 %v4132
      %v5126 = vunpack.c.l.b16 %v4141
      %v5127 = vunpack.c.h.b16 %v4141
      %v5128 = vunpack.c.l.b16 %v4154
      %v5129 = vunpack.c.h.b16 %v4154
      %v5130 = vunpack.c.l.b16 %v4163
      %v5131 = vunpack.c.h.b16 %v4163
      %v5132 = vunpack.c.l.b16 %v4176
      %v5133 = vunpack.c.h.b16 %v4176
      %v5134 = vunpack.c.l.b16 %v4185
      %v5135 = vunpack.c.h.b16 %v4185
      %v5136 = vunpack.c.l.b16 %v4198
      %v5137 = vunpack.c.h.b16 %v4198
      %v5138 = vunpack.c.l.b16 %v4207
      %v5139 = vunpack.c.h.b16 %v4207
      %v5140 = vunpack.c.l.b16 %v4220
      %v5141 = vunpack.c.h.b16 %v4220
      %v5142 = vunpack.c.l.b16 %v4229
      %v5143 = vunpack.c.h.b16 %v4229
      %v5144 = vpack.c.b16 %v5082, %v5080
      %v5145 = vpack.c.b16 %v5083, %v5081
      %v5146 = vpack.c.b16 %v5086, %v5084
      %v5147 = vpack.c.b16 %v5087, %v5085
      %v5148 = vpack.c.b16 %v5090, %v5088
      %v5149 = vpack.c.b16 %v5091, %v5089
      %v5150 = vpack.c.b16 %v5094, %v5092
      %v5151 = vpack.c.b16 %v5095, %v5093
      %v5152 = vpack.c.b16 %v5098, %v5096
      %v5153 = vpack.c.b16 %v5099, %v5097
      %v5154 = vpack.c.b16 %v5102, %v5100
      %v5155 = vpack.c.b16 %v5103, %v5101
      %v5156 = vpack.c.b16 %v5106, %v5104
      %v5157 = vpack.c.b16 %v5107, %v5105
      %v5158 = vpack.c.b16 %v5110, %v5108
      %v5159 = vpack.c.b16 %v5111, %v5109
      %v5160 = vpack.c.b16 %v5114, %v5112
      %v5161 = vpack.c.b16 %v5115, %v5113
      %v5162 = vpack.c.b16 %v5118, %v5116
      %v5163 = vpack.c.b16 %v5119, %v5117
      %v5164 = vpack.c.b16 %v5122, %v5120
      %v5165 = vpack.c.b16 %v5123, %v5121
      %v5166 = vpack.c.b16 %v5126, %v5124
      %v5167 = vpack.c.b16 %v5127, %v5125
      %v5168 = vpack.c.b16 %v5130, %v5128
      %v5169 = vpack.c.b16 %v5131, %v5129
      %v5170 = vpack.c.b16 %v5134, %v5132
      %v5171 = vpack.c.b16 %v5135, %v5133
      %v5172 = vpack.c.b16 %v5138, %v5136
      %v5173 = vpack.c.b16 %v5139, %v5137
      %v5174 = vpack.c.b16 %v5142, %v5140
      %v5175 = vpack.c.b16 %v5143, %v5141
      %v5240 = vunpack.c.l.b16 %v4230
      %v5241 = vunpack.c.l.b16 %v4231
      %v5242 = vunpack.c.l.b16 %v4232
      %v5243 = vunpack.c.l.b16 %v4233
      %v5244 = vunpack.c.l.b16 %v4234
      %v5245 = vunpack.c.l.b16 %v4235
      %v5246 = vunpack.c.l.b16 %v4236
      %v5247 = vunpack.c.l.b16 %v4237
      %v5248 = vunpack.c.l.b16 %v4238
      %v5249 = vunpack.c.l.b16 %v4239
      %v5250 = vunpack.c.l.b16 %v4240
      %v5251 = vunpack.c.l.b16 %v4241
      %v5252 = vunpack.c.l.b16 %v4242
      %v5253 = vunpack.c.l.b16 %v4243
      %v5254 = vunpack.c.l.b16 %v4244
      %v5255 = vunpack.c.l.b16 %v4245
      %v5256 = vunpack.c.l.b16 %v4246
      %v5257 = vunpack.c.l.b16 %v4247
      %v5258 = vunpack.c.l.b16 %v4248
      %v5259 = vunpack.c.l.b16 %v4249
      %v5260 = vunpack.c.l.b16 %v4250
      %v5261 = vunpack.c.l.b16 %v4251
      %v5262 = vunpack.c.l.b16 %v4252
      %v5263 = vunpack.c.l.b16 %v4253
      %v5264 = vunpack.c.l.b16 %v4254
      %v5265 = vunpack.c.l.b16 %v4255
      %v5266 = vunpack.c.l.b16 %v4256
      %v5267 = vunpack.c.l.b16 %v4257
      %v5268 = vunpack.c.l.b16 %v4258
      %v5269 = vunpack.c.l.b16 %v4259
      %v5270 = vunpack.c.l.b16 %v4260
      %v5271 = vunpack.c.l.b16 %v4261
      %v5272 = vpack.c.b16 %v5241, %v5240
      %v5273 = vpack.c.b16 %v5243, %v5242
      %v5274 = vpack.c.b16 %v5245, %v5244
      %v5275 = vpack.c.b16 %v5247, %v5246
      %v5276 = vpack.c.b16 %v5249, %v5248
      %v5277 = vpack.c.b16 %v5251, %v5250
      %v5278 = vpack.c.b16 %v5253, %v5252
      %v5279 = vpack.c.b16 %v5255, %v5254
      %v5280 = vpack.c.b16 %v5257, %v5256
      %v5281 = vpack.c.b16 %v5259, %v5258
      %v5282 = vpack.c.b16 %v5261, %v5260
      %v5283 = vpack.c.b16 %v5263, %v5262
      %v5284 = vpack.c.b16 %v5265, %v5264
      %v5285 = vpack.c.b16 %v5267, %v5266
      %v5286 = vpack.c.b16 %v5269, %v5268
      %v5287 = vpack.c.b16 %v5271, %v5270
      %5304 = vmatprep.subr.bf16.mxu0 0
      %5305 = vmatpush1.bf16.msra.mxu0 %v5279
      %5306 = vmatprep.subr.bf16.mxu0 0
      %5307 = vmatpush1.bf16.msra.mxu0 %v5278
      %5308 = vmatprep.subr.bf16.mxu0 0
      %5309 = vmatpush1.bf16.msra.mxu0 %v5277
      %5310 = vmatprep.subr.bf16.mxu0 0
      %5311 = vmatpush1.bf16.msra.mxu0 %v5276
      %5312 = vmatprep.subr.bf16.mxu0 0
      %5313 = vmatpush1.bf16.msra.mxu0 %v5275
      %5314 = vmatprep.subr.bf16.mxu0 0
      %5315 = vmatpush1.bf16.msra.mxu0 %v5274
      %5316 = vmatprep.subr.bf16.mxu0 0
      %5317 = vmatpush1.bf16.msra.mxu0 %v5273
      %5318 = vmatprep.subr.bf16.mxu0 0
      %5319 = vmatpush1.bf16.msra.mxu0 %v5272
      %5320 = vmatprep.subr.bf16.mxu0 0
      %5321 = vmatpush2.bf16.msra.mxu0 %v5287
      %5322 = vmatprep.subr.bf16.mxu0 0
      %5323 = vmatpush2.bf16.msra.mxu0 %v5286
      %5324 = vmatprep.subr.bf16.mxu0 0
      %5325 = vmatpush2.bf16.msra.mxu0 %v5285
      %5326 = vmatprep.subr.bf16.mxu0 0
      %5327 = vmatpush2.bf16.msra.mxu0 %v5284
      %5328 = vmatprep.subr.bf16.mxu0 0
      %5329 = vmatpush2.bf16.msra.mxu0 %v5283
      %5330 = vmatprep.subr.bf16.mxu0 0
      %5331 = vmatpush2.bf16.msra.mxu0 %v5282
      %5332 = vmatprep.subr.bf16.mxu0 0
      %5333 = vmatpush2.bf16.msra.mxu0 %v5281
      %5334 = vmatprep.subr.bf16.mxu0 0
      %5335 = vmatpush2.bf16.msra.mxu0 %v5280
      %5336 = vmatprep.mubr.bf16.mxu0 %v5145
      %5337 = vmatmul.mubr.bf16.gmra.mxu0 %v5144
      %v5338 = vpop.f32.mrf.mxu0
      %v5339 = vadd.f32 %v4954, %v5338
      %v5340 = vpop.f32.mrf.mxu0
      %v5341 = vpop.f32.mrf.mxu0
      %v5342 = vadd.f32 %v4957, %v5341
      %v5343 = vpop.f32.mrf.mxu0
      %5344 = vmatprep.mubr.bf16.mxu0 %v5147
      %5345 = vmatmul.mubr.bf16.gmra.mxu0 %v5146
      %v5346 = vpop.f32.mrf.mxu0
      %v5347 = vadd.f32 %v4962, %v5346
      %v5348 = vpop.f32.mrf.mxu0
      %v5349 = vpop.f32.mrf.mxu0
      %v5350 = vadd.f32 %v4965, %v5349
      %v5351 = vpop.f32.mrf.mxu0
      %5352 = vmatprep.mubr.bf16.mxu0 %v5149
      %5353 = vmatmul.mubr.bf16.gmra.mxu0 %v5148
      %v5354 = vpop.f32.mrf.mxu0
      %v5355 = vadd.f32 %v4970, %v5354
      %v5356 = vpop.f32.mrf.mxu0
      %v5357 = vpop.f32.mrf.mxu0
      %v5358 = vadd.f32 %v4973, %v5357
      %v5359 = vpop.f32.mrf.mxu0
      %5360 = vmatprep.mubr.bf16.mxu0 %v5151
      %5361 = vmatmul.mubr.bf16.gmra.mxu0 %v5150
      %v5362 = vpop.f32.mrf.mxu0
      %v5363 = vadd.f32 %v4978, %v5362
      %v5364 = vpop.f32.mrf.mxu0
      %v5365 = vpop.f32.mrf.mxu0
      %v5366 = vadd.f32 %v4981, %v5365
      %v5367 = vpop.f32.mrf.mxu0
      %5368 = vmatprep.mubr.bf16.mxu0 %v5153
      %5369 = vmatmul.mubr.bf16.gmra.mxu0 %v5152
      %v5370 = vpop.f32.mrf.mxu0
      %v5371 = vadd.f32 %v4986, %v5370
      %v5372 = vpop.f32.mrf.mxu0
      %v5373 = vpop.f32.mrf.mxu0
      %v5374 = vadd.f32 %v4989, %v5373
      %v5375 = vpop.f32.mrf.mxu0
      %5376 = vmatprep.mubr.bf16.mxu0 %v5155
      %5377 = vmatmul.mubr.bf16.gmra.mxu0 %v5154
      %v5378 = vpop.f32.mrf.mxu0
      %v5379 = vadd.f32 %v4994, %v5378
      %v5380 = vpop.f32.mrf.mxu0
      %v5381 = vpop.f32.mrf.mxu0
      %v5382 = vadd.f32 %v4997, %v5381
      %v5383 = vpop.f32.mrf.mxu0
      %5384 = vmatprep.mubr.bf16.mxu0 %v5157
      %5385 = vmatmul.mubr.bf16.gmra.mxu0 %v5156
      %v5386 = vpop.f32.mrf.mxu0
      %v5387 = vadd.f32 %v5002, %v5386
      %v5388 = vpop.f32.mrf.mxu0
      %v5389 = vpop.f32.mrf.mxu0
      %v5390 = vadd.f32 %v5005, %v5389
      %v5391 = vpop.f32.mrf.mxu0
      %5392 = vmatprep.mubr.bf16.mxu0 %v5159
      %5393 = vmatmul.mubr.bf16.gmra.mxu0 %v5158
      %v5394 = vpop.f32.mrf.mxu0
      %v5395 = vadd.f32 %v5010, %v5394
      %v5396 = vpop.f32.mrf.mxu0
      %v5397 = vpop.f32.mrf.mxu0
      %v5398 = vadd.f32 %v5013, %v5397
      %v5399 = vpop.f32.mrf.mxu0
      %5400 = vmatprep.mubr.bf16.mxu0 %v5161
      %5401 = vmatmul.mubr.bf16.gmra.mxu0 %v5160
      %v5402 = vpop.f32.mrf.mxu0
      %v5403 = vadd.f32 %v5018, %v5402
      %v5404 = vpop.f32.mrf.mxu0
      %v5405 = vpop.f32.mrf.mxu0
      %v5406 = vadd.f32 %v5021, %v5405
      %v5407 = vpop.f32.mrf.mxu0
      %5408 = vmatprep.mubr.bf16.mxu0 %v5163
      %5409 = vmatmul.mubr.bf16.gmra.mxu0 %v5162
      %v5410 = vpop.f32.mrf.mxu0
      %v5411 = vadd.f32 %v5026, %v5410
      %v5412 = vpop.f32.mrf.mxu0
      %v5413 = vpop.f32.mrf.mxu0
      %v5414 = vadd.f32 %v5029, %v5413
      %v5415 = vpop.f32.mrf.mxu0
      %5416 = vmatprep.mubr.bf16.mxu0 %v5165
      %5417 = vmatmul.mubr.bf16.gmra.mxu0 %v5164
      %v5418 = vpop.f32.mrf.mxu0
      %v5419 = vadd.f32 %v5034, %v5418
      %v5420 = vpop.f32.mrf.mxu0
      %v5421 = vpop.f32.mrf.mxu0
      %v5422 = vadd.f32 %v5037, %v5421
      %v5423 = vpop.f32.mrf.mxu0
      %5424 = vmatprep.mubr.bf16.mxu0 %v5167
      %5425 = vmatmul.mubr.bf16.gmra.mxu0 %v5166
      %v5426 = vpop.f32.mrf.mxu0
      %v5427 = vadd.f32 %v5042, %v5426
      %v5428 = vpop.f32.mrf.mxu0
      %v5429 = vpop.f32.mrf.mxu0
      %v5430 = vadd.f32 %v5045, %v5429
      %v5431 = vpop.f32.mrf.mxu0
      %5432 = vmatprep.mubr.bf16.mxu0 %v5169
      %5433 = vmatmul.mubr.bf16.gmra.mxu0 %v5168
      %v5434 = vpop.f32.mrf.mxu0
      %v5435 = vadd.f32 %v5050, %v5434
      %v5436 = vpop.f32.mrf.mxu0
      %v5437 = vpop.f32.mrf.mxu0
      %v5438 = vadd.f32 %v5053, %v5437
      %v5439 = vpop.f32.mrf.mxu0
      %5440 = vmatprep.mubr.bf16.mxu0 %v5171
      %5441 = vmatmul.mubr.bf16.gmra.mxu0 %v5170
      %v5442 = vpop.f32.mrf.mxu0
      %v5443 = vadd.f32 %v5058, %v5442
      %v5444 = vpop.f32.mrf.mxu0
      %v5445 = vpop.f32.mrf.mxu0
      %v5446 = vadd.f32 %v5061, %v5445
      %v5447 = vpop.f32.mrf.mxu0
      %5448 = vmatprep.mubr.bf16.mxu0 %v5173
      %5449 = vmatmul.mubr.bf16.gmra.mxu0 %v5172
      %v5450 = vpop.f32.mrf.mxu0
      %v5451 = vadd.f32 %v5066, %v5450
      %v5452 = vpop.f32.mrf.mxu0
      %v5453 = vpop.f32.mrf.mxu0
      %v5454 = vadd.f32 %v5069, %v5453
      %v5455 = vpop.f32.mrf.mxu0
      %5456 = vmatprep.mubr.bf16.mxu0 %v5175
      %5457 = vmatmul.mubr.bf16.gmra.mxu0 %v5174
      %v5458 = vpop.f32.mrf.mxu0
      %v5459 = vadd.f32 %v5074, %v5458
      %v5460 = vpop.f32.mrf.mxu0
      %v5461 = vpop.f32.mrf.mxu0
      %v5462 = vadd.f32 %v5077, %v5461
      %v5463 = vpop.f32.mrf.mxu0
      %5464 = vdwg.mxu0
      %s5465 = scalar_lea.vmem [#allocation2], 64
      %v5466 = vld [vmem:[%s5465 + $0x8] sm:$0x88]
      %v5467 = vld [vmem:[%s5465 + $0x10] sm:$0xff]
      %v5468 = vld [vmem:[%s5465 + $0x18] sm:$0xff]
      %v5469 = vld [vmem:[%s5465 + $0x28] sm:$0x88]
      %v5470 = vld [vmem:[%s5465 + $0x30] sm:$0xff]
      %v5471 = vld [vmem:[%s5465 + $0x38] sm:$0xff]
      %v5472 = vld [vmem:[%s5465 + $0x48] sm:$0x88]
      %v5473 = vld [vmem:[%s5465 + $0x50] sm:$0xff]
      %v5474 = vld [vmem:[%s5465 + $0x58] sm:$0xff]
      %v5475 = vld [vmem:[%s5465 + $0x68] sm:$0x88]
      %v5476 = vld [vmem:[%s5465 + $0x70] sm:$0xff]
      %v5477 = vld [vmem:[%s5465 + $0x78] sm:$0xff]
      %v5478 = vld [vmem:[%s5465 + $0x88] sm:$0x88]
      %v5479 = vld [vmem:[%s5465 + $0x90] sm:$0xff]
      %v5480 = vld [vmem:[%s5465 + $0x98] sm:$0xff]
      %v5481 = vld [vmem:[%s5465 + $0xa8] sm:$0x88]
      %v5482 = vld [vmem:[%s5465 + $0xb0] sm:$0xff]
      %v5483 = vld [vmem:[%s5465 + $0xb8] sm:$0xff]
      %v5484 = vld [vmem:[%s5465 + $0xc8] sm:$0x88]
      %v5485 = vld [vmem:[%s5465 + $0xd0] sm:$0xff]
      %v5486 = vld [vmem:[%s5465 + $0xd8] sm:$0xff]
      %v5487 = vld [vmem:[%s5465 + $0xe8] sm:$0x88]
      %v5488 = vld [vmem:[%s5465 + $0xf0] sm:$0xff]
      %v5489 = vld [vmem:[%s5465 + $0xf8] sm:$0xff]
      %v5490 = vld [vmem:[%s5465 + $0x108] sm:$0x88]
      %v5491 = vld [vmem:[%s5465 + $0x110] sm:$0xff]
      %v5492 = vld [vmem:[%s5465 + $0x118] sm:$0xff]
      %v5493 = vld [vmem:[%s5465 + $0x128] sm:$0x88]
      %v5494 = vld [vmem:[%s5465 + $0x130] sm:$0xff]
      %v5495 = vld [vmem:[%s5465 + $0x138] sm:$0xff]
      %v5496 = vld [vmem:[%s5465 + $0x148] sm:$0x88]
      %v5497 = vld [vmem:[%s5465 + $0x150] sm:$0xff]
      %v5498 = vld [vmem:[%s5465 + $0x158] sm:$0xff]
      %v5499 = vld [vmem:[%s5465 + $0x168] sm:$0x88]
      %v5500 = vld [vmem:[%s5465 + $0x170] sm:$0xff]
      %v5501 = vld [vmem:[%s5465 + $0x178] sm:$0xff]
      %v5502 = vld [vmem:[%s5465 + $0x188] sm:$0x88]
      %v5503 = vld [vmem:[%s5465 + $0x190] sm:$0xff]
      %v5504 = vld [vmem:[%s5465 + $0x198] sm:$0xff]
      %v5505 = vld [vmem:[%s5465 + $0x1a8] sm:$0x88]
      %v5506 = vld [vmem:[%s5465 + $0x1b0] sm:$0xff]
      %v5507 = vld [vmem:[%s5465 + $0x1b8] sm:$0xff]
      %v5508 = vld [vmem:[%s5465 + $0x1c8] sm:$0x88]
      %v5509 = vld [vmem:[%s5465 + $0x1d0] sm:$0xff]
      %v5510 = vld [vmem:[%s5465 + $0x1d8] sm:$0xff]
      %v5511 = vld [vmem:[%s5465 + $0x1e8] sm:$0x88]
      %v5512 = vld [vmem:[%s5465 + $0x1f0] sm:$0xff]
      %v5513 = vld [vmem:[%s5465 + $0x1f8] sm:$0xff]
      %v5515 = vshrl.u32 %v5466, 16
      %v5517 = vrot.slane %v5515, 7
      %v5518 = vrot.slane %v5517, 4
      %v5520 = vshrl.u32 %v5467, 16
      %v5522 = vrot.slane %v5520, 7
      %v5523 = vshll.u32 %v5467, 16
      %v5525 = vor.u32 %v5522, %v5523
      %v5526 = vsel %vm3877, %v5518, %v5525
      %v5527 = vrot.slane %v5522, 4
      %v5529 = vshrl.u32 %v5468, 16
      %v5531 = vrot.slane %v5529, 7
      %v5532 = vshll.u32 %v5468, 16
      %v5534 = vor.u32 %v5531, %v5532
      %v5535 = vsel %vm3877, %v5527, %v5534
      %v5537 = vshrl.u32 %v5469, 16
      %v5539 = vrot.slane %v5537, 7
      %v5540 = vrot.slane %v5539, 4
      %v5542 = vshrl.u32 %v5470, 16
      %v5544 = vrot.slane %v5542, 7
      %v5545 = vshll.u32 %v5470, 16
      %v5547 = vor.u32 %v5544, %v5545
      %v5548 = vsel %vm3877, %v5540, %v5547
      %v5549 = vrot.slane %v5544, 4
      %v5551 = vshrl.u32 %v5471, 16
      %v5553 = vrot.slane %v5551, 7
      %v5554 = vshll.u32 %v5471, 16
      %v5556 = vor.u32 %v5553, %v5554
      %v5557 = vsel %vm3877, %v5549, %v5556
      %v5559 = vshrl.u32 %v5472, 16
      %v5561 = vrot.slane %v5559, 7
      %v5562 = vrot.slane %v5561, 4
      %v5564 = vshrl.u32 %v5473, 16
      %v5566 = vrot.slane %v5564, 7
      %v5567 = vshll.u32 %v5473, 16
      %v5569 = vor.u32 %v5566, %v5567
      %v5570 = vsel %vm3877, %v5562, %v5569
      %v5571 = vrot.slane %v5566, 4
      %v5573 = vshrl.u32 %v5474, 16
      %v5575 = vrot.slane %v5573, 7
      %v5576 = vshll.u32 %v5474, 16
      %v5578 = vor.u32 %v5575, %v5576
      %v5579 = vsel %vm3877, %v5571, %v5578
      %v5581 = vshrl.u32 %v5475, 16
      %v5583 = vrot.slane %v5581, 7
      %v5584 = vrot.slane %v5583, 4
      %v5586 = vshrl.u32 %v5476, 16
      %v5588 = vrot.slane %v5586, 7
      %v5589 = vshll.u32 %v5476, 16
      %v5591 = vor.u32 %v5588, %v5589
      %v5592 = vsel %vm3877, %v5584, %v5591
      %v5593 = vrot.slane %v5588, 4
      %v5595 = vshrl.u32 %v5477, 16
      %v5597 = vrot.slane %v5595, 7
      %v5598 = vshll.u32 %v5477, 16
      %v5600 = vor.u32 %v5597, %v5598
      %v5601 = vsel %vm3877, %v5593, %v5600
      %v5603 = vshrl.u32 %v5478, 16
      %v5605 = vrot.slane %v5603, 7
      %v5606 = vrot.slane %v5605, 4
      %v5608 = vshrl.u32 %v5479, 16
      %v5610 = vrot.slane %v5608, 7
      %v5611 = vshll.u32 %v5479, 16
      %v5613 = vor.u32 %v5610, %v5611
      %v5614 = vsel %vm3877, %v5606, %v5613
      %v5615 = vrot.slane %v5610, 4
      %v5617 = vshrl.u32 %v5480, 16
      %v5619 = vrot.slane %v5617, 7
      %v5620 = vshll.u32 %v5480, 16
      %v5622 = vor.u32 %v5619, %v5620
      %v5623 = vsel %vm3877, %v5615, %v5622
      %v5625 = vshrl.u32 %v5481, 16
      %v5627 = vrot.slane %v5625, 7
      %v5628 = vrot.slane %v5627, 4
      %v5630 = vshrl.u32 %v5482, 16
      %v5632 = vrot.slane %v5630, 7
      %v5633 = vshll.u32 %v5482, 16
      %v5635 = vor.u32 %v5632, %v5633
      %v5636 = vsel %vm3877, %v5628, %v5635
      %v5637 = vrot.slane %v5632, 4
      %v5639 = vshrl.u32 %v5483, 16
      %v5641 = vrot.slane %v5639, 7
      %v5642 = vshll.u32 %v5483, 16
      %v5644 = vor.u32 %v5641, %v5642
      %v5645 = vsel %vm3877, %v5637, %v5644
      %v5647 = vshrl.u32 %v5484, 16
      %v5649 = vrot.slane %v5647, 7
      %v5650 = vrot.slane %v5649, 4
      %v5652 = vshrl.u32 %v5485, 16
      %v5654 = vrot.slane %v5652, 7
      %v5655 = vshll.u32 %v5485, 16
      %v5657 = vor.u32 %v5654, %v5655
      %v5658 = vsel %vm3877, %v5650, %v5657
      %v5659 = vrot.slane %v5654, 4
      %v5661 = vshrl.u32 %v5486, 16
      %v5663 = vrot.slane %v5661, 7
      %v5664 = vshll.u32 %v5486, 16
      %v5666 = vor.u32 %v5663, %v5664
      %v5667 = vsel %vm3877, %v5659, %v5666
      %v5669 = vshrl.u32 %v5487, 16
      %v5671 = vrot.slane %v5669, 7
      %v5672 = vrot.slane %v5671, 4
      %v5674 = vshrl.u32 %v5488, 16
      %v5676 = vrot.slane %v5674, 7
      %v5677 = vshll.u32 %v5488, 16
      %v5679 = vor.u32 %v5676, %v5677
      %v5680 = vsel %vm3877, %v5672, %v5679
      %v5681 = vrot.slane %v5676, 4
      %v5683 = vshrl.u32 %v5489, 16
      %v5685 = vrot.slane %v5683, 7
      %v5686 = vshll.u32 %v5489, 16
      %v5688 = vor.u32 %v5685, %v5686
      %v5689 = vsel %vm3877, %v5681, %v5688
      %v5691 = vshrl.u32 %v5490, 16
      %v5693 = vrot.slane %v5691, 7
      %v5694 = vrot.slane %v5693, 4
      %v5696 = vshrl.u32 %v5491, 16
      %v5698 = vrot.slane %v5696, 7
      %v5699 = vshll.u32 %v5491, 16
      %v5701 = vor.u32 %v5698, %v5699
      %v5702 = vsel %vm3877, %v5694, %v5701
      %v5703 = vrot.slane %v5698, 4
      %v5705 = vshrl.u32 %v5492, 16
      %v5707 = vrot.slane %v5705, 7
      %v5708 = vshll.u32 %v5492, 16
      %v5710 = vor.u32 %v5707, %v5708
      %v5711 = vsel %vm3877, %v5703, %v5710
      %v5713 = vshrl.u32 %v5493, 16
      %v5715 = vrot.slane %v5713, 7
      %v5716 = vrot.slane %v5715, 4
      %v5718 = vshrl.u32 %v5494, 16
      %v5720 = vrot.slane %v5718, 7
      %v5721 = vshll.u32 %v5494, 16
      %v5723 = vor.u32 %v5720, %v5721
      %v5724 = vsel %vm3877, %v5716, %v5723
      %v5725 = vrot.slane %v5720, 4
      %v5727 = vshrl.u32 %v5495, 16
      %v5729 = vrot.slane %v5727, 7
      %v5730 = vshll.u32 %v5495, 16
      %v5732 = vor.u32 %v5729, %v5730
      %v5733 = vsel %vm3877, %v5725, %v5732
      %v5735 = vshrl.u32 %v5496, 16
      %v5737 = vrot.slane %v5735, 7
      %v5738 = vrot.slane %v5737, 4
      %v5740 = vshrl.u32 %v5497, 16
      %v5742 = vrot.slane %v5740, 7
      %v5743 = vshll.u32 %v5497, 16
      %v5745 = vor.u32 %v5742, %v5743
      %v5746 = vsel %vm3877, %v5738, %v5745
      %v5747 = vrot.slane %v5742, 4
      %v5749 = vshrl.u32 %v5498, 16
      %v5751 = vrot.slane %v5749, 7
      %v5752 = vshll.u32 %v5498, 16
      %v5754 = vor.u32 %v5751, %v5752
      %v5755 = vsel %vm3877, %v5747, %v5754
      %v5757 = vshrl.u32 %v5499, 16
      %v5759 = vrot.slane %v5757, 7
      %v5760 = vrot.slane %v5759, 4
      %v5762 = vshrl.u32 %v5500, 16
      %v5764 = vrot.slane %v5762, 7
      %v5765 = vshll.u32 %v5500, 16
      %v5767 = vor.u32 %v5764, %v5765
      %v5768 = vsel %vm3877, %v5760, %v5767
      %v5769 = vrot.slane %v5764, 4
      %v5771 = vshrl.u32 %v5501, 16
      %v5773 = vrot.slane %v5771, 7
      %v5774 = vshll.u32 %v5501, 16
      %v5776 = vor.u32 %v5773, %v5774
      %v5777 = vsel %vm3877, %v5769, %v5776
      %v5779 = vshrl.u32 %v5502, 16
      %v5781 = vrot.slane %v5779, 7
      %v5782 = vrot.slane %v5781, 4
      %v5784 = vshrl.u32 %v5503, 16
      %v5786 = vrot.slane %v5784, 7
      %v5787 = vshll.u32 %v5503, 16
      %v5789 = vor.u32 %v5786, %v5787
      %v5790 = vsel %vm3877, %v5782, %v5789
      %v5791 = vrot.slane %v5786, 4
      %v5793 = vshrl.u32 %v5504, 16
      %v5795 = vrot.slane %v5793, 7
      %v5796 = vshll.u32 %v5504, 16
      %v5798 = vor.u32 %v5795, %v5796
      %v5799 = vsel %vm3877, %v5791, %v5798
      %v5801 = vshrl.u32 %v5505, 16
      %v5803 = vrot.slane %v5801, 7
      %v5804 = vrot.slane %v5803, 4
      %v5806 = vshrl.u32 %v5506, 16
      %v5808 = vrot.slane %v5806, 7
      %v5809 = vshll.u32 %v5506, 16
      %v5811 = vor.u32 %v5808, %v5809
      %v5812 = vsel %vm3877, %v5804, %v5811
      %v5813 = vrot.slane %v5808, 4
      %v5815 = vshrl.u32 %v5507, 16
      %v5817 = vrot.slane %v5815, 7
      %v5818 = vshll.u32 %v5507, 16
      %v5820 = vor.u32 %v5817, %v5818
      %v5821 = vsel %vm3877, %v5813, %v5820
      %v5823 = vshrl.u32 %v5508, 16
      %v5825 = vrot.slane %v5823, 7
      %v5826 = vrot.slane %v5825, 4
      %v5828 = vshrl.u32 %v5509, 16
      %v5830 = vrot.slane %v5828, 7
      %v5831 = vshll.u32 %v5509, 16
      %v5833 = vor.u32 %v5830, %v5831
      %v5834 = vsel %vm3877, %v5826, %v5833
      %v5835 = vrot.slane %v5830, 4
      %v5837 = vshrl.u32 %v5510, 16
      %v5839 = vrot.slane %v5837, 7
      %v5840 = vshll.u32 %v5510, 16
      %v5842 = vor.u32 %v5839, %v5840
      %v5843 = vsel %vm3877, %v5835, %v5842
      %v5845 = vshrl.u32 %v5511, 16
      %v5847 = vrot.slane %v5845, 7
      %v5848 = vrot.slane %v5847, 4
      %v5850 = vshrl.u32 %v5512, 16
      %v5852 = vrot.slane %v5850, 7
      %v5853 = vshll.u32 %v5512, 16
      %v5855 = vor.u32 %v5852, %v5853
      %v5856 = vsel %vm3877, %v5848, %v5855
      %v5857 = vrot.slane %v5852, 4
      %v5859 = vshrl.u32 %v5513, 16
      %v5861 = vrot.slane %v5859, 7
      %v5862 = vshll.u32 %v5513, 16
      %v5864 = vor.u32 %v5861, %v5862
      %v5865 = vsel %vm3877, %v5857, %v5864
      %s5866 = scalar_lea.vmem %s6, 256
      %v5867 = vld [vmem:[%s5866] sm:$0xf]
      %v5868 = vld [vmem:[%s5866 + $0x4] sm:$0xf]
      %v5869 = vld [vmem:[%s5866 + $0x8] sm:$0xf]
      %v5870 = vld [vmem:[%s5866 + $0xc] sm:$0xf]
      %v5871 = vld [vmem:[%s5866 + $0x10] sm:$0xf]
      %v5872 = vld [vmem:[%s5866 + $0x14] sm:$0xf]
      %v5873 = vld [vmem:[%s5866 + $0x18] sm:$0xf]
      %v5874 = vld [vmem:[%s5866 + $0x1c] sm:$0xf]
      %v5875 = vld [vmem:[%s5866 + $0x20] sm:$0xf]
      %v5876 = vld [vmem:[%s5866 + $0x24] sm:$0xf]
      %v5877 = vld [vmem:[%s5866 + $0x28] sm:$0xf]
      %v5878 = vld [vmem:[%s5866 + $0x2c] sm:$0xf]
      %v5879 = vld [vmem:[%s5866 + $0x30] sm:$0xf]
      %v5880 = vld [vmem:[%s5866 + $0x34] sm:$0xf]
      %v5881 = vld [vmem:[%s5866 + $0x38] sm:$0xf]
      %v5882 = vld [vmem:[%s5866 + $0x3c] sm:$0xf]
      %v5883 = vld [vmem:[%s5866 + $0x40] sm:$0xf]
      %v5884 = vld [vmem:[%s5866 + $0x44] sm:$0xf]
      %v5885 = vld [vmem:[%s5866 + $0x48] sm:$0xf]
      %v5886 = vld [vmem:[%s5866 + $0x4c] sm:$0xf]
      %v5887 = vld [vmem:[%s5866 + $0x50] sm:$0xf]
      %v5888 = vld [vmem:[%s5866 + $0x54] sm:$0xf]
      %v5889 = vld [vmem:[%s5866 + $0x58] sm:$0xf]
      %v5890 = vld [vmem:[%s5866 + $0x5c] sm:$0xf]
      %v5891 = vld [vmem:[%s5866 + $0x60] sm:$0xf]
      %v5892 = vld [vmem:[%s5866 + $0x64] sm:$0xf]
      %v5893 = vld [vmem:[%s5866 + $0x68] sm:$0xf]
      %v5894 = vld [vmem:[%s5866 + $0x6c] sm:$0xf]
      %v5895 = vld [vmem:[%s5866 + $0x70] sm:$0xf]
      %v5896 = vld [vmem:[%s5866 + $0x74] sm:$0xf]
      %v5897 = vld [vmem:[%s5866 + $0x78] sm:$0xf]
      %v5898 = vld [vmem:[%s5866 + $0x7c] sm:$0xf]
      %v5899 = vunpack.c.l.b16 %v5526
      %v5900 = vunpack.c.h.b16 %v5526
      %v5901 = vunpack.c.l.b16 %v5535
      %v5902 = vunpack.c.h.b16 %v5535
      %v5903 = vunpack.c.l.b16 %v5548
      %v5904 = vunpack.c.h.b16 %v5548
      %v5905 = vunpack.c.l.b16 %v5557
      %v5906 = vunpack.c.h.b16 %v5557
      %v5907 = vunpack.c.l.b16 %v5570
      %v5908 = vunpack.c.h.b16 %v5570
      %v5909 = vunpack.c.l.b16 %v5579
      %v5910 = vunpack.c.h.b16 %v5579
      %v5911 = vunpack.c.l.b16 %v5592
      %v5912 = vunpack.c.h.b16 %v5592
      %v5913 = vunpack.c.l.b16 %v5601
      %v5914 = vunpack.c.h.b16 %v5601
      %v5915 = vunpack.c.l.b16 %v5614
      %v5916 = vunpack.c.h.b16 %v5614
      %v5917 = vunpack.c.l.b16 %v5623
      %v5918 = vunpack.c.h.b16 %v5623
      %v5919 = vunpack.c.l.b16 %v5636
      %v5920 = vunpack.c.h.b16 %v5636
      %v5921 = vunpack.c.l.b16 %v5645
      %v5922 = vunpack.c.h.b16 %v5645
      %v5923 = vunpack.c.l.b16 %v5658
      %v5924 = vunpack.c.h.b16 %v5658
      %v5925 = vunpack.c.l.b16 %v5667
      %v5926 = vunpack.c.h.b16 %v5667
      %v5927 = vunpack.c.l.b16 %v5680
      %v5928 = vunpack.c.h.b16 %v5680
      %v5929 = vunpack.c.l.b16 %v5689
      %v5930 = vunpack.c.h.b16 %v5689
      %v5931 = vunpack.c.l.b16 %v5702
      %v5932 = vunpack.c.h.b16 %v5702
      %v5933 = vunpack.c.l.b16 %v5711
      %v5934 = vunpack.c.h.b16 %v5711
      %v5935 = vunpack.c.l.b16 %v5724
      %v5936 = vunpack.c.h.b16 %v5724
      %v5937 = vunpack.c.l.b16 %v5733
      %v5938 = vunpack.c.h.b16 %v5733
      %v5939 = vunpack.c.l.b16 %v5746
      %v5940 = vunpack.c.h.b16 %v5746
      %v5941 = vunpack.c.l.b16 %v5755
      %v5942 = vunpack.c.h.b16 %v5755
      %v5943 = vunpack.c.l.b16 %v5768
      %v5944 = vunpack.c.h.b16 %v5768
      %v5945 = vunpack.c.l.b16 %v5777
      %v5946 = vunpack.c.h.b16 %v5777
      %v5947 = vunpack.c.l.b16 %v5790
      %v5948 = vunpack.c.h.b16 %v5790
      %v5949 = vunpack.c.l.b16 %v5799
      %v5950 = vunpack.c.h.b16 %v5799
      %v5951 = vunpack.c.l.b16 %v5812
      %v5952 = vunpack.c.h.b16 %v5812
      %v5953 = vunpack.c.l.b16 %v5821
      %v5954 = vunpack.c.h.b16 %v5821
      %v5955 = vunpack.c.l.b16 %v5834
      %v5956 = vunpack.c.h.b16 %v5834
      %v5957 = vunpack.c.l.b16 %v5843
      %v5958 = vunpack.c.h.b16 %v5843
      %v5959 = vunpack.c.l.b16 %v5856
      %v5960 = vunpack.c.h.b16 %v5856
      %v5961 = vunpack.c.l.b16 %v5865
      %v5962 = vunpack.c.h.b16 %v5865
      %v5963 = vpack.c.b16 %v5901, %v5899
      %v5964 = vpack.c.b16 %v5902, %v5900
      %v5965 = vpack.c.b16 %v5905, %v5903
      %v5966 = vpack.c.b16 %v5906, %v5904
      %v5967 = vpack.c.b16 %v5909, %v5907
      %v5968 = vpack.c.b16 %v5910, %v5908
      %v5969 = vpack.c.b16 %v5913, %v5911
      %v5970 = vpack.c.b16 %v5914, %v5912
      %v5971 = vpack.c.b16 %v5917, %v5915
      %v5972 = vpack.c.b16 %v5918, %v5916
      %v5973 = vpack.c.b16 %v5921, %v5919
      %v5974 = vpack.c.b16 %v5922, %v5920
      %v5975 = vpack.c.b16 %v5925, %v5923
      %v5976 = vpack.c.b16 %v5926, %v5924
      %v5977 = vpack.c.b16 %v5929, %v5927
      %v5978 = vpack.c.b16 %v5930, %v5928
      %v5979 = vpack.c.b16 %v5933, %v5931
      %v5980 = vpack.c.b16 %v5934, %v5932
      %v5981 = vpack.c.b16 %v5937, %v5935
      %v5982 = vpack.c.b16 %v5938, %v5936
      %v5983 = vpack.c.b16 %v5941, %v5939
      %v5984 = vpack.c.b16 %v5942, %v5940
      %v5985 = vpack.c.b16 %v5945, %v5943
      %v5986 = vpack.c.b16 %v5946, %v5944
      %v5987 = vpack.c.b16 %v5949, %v5947
      %v5988 = vpack.c.b16 %v5950, %v5948
      %v5989 = vpack.c.b16 %v5953, %v5951
      %v5990 = vpack.c.b16 %v5954, %v5952
      %v5991 = vpack.c.b16 %v5957, %v5955
      %v5992 = vpack.c.b16 %v5958, %v5956
      %v5993 = vpack.c.b16 %v5961, %v5959
      %v5994 = vpack.c.b16 %v5962, %v5960
      %v6059 = vunpack.c.l.b16 %v5867
      %v6060 = vunpack.c.l.b16 %v5868
      %v6061 = vunpack.c.l.b16 %v5869
      %v6062 = vunpack.c.l.b16 %v5870
      %v6063 = vunpack.c.l.b16 %v5871
      %v6064 = vunpack.c.l.b16 %v5872
      %v6065 = vunpack.c.l.b16 %v5873
      %v6066 = vunpack.c.l.b16 %v5874
      %v6067 = vunpack.c.l.b16 %v5875
      %v6068 = vunpack.c.l.b16 %v5876
      %v6069 = vunpack.c.l.b16 %v5877
      %v6070 = vunpack.c.l.b16 %v5878
      %v6071 = vunpack.c.l.b16 %v5879
      %v6072 = vunpack.c.l.b16 %v5880
      %v6073 = vunpack.c.l.b16 %v5881
      %v6074 = vunpack.c.l.b16 %v5882
      %v6075 = vunpack.c.l.b16 %v5883
      %v6076 = vunpack.c.l.b16 %v5884
      %v6077 = vunpack.c.l.b16 %v5885
      %v6078 = vunpack.c.l.b16 %v5886
      %v6079 = vunpack.c.l.b16 %v5887
      %v6080 = vunpack.c.l.b16 %v5888
      %v6081 = vunpack.c.l.b16 %v5889
      %v6082 = vunpack.c.l.b16 %v5890
      %v6083 = vunpack.c.l.b16 %v5891
      %v6084 = vunpack.c.l.b16 %v5892
      %v6085 = vunpack.c.l.b16 %v5893
      %v6086 = vunpack.c.l.b16 %v5894
      %v6087 = vunpack.c.l.b16 %v5895
      %v6088 = vunpack.c.l.b16 %v5896
      %v6089 = vunpack.c.l.b16 %v5897
      %v6090 = vunpack.c.l.b16 %v5898
      %v6091 = vpack.c.b16 %v6060, %v6059
      %v6092 = vpack.c.b16 %v6062, %v6061
      %v6093 = vpack.c.b16 %v6064, %v6063
      %v6094 = vpack.c.b16 %v6066, %v6065
      %v6095 = vpack.c.b16 %v6068, %v6067
      %v6096 = vpack.c.b16 %v6070, %v6069
      %v6097 = vpack.c.b16 %v6072, %v6071
      %v6098 = vpack.c.b16 %v6074, %v6073
      %v6099 = vpack.c.b16 %v6076, %v6075
      %v6100 = vpack.c.b16 %v6078, %v6077
      %v6101 = vpack.c.b16 %v6080, %v6079
      %v6102 = vpack.c.b16 %v6082, %v6081
      %v6103 = vpack.c.b16 %v6084, %v6083
      %v6104 = vpack.c.b16 %v6086, %v6085
      %v6105 = vpack.c.b16 %v6088, %v6087
      %v6106 = vpack.c.b16 %v6090, %v6089
      %6123 = vmatprep.subr.bf16.mxu0 0
      %6124 = vmatpush1.bf16.msra.mxu0 %v6098
      %6125 = vmatprep.subr.bf16.mxu0 0
      %6126 = vmatpush1.bf16.msra.mxu0 %v6097
      %6127 = vmatprep.subr.bf16.mxu0 0
      %6128 = vmatpush1.bf16.msra.mxu0 %v6096
      %6129 = vmatprep.subr.bf16.mxu0 0
      %6130 = vmatpush1.bf16.msra.mxu0 %v6095
      %6131 = vmatprep.subr.bf16.mxu0 0
      %6132 = vmatpush1.bf16.msra.mxu0 %v6094
      %6133 = vmatprep.subr.bf16.mxu0 0
      %6134 = vmatpush1.bf16.msra.mxu0 %v6093
      %6135 = vmatprep.subr.bf16.mxu0 0
      %6136 = vmatpush1.bf16.msra.mxu0 %v6092
      %6137 = vmatprep.subr.bf16.mxu0 0
      %6138 = vmatpush1.bf16.msra.mxu0 %v6091
      %6139 = vmatprep.subr.bf16.mxu0 0
      %6140 = vmatpush2.bf16.msra.mxu0 %v6106
      %6141 = vmatprep.subr.bf16.mxu0 0
      %6142 = vmatpush2.bf16.msra.mxu0 %v6105
      %6143 = vmatprep.subr.bf16.mxu0 0
      %6144 = vmatpush2.bf16.msra.mxu0 %v6104
      %6145 = vmatprep.subr.bf16.mxu0 0
      %6146 = vmatpush2.bf16.msra.mxu0 %v6103
      %6147 = vmatprep.subr.bf16.mxu0 0
      %6148 = vmatpush2.bf16.msra.mxu0 %v6102
      %6149 = vmatprep.subr.bf16.mxu0 0
      %6150 = vmatpush2.bf16.msra.mxu0 %v6101
      %6151 = vmatprep.subr.bf16.mxu0 0
      %6152 = vmatpush2.bf16.msra.mxu0 %v6100
      %6153 = vmatprep.subr.bf16.mxu0 0
      %6154 = vmatpush2.bf16.msra.mxu0 %v6099
      %6155 = vmatprep.mubr.bf16.mxu0 %v5964
      %6156 = vmatmul.mubr.bf16.gmra.mxu0 %v5963
      %v6157 = vpop.f32.mrf.mxu0
      %v6158 = vadd.f32 0.0, %v6157
      %v6159 = vpop.f32.mrf.mxu0
      %v6160 = vpop.f32.mrf.mxu0
      %v6161 = vadd.f32 0.0, %v6160
      %v6162 = vpop.f32.mrf.mxu0
      %6163 = vmatprep.mubr.bf16.mxu0 %v5966
      %6164 = vmatmul.mubr.bf16.gmra.mxu0 %v5965
      %v6165 = vpop.f32.mrf.mxu0
      %v6166 = vadd.f32 0.0, %v6165
      %v6167 = vpop.f32.mrf.mxu0
      %v6168 = vpop.f32.mrf.mxu0
      %v6169 = vadd.f32 0.0, %v6168
      %v6170 = vpop.f32.mrf.mxu0
      %6171 = vmatprep.mubr.bf16.mxu0 %v5968
      %6172 = vmatmul.mubr.bf16.gmra.mxu0 %v5967
      %v6173 = vpop.f32.mrf.mxu0
      %v6174 = vadd.f32 0.0, %v6173
      %v6175 = vpop.f32.mrf.mxu0
      %v6176 = vpop.f32.mrf.mxu0
      %v6177 = vadd.f32 0.0, %v6176
      %v6178 = vpop.f32.mrf.mxu0
      %6179 = vmatprep.mubr.bf16.mxu0 %v5970
      %6180 = vmatmul.mubr.bf16.gmra.mxu0 %v5969
      %v6181 = vpop.f32.mrf.mxu0
      %v6182 = vadd.f32 0.0, %v6181
      %v6183 = vpop.f32.mrf.mxu0
      %v6184 = vpop.f32.mrf.mxu0
      %v6185 = vadd.f32 0.0, %v6184
      %v6186 = vpop.f32.mrf.mxu0
      %6187 = vmatprep.mubr.bf16.mxu0 %v5972
      %6188 = vmatmul.mubr.bf16.gmra.mxu0 %v5971
      %v6189 = vpop.f32.mrf.mxu0
      %v6190 = vadd.f32 0.0, %v6189
      %v6191 = vpop.f32.mrf.mxu0
      %v6192 = vpop.f32.mrf.mxu0
      %v6193 = vadd.f32 0.0, %v6192
      %v6194 = vpop.f32.mrf.mxu0
      %6195 = vmatprep.mubr.bf16.mxu0 %v5974
      %6196 = vmatmul.mubr.bf16.gmra.mxu0 %v5973
      %v6197 = vpop.f32.mrf.mxu0
      %v6198 = vadd.f32 0.0, %v6197
      %v6199 = vpop.f32.mrf.mxu0
      %v6200 = vpop.f32.mrf.mxu0
      %v6201 = vadd.f32 0.0, %v6200
      %v6202 = vpop.f32.mrf.mxu0
      %6203 = vmatprep.mubr.bf16.mxu0 %v5976
      %6204 = vmatmul.mubr.bf16.gmra.mxu0 %v5975
      %v6205 = vpop.f32.mrf.mxu0
      %v6206 = vadd.f32 0.0, %v6205
      %v6207 = vpop.f32.mrf.mxu0
      %v6208 = vpop.f32.mrf.mxu0
      %v6209 = vadd.f32 0.0, %v6208
      %v6210 = vpop.f32.mrf.mxu0
      %6211 = vmatprep.mubr.bf16.mxu0 %v5978
      %6212 = vmatmul.mubr.bf16.gmra.mxu0 %v5977
      %v6213 = vpop.f32.mrf.mxu0
      %v6214 = vadd.f32 0.0, %v6213
      %v6215 = vpop.f32.mrf.mxu0
      %v6216 = vpop.f32.mrf.mxu0
      %v6217 = vadd.f32 0.0, %v6216
      %v6218 = vpop.f32.mrf.mxu0
      %6219 = vmatprep.mubr.bf16.mxu0 %v5980
      %6220 = vmatmul.mubr.bf16.gmra.mxu0 %v5979
      %v6221 = vpop.f32.mrf.mxu0
      %v6222 = vadd.f32 0.0, %v6221
      %v6223 = vpop.f32.mrf.mxu0
      %v6224 = vpop.f32.mrf.mxu0
      %v6225 = vadd.f32 0.0, %v6224
      %v6226 = vpop.f32.mrf.mxu0
      %6227 = vmatprep.mubr.bf16.mxu0 %v5982
      %6228 = vmatmul.mubr.bf16.gmra.mxu0 %v5981
      %v6229 = vpop.f32.mrf.mxu0
      %v6230 = vadd.f32 0.0, %v6229
      %v6231 = vpop.f32.mrf.mxu0
      %v6232 = vpop.f32.mrf.mxu0
      %v6233 = vadd.f32 0.0, %v6232
      %v6234 = vpop.f32.mrf.mxu0
      %6235 = vmatprep.mubr.bf16.mxu0 %v5984
      %6236 = vmatmul.mubr.bf16.gmra.mxu0 %v5983
      %v6237 = vpop.f32.mrf.mxu0
      %v6238 = vadd.f32 0.0, %v6237
      %v6239 = vpop.f32.mrf.mxu0
      %v6240 = vpop.f32.mrf.mxu0
      %v6241 = vadd.f32 0.0, %v6240
      %v6242 = vpop.f32.mrf.mxu0
      %6243 = vmatprep.mubr.bf16.mxu0 %v5986
      %6244 = vmatmul.mubr.bf16.gmra.mxu0 %v5985
      %v6245 = vpop.f32.mrf.mxu0
      %v6246 = vadd.f32 0.0, %v6245
      %v6247 = vpop.f32.mrf.mxu0
      %v6248 = vpop.f32.mrf.mxu0
      %v6249 = vadd.f32 0.0, %v6248
      %v6250 = vpop.f32.mrf.mxu0
      %6251 = vmatprep.mubr.bf16.mxu0 %v5988
      %6252 = vmatmul.mubr.bf16.gmra.mxu0 %v5987
      %v6253 = vpop.f32.mrf.mxu0
      %v6254 = vadd.f32 0.0, %v6253
      %v6255 = vpop.f32.mrf.mxu0
      %v6256 = vpop.f32.mrf.mxu0
      %v6257 = vadd.f32 0.0, %v6256
      %v6258 = vpop.f32.mrf.mxu0
      %6259 = vmatprep.mubr.bf16.mxu0 %v5990
      %6260 = vmatmul.mubr.bf16.gmra.mxu0 %v5989
      %v6261 = vpop.f32.mrf.mxu0
      %v6262 = vadd.f32 0.0, %v6261
      %v6263 = vpop.f32.mrf.mxu0
      %v6264 = vpop.f32.mrf.mxu0
      %v6265 = vadd.f32 0.0, %v6264
      %v6266 = vpop.f32.mrf.mxu0
      %6267 = vmatprep.mubr.bf16.mxu0 %v5992
      %6268 = vmatmul.mubr.bf16.gmra.mxu0 %v5991
      %v6269 = vpop.f32.mrf.mxu0
      %v6270 = vadd.f32 0.0, %v6269
      %v6271 = vpop.f32.mrf.mxu0
      %v6272 = vpop.f32.mrf.mxu0
      %v6273 = vadd.f32 0.0, %v6272
      %v6274 = vpop.f32.mrf.mxu0
      %6275 = vmatprep.mubr.bf16.mxu0 %v5994
      %6276 = vmatmul.mubr.bf16.gmra.mxu0 %v5993
      %v6277 = vpop.f32.mrf.mxu0
      %v6278 = vadd.f32 0.0, %v6277
      %v6279 = vpop.f32.mrf.mxu0
      %v6280 = vpop.f32.mrf.mxu0
      %v6281 = vadd.f32 0.0, %v6280
      %v6282 = vpop.f32.mrf.mxu0
      %6283 = vdwg.mxu0
      %v6284 = vadd.f32 %v5339, %v6158
      %v6285 = vadd.f32 %v5342, %v6161
      %v6286 = vadd.f32 %v5347, %v6166
      %v6287 = vadd.f32 %v5350, %v6169
      %v6288 = vadd.f32 %v5355, %v6174
      %v6289 = vadd.f32 %v5358, %v6177
      %v6290 = vadd.f32 %v5363, %v6182
      %v6291 = vadd.f32 %v5366, %v6185
      %v6292 = vadd.f32 %v5371, %v6190
      %v6293 = vadd.f32 %v5374, %v6193
      %v6294 = vadd.f32 %v5379, %v6198
      %v6295 = vadd.f32 %v5382, %v6201
      %v6296 = vadd.f32 %v5387, %v6206
      %v6297 = vadd.f32 %v5390, %v6209
      %v6298 = vadd.f32 %v5395, %v6214
      %v6299 = vadd.f32 %v5398, %v6217
      %v6300 = vadd.f32 %v5403, %v6222
      %v6301 = vadd.f32 %v5406, %v6225
      %v6302 = vadd.f32 %v5411, %v6230
      %v6303 = vadd.f32 %v5414, %v6233
      %v6304 = vadd.f32 %v5419, %v6238
      %v6305 = vadd.f32 %v5422, %v6241
      %v6306 = vadd.f32 %v5427, %v6246
      %v6307 = vadd.f32 %v5430, %v6249
      %v6308 = vadd.f32 %v5435, %v6254
      %v6309 = vadd.f32 %v5438, %v6257
      %v6310 = vadd.f32 %v5443, %v6262
      %v6311 = vadd.f32 %v5446, %v6265
      %v6312 = vadd.f32 %v5451, %v6270
      %v6313 = vadd.f32 %v5454, %v6273
      %v6314 = vadd.f32 %v5459, %v6278
      %v6315 = vadd.f32 %v5462, %v6281
      %v6316 = vld [vmem:[#allocation2 + $0x14] sm:$0xf]
      %v6317 = vld [vmem:[#allocation2 + $0x1c] sm:$0xf]
      %v6318 = vld [vmem:[#allocation2 + $0x34] sm:$0xf]
      %v6319 = vld [vmem:[#allocation2 + $0x3c] sm:$0xf]
      %v6320 = vld [vmem:[#allocation2 + $0x54] sm:$0xf]
      %v6321 = vld [vmem:[#allocation2 + $0x5c] sm:$0xf]
      %v6322 = vld [vmem:[#allocation2 + $0x74] sm:$0xf]
      %v6323 = vld [vmem:[#allocation2 + $0x7c] sm:$0xf]
      %v6324 = vld [vmem:[#allocation2 + $0x94] sm:$0xf]
      %v6325 = vld [vmem:[#allocation2 + $0x9c] sm:$0xf]
      %v6326 = vld [vmem:[#allocation2 + $0xb4] sm:$0xf]
      %v6327 = vld [vmem:[#allocation2 + $0xbc] sm:$0xf]
      %v6328 = vld [vmem:[#allocation2 + $0xd4] sm:$0xf]
      %v6329 = vld [vmem:[#allocation2 + $0xdc] sm:$0xf]
      %v6330 = vld [vmem:[#allocation2 + $0xf4] sm:$0xf]
      %v6331 = vld [vmem:[#allocation2 + $0xfc] sm:$0xf]
      %v6332 = vld [vmem:[#allocation2 + $0x114] sm:$0xf]
      %v6333 = vld [vmem:[#allocation2 + $0x11c] sm:$0xf]
      %v6334 = vld [vmem:[#allocation2 + $0x134] sm:$0xf]
      %v6335 = vld [vmem:[#allocation2 + $0x13c] sm:$0xf]
      %v6336 = vld [vmem:[#allocation2 + $0x154] sm:$0xf]
      %v6337 = vld [vmem:[#allocation2 + $0x15c] sm:$0xf]
      %v6338 = vld [vmem:[#allocation2 + $0x174] sm:$0xf]
      %v6339 = vld [vmem:[#allocation2 + $0x17c] sm:$0xf]
      %v6340 = vld [vmem:[#allocation2 + $0x194] sm:$0xf]
      %v6341 = vld [vmem:[#allocation2 + $0x19c] sm:$0xf]
      %v6342 = vld [vmem:[#allocation2 + $0x1b4] sm:$0xf]
      %v6343 = vld [vmem:[#allocation2 + $0x1bc] sm:$0xf]
      %v6344 = vld [vmem:[#allocation2 + $0x1d4] sm:$0xf]
      %v6345 = vld [vmem:[#allocation2 + $0x1dc] sm:$0xf]
      %v6346 = vld [vmem:[#allocation2 + $0x1f4] sm:$0xf]
      %v6347 = vld [vmem:[#allocation2 + $0x1fc] sm:$0xf]
      %v6348 = vld [vmem:[%s7] sm:$0xf]
      %v6349 = vld [vmem:[%s7 + $0x4] sm:$0xf]
      %v6350 = vld [vmem:[%s7 + $0x8] sm:$0xf]
      %v6351 = vld [vmem:[%s7 + $0xc] sm:$0xf]
      %v6352 = vld [vmem:[%s7 + $0x10] sm:$0xf]
      %v6353 = vld [vmem:[%s7 + $0x14] sm:$0xf]
      %v6354 = vld [vmem:[%s7 + $0x18] sm:$0xf]
      %v6355 = vld [vmem:[%s7 + $0x1c] sm:$0xf]
      %v6356 = vld [vmem:[%s7 + $0x20] sm:$0xf]
      %v6357 = vld [vmem:[%s7 + $0x24] sm:$0xf]
      %v6358 = vld [vmem:[%s7 + $0x28] sm:$0xf]
      %v6359 = vld [vmem:[%s7 + $0x2c] sm:$0xf]
      %v6360 = vld [vmem:[%s7 + $0x30] sm:$0xf]
      %v6361 = vld [vmem:[%s7 + $0x34] sm:$0xf]
      %v6362 = vld [vmem:[%s7 + $0x38] sm:$0xf]
      %v6363 = vld [vmem:[%s7 + $0x3c] sm:$0xf]
      %v6396 = vunpack.c.l.b16 %v6316
      %v6397 = vunpack.c.l.b16 %v6317
      %v6398 = vunpack.c.l.b16 %v6318
      %v6399 = vunpack.c.l.b16 %v6319
      %v6400 = vunpack.c.l.b16 %v6320
      %v6401 = vunpack.c.l.b16 %v6321
      %v6402 = vunpack.c.l.b16 %v6322
      %v6403 = vunpack.c.l.b16 %v6323
      %v6404 = vunpack.c.l.b16 %v6324
      %v6405 = vunpack.c.l.b16 %v6325
      %v6406 = vunpack.c.l.b16 %v6326
      %v6407 = vunpack.c.l.b16 %v6327
      %v6408 = vunpack.c.l.b16 %v6328
      %v6409 = vunpack.c.l.b16 %v6329
      %v6410 = vunpack.c.l.b16 %v6330
      %v6411 = vunpack.c.l.b16 %v6331
      %v6412 = vunpack.c.l.b16 %v6332
      %v6413 = vunpack.c.l.b16 %v6333
      %v6414 = vunpack.c.l.b16 %v6334
      %v6415 = vunpack.c.l.b16 %v6335
      %v6416 = vunpack.c.l.b16 %v6336
      %v6417 = vunpack.c.l.b16 %v6337
      %v6418 = vunpack.c.l.b16 %v6338
      %v6419 = vunpack.c.l.b16 %v6339
      %v6420 = vunpack.c.l.b16 %v6340
      %v6421 = vunpack.c.l.b16 %v6341
      %v6422 = vunpack.c.l.b16 %v6342
      %v6423 = vunpack.c.l.b16 %v6343
      %v6424 = vunpack.c.l.b16 %v6344
      %v6425 = vunpack.c.l.b16 %v6345
      %v6426 = vunpack.c.l.b16 %v6346
      %v6427 = vunpack.c.l.b16 %v6347
      %v6428 = vpack.c.b16 %v6397, %v6396
      %v6429 = vpack.c.b16 %v6399, %v6398
      %v6430 = vpack.c.b16 %v6401, %v6400
      %v6431 = vpack.c.b16 %v6403, %v6402
      %v6432 = vpack.c.b16 %v6405, %v6404
      %v6433 = vpack.c.b16 %v6407, %v6406
      %v6434 = vpack.c.b16 %v6409, %v6408
      %v6435 = vpack.c.b16 %v6411, %v6410
      %v6436 = vpack.c.b16 %v6413, %v6412
      %v6437 = vpack.c.b16 %v6415, %v6414
      %v6438 = vpack.c.b16 %v6417, %v6416
      %v6439 = vpack.c.b16 %v6419, %v6418
      %v6440 = vpack.c.b16 %v6421, %v6420
      %v6441 = vpack.c.b16 %v6423, %v6422
      %v6442 = vpack.c.b16 %v6425, %v6424
      %v6443 = vpack.c.b16 %v6427, %v6426
      %v6476 = vunpack.c.l.b16 %v6348
      %v6477 = vunpack.c.l.b16 %v6349
      %v6478 = vunpack.c.l.b16 %v6350
      %v6479 = vunpack.c.l.b16 %v6351
      %v6480 = vunpack.c.l.b16 %v6352
      %v6481 = vunpack.c.l.b16 %v6353
      %v6482 = vunpack.c.l.b16 %v6354
      %v6483 = vunpack.c.l.b16 %v6355
      %v6484 = vunpack.c.l.b16 %v6356
      %v6485 = vunpack.c.l.b16 %v6357
      %v6486 = vunpack.c.l.b16 %v6358
      %v6487 = vunpack.c.l.b16 %v6359
      %v6488 = vunpack.c.l.b16 %v6360
      %v6489 = vunpack.c.l.b16 %v6361
      %v6490 = vunpack.c.l.b16 %v6362
      %v6491 = vunpack.c.l.b16 %v6363
      %v6492 = vpack.c.b16 %v6477, %v6476
      %v6493 = vpack.c.b16 %v6479, %v6478
      %v6494 = vpack.c.b16 %v6481, %v6480
      %v6495 = vpack.c.b16 %v6483, %v6482
      %v6496 = vpack.c.b16 %v6485, %v6484
      %v6497 = vpack.c.b16 %v6487, %v6486
      %v6498 = vpack.c.b16 %v6489, %v6488
      %v6499 = vpack.c.b16 %v6491, %v6490
      %6508 = vmatprep.subr.bf16.mxu0 0
      %6509 = vmatpush1.bf16.msra.mxu0 %v6499
      %6510 = vmatprep.subr.bf16.mxu0 0
      %6511 = vmatpush1.bf16.msra.mxu0 %v6498
      %6512 = vmatprep.subr.bf16.mxu0 0
      %6513 = vmatpush1.bf16.msra.mxu0 %v6497
      %6514 = vmatprep.subr.bf16.mxu0 0
      %6515 = vmatpush1.bf16.msra.mxu0 %v6496
      %6516 = vmatprep.subr.bf16.mxu0 0
      %6517 = vmatpush1.bf16.msra.mxu0 %v6495
      %6518 = vmatprep.subr.bf16.mxu0 0
      %6519 = vmatpush1.bf16.msra.mxu0 %v6494
      %6520 = vmatprep.subr.bf16.mxu0 0
      %6521 = vmatpush1.bf16.msra.mxu0 %v6493
      %6522 = vmatprep.subr.bf16.mxu0 0
      %6523 = vmatpush1.bf16.msra.mxu0 %v6492
      %6524 = vmatprep.subr.bf16.mxu0 0
      %6525 = vmatpush2.bf16.msra.mxu0 0
      %6526 = vmatprep.subr.bf16.mxu0 0
      %6527 = vmatpush2.bf16.msra.mxu0 0
      %6528 = vmatprep.subr.bf16.mxu0 0
      %6529 = vmatpush2.bf16.msra.mxu0 0
      %6530 = vmatprep.subr.bf16.mxu0 0
      %6531 = vmatpush2.bf16.msra.mxu0 0
      %6532 = vmatprep.subr.bf16.mxu0 0
      %6533 = vmatpush2.bf16.msra.mxu0 0
      %6534 = vmatprep.subr.bf16.mxu0 0
      %6535 = vmatpush2.bf16.msra.mxu0 0
      %6536 = vmatprep.subr.bf16.mxu0 0
      %6537 = vmatpush2.bf16.msra.mxu0 0
      %6538 = vmatprep.subr.bf16.mxu0 0
      %6539 = vmatpush2.bf16.msra.mxu0 0
      %6540 = vmatprep.mubr.bf16.mxu0 0
      %6541 = vmatmul.mubr.bf16.gmra.mxu0 %v6428
      %v6542 = vpop.f32.mrf.mxu0
      %v6543 = vadd.f32 0.0, %v6542
      %v6544 = vpop.f32.mrf.mxu0
      %v6545 = vpop.f32.mrf.mxu0
      %v6546 = vadd.f32 0.0, %v6545
      %v6547 = vpop.f32.mrf.mxu0
      %6548 = vmatprep.mubr.bf16.mxu0 0
      %6549 = vmatmul.mubr.bf16.gmra.mxu0 %v6429
      %v6550 = vpop.f32.mrf.mxu0
      %v6551 = vadd.f32 0.0, %v6550
      %v6552 = vpop.f32.mrf.mxu0
      %v6553 = vpop.f32.mrf.mxu0
      %v6554 = vadd.f32 0.0, %v6553
      %v6555 = vpop.f32.mrf.mxu0
      %6556 = vmatprep.mubr.bf16.mxu0 0
      %6557 = vmatmul.mubr.bf16.gmra.mxu0 %v6430
      %v6558 = vpop.f32.mrf.mxu0
      %v6559 = vadd.f32 0.0, %v6558
      %v6560 = vpop.f32.mrf.mxu0
      %v6561 = vpop.f32.mrf.mxu0
      %v6562 = vadd.f32 0.0, %v6561
      %v6563 = vpop.f32.mrf.mxu0
      %6564 = vmatprep.mubr.bf16.mxu0 0
      %6565 = vmatmul.mubr.bf16.gmra.mxu0 %v6431
      %v6566 = vpop.f32.mrf.mxu0
      %v6567 = vadd.f32 0.0, %v6566
      %v6568 = vpop.f32.mrf.mxu0
      %v6569 = vpop.f32.mrf.mxu0
      %v6570 = vadd.f32 0.0, %v6569
      %v6571 = vpop.f32.mrf.mxu0
      %6572 = vmatprep.mubr.bf16.mxu0 0
      %6573 = vmatmul.mubr.bf16.gmra.mxu0 %v6432
      %v6574 = vpop.f32.mrf.mxu0
      %v6575 = vadd.f32 0.0, %v6574
      %v6576 = vpop.f32.mrf.mxu0
      %v6577 = vpop.f32.mrf.mxu0
      %v6578 = vadd.f32 0.0, %v6577
      %v6579 = vpop.f32.mrf.mxu0
      %6580 = vmatprep.mubr.bf16.mxu0 0
      %6581 = vmatmul.mubr.bf16.gmra.mxu0 %v6433
      %v6582 = vpop.f32.mrf.mxu0
      %v6583 = vadd.f32 0.0, %v6582
      %v6584 = vpop.f32.mrf.mxu0
      %v6585 = vpop.f32.mrf.mxu0
      %v6586 = vadd.f32 0.0, %v6585
      %v6587 = vpop.f32.mrf.mxu0
      %6588 = vmatprep.mubr.bf16.mxu0 0
      %6589 = vmatmul.mubr.bf16.gmra.mxu0 %v6434
      %v6590 = vpop.f32.mrf.mxu0
      %v6591 = vadd.f32 0.0, %v6590
      %v6592 = vpop.f32.mrf.mxu0
      %v6593 = vpop.f32.mrf.mxu0
      %v6594 = vadd.f32 0.0, %v6593
      %v6595 = vpop.f32.mrf.mxu0
      %6596 = vmatprep.mubr.bf16.mxu0 0
      %6597 = vmatmul.mubr.bf16.gmra.mxu0 %v6435
      %v6598 = vpop.f32.mrf.mxu0
      %v6599 = vadd.f32 0.0, %v6598
      %v6600 = vpop.f32.mrf.mxu0
      %v6601 = vpop.f32.mrf.mxu0
      %v6602 = vadd.f32 0.0, %v6601
      %v6603 = vpop.f32.mrf.mxu0
      %6604 = vmatprep.mubr.bf16.mxu0 0
      %6605 = vmatmul.mubr.bf16.gmra.mxu0 %v6436
      %v6606 = vpop.f32.mrf.mxu0
      %v6607 = vadd.f32 0.0, %v6606
      %v6608 = vpop.f32.mrf.mxu0
      %v6609 = vpop.f32.mrf.mxu0
      %v6610 = vadd.f32 0.0, %v6609
      %v6611 = vpop.f32.mrf.mxu0
      %6612 = vmatprep.mubr.bf16.mxu0 0
      %6613 = vmatmul.mubr.bf16.gmra.mxu0 %v6437
      %v6614 = vpop.f32.mrf.mxu0
      %v6615 = vadd.f32 0.0, %v6614
      %v6616 = vpop.f32.mrf.mxu0
      %v6617 = vpop.f32.mrf.mxu0
      %v6618 = vadd.f32 0.0, %v6617
      %v6619 = vpop.f32.mrf.mxu0
      %6620 = vmatprep.mubr.bf16.mxu0 0
      %6621 = vmatmul.mubr.bf16.gmra.mxu0 %v6438
      %v6622 = vpop.f32.mrf.mxu0
      %v6623 = vadd.f32 0.0, %v6622
      %v6624 = vpop.f32.mrf.mxu0
      %v6625 = vpop.f32.mrf.mxu0
      %v6626 = vadd.f32 0.0, %v6625
      %v6627 = vpop.f32.mrf.mxu0
      %6628 = vmatprep.mubr.bf16.mxu0 0
      %6629 = vmatmul.mubr.bf16.gmra.mxu0 %v6439
      %v6630 = vpop.f32.mrf.mxu0
      %v6631 = vadd.f32 0.0, %v6630
      %v6632 = vpop.f32.mrf.mxu0
      %v6633 = vpop.f32.mrf.mxu0
      %v6634 = vadd.f32 0.0, %v6633
      %v6635 = vpop.f32.mrf.mxu0
      %6636 = vmatprep.mubr.bf16.mxu0 0
      %6637 = vmatmul.mubr.bf16.gmra.mxu0 %v6440
      %v6638 = vpop.f32.mrf.mxu0
      %v6639 = vadd.f32 0.0, %v6638
      %v6640 = vpop.f32.mrf.mxu0
      %v6641 = vpop.f32.mrf.mxu0
      %v6642 = vadd.f32 0.0, %v6641
      %v6643 = vpop.f32.mrf.mxu0
      %6644 = vmatprep.mubr.bf16.mxu0 0
      %6645 = vmatmul.mubr.bf16.gmra.mxu0 %v6441
      %v6646 = vpop.f32.mrf.mxu0
      %v6647 = vadd.f32 0.0, %v6646
      %v6648 = vpop.f32.mrf.mxu0
      %v6649 = vpop.f32.mrf.mxu0
      %v6650 = vadd.f32 0.0, %v6649
      %v6651 = vpop.f32.mrf.mxu0
      %6652 = vmatprep.mubr.bf16.mxu0 0
      %6653 = vmatmul.mubr.bf16.gmra.mxu0 %v6442
      %v6654 = vpop.f32.mrf.mxu0
      %v6655 = vadd.f32 0.0, %v6654
      %v6656 = vpop.f32.mrf.mxu0
      %v6657 = vpop.f32.mrf.mxu0
      %v6658 = vadd.f32 0.0, %v6657
      %v6659 = vpop.f32.mrf.mxu0
      %6660 = vmatprep.mubr.bf16.mxu0 0
      %6661 = vmatmul.mubr.bf16.gmra.mxu0 %v6443
      %v6662 = vpop.f32.mrf.mxu0
      %v6663 = vadd.f32 0.0, %v6662
      %v6664 = vpop.f32.mrf.mxu0
      %v6665 = vpop.f32.mrf.mxu0
      %v6666 = vadd.f32 0.0, %v6665
      %v6667 = vpop.f32.mrf.mxu0
      %6668 = vdwg.mxu0
      %v6669 = vadd.f32 %v6284, %v6543
      %v6670 = vadd.f32 %v6285, %v6546
      %v6671 = vadd.f32 %v6286, %v6551
      %v6672 = vadd.f32 %v6287, %v6554
      %v6673 = vadd.f32 %v6288, %v6559
      %v6674 = vadd.f32 %v6289, %v6562
      %v6675 = vadd.f32 %v6290, %v6567
      %v6676 = vadd.f32 %v6291, %v6570
      %v6677 = vadd.f32 %v6292, %v6575
      %v6678 = vadd.f32 %v6293, %v6578
      %v6679 = vadd.f32 %v6294, %v6583
      %v6680 = vadd.f32 %v6295, %v6586
      %v6681 = vadd.f32 %v6296, %v6591
      %v6682 = vadd.f32 %v6297, %v6594
      %v6683 = vadd.f32 %v6298, %v6599
      %v6684 = vadd.f32 %v6299, %v6602
      %v6685 = vadd.f32 %v6300, %v6607
      %v6686 = vadd.f32 %v6301, %v6610
      %v6687 = vadd.f32 %v6302, %v6615
      %v6688 = vadd.f32 %v6303, %v6618
      %v6689 = vadd.f32 %v6304, %v6623
      %v6690 = vadd.f32 %v6305, %v6626
      %v6691 = vadd.f32 %v6306, %v6631
      %v6692 = vadd.f32 %v6307, %v6634
      %v6693 = vadd.f32 %v6308, %v6639
      %v6694 = vadd.f32 %v6309, %v6642
      %v6695 = vadd.f32 %v6310, %v6647
      %v6696 = vadd.f32 %v6311, %v6650
      %v6697 = vadd.f32 %v6312, %v6655
      %v6698 = vadd.f32 %v6313, %v6658
      %v6699 = vadd.f32 %v6314, %v6663
      %v6700 = vadd.f32 %v6315, %v6666
      %v6701 = vld [vmem:[%s3104 + $0x14] sm:$0xf]
      %v6702 = vld [vmem:[%s3104 + $0x1c] sm:$0xf]
      %v6703 = vld [vmem:[%s3104 + $0x34] sm:$0xf]
      %v6704 = vld [vmem:[%s3104 + $0x3c] sm:$0xf]
      %v6705 = vld [vmem:[%s3104 + $0x54] sm:$0xf]
      %v6706 = vld [vmem:[%s3104 + $0x5c] sm:$0xf]
      %v6707 = vld [vmem:[%s3104 + $0x74] sm:$0xf]
      %v6708 = vld [vmem:[%s3104 + $0x7c] sm:$0xf]
      %v6709 = vld [vmem:[%s3104 + $0x94] sm:$0xf]
      %v6710 = vld [vmem:[%s3104 + $0x9c] sm:$0xf]
      %v6711 = vld [vmem:[%s3104 + $0xb4] sm:$0xf]
      %v6712 = vld [vmem:[%s3104 + $0xbc] sm:$0xf]
      %v6713 = vld [vmem:[%s3104 + $0xd4] sm:$0xf]
      %v6714 = vld [vmem:[%s3104 + $0xdc] sm:$0xf]
      %v6715 = vld [vmem:[%s3104 + $0xf4] sm:$0xf]
      %v6716 = vld [vmem:[%s3104 + $0xfc] sm:$0xf]
      %v6717 = vld [vmem:[%s3104 + $0x114] sm:$0xf]
      %v6718 = vld [vmem:[%s3104 + $0x11c] sm:$0xf]
      %v6719 = vld [vmem:[%s3104 + $0x134] sm:$0xf]
      %v6720 = vld [vmem:[%s3104 + $0x13c] sm:$0xf]
      %v6721 = vld [vmem:[%s3104 + $0x154] sm:$0xf]
      %v6722 = vld [vmem:[%s3104 + $0x15c] sm:$0xf]
      %v6723 = vld [vmem:[%s3104 + $0x174] sm:$0xf]
      %v6724 = vld [vmem:[%s3104 + $0x17c] sm:$0xf]
      %v6725 = vld [vmem:[%s3104 + $0x194] sm:$0xf]
      %v6726 = vld [vmem:[%s3104 + $0x19c] sm:$0xf]
      %v6727 = vld [vmem:[%s3104 + $0x1b4] sm:$0xf]
      %v6728 = vld [vmem:[%s3104 + $0x1bc] sm:$0xf]
      %v6729 = vld [vmem:[%s3104 + $0x1d4] sm:$0xf]
      %v6730 = vld [vmem:[%s3104 + $0x1dc] sm:$0xf]
      %v6731 = vld [vmem:[%s3104 + $0x1f4] sm:$0xf]
      %v6732 = vld [vmem:[%s3104 + $0x1fc] sm:$0xf]
      %s6733 = scalar_lea.vmem %s7, 64
      %v6734 = vld [vmem:[%s6733] sm:$0xf]
      %v6735 = vld [vmem:[%s6733 + $0x4] sm:$0xf]
      %v6736 = vld [vmem:[%s6733 + $0x8] sm:$0xf]
      %v6737 = vld [vmem:[%s6733 + $0xc] sm:$0xf]
      %v6738 = vld [vmem:[%s6733 + $0x10] sm:$0xf]
      %v6739 = vld [vmem:[%s6733 + $0x14] sm:$0xf]
      %v6740 = vld [vmem:[%s6733 + $0x18] sm:$0xf]
      %v6741 = vld [vmem:[%s6733 + $0x1c] sm:$0xf]
      %v6742 = vld [vmem:[%s6733 + $0x20] sm:$0xf]
      %v6743 = vld [vmem:[%s6733 + $0x24] sm:$0xf]
      %v6744 = vld [vmem:[%s6733 + $0x28] sm:$0xf]
      %v6745 = vld [vmem:[%s6733 + $0x2c] sm:$0xf]
      %v6746 = vld [vmem:[%s6733 + $0x30] sm:$0xf]
      %v6747 = vld [vmem:[%s6733 + $0x34] sm:$0xf]
      %v6748 = vld [vmem:[%s6733 + $0x38] sm:$0xf]
      %v6749 = vld [vmem:[%s6733 + $0x3c] sm:$0xf]
      %v6782 = vunpack.c.l.b16 %v6701
      %v6783 = vunpack.c.l.b16 %v6702
      %v6784 = vunpack.c.l.b16 %v6703
      %v6785 = vunpack.c.l.b16 %v6704
      %v6786 = vunpack.c.l.b16 %v6705
      %v6787 = vunpack.c.l.b16 %v6706
      %v6788 = vunpack.c.l.b16 %v6707
      %v6789 = vunpack.c.l.b16 %v6708
      %v6790 = vunpack.c.l.b16 %v6709
      %v6791 = vunpack.c.l.b16 %v6710
      %v6792 = vunpack.c.l.b16 %v6711
      %v6793 = vunpack.c.l.b16 %v6712
      %v6794 = vunpack.c.l.b16 %v6713
      %v6795 = vunpack.c.l.b16 %v6714
      %v6796 = vunpack.c.l.b16 %v6715
      %v6797 = vunpack.c.l.b16 %v6716
      %v6798 = vunpack.c.l.b16 %v6717
      %v6799 = vunpack.c.l.b16 %v6718
      %v6800 = vunpack.c.l.b16 %v6719
      %v6801 = vunpack.c.l.b16 %v6720
      %v6802 = vunpack.c.l.b16 %v6721
      %v6803 = vunpack.c.l.b16 %v6722
      %v6804 = vunpack.c.l.b16 %v6723
      %v6805 = vunpack.c.l.b16 %v6724
      %v6806 = vunpack.c.l.b16 %v6725
      %v6807 = vunpack.c.l.b16 %v6726
      %v6808 = vunpack.c.l.b16 %v6727
      %v6809 = vunpack.c.l.b16 %v6728
      %v6810 = vunpack.c.l.b16 %v6729
      %v6811 = vunpack.c.l.b16 %v6730
      %v6812 = vunpack.c.l.b16 %v6731
      %v6813 = vunpack.c.l.b16 %v6732
      %v6814 = vpack.c.b16 %v6783, %v6782
      %v6815 = vpack.c.b16 %v6785, %v6784
      %v6816 = vpack.c.b16 %v6787, %v6786
      %v6817 = vpack.c.b16 %v6789, %v6788
      %v6818 = vpack.c.b16 %v6791, %v6790
      %v6819 = vpack.c.b16 %v6793, %v6792
      %v6820 = vpack.c.b16 %v6795, %v6794
      %v6821 = vpack.c.b16 %v6797, %v6796
      %v6822 = vpack.c.b16 %v6799, %v6798
      %v6823 = vpack.c.b16 %v6801, %v6800
      %v6824 = vpack.c.b16 %v6803, %v6802
      %v6825 = vpack.c.b16 %v6805, %v6804
      %v6826 = vpack.c.b16 %v6807, %v6806
      %v6827 = vpack.c.b16 %v6809, %v6808
      %v6828 = vpack.c.b16 %v6811, %v6810
      %v6829 = vpack.c.b16 %v6813, %v6812
      %v6862 = vunpack.c.l.b16 %v6734
      %v6863 = vunpack.c.l.b16 %v6735
      %v6864 = vunpack.c.l.b16 %v6736
      %v6865 = vunpack.c.l.b16 %v6737
      %v6866 = vunpack.c.l.b16 %v6738
      %v6867 = vunpack.c.l.b16 %v6739
      %v6868 = vunpack.c.l.b16 %v6740
      %v6869 = vunpack.c.l.b16 %v6741
      %v6870 = vunpack.c.l.b16 %v6742
      %v6871 = vunpack.c.l.b16 %v6743
      %v6872 = vunpack.c.l.b16 %v6744
      %v6873 = vunpack.c.l.b16 %v6745
      %v6874 = vunpack.c.l.b16 %v6746
      %v6875 = vunpack.c.l.b16 %v6747
      %v6876 = vunpack.c.l.b16 %v6748
      %v6877 = vunpack.c.l.b16 %v6749
      %v6878 = vpack.c.b16 %v6863, %v6862
      %v6879 = vpack.c.b16 %v6865, %v6864
      %v6880 = vpack.c.b16 %v6867, %v6866
      %v6881 = vpack.c.b16 %v6869, %v6868
      %v6882 = vpack.c.b16 %v6871, %v6870
      %v6883 = vpack.c.b16 %v6873, %v6872
      %v6884 = vpack.c.b16 %v6875, %v6874
      %v6885 = vpack.c.b16 %v6877, %v6876
      %6894 = vmatprep.subr.bf16.mxu0 0
      %6895 = vmatpush1.bf16.msra.mxu0 %v6885
      %6896 = vmatprep.subr.bf16.mxu0 0
      %6897 = vmatpush1.bf16.msra.mxu0 %v6884
      %6898 = vmatprep.subr.bf16.mxu0 0
      %6899 = vmatpush1.bf16.msra.mxu0 %v6883
      %6900 = vmatprep.subr.bf16.mxu0 0
      %6901 = vmatpush1.bf16.msra.mxu0 %v6882
      %6902 = vmatprep.subr.bf16.mxu0 0
      %6903 = vmatpush1.bf16.msra.mxu0 %v6881
      %6904 = vmatprep.subr.bf16.mxu0 0
      %6905 = vmatpush1.bf16.msra.mxu0 %v6880
      %6906 = vmatprep.subr.bf16.mxu0 0
      %6907 = vmatpush1.bf16.msra.mxu0 %v6879
      %6908 = vmatprep.subr.bf16.mxu0 0
      %6909 = vmatpush1.bf16.msra.mxu0 %v6878
      %6910 = vmatprep.subr.bf16.mxu0 0
      %6911 = vmatpush2.bf16.msra.mxu0 0
      %6912 = vmatprep.subr.bf16.mxu0 0
      %6913 = vmatpush2.bf16.msra.mxu0 0
      %6914 = vmatprep.subr.bf16.mxu0 0
      %6915 = vmatpush2.bf16.msra.mxu0 0
      %6916 = vmatprep.subr.bf16.mxu0 0
      %6917 = vmatpush2.bf16.msra.mxu0 0
      %6918 = vmatprep.subr.bf16.mxu0 0
      %6919 = vmatpush2.bf16.msra.mxu0 0
      %6920 = vmatprep.subr.bf16.mxu0 0
      %6921 = vmatpush2.bf16.msra.mxu0 0
      %6922 = vmatprep.subr.bf16.mxu0 0
      %6923 = vmatpush2.bf16.msra.mxu0 0
      %6924 = vmatprep.subr.bf16.mxu0 0
      %6925 = vmatpush2.bf16.msra.mxu0 0
      %6926 = vmatprep.mubr.bf16.mxu0 0
      %6927 = vmatmul.mubr.bf16.gmra.mxu0 %v6814
      %v6928 = vpop.f32.mrf.mxu0
      %v6929 = vadd.f32 0.0, %v6928
      %v6930 = vpop.f32.mrf.mxu0
      %v6931 = vpop.f32.mrf.mxu0
      %v6932 = vadd.f32 0.0, %v6931
      %v6933 = vpop.f32.mrf.mxu0
      %6934 = vmatprep.mubr.bf16.mxu0 0
      %6935 = vmatmul.mubr.bf16.gmra.mxu0 %v6815
      %v6936 = vpop.f32.mrf.mxu0
      %v6937 = vadd.f32 0.0, %v6936
      %v6938 = vpop.f32.mrf.mxu0
      %v6939 = vpop.f32.mrf.mxu0
      %v6940 = vadd.f32 0.0, %v6939
      %v6941 = vpop.f32.mrf.mxu0
      %6942 = vmatprep.mubr.bf16.mxu0 0
      %6943 = vmatmul.mubr.bf16.gmra.mxu0 %v6816
      %v6944 = vpop.f32.mrf.mxu0
      %v6945 = vadd.f32 0.0, %v6944
      %v6946 = vpop.f32.mrf.mxu0
      %v6947 = vpop.f32.mrf.mxu0
      %v6948 = vadd.f32 0.0, %v6947
      %v6949 = vpop.f32.mrf.mxu0
      %6950 = vmatprep.mubr.bf16.mxu0 0
      %6951 = vmatmul.mubr.bf16.gmra.mxu0 %v6817
      %v6952 = vpop.f32.mrf.mxu0
      %v6953 = vadd.f32 0.0, %v6952
      %v6954 = vpop.f32.mrf.mxu0
      %v6955 = vpop.f32.mrf.mxu0
      %v6956 = vadd.f32 0.0, %v6955
      %v6957 = vpop.f32.mrf.mxu0
      %6958 = vmatprep.mubr.bf16.mxu0 0
      %6959 = vmatmul.mubr.bf16.gmra.mxu0 %v6818
      %v6960 = vpop.f32.mrf.mxu0
      %v6961 = vadd.f32 0.0, %v6960
      %v6962 = vpop.f32.mrf.mxu0
      %v6963 = vpop.f32.mrf.mxu0
      %v6964 = vadd.f32 0.0, %v6963
      %v6965 = vpop.f32.mrf.mxu0
      %6966 = vmatprep.mubr.bf16.mxu0 0
      %6967 = vmatmul.mubr.bf16.gmra.mxu0 %v6819
      %v6968 = vpop.f32.mrf.mxu0
      %v6969 = vadd.f32 0.0, %v6968
      %v6970 = vpop.f32.mrf.mxu0
      %v6971 = vpop.f32.mrf.mxu0
      %v6972 = vadd.f32 0.0, %v6971
      %v6973 = vpop.f32.mrf.mxu0
      %6974 = vmatprep.mubr.bf16.mxu0 0
      %6975 = vmatmul.mubr.bf16.gmra.mxu0 %v6820
      %v6976 = vpop.f32.mrf.mxu0
      %v6977 = vadd.f32 0.0, %v6976
      %v6978 = vpop.f32.mrf.mxu0
      %v6979 = vpop.f32.mrf.mxu0
      %v6980 = vadd.f32 0.0, %v6979
      %v6981 = vpop.f32.mrf.mxu0
      %6982 = vmatprep.mubr.bf16.mxu0 0
      %6983 = vmatmul.mubr.bf16.gmra.mxu0 %v6821
      %v6984 = vpop.f32.mrf.mxu0
      %v6985 = vadd.f32 0.0, %v6984
      %v6986 = vpop.f32.mrf.mxu0
      %v6987 = vpop.f32.mrf.mxu0
      %v6988 = vadd.f32 0.0, %v6987
      %v6989 = vpop.f32.mrf.mxu0
      %6990 = vmatprep.mubr.bf16.mxu0 0
      %6991 = vmatmul.mubr.bf16.gmra.mxu0 %v6822
      %v6992 = vpop.f32.mrf.mxu0
      %v6993 = vadd.f32 0.0, %v6992
      %v6994 = vpop.f32.mrf.mxu0
      %v6995 = vpop.f32.mrf.mxu0
      %v6996 = vadd.f32 0.0, %v6995
      %v6997 = vpop.f32.mrf.mxu0
      %6998 = vmatprep.mubr.bf16.mxu0 0
      %6999 = vmatmul.mubr.bf16.gmra.mxu0 %v6823
      %v7000 = vpop.f32.mrf.mxu0
      %v7001 = vadd.f32 0.0, %v7000
      %v7002 = vpop.f32.mrf.mxu0
      %v7003 = vpop.f32.mrf.mxu0
      %v7004 = vadd.f32 0.0, %v7003
      %v7005 = vpop.f32.mrf.mxu0
      %7006 = vmatprep.mubr.bf16.mxu0 0
      %7007 = vmatmul.mubr.bf16.gmra.mxu0 %v6824
      %v7008 = vpop.f32.mrf.mxu0
      %v7009 = vadd.f32 0.0, %v7008
      %v7010 = vpop.f32.mrf.mxu0
      %v7011 = vpop.f32.mrf.mxu0
      %v7012 = vadd.f32 0.0, %v7011
      %v7013 = vpop.f32.mrf.mxu0
      %7014 = vmatprep.mubr.bf16.mxu0 0
      %7015 = vmatmul.mubr.bf16.gmra.mxu0 %v6825
      %v7016 = vpop.f32.mrf.mxu0
      %v7017 = vadd.f32 0.0, %v7016
      %v7018 = vpop.f32.mrf.mxu0
      %v7019 = vpop.f32.mrf.mxu0
      %v7020 = vadd.f32 0.0, %v7019
      %v7021 = vpop.f32.mrf.mxu0
      %7022 = vmatprep.mubr.bf16.mxu0 0
      %7023 = vmatmul.mubr.bf16.gmra.mxu0 %v6826
      %v7024 = vpop.f32.mrf.mxu0
      %v7025 = vadd.f32 0.0, %v7024
      %v7026 = vpop.f32.mrf.mxu0
      %v7027 = vpop.f32.mrf.mxu0
      %v7028 = vadd.f32 0.0, %v7027
      %v7029 = vpop.f32.mrf.mxu0
      %7030 = vmatprep.mubr.bf16.mxu0 0
      %7031 = vmatmul.mubr.bf16.gmra.mxu0 %v6827
      %v7032 = vpop.f32.mrf.mxu0
      %v7033 = vadd.f32 0.0, %v7032
      %v7034 = vpop.f32.mrf.mxu0
      %v7035 = vpop.f32.mrf.mxu0
      %v7036 = vadd.f32 0.0, %v7035
      %v7037 = vpop.f32.mrf.mxu0
      %7038 = vmatprep.mubr.bf16.mxu0 0
      %7039 = vmatmul.mubr.bf16.gmra.mxu0 %v6828
      %v7040 = vpop.f32.mrf.mxu0
      %v7041 = vadd.f32 0.0, %v7040
      %v7042 = vpop.f32.mrf.mxu0
      %v7043 = vpop.f32.mrf.mxu0
      %v7044 = vadd.f32 0.0, %v7043
      %v7045 = vpop.f32.mrf.mxu0
      %7046 = vmatprep.mubr.bf16.mxu0 0
      %7047 = vmatmul.mubr.bf16.gmra.mxu0 %v6829
      %v7048 = vpop.f32.mrf.mxu0
      %v7049 = vadd.f32 0.0, %v7048
      %v7050 = vpop.f32.mrf.mxu0
      %v7051 = vpop.f32.mrf.mxu0
      %v7052 = vadd.f32 0.0, %v7051
      %v7053 = vpop.f32.mrf.mxu0
      %7054 = vdwg.mxu0
      %v7055 = vadd.f32 %v6669, %v6929
      %v7056 = vadd.f32 %v6670, %v6932
      %v7057 = vadd.f32 %v6671, %v6937
      %v7058 = vadd.f32 %v6672, %v6940
      %v7059 = vadd.f32 %v6673, %v6945
      %v7060 = vadd.f32 %v6674, %v6948
      %v7061 = vadd.f32 %v6675, %v6953
      %v7062 = vadd.f32 %v6676, %v6956
      %v7063 = vadd.f32 %v6677, %v6961
      %v7064 = vadd.f32 %v6678, %v6964
      %v7065 = vadd.f32 %v6679, %v6969
      %v7066 = vadd.f32 %v6680, %v6972
      %v7067 = vadd.f32 %v6681, %v6977
      %v7068 = vadd.f32 %v6682, %v6980
      %v7069 = vadd.f32 %v6683, %v6985
      %v7070 = vadd.f32 %v6684, %v6988
      %v7071 = vadd.f32 %v6685, %v6993
      %v7072 = vadd.f32 %v6686, %v6996
      %v7073 = vadd.f32 %v6687, %v7001
      %v7074 = vadd.f32 %v6688, %v7004
      %v7075 = vadd.f32 %v6689, %v7009
      %v7076 = vadd.f32 %v6690, %v7012
      %v7077 = vadd.f32 %v6691, %v7017
      %v7078 = vadd.f32 %v6692, %v7020
      %v7079 = vadd.f32 %v6693, %v7025
      %v7080 = vadd.f32 %v6694, %v7028
      %v7081 = vadd.f32 %v6695, %v7033
      %v7082 = vadd.f32 %v6696, %v7036
      %v7083 = vadd.f32 %v6697, %v7041
      %v7084 = vadd.f32 %v6698, %v7044
      %v7085 = vadd.f32 %v6699, %v7049
      %v7086 = vadd.f32 %v6700, %v7052
      %v7087 = vld [vmem:[%s5465 + $0x14] sm:$0xf]
      %v7088 = vld [vmem:[%s5465 + $0x1c] sm:$0xf]
      %v7089 = vld [vmem:[%s5465 + $0x34] sm:$0xf]
      %v7090 = vld [vmem:[%s5465 + $0x3c] sm:$0xf]
      %v7091 = vld [vmem:[%s5465 + $0x54] sm:$0xf]
      %v7092 = vld [vmem:[%s5465 + $0x5c] sm:$0xf]
      %v7093 = vld [vmem:[%s5465 + $0x74] sm:$0xf]
      %v7094 = vld [vmem:[%s5465 + $0x7c] sm:$0xf]
      %v7095 = vld [vmem:[%s5465 + $0x94] sm:$0xf]
      %v7096 = vld [vmem:[%s5465 + $0x9c] sm:$0xf]
      %v7097 = vld [vmem:[%s5465 + $0xb4] sm:$0xf]
      %v7098 = vld [vmem:[%s5465 + $0xbc] sm:$0xf]
      %v7099 = vld [vmem:[%s5465 + $0xd4] sm:$0xf]
      %v7100 = vld [vmem:[%s5465 + $0xdc] sm:$0xf]
      %v7101 = vld [vmem:[%s5465 + $0xf4] sm:$0xf]
      %v7102 = vld [vmem:[%s5465 + $0xfc] sm:$0xf]
      %v7103 = vld [vmem:[%s5465 + $0x114] sm:$0xf]
      %v7104 = vld [vmem:[%s5465 + $0x11c] sm:$0xf]
      %v7105 = vld [vmem:[%s5465 + $0x134] sm:$0xf]
      %v7106 = vld [vmem:[%s5465 + $0x13c] sm:$0xf]
      %v7107 = vld [vmem:[%s5465 + $0x154] sm:$0xf]
      %v7108 = vld [vmem:[%s5465 + $0x15c] sm:$0xf]
      %v7109 = vld [vmem:[%s5465 + $0x174] sm:$0xf]
      %v7110 = vld [vmem:[%s5465 + $0x17c] sm:$0xf]
      %v7111 = vld [vmem:[%s5465 + $0x194] sm:$0xf]
      %v7112 = vld [vmem:[%s5465 + $0x19c] sm:$0xf]
      %v7113 = vld [vmem:[%s5465 + $0x1b4] sm:$0xf]
      %v7114 = vld [vmem:[%s5465 + $0x1bc] sm:$0xf]
      %v7115 = vld [vmem:[%s5465 + $0x1d4] sm:$0xf]
      %v7116 = vld [vmem:[%s5465 + $0x1dc] sm:$0xf]
      %v7117 = vld [vmem:[%s5465 + $0x1f4] sm:$0xf]
      %v7118 = vld [vmem:[%s5465 + $0x1fc] sm:$0xf]
      %s7119 = scalar_lea.vmem %s7, 128
      %v7120 = vld [vmem:[%s7119] sm:$0xf]
      %v7121 = vld [vmem:[%s7119 + $0x4] sm:$0xf]
      %v7122 = vld [vmem:[%s7119 + $0x8] sm:$0xf]
      %v7123 = vld [vmem:[%s7119 + $0xc] sm:$0xf]
      %v7124 = vld [vmem:[%s7119 + $0x10] sm:$0xf]
      %v7125 = vld [vmem:[%s7119 + $0x14] sm:$0xf]
      %v7126 = vld [vmem:[%s7119 + $0x18] sm:$0xf]
      %v7127 = vld [vmem:[%s7119 + $0x1c] sm:$0xf]
      %v7128 = vld [vmem:[%s7119 + $0x20] sm:$0xf]
      %v7129 = vld [vmem:[%s7119 + $0x24] sm:$0xf]
      %v7130 = vld [vmem:[%s7119 + $0x28] sm:$0xf]
      %v7131 = vld [vmem:[%s7119 + $0x2c] sm:$0xf]
      %v7132 = vld [vmem:[%s7119 + $0x30] sm:$0xf]
      %v7133 = vld [vmem:[%s7119 + $0x34] sm:$0xf]
      %v7134 = vld [vmem:[%s7119 + $0x38] sm:$0xf]
      %v7135 = vld [vmem:[%s7119 + $0x3c] sm:$0xf]
      %v7168 = vunpack.c.l.b16 %v7087
      %v7169 = vunpack.c.l.b16 %v7088
      %v7170 = vunpack.c.l.b16 %v7089
      %v7171 = vunpack.c.l.b16 %v7090
      %v7172 = vunpack.c.l.b16 %v7091
      %v7173 = vunpack.c.l.b16 %v7092
      %v7174 = vunpack.c.l.b16 %v7093
      %v7175 = vunpack.c.l.b16 %v7094
      %v7176 = vunpack.c.l.b16 %v7095
      %v7177 = vunpack.c.l.b16 %v7096
      %v7178 = vunpack.c.l.b16 %v7097
      %v7179 = vunpack.c.l.b16 %v7098
      %v7180 = vunpack.c.l.b16 %v7099
      %v7181 = vunpack.c.l.b16 %v7100
      %v7182 = vunpack.c.l.b16 %v7101
      %v7183 = vunpack.c.l.b16 %v7102
      %v7184 = vunpack.c.l.b16 %v7103
      %v7185 = vunpack.c.l.b16 %v7104
      %v7186 = vunpack.c.l.b16 %v7105
      %v7187 = vunpack.c.l.b16 %v7106
      %v7188 = vunpack.c.l.b16 %v7107
      %v7189 = vunpack.c.l.b16 %v7108
      %v7190 = vunpack.c.l.b16 %v7109
      %v7191 = vunpack.c.l.b16 %v7110
      %v7192 = vunpack.c.l.b16 %v7111
      %v7193 = vunpack.c.l.b16 %v7112
      %v7194 = vunpack.c.l.b16 %v7113
      %v7195 = vunpack.c.l.b16 %v7114
      %v7196 = vunpack.c.l.b16 %v7115
      %v7197 = vunpack.c.l.b16 %v7116
      %v7198 = vunpack.c.l.b16 %v7117
      %v7199 = vunpack.c.l.b16 %v7118
      %v7200 = vpack.c.b16 %v7169, %v7168
      %v7201 = vpack.c.b16 %v7171, %v7170
      %v7202 = vpack.c.b16 %v7173, %v7172
      %v7203 = vpack.c.b16 %v7175, %v7174
      %v7204 = vpack.c.b16 %v7177, %v7176
      %v7205 = vpack.c.b16 %v7179, %v7178
      %v7206 = vpack.c.b16 %v7181, %v7180
      %v7207 = vpack.c.b16 %v7183, %v7182
      %v7208 = vpack.c.b16 %v7185, %v7184
      %v7209 = vpack.c.b16 %v7187, %v7186
      %v7210 = vpack.c.b16 %v7189, %v7188
      %v7211 = vpack.c.b16 %v7191, %v7190
      %v7212 = vpack.c.b16 %v7193, %v7192
      %v7213 = vpack.c.b16 %v7195, %v7194
      %v7214 = vpack.c.b16 %v7197, %v7196
      %v7215 = vpack.c.b16 %v7199, %v7198
      %v7248 = vunpack.c.l.b16 %v7120
      %v7249 = vunpack.c.l.b16 %v7121
      %v7250 = vunpack.c.l.b16 %v7122
      %v7251 = vunpack.c.l.b16 %v7123
      %v7252 = vunpack.c.l.b16 %v7124
      %v7253 = vunpack.c.l.b16 %v7125
      %v7254 = vunpack.c.l.b16 %v7126
      %v7255 = vunpack.c.l.b16 %v7127
      %v7256 = vunpack.c.l.b16 %v7128
      %v7257 = vunpack.c.l.b16 %v7129
      %v7258 = vunpack.c.l.b16 %v7130
      %v7259 = vunpack.c.l.b16 %v7131
      %v7260 = vunpack.c.l.b16 %v7132
      %v7261 = vunpack.c.l.b16 %v7133
      %v7262 = vunpack.c.l.b16 %v7134
      %v7263 = vunpack.c.l.b16 %v7135
      %v7264 = vpack.c.b16 %v7249, %v7248
      %v7265 = vpack.c.b16 %v7251, %v7250
      %v7266 = vpack.c.b16 %v7253, %v7252
      %v7267 = vpack.c.b16 %v7255, %v7254
      %v7268 = vpack.c.b16 %v7257, %v7256
      %v7269 = vpack.c.b16 %v7259, %v7258
      %v7270 = vpack.c.b16 %v7261, %v7260
      %v7271 = vpack.c.b16 %v7263, %v7262
      %7280 = vmatprep.subr.bf16.mxu0 0
      %7281 = vmatpush1.bf16.msra.mxu0 %v7271
      %7282 = vmatprep.subr.bf16.mxu0 0
      %7283 = vmatpush1.bf16.msra.mxu0 %v7270
      %7284 = vmatprep.subr.bf16.mxu0 0
      %7285 = vmatpush1.bf16.msra.mxu0 %v7269
      %7286 = vmatprep.subr.bf16.mxu0 0
      %7287 = vmatpush1.bf16.msra.mxu0 %v7268
      %7288 = vmatprep.subr.bf16.mxu0 0
      %7289 = vmatpush1.bf16.msra.mxu0 %v7267
      %7290 = vmatprep.subr.bf16.mxu0 0
      %7291 = vmatpush1.bf16.msra.mxu0 %v7266
      %7292 = vmatprep.subr.bf16.mxu0 0
      %7293 = vmatpush1.bf16.msra.mxu0 %v7265
      %7294 = vmatprep.subr.bf16.mxu0 0
      %7295 = vmatpush1.bf16.msra.mxu0 %v7264
      %7296 = vmatprep.subr.bf16.mxu0 0
      %7297 = vmatpush2.bf16.msra.mxu0 0
      %7298 = vmatprep.subr.bf16.mxu0 0
      %7299 = vmatpush2.bf16.msra.mxu0 0
      %7300 = vmatprep.subr.bf16.mxu0 0
      %7301 = vmatpush2.bf16.msra.mxu0 0
      %7302 = vmatprep.subr.bf16.mxu0 0
      %7303 = vmatpush2.bf16.msra.mxu0 0
      %7304 = vmatprep.subr.bf16.mxu0 0
      %7305 = vmatpush2.bf16.msra.mxu0 0
      %7306 = vmatprep.subr.bf16.mxu0 0
      %7307 = vmatpush2.bf16.msra.mxu0 0
      %7308 = vmatprep.subr.bf16.mxu0 0
      %7309 = vmatpush2.bf16.msra.mxu0 0
      %7310 = vmatprep.subr.bf16.mxu0 0
      %7311 = vmatpush2.bf16.msra.mxu0 0
      %7312 = vmatprep.mubr.bf16.mxu0 0
      %7313 = vmatmul.mubr.bf16.gmra.mxu0 %v7200
      %v7314 = vpop.f32.mrf.mxu0
      %v7315 = vadd.f32 0.0, %v7314
      %v7316 = vpop.f32.mrf.mxu0
      %v7317 = vpop.f32.mrf.mxu0
      %v7318 = vadd.f32 0.0, %v7317
      %v7319 = vpop.f32.mrf.mxu0
      %7320 = vmatprep.mubr.bf16.mxu0 0
      %7321 = vmatmul.mubr.bf16.gmra.mxu0 %v7201
      %v7322 = vpop.f32.mrf.mxu0
      %v7323 = vadd.f32 0.0, %v7322
      %v7324 = vpop.f32.mrf.mxu0
      %v7325 = vpop.f32.mrf.mxu0
      %v7326 = vadd.f32 0.0, %v7325
      %v7327 = vpop.f32.mrf.mxu0
      %7328 = vmatprep.mubr.bf16.mxu0 0
      %7329 = vmatmul.mubr.bf16.gmra.mxu0 %v7202
      %v7330 = vpop.f32.mrf.mxu0
      %v7331 = vadd.f32 0.0, %v7330
      %v7332 = vpop.f32.mrf.mxu0
      %v7333 = vpop.f32.mrf.mxu0
      %v7334 = vadd.f32 0.0, %v7333
      %v7335 = vpop.f32.mrf.mxu0
      %7336 = vmatprep.mubr.bf16.mxu0 0
      %7337 = vmatmul.mubr.bf16.gmra.mxu0 %v7203
      %v7338 = vpop.f32.mrf.mxu0
      %v7339 = vadd.f32 0.0, %v7338
      %v7340 = vpop.f32.mrf.mxu0
      %v7341 = vpop.f32.mrf.mxu0
      %v7342 = vadd.f32 0.0, %v7341
      %v7343 = vpop.f32.mrf.mxu0
      %7344 = vmatprep.mubr.bf16.mxu0 0
      %7345 = vmatmul.mubr.bf16.gmra.mxu0 %v7204
      %v7346 = vpop.f32.mrf.mxu0
      %v7347 = vadd.f32 0.0, %v7346
      %v7348 = vpop.f32.mrf.mxu0
      %v7349 = vpop.f32.mrf.mxu0
      %v7350 = vadd.f32 0.0, %v7349
      %v7351 = vpop.f32.mrf.mxu0
      %7352 = vmatprep.mubr.bf16.mxu0 0
      %7353 = vmatmul.mubr.bf16.gmra.mxu0 %v7205
      %v7354 = vpop.f32.mrf.mxu0
      %v7355 = vadd.f32 0.0, %v7354
      %v7356 = vpop.f32.mrf.mxu0
      %v7357 = vpop.f32.mrf.mxu0
      %v7358 = vadd.f32 0.0, %v7357
      %v7359 = vpop.f32.mrf.mxu0
      %7360 = vmatprep.mubr.bf16.mxu0 0
      %7361 = vmatmul.mubr.bf16.gmra.mxu0 %v7206
      %v7362 = vpop.f32.mrf.mxu0
      %v7363 = vadd.f32 0.0, %v7362
      %v7364 = vpop.f32.mrf.mxu0
      %v7365 = vpop.f32.mrf.mxu0
      %v7366 = vadd.f32 0.0, %v7365
      %v7367 = vpop.f32.mrf.mxu0
      %7368 = vmatprep.mubr.bf16.mxu0 0
      %7369 = vmatmul.mubr.bf16.gmra.mxu0 %v7207
      %v7370 = vpop.f32.mrf.mxu0
      %v7371 = vadd.f32 0.0, %v7370
      %v7372 = vpop.f32.mrf.mxu0
      %v7373 = vpop.f32.mrf.mxu0
      %v7374 = vadd.f32 0.0, %v7373
      %v7375 = vpop.f32.mrf.mxu0
      %7376 = vmatprep.mubr.bf16.mxu0 0
      %7377 = vmatmul.mubr.bf16.gmra.mxu0 %v7208
      %v7378 = vpop.f32.mrf.mxu0
      %v7379 = vadd.f32 0.0, %v7378
      %v7380 = vpop.f32.mrf.mxu0
      %v7381 = vpop.f32.mrf.mxu0
      %v7382 = vadd.f32 0.0, %v7381
      %v7383 = vpop.f32.mrf.mxu0
      %7384 = vmatprep.mubr.bf16.mxu0 0
      %7385 = vmatmul.mubr.bf16.gmra.mxu0 %v7209
      %v7386 = vpop.f32.mrf.mxu0
      %v7387 = vadd.f32 0.0, %v7386
      %v7388 = vpop.f32.mrf.mxu0
      %v7389 = vpop.f32.mrf.mxu0
      %v7390 = vadd.f32 0.0, %v7389
      %v7391 = vpop.f32.mrf.mxu0
      %7392 = vmatprep.mubr.bf16.mxu0 0
      %7393 = vmatmul.mubr.bf16.gmra.mxu0 %v7210
      %v7394 = vpop.f32.mrf.mxu0
      %v7395 = vadd.f32 0.0, %v7394
      %v7396 = vpop.f32.mrf.mxu0
      %v7397 = vpop.f32.mrf.mxu0
      %v7398 = vadd.f32 0.0, %v7397
      %v7399 = vpop.f32.mrf.mxu0
      %7400 = vmatprep.mubr.bf16.mxu0 0
      %7401 = vmatmul.mubr.bf16.gmra.mxu0 %v7211
      %v7402 = vpop.f32.mrf.mxu0
      %v7403 = vadd.f32 0.0, %v7402
      %v7404 = vpop.f32.mrf.mxu0
      %v7405 = vpop.f32.mrf.mxu0
      %v7406 = vadd.f32 0.0, %v7405
      %v7407 = vpop.f32.mrf.mxu0
      %7408 = vmatprep.mubr.bf16.mxu0 0
      %7409 = vmatmul.mubr.bf16.gmra.mxu0 %v7212
      %v7410 = vpop.f32.mrf.mxu0
      %v7411 = vadd.f32 0.0, %v7410
      %v7412 = vpop.f32.mrf.mxu0
      %v7413 = vpop.f32.mrf.mxu0
      %v7414 = vadd.f32 0.0, %v7413
      %v7415 = vpop.f32.mrf.mxu0
      %7416 = vmatprep.mubr.bf16.mxu0 0
      %7417 = vmatmul.mubr.bf16.gmra.mxu0 %v7213
      %v7418 = vpop.f32.mrf.mxu0
      %v7419 = vadd.f32 0.0, %v7418
      %v7420 = vpop.f32.mrf.mxu0
      %v7421 = vpop.f32.mrf.mxu0
      %v7422 = vadd.f32 0.0, %v7421
      %v7423 = vpop.f32.mrf.mxu0
      %7424 = vmatprep.mubr.bf16.mxu0 0
      %7425 = vmatmul.mubr.bf16.gmra.mxu0 %v7214
      %v7426 = vpop.f32.mrf.mxu0
      %v7427 = vadd.f32 0.0, %v7426
      %v7428 = vpop.f32.mrf.mxu0
      %v7429 = vpop.f32.mrf.mxu0
      %v7430 = vadd.f32 0.0, %v7429
      %v7431 = vpop.f32.mrf.mxu0
      %7432 = vmatprep.mubr.bf16.mxu0 0
      %7433 = vmatmul.mubr.bf16.gmra.mxu0 %v7215
      %v7434 = vpop.f32.mrf.mxu0
      %v7435 = vadd.f32 0.0, %v7434
      %v7436 = vpop.f32.mrf.mxu0
      %v7437 = vpop.f32.mrf.mxu0
      %v7438 = vadd.f32 0.0, %v7437
      %v7439 = vpop.f32.mrf.mxu0
      %7440 = vdwg.mxu0
      %v7441 = vadd.f32 %v7055, %v7315
      %v7442 = vadd.f32 %v7056, %v7318
      %v7443 = vadd.f32 %v7057, %v7323
      %v7444 = vadd.f32 %v7058, %v7326
      %v7445 = vadd.f32 %v7059, %v7331
      %v7446 = vadd.f32 %v7060, %v7334
      %v7447 = vadd.f32 %v7061, %v7339
      %v7448 = vadd.f32 %v7062, %v7342
      %v7449 = vadd.f32 %v7063, %v7347
      %v7450 = vadd.f32 %v7064, %v7350
      %v7451 = vadd.f32 %v7065, %v7355
      %v7452 = vadd.f32 %v7066, %v7358
      %v7453 = vadd.f32 %v7067, %v7363
      %v7454 = vadd.f32 %v7068, %v7366
      %v7455 = vadd.f32 %v7069, %v7371
      %v7456 = vadd.f32 %v7070, %v7374
      %v7457 = vadd.f32 %v7071, %v7379
      %v7458 = vadd.f32 %v7072, %v7382
      %v7459 = vadd.f32 %v7073, %v7387
      %v7460 = vadd.f32 %v7074, %v7390
      %v7461 = vadd.f32 %v7075, %v7395
      %v7462 = vadd.f32 %v7076, %v7398
      %v7463 = vadd.f32 %v7077, %v7403
      %v7464 = vadd.f32 %v7078, %v7406
      %v7465 = vadd.f32 %v7079, %v7411
      %v7466 = vadd.f32 %v7080, %v7414
      %v7467 = vadd.f32 %v7081, %v7419
      %v7468 = vadd.f32 %v7082, %v7422
      %v7469 = vadd.f32 %v7083, %v7427
      %v7470 = vadd.f32 %v7084, %v7430
      %v7471 = vadd.f32 %v7085, %v7435
      %v7472 = vadd.f32 %v7086, %v7438
      %v7473 = vld [vmem:[%s8] sm:$0x1]
      %v7475 = vlaneseq
      %v7476 = vshrl.u32 %v7475, 7
      %v7477 = vsub.s32 0, %v7476
      %v7478 = vrot.slane %v7473, %v7477
      %v7480 = vadd.f32 %v7441, %v7478
      %v7481 = vadd.f32 %v7442, %v7478
      %v7482 = vadd.f32 %v7443, %v7478
      %v7483 = vadd.f32 %v7444, %v7478
      %v7484 = vadd.f32 %v7445, %v7478
      %v7485 = vadd.f32 %v7446, %v7478
      %v7486 = vadd.f32 %v7447, %v7478
      %v7487 = vadd.f32 %v7448, %v7478
      %v7488 = vadd.f32 %v7449, %v7478
      %v7489 = vadd.f32 %v7450, %v7478
      %v7490 = vadd.f32 %v7451, %v7478
      %v7491 = vadd.f32 %v7452, %v7478
      %v7492 = vadd.f32 %v7453, %v7478
      %v7493 = vadd.f32 %v7454, %v7478
      %v7494 = vadd.f32 %v7455, %v7478
      %v7495 = vadd.f32 %v7456, %v7478
      %v7496 = vadd.f32 %v7457, %v7478
      %v7497 = vadd.f32 %v7458, %v7478
      %v7498 = vadd.f32 %v7459, %v7478
      %v7499 = vadd.f32 %v7460, %v7478
      %v7500 = vadd.f32 %v7461, %v7478
      %v7501 = vadd.f32 %v7462, %v7478
      %v7502 = vadd.f32 %v7463, %v7478
      %v7503 = vadd.f32 %v7464, %v7478
      %v7504 = vadd.f32 %v7465, %v7478
      %v7505 = vadd.f32 %v7466, %v7478
      %v7506 = vadd.f32 %v7467, %v7478
      %v7507 = vadd.f32 %v7468, %v7478
      %v7508 = vadd.f32 %v7469, %v7478
      %v7509 = vadd.f32 %v7470, %v7478
      %v7510 = vadd.f32 %v7471, %v7478
      %v7511 = vadd.f32 %v7472, %v7478
      %v7512 = vadd.f32 %v7480, %v7481
      %v7513 = vadd.f32 %v7512, %v7482
      %v7514 = vadd.f32 %v7513, %v7483
      %v7515 = vadd.f32 %v7514, %v7484
      %v7516 = vadd.f32 %v7515, %v7485
      %v7517 = vadd.f32 %v7516, %v7486
      %v7518 = vadd.f32 %v7517, %v7487
      %v7519 = vadd.f32 %v7518, %v7488
      %v7520 = vadd.f32 %v7519, %v7489
      %v7521 = vadd.f32 %v7520, %v7490
      %v7522 = vadd.f32 %v7521, %v7491
      %v7523 = vadd.f32 %v7522, %v7492
      %v7524 = vadd.f32 %v7523, %v7493
      %v7525 = vadd.f32 %v7524, %v7494
      %v7526 = vadd.f32 %v7525, %v7495
      %v7527 = vadd.f32 %v7526, %v7496
      %v7528 = vadd.f32 %v7527, %v7497
      %v7529 = vadd.f32 %v7528, %v7498
      %v7530 = vadd.f32 %v7529, %v7499
      %v7531 = vadd.f32 %v7530, %v7500
      %v7532 = vadd.f32 %v7531, %v7501
      %v7533 = vadd.f32 %v7532, %v7502
      %v7534 = vadd.f32 %v7533, %v7503
      %v7535 = vadd.f32 %v7534, %v7504
      %v7536 = vadd.f32 %v7535, %v7505
      %v7537 = vadd.f32 %v7536, %v7506
      %v7538 = vadd.f32 %v7537, %v7507
      %v7539 = vadd.f32 %v7538, %v7508
      %v7540 = vadd.f32 %v7539, %v7509
      %v7541 = vadd.f32 %v7540, %v7510
      %v7542 = vadd.f32 %v7541, %v7511
      %v7543 = vrot.slane %v7542, 4
      %v7544 = vadd.f32 %v7542, %v7543
      %v7545 = vrot.slane %v7544, 2
      %v7546 = vadd.f32 %v7544, %v7545
      %v7547 = vrot.slane %v7546, 1
      %v7548 = vadd.f32 %v7546, %v7547
      %v7549 = vmul.f32 %v7548, %v2916
      %v7550 = vsub.f32 %v7480, %v7549
      %v7551 = vsub.f32 %v7481, %v7549
      %v7552 = vsub.f32 %v7482, %v7549
      %v7553 = vsub.f32 %v7483, %v7549
      %v7554 = vsub.f32 %v7484, %v7549
      %v7555 = vsub.f32 %v7485, %v7549
      %v7556 = vsub.f32 %v7486, %v7549
      %v7557 = vsub.f32 %v7487, %v7549
      %v7558 = vsub.f32 %v7488, %v7549
      %v7559 = vsub.f32 %v7489, %v7549
      %v7560 = vsub.f32 %v7490, %v7549
      %v7561 = vsub.f32 %v7491, %v7549
      %v7562 = vsub.f32 %v7492, %v7549
      %v7563 = vsub.f32 %v7493, %v7549
      %v7564 = vsub.f32 %v7494, %v7549
      %v7565 = vsub.f32 %v7495, %v7549
      %v7566 = vsub.f32 %v7496, %v7549
      %v7567 = vsub.f32 %v7497, %v7549
      %v7568 = vsub.f32 %v7498, %v7549
      %v7569 = vsub.f32 %v7499, %v7549
      %v7570 = vsub.f32 %v7500, %v7549
      %v7571 = vsub.f32 %v7501, %v7549
      %v7572 = vsub.f32 %v7502, %v7549
      %v7573 = vsub.f32 %v7503, %v7549
      %v7574 = vsub.f32 %v7504, %v7549
      %v7575 = vsub.f32 %v7505, %v7549
      %v7576 = vsub.f32 %v7506, %v7549
      %v7577 = vsub.f32 %v7507, %v7549
      %v7578 = vsub.f32 %v7508, %v7549
      %v7579 = vsub.f32 %v7509, %v7549
      %v7580 = vsub.f32 %v7510, %v7549
      %v7581 = vsub.f32 %v7511, %v7549
      %v7582 = vmul.f32 %v7550, %v7550
      %v7583 = vmul.f32 %v7551, %v7551
      %v7584 = vmul.f32 %v7552, %v7552
      %v7585 = vmul.f32 %v7553, %v7553
      %v7586 = vmul.f32 %v7554, %v7554
      %v7587 = vmul.f32 %v7555, %v7555
      %v7588 = vmul.f32 %v7556, %v7556
      %v7589 = vmul.f32 %v7557, %v7557
      %v7590 = vmul.f32 %v7558, %v7558
      %v7591 = vmul.f32 %v7559, %v7559
      %v7592 = vmul.f32 %v7560, %v7560
      %v7593 = vmul.f32 %v7561, %v7561
      %v7594 = vmul.f32 %v7562, %v7562
      %v7595 = vmul.f32 %v7563, %v7563
      %v7596 = vmul.f32 %v7564, %v7564
      %v7597 = vmul.f32 %v7565, %v7565
      %v7598 = vmul.f32 %v7566, %v7566
      %v7599 = vmul.f32 %v7567, %v7567
      %v7600 = vmul.f32 %v7568, %v7568
      %v7601 = vmul.f32 %v7569, %v7569
      %v7602 = vmul.f32 %v7570, %v7570
      %v7603 = vmul.f32 %v7571, %v7571
      %v7604 = vmul.f32 %v7572, %v7572
      %v7605 = vmul.f32 %v7573, %v7573
      %v7606 = vmul.f32 %v7574, %v7574
      %v7607 = vmul.f32 %v7575, %v7575
      %v7608 = vmul.f32 %v7576, %v7576
      %v7609 = vmul.f32 %v7577, %v7577
      %v7610 = vmul.f32 %v7578, %v7578
      %v7611 = vmul.f32 %v7579, %v7579
      %v7612 = vmul.f32 %v7580, %v7580
      %v7613 = vmul.f32 %v7581, %v7581
      %v7614 = vadd.f32 %v7582, %v7583
      %v7615 = vadd.f32 %v7614, %v7584
      %v7616 = vadd.f32 %v7615, %v7585
      %v7617 = vadd.f32 %v7616, %v7586
      %v7618 = vadd.f32 %v7617, %v7587
      %v7619 = vadd.f32 %v7618, %v7588
      %v7620 = vadd.f32 %v7619, %v7589
      %v7621 = vadd.f32 %v7620, %v7590
      %v7622 = vadd.f32 %v7621, %v7591
      %v7623 = vadd.f32 %v7622, %v7592
      %v7624 = vadd.f32 %v7623, %v7593
      %v7625 = vadd.f32 %v7624, %v7594
      %v7626 = vadd.f32 %v7625, %v7595
      %v7627 = vadd.f32 %v7626, %v7596
      %v7628 = vadd.f32 %v7627, %v7597
      %v7629 = vadd.f32 %v7628, %v7598
      %v7630 = vadd.f32 %v7629, %v7599
      %v7631 = vadd.f32 %v7630, %v7600
      %v7632 = vadd.f32 %v7631, %v7601
      %v7633 = vadd.f32 %v7632, %v7602
      %v7634 = vadd.f32 %v7633, %v7603
      %v7635 = vadd.f32 %v7634, %v7604
      %v7636 = vadd.f32 %v7635, %v7605
      %v7637 = vadd.f32 %v7636, %v7606
      %v7638 = vadd.f32 %v7637, %v7607
      %v7639 = vadd.f32 %v7638, %v7608
      %v7640 = vadd.f32 %v7639, %v7609
      %v7641 = vadd.f32 %v7640, %v7610
      %v7642 = vadd.f32 %v7641, %v7611
      %v7643 = vadd.f32 %v7642, %v7612
      %v7644 = vadd.f32 %v7643, %v7613
      %v7645 = vrot.slane %v7644, 4
      %v7646 = vadd.f32 %v7644, %v7645
      %v7647 = vrot.slane %v7646, 2
      %v7648 = vadd.f32 %v7646, %v7647
      %v7649 = vrot.slane %v7648, 1
      %v7650 = vadd.f32 %v7648, %v7649
      %v7651 = vmul.f32 %v7650, %v2916
      %v7652 = vadd.f32 %v7651, 1e-05
      %v7653 = vrsqrt.pop %v7652
      %v7654 = vmul.f32 %v7550, %v7653
      %v7655 = vmul.f32 %v7551, %v7653
      %v7656 = vmul.f32 %v7552, %v7653
      %v7657 = vmul.f32 %v7553, %v7653
      %v7658 = vmul.f32 %v7554, %v7653
      %v7659 = vmul.f32 %v7555, %v7653
      %v7660 = vmul.f32 %v7556, %v7653
      %v7661 = vmul.f32 %v7557, %v7653
      %v7662 = vmul.f32 %v7558, %v7653
      %v7663 = vmul.f32 %v7559, %v7653
      %v7664 = vmul.f32 %v7560, %v7653
      %v7665 = vmul.f32 %v7561, %v7653
      %v7666 = vmul.f32 %v7562, %v7653
      %v7667 = vmul.f32 %v7563, %v7653
      %v7668 = vmul.f32 %v7564, %v7653
      %v7669 = vmul.f32 %v7565, %v7653
      %v7670 = vmul.f32 %v7566, %v7653
      %v7671 = vmul.f32 %v7567, %v7653
      %v7672 = vmul.f32 %v7568, %v7653
      %v7673 = vmul.f32 %v7569, %v7653
      %v7674 = vmul.f32 %v7570, %v7653
      %v7675 = vmul.f32 %v7571, %v7653
      %v7676 = vmul.f32 %v7572, %v7653
      %v7677 = vmul.f32 %v7573, %v7653
      %v7678 = vmul.f32 %v7574, %v7653
      %v7679 = vmul.f32 %v7575, %v7653
      %v7680 = vmul.f32 %v7576, %v7653
      %v7681 = vmul.f32 %v7577, %v7653
      %v7682 = vmul.f32 %v7578, %v7653
      %v7683 = vmul.f32 %v7579, %v7653
      %v7684 = vmul.f32 %v7580, %v7653
      %v7685 = vmul.f32 %v7581, %v7653
      %v7686 = vmax.f32 %v7654, 0.0
      %v7687 = vmax.f32 %v7655, 0.0
      %v7688 = vmax.f32 %v7656, 0.0
      %v7689 = vmax.f32 %v7657, 0.0
      %v7690 = vmax.f32 %v7658, 0.0
      %v7691 = vmax.f32 %v7659, 0.0
      %v7692 = vmax.f32 %v7660, 0.0
      %v7693 = vmax.f32 %v7661, 0.0
      %v7694 = vmax.f32 %v7662, 0.0
      %v7695 = vmax.f32 %v7663, 0.0
      %v7696 = vmax.f32 %v7664, 0.0
      %v7697 = vmax.f32 %v7665, 0.0
      %v7698 = vmax.f32 %v7666, 0.0
      %v7699 = vmax.f32 %v7667, 0.0
      %v7700 = vmax.f32 %v7668, 0.0
      %v7701 = vmax.f32 %v7669, 0.0
      %v7702 = vmax.f32 %v7670, 0.0
      %v7703 = vmax.f32 %v7671, 0.0
      %v7704 = vmax.f32 %v7672, 0.0
      %v7705 = vmax.f32 %v7673, 0.0
      %v7706 = vmax.f32 %v7674, 0.0
      %v7707 = vmax.f32 %v7675, 0.0
      %v7708 = vmax.f32 %v7676, 0.0
      %v7709 = vmax.f32 %v7677, 0.0
      %v7710 = vmax.f32 %v7678, 0.0
      %v7711 = vmax.f32 %v7679, 0.0
      %v7712 = vmax.f32 %v7680, 0.0
      %v7713 = vmax.f32 %v7681, 0.0
      %v7714 = vmax.f32 %v7682, 0.0
      %v7715 = vmax.f32 %v7683, 0.0
      %v7716 = vmax.f32 %v7684, 0.0
      %v7717 = vmax.f32 %v7685, 0.0
      %7718 = vxpose.xlu0.b32.start [1/16] %v7686, 128
      %7719 = vxpose.xlu0.b32.cont [2/16] %v7687, 128
      %7720 = vxpose.xlu0.b32.cont [3/16] %v7688, 128
      %7721 = vxpose.xlu0.b32.cont [4/16] %v7689, 128
      %7722 = vxpose.xlu0.b32.cont [5/16] %v7690, 128
      %7723 = vxpose.xlu0.b32.cont [6/16] %v7691, 128
      %7724 = vxpose.xlu0.b32.cont [7/16] %v7692, 128
      %7725 = vxpose.xlu0.b32.cont [8/16] %v7693, 128
      %7726 = vxpose.xlu0.b32.cont [9/16] %v7694, 128
      %7727 = vxpose.xlu0.b32.cont [10/16] %v7695, 128
      %7728 = vxpose.xlu0.b32.cont [11/16] %v7696, 128
      %7729 = vxpose.xlu0.b32.cont [12/16] %v7697, 128
      %7730 = vxpose.xlu0.b32.cont [13/16] %v7698, 128
      %7731 = vxpose.xlu0.b32.cont [14/16] %v7699, 128
      %7732 = vxpose.xlu0.b32.cont [15/16] %v7700, 128
      %7733 = vxpose.xlu0.b32.end [16/16] %v7701, 128
      %v7734 = vpop.trf.xlu0
      %v7735 = vpop.trf.xlu0
      %v7736 = vpop.trf.xlu0
      %v7737 = vpop.trf.xlu0
      %v7738 = vpop.trf.xlu0
      %v7739 = vpop.trf.xlu0
      %v7740 = vpop.trf.xlu0
      %v7741 = vpop.trf.xlu0
      %v7742 = vpop.trf.xlu0
      %v7743 = vpop.trf.xlu0
      %v7744 = vpop.trf.xlu0
      %v7745 = vpop.trf.xlu0
      %v7746 = vpop.trf.xlu0
      %v7747 = vpop.trf.xlu0
      %v7748 = vpop.trf.xlu0
      %v7749 = vpop.trf.xlu0
      %7750 = vxpose.xlu0.b32.start [1/16] %v7702, 128
      %7751 = vxpose.xlu0.b32.cont [2/16] %v7703, 128
      %7752 = vxpose.xlu0.b32.cont [3/16] %v7704, 128
      %7753 = vxpose.xlu0.b32.cont [4/16] %v7705, 128
      %7754 = vxpose.xlu0.b32.cont [5/16] %v7706, 128
      %7755 = vxpose.xlu0.b32.cont [6/16] %v7707, 128
      %7756 = vxpose.xlu0.b32.cont [7/16] %v7708, 128
      %7757 = vxpose.xlu0.b32.cont [8/16] %v7709, 128
      %7758 = vxpose.xlu0.b32.cont [9/16] %v7710, 128
      %7759 = vxpose.xlu0.b32.cont [10/16] %v7711, 128
      %7760 = vxpose.xlu0.b32.cont [11/16] %v7712, 128
      %7761 = vxpose.xlu0.b32.cont [12/16] %v7713, 128
      %7762 = vxpose.xlu0.b32.cont [13/16] %v7714, 128
      %7763 = vxpose.xlu0.b32.cont [14/16] %v7715, 128
      %7764 = vxpose.xlu0.b32.cont [15/16] %v7716, 128
      %7765 = vxpose.xlu0.b32.end [16/16] %v7717, 128
      %v7766 = vpop.trf.xlu0
      %v7767 = vpop.trf.xlu0
      %v7768 = vpop.trf.xlu0
      %v7769 = vpop.trf.xlu0
      %v7770 = vpop.trf.xlu0
      %v7771 = vpop.trf.xlu0
      %v7772 = vpop.trf.xlu0
      %v7773 = vpop.trf.xlu0
      %v7774 = vpop.trf.xlu0
      %v7775 = vpop.trf.xlu0
      %v7776 = vpop.trf.xlu0
      %v7777 = vpop.trf.xlu0
      %v7778 = vpop.trf.xlu0
      %v7779 = vpop.trf.xlu0
      %v7780 = vpop.trf.xlu0
      %v7781 = vpop.trf.xlu0
      %7782 = vst [vmem:[%s332] sm:$0xff] %v7734
      %7783 = vst [vmem:[%s332 + $0x8] sm:$0xff] %v7766
      %7784 = vst [vmem:[%s332 + $0x10] sm:$0xff] %v7735
      %7785 = vst [vmem:[%s332 + $0x18] sm:$0xff] %v7767
      %7786 = vst [vmem:[%s332 + $0x20] sm:$0xff] %v7736
      %7787 = vst [vmem:[%s332 + $0x28] sm:$0xff] %v7768
      %7788 = vst [vmem:[%s332 + $0x30] sm:$0xff] %v7737
      %7789 = vst [vmem:[%s332 + $0x38] sm:$0xff] %v7769
      %7790 = vst [vmem:[%s332 + $0x40] sm:$0xff] %v7738
      %7791 = vst [vmem:[%s332 + $0x48] sm:$0xff] %v7770
      %7792 = vst [vmem:[%s332 + $0x50] sm:$0xff] %v7739
      %7793 = vst [vmem:[%s332 + $0x58] sm:$0xff] %v7771
      %7794 = vst [vmem:[%s332 + $0x60] sm:$0xff] %v7740
      %7795 = vst [vmem:[%s332 + $0x68] sm:$0xff] %v7772
      %7796 = vst [vmem:[%s332 + $0x70] sm:$0xff] %v7741
      %7797 = vst [vmem:[%s332 + $0x78] sm:$0xff] %v7773
      %7798 = vst [vmem:[%s332 + $0x80] sm:$0xff] %v7742
      %7799 = vst [vmem:[%s332 + $0x88] sm:$0xff] %v7774
      %7800 = vst [vmem:[%s332 + $0x90] sm:$0xff] %v7743
      %7801 = vst [vmem:[%s332 + $0x98] sm:$0xff] %v7775
      %7802 = vst [vmem:[%s332 + $0xa0] sm:$0xff] %v7744
      %7803 = vst [vmem:[%s332 + $0xa8] sm:$0xff] %v7776
      %7804 = vst [vmem:[%s332 + $0xb0] sm:$0xff] %v7745
      %7805 = vst [vmem:[%s332 + $0xb8] sm:$0xff] %v7777
      %7806 = vst [vmem:[%s332 + $0xc0] sm:$0xff] %v7746
      %7807 = vst [vmem:[%s332 + $0xc8] sm:$0xff] %v7778
      %7808 = vst [vmem:[%s332 + $0xd0] sm:$0xff] %v7747
      %7809 = vst [vmem:[%s332 + $0xd8] sm:$0xff] %v7779
      %7810 = vst [vmem:[%s332 + $0xe0] sm:$0xff] %v7748
      %7811 = vst [vmem:[%s332 + $0xe8] sm:$0xff] %v7780
      %7812 = vst [vmem:[%s332 + $0xf0] sm:$0xff] %v7749
      %7813 = vst [vmem:[%s332 + $0xf8] sm:$0xff] %v7781
      %p7814 = scmp.lt.s32.totalorder %s20, 1
      %s7815 = scalar_select %p7814, %s20, 1
      %s7816 = smul.addr %s7815, 32
      %s7817 = smul.addr %s7816, 8
      %s7818 = scalar_lea.vmem %s9, %s7817
      // Predicated region
      $region57: #{downsample_block.1} parent=55 // pred_check
        %p7819 = pneg %p232
      $region58: #{downsample_block.1} parent=55 // pred_check_branch
        %7821 = sbr.rel (%p7819) target = $region60
      $region59: #{downsample_block.1} parent=55 // pred_region
        _
      $region60: #{downsample_block.1} parent=55 // pred_fallthru
        _
    $region56: #{downsample_block.1} parent=5 // pred_fallthru
      _
    %p7822 = scmp.le.s32.totalorder 2, %s15
    // Predicated region
    $region61: #{downsample_block.1} parent=5 // pred_check
      %p7823 = pneg %p7822
    $region62: #{downsample_block.1} parent=5 // pred_check_branch
      %7825 = sbr.rel (%p7823) target = $region64
    $region63: #{downsample_block.1} parent=5 // pred_region
      %s7826 = ssub.s32 %s15, 2
      // Predicated region
      $region65: #{downsample_block.1} parent=63 // pred_check
        %p7827 = pneg %p238
      $region66: #{downsample_block.1} parent=63 // pred_check_branch
        %7829 = sbr.rel (%p7827) target = $region68
      $region67: #{downsample_block.1} parent=63 // pred_region
        %p7830 = scmp.lt.s32.totalorder %s21, 1
        %s7831 = scalar_select %p7830, %s21, 1
        %s7832 = smul.addr %s7831, 32
        %s7833 = smul.addr %s7832, 8
        %s7834 = scalar_lea.vmem %s9, %s7833
      $region68: #{downsample_block.1} parent=63 // pred_fallthru
        _
    $region64: #{downsample_block.1} parent=5 // pred_fallthru
      _
  $region6: #{downsample_block.1} parent=0 // loop_footer
    %s19 = sadd.s32 1, %s15
  $region7: #{downsample_block.1} parent=0 // loop_footer_branch
    %14 = sbr.rel target = $region3
  $region8: #{downsample_block.1} parent=0 // loop_exit
    _

</llo_original>
